<compile_context>
chip_gen: v5e
topology: v5e:2x2
jax: 0.10.0
libtpu: 0.0.40
codegen_flags: <defaults>
</compile_context>

<pallas_src>
import jax
import jax.numpy as jnp
from jax.experimental import pallas as pl
from jax.experimental.pallas import tpu as pltpu


def lstm_fc_kernel(x_ref, wih_ref, whh_ref, b_ref, wfc_ref, bfc_ref, out_ref):
    """Whole problem lives in VMEM (small shapes).

    x_ref   : (T, B_pad, D)   bf16, time-major, batch zero-padded
    wih_ref : (D, 4H)         bf16  (pre-transposed W_ih)
    whh_ref : (H, 4H)         bf16  (pre-transposed W_hh)
    b_ref   : (1, 4H)         f32   (b_ih + b_hh)
    wfc_ref : (H, C_pad)      bf16  (pre-transposed, lane-padded W_fc)
    bfc_ref : (1, C_pad)      f32   (lane-padded b_fc)
    out_ref : (B_pad, C_pad)  f32   (lane-dense output)
    """
    T, Bp, D = x_ref.shape
    H = whh_ref.shape[0]

    # ---- Hoisted input projection: one batched MXU matmul, bias folded once ----
    x_all = x_ref[...].reshape(T * Bp, D)                              # bf16 (T*Bp, D)
    gates_x = (jnp.dot(x_all, wih_ref[...],
                       preferred_element_type=jnp.float32)
               + b_ref[...]).reshape(T, Bp, 4 * H)                     # f32  (T, Bp, 4H)

    whh = whh_ref[...]                                                 # bf16 (H, 4H)

    h = jnp.zeros((Bp, H), jnp.float32)
    c = jnp.zeros((Bp, H), jnp.float32)

    # ---- Recurrence: fully unrolled (T static & small); one matmul per step ----
    for t in range(T):
        gates = gates_x[t] + jnp.dot(h.astype(jnp.bfloat16), whh,
                                     preferred_element_type=jnp.float32)   # (Bp, 4H)
        i = jax.nn.sigmoid(gates[:, 0 * H:1 * H])
        f = jax.nn.sigmoid(gates[:, 1 * H:2 * H])
        g = jnp.tanh(gates[:, 2 * H:3 * H])
        o = jax.nn.sigmoid(gates[:, 3 * H:4 * H])
        c = f * c + i * g
        h = o * jnp.tanh(c)

    # ---- FC on the last hidden state; lane-dense (C padded to 128) store ----
    out_ref[...] = (jnp.dot(h.astype(jnp.bfloat16), wfc_ref[...],
                            preferred_element_type=jnp.float32)
                    + bfc_ref[...]).astype(out_ref.dtype)


def lstm_network_pallas(x, w_ih, w_hh, b_ih, b_hh, w_fc, b_fc):
    """x: (B, T, D) f32. PyTorch-shaped params:
       w_ih (4H, D), w_hh (4H, H), b_ih (4H,), b_hh (4H,), w_fc (C, H), b_fc (C,)."""
    B, T, D = x.shape
    H = w_hh.shape[1]
    C = w_fc.shape[0]

    # Pad batch to the bf16 sublane tile (16) and classes to a full lane (128).
    B_pad = max(16, ((B + 15) // 16) * 16)
    C_pad = max(128, ((C + 127) // 128) * 128)

    # Time-major, batch-padded input in bf16 (halves DMA bytes, feeds MXU directly).
    x_tm = jnp.zeros((T, B_pad, D), jnp.bfloat16)
    x_tm = x_tm.at[:, :B, :].set(jnp.transpose(x, (1, 0, 2)).astype(jnp.bfloat16))

    wih_t = jnp.asarray(w_ih, jnp.bfloat16).T                          # (D, 4H)
    whh_t = jnp.asarray(w_hh, jnp.bfloat16).T                          # (H, 4H)
    b = (jnp.asarray(b_ih, jnp.float32)
         + jnp.asarray(b_hh, jnp.float32))[None, :]                    # (1, 4H)

    wfc_pad = jnp.zeros((H, C_pad), jnp.bfloat16)
    wfc_pad = wfc_pad.at[:, :C].set(jnp.asarray(w_fc, jnp.bfloat16).T)  # (H, C_pad)
    bfc_pad = jnp.zeros((1, C_pad), jnp.float32)
    bfc_pad = bfc_pad.at[:, :C].set(jnp.asarray(b_fc, jnp.float32)[None, :])

    vmem = pl.BlockSpec(memory_space=pltpu.MemorySpace.VMEM)
    out_pad = pl.pallas_call(
        lstm_fc_kernel,
        out_shape=jax.ShapeDtypeStruct((B_pad, C_pad), jnp.float32),
        in_specs=[vmem] * 6,
        out_specs=vmem,
    )(x_tm, wih_t, whh_t, b, wfc_pad, bfc_pad)

    return out_pad[:B, :C]


def lstm_network_ref(x, w_ih, w_hh, b_ih, b_hh, w_fc, b_fc):
    """Pure-JAX f32 reference matching PyTorch nn.LSTM(batch_first=True) + nn.Linear."""
    B, T, D = x.shape
    H = w_hh.shape[1]
    h = jnp.zeros((B, H), jnp.float32)
    c = jnp.zeros((B, H), jnp.float32)
    for t in range(T):
        gates = x[:, t, :] @ w_ih.T + h @ w_hh.T + b_ih + b_hh
        i = jax.nn.sigmoid(gates[:, :H])
        f = jax.nn.sigmoid(gates[:, H:2 * H])
        g = jnp.tanh(gates[:, 2 * H:3 * H])
        o = jax.nn.sigmoid(gates[:, 3 * H:])
        c = f * c + i * g
        h = o * jnp.tanh(c)
    return h @ w_fc.T + b_fc


if __name__ == "__main__":
    # Module defaults: input_size=512, hidden_size=256, num_classes=4; small B/T.
    B, T, D, H, C = 2, 8, 512, 256, 4

    key = jax.random.PRNGKey(0)
    kx, k1, k2, k3, k4, k5, k6 = jax.random.split(key, 7)
    bound = 1.0 / jnp.sqrt(H)   # PyTorch-style uniform init scale

    x = jax.random.normal(kx, (B, T, D), jnp.float32)
    w_ih = jax.random.uniform(k1, (4 * H, D), jnp.float32, -bound, bound)
    w_hh = jax.random.uniform(k2, (4 * H, H), jnp.float32, -bound, bound)
    b_ih = jax.random.uniform(k3, (4 * H,), jnp.float32, -bound, bound)
    b_hh = jax.random.uniform(k4, (4 * H,), jnp.float32, -bound, bound)
    w_fc = jax.random.uniform(k5, (C, H), jnp.float32, -bound, bound)
    b_fc = jax.random.uniform(k6, (C,), jnp.float32, -bound, bound)

    out = lstm_network_pallas(x, w_ih, w_hh, b_ih, b_hh, w_fc, b_fc)
    out = jax.block_until_ready(out)

    ref = lstm_network_ref(x, w_ih, w_hh, b_ih, b_hh, w_fc, b_fc)
    assert out.shape == (B, C)
    assert jnp.allclose(out, ref, atol=1e-2, rtol=1e-2), "mismatch vs reference"

    print("KERNEL_OK")
</pallas_src>

<mosaic_0001>
module attributes {stable_mosaic.version = 11 : i64} {
  func.func @lstm_fc_kernel(%arg0: memref<8x16x512xbf16, #tpu.memory_space<vmem>>, %arg1: memref<512x1024xbf16, #tpu.memory_space<vmem>>, %arg2: memref<256x1024xbf16, #tpu.memory_space<vmem>>, %arg3: memref<1x1024xf32, #tpu.memory_space<vmem>>, %arg4: memref<256x128xbf16, #tpu.memory_space<vmem>>, %arg5: memref<1x128xf32, #tpu.memory_space<vmem>>, %arg6: memref<16x128xf32, #tpu.memory_space<vmem>>) attributes {dimension_semantics = [], scalar_prefetch = 0 : i64, scratch_operands = 0 : i64, tpu.core_type = #tpu.core_type<tc>} {
    %c0 = arith.constant 0 : index
    %c0_0 = arith.constant 0 : index
    %c0_1 = arith.constant 0 : index
    %0 = vector.load %arg0[%c0, %c0_0, %c0_1] : memref<8x16x512xbf16, #tpu.memory_space<vmem>>, vector<8x16x512xbf16>
    %1 = vector.shape_cast %0 : vector<8x16x512xbf16> to vector<128x512xbf16>
    %c0_2 = arith.constant 0 : index
    %c0_3 = arith.constant 0 : index
    %2 = vector.load %arg1[%c0_2, %c0_3] : memref<512x1024xbf16, #tpu.memory_space<vmem>>, vector<512x1024xbf16>
    %cst = arith.constant dense<0.000000e+00> : vector<128x1024xf32>
    %3 = tpu.matmul %1, %2, %cst {dimension_numbers = #tpu.dot_dimension_numbers<[1], [0], [0], [1], [0, 0, 1, 1], [], []>} : vector<128x512xbf16>, vector<512x1024xbf16>, vector<128x1024xf32> -> vector<128x1024xf32>
    %c0_4 = arith.constant 0 : index
    %c0_5 = arith.constant 0 : index
    %4 = vector.load %arg3[%c0_4, %c0_5] : memref<1x1024xf32, #tpu.memory_space<vmem>>, vector<1x1024xf32>
    %5 = vector.broadcast %4 : vector<1x1024xf32> to vector<128x1024xf32>
    %6 = arith.addf %3, %5 : vector<128x1024xf32>
    %7 = vector.shape_cast %6 : vector<128x1024xf32> to vector<8x16x1024xf32>
    %c0_6 = arith.constant 0 : index
    %c0_7 = arith.constant 0 : index
    %8 = vector.load %arg2[%c0_6, %c0_7] : memref<256x1024xbf16, #tpu.memory_space<vmem>>, vector<256x1024xbf16>
    %cst_8 = arith.constant 0.000000e+00 : f32
    %9 = vector.broadcast %cst_8 : f32 to vector<16x256xf32>
    %cst_9 = arith.constant 0.000000e+00 : f32
    %10 = vector.broadcast %cst_9 : f32 to vector<16x256xf32>
    %11 = vector.extract_strided_slice %7 {offsets = [0, 0, 0], sizes = [1, 16, 1024], strides = [1, 1, 1]} : vector<8x16x1024xf32> to vector<1x16x1024xf32>
    %12 = vector.shape_cast %11 : vector<1x16x1024xf32> to vector<16x1024xf32>
    %13 = arith.truncf %9 : vector<16x256xf32> to vector<16x256xbf16>
    %cst_10 = arith.constant dense<0.000000e+00> : vector<16x1024xf32>
    %14 = tpu.matmul %13, %8, %cst_10 {dimension_numbers = #tpu.dot_dimension_numbers<[1], [0], [0], [1], [0, 0, 1, 1], [], []>} : vector<16x256xbf16>, vector<256x1024xbf16>, vector<16x1024xf32> -> vector<16x1024xf32>
    %15 = arith.addf %12, %14 : vector<16x1024xf32>
    %16 = vector.extract_strided_slice %15 {offsets = [0, 0], sizes = [16, 256], strides = [1, 1]} : vector<16x1024xf32> to vector<16x256xf32>
    %17 = arith.negf %16 : vector<16x256xf32>
    %18 = math.exp %17 : vector<16x256xf32>
    %cst_11 = arith.constant 1.000000e+00 : f32
    %19 = vector.broadcast %cst_11 : f32 to vector<16x256xf32>
    %20 = arith.addf %19, %18 : vector<16x256xf32>
    %21 = arith.divf %19, %20 : vector<16x256xf32>
    %22 = vector.extract_strided_slice %15 {offsets = [0, 256], sizes = [16, 256], strides = [1, 1]} : vector<16x1024xf32> to vector<16x256xf32>
    %23 = arith.negf %22 : vector<16x256xf32>
    %24 = math.exp %23 : vector<16x256xf32>
    %cst_12 = arith.constant 1.000000e+00 : f32
    %25 = vector.broadcast %cst_12 : f32 to vector<16x256xf32>
    %26 = arith.addf %25, %24 : vector<16x256xf32>
    %27 = arith.divf %25, %26 : vector<16x256xf32>
    %28 = vector.extract_strided_slice %15 {offsets = [0, 512], sizes = [16, 256], strides = [1, 1]} : vector<16x1024xf32> to vector<16x256xf32>
    %29 = math.tanh %28 : vector<16x256xf32>
    %30 = vector.extract_strided_slice %15 {offsets = [0, 768], sizes = [16, 256], strides = [1, 1]} : vector<16x1024xf32> to vector<16x256xf32>
    %31 = arith.negf %30 : vector<16x256xf32>
    %32 = math.exp %31 : vector<16x256xf32>
    %cst_13 = arith.constant 1.000000e+00 : f32
    %33 = vector.broadcast %cst_13 : f32 to vector<16x256xf32>
    %34 = arith.addf %33, %32 : vector<16x256xf32>
    %35 = arith.divf %33, %34 : vector<16x256xf32>
    %36 = arith.mulf %27, %10 : vector<16x256xf32>
    %37 = arith.mulf %21, %29 : vector<16x256xf32>
    %38 = arith.addf %36, %37 : vector<16x256xf32>
    %39 = math.tanh %38 : vector<16x256xf32>
    %40 = arith.mulf %35, %39 : vector<16x256xf32>
    %41 = vector.extract_strided_slice %7 {offsets = [1, 0, 0], sizes = [1, 16, 1024], strides = [1, 1, 1]} : vector<8x16x1024xf32> to vector<1x16x1024xf32>
    %42 = vector.shape_cast %41 : vector<1x16x1024xf32> to vector<16x1024xf32>
    %43 = arith.truncf %40 : vector<16x256xf32> to vector<16x256xbf16>
    %cst_14 = arith.constant dense<0.000000e+00> : vector<16x1024xf32>
    %44 = tpu.matmul %43, %8, %cst_14 {dimension_numbers = #tpu.dot_dimension_numbers<[1], [0], [0], [1], [0, 0, 1, 1], [], []>} : vector<16x256xbf16>, vector<256x1024xbf16>, vector<16x1024xf32> -> vector<16x1024xf32>
    %45 = arith.addf %42, %44 : vector<16x1024xf32>
    %46 = vector.extract_strided_slice %45 {offsets = [0, 0], sizes = [16, 256], strides = [1, 1]} : vector<16x1024xf32> to vector<16x256xf32>
    %47 = arith.negf %46 : vector<16x256xf32>
    %48 = math.exp %47 : vector<16x256xf32>
    %cst_15 = arith.constant 1.000000e+00 : f32
    %49 = vector.broadcast %cst_15 : f32 to vector<16x256xf32>
    %50 = arith.addf %49, %48 : vector<16x256xf32>
    %51 = arith.divf %49, %50 : vector<16x256xf32>
    %52 = vector.extract_strided_slice %45 {offsets = [0, 256], sizes = [16, 256], strides = [1, 1]} : vector<16x1024xf32> to vector<16x256xf32>
    %53 = arith.negf %52 : vector<16x256xf32>
    %54 = math.exp %53 : vector<16x256xf32>
    %cst_16 = arith.constant 1.000000e+00 : f32
    %55 = vector.broadcast %cst_16 : f32 to vector<16x256xf32>
    %56 = arith.addf %55, %54 : vector<16x256xf32>
    %57 = arith.divf %55, %56 : vector<16x256xf32>
    %58 = vector.extract_strided_slice %45 {offsets = [0, 512], sizes = [16, 256], strides = [1, 1]} : vector<16x1024xf32> to vector<16x256xf32>
    %59 = math.tanh %58 : vector<16x256xf32>
    %60 = vector.extract_strided_slice %45 {offsets = [0, 768], sizes = [16, 256], strides = [1, 1]} : vector<16x1024xf32> to vector<16x256xf32>
    %61 = arith.negf %60 : vector<16x256xf32>
    %62 = math.exp %61 : vector<16x256xf32>
    %cst_17 = arith.constant 1.000000e+00 : f32
    %63 = vector.broadcast %cst_17 : f32 to vector<16x256xf32>
    %64 = arith.addf %63, %62 : vector<16x256xf32>
    %65 = arith.divf %63, %64 : vector<16x256xf32>
    %66 = arith.mulf %57, %38 : vector<16x256xf32>
    %67 = arith.mulf %51, %59 : vector<16x256xf32>
    %68 = arith.addf %66, %67 : vector<16x256xf32>
    %69 = math.tanh %68 : vector<16x256xf32>
    %70 = arith.mulf %65, %69 : vector<16x256xf32>
    %71 = vector.extract_strided_slice %7 {offsets = [2, 0, 0], sizes = [1, 16, 1024], strides = [1, 1, 1]} : vector<8x16x1024xf32> to vector<1x16x1024xf32>
    %72 = vector.shape_cast %71 : vector<1x16x1024xf32> to vector<16x1024xf32>
    %73 = arith.truncf %70 : vector<16x256xf32> to vector<16x256xbf16>
    %cst_18 = arith.constant dense<0.000000e+00> : vector<16x1024xf32>
    %74 = tpu.matmul %73, %8, %cst_18 {dimension_numbers = #tpu.dot_dimension_numbers<[1], [0], [0], [1], [0, 0, 1, 1], [], []>} : vector<16x256xbf16>, vector<256x1024xbf16>, vector<16x1024xf32> -> vector<16x1024xf32>
    %75 = arith.addf %72, %74 : vector<16x1024xf32>
    %76 = vector.extract_strided_slice %75 {offsets = [0, 0], sizes = [16, 256], strides = [1, 1]} : vector<16x1024xf32> to vector<16x256xf32>
    %77 = arith.negf %76 : vector<16x256xf32>
    %78 = math.exp %77 : vector<16x256xf32>
    %cst_19 = arith.constant 1.000000e+00 : f32
    %79 = vector.broadcast %cst_19 : f32 to vector<16x256xf32>
    %80 = arith.addf %79, %78 : vector<16x256xf32>
    %81 = arith.divf %79, %80 : vector<16x256xf32>
    %82 = vector.extract_strided_slice %75 {offsets = [0, 256], sizes = [16, 256], strides = [1, 1]} : vector<16x1024xf32> to vector<16x256xf32>
    %83 = arith.negf %82 : vector<16x256xf32>
    %84 = math.exp %83 : vector<16x256xf32>
    %cst_20 = arith.constant 1.000000e+00 : f32
    %85 = vector.broadcast %cst_20 : f32 to vector<16x256xf32>
    %86 = arith.addf %85, %84 : vector<16x256xf32>
    %87 = arith.divf %85, %86 : vector<16x256xf32>
    %88 = vector.extract_strided_slice %75 {offsets = [0, 512], sizes = [16, 256], strides = [1, 1]} : vector<16x1024xf32> to vector<16x256xf32>
    %89 = math.tanh %88 : vector<16x256xf32>
    %90 = vector.extract_strided_slice %75 {offsets = [0, 768], sizes = [16, 256], strides = [1, 1]} : vector<16x1024xf32> to vector<16x256xf32>
    %91 = arith.negf %90 : vector<16x256xf32>
    %92 = math.exp %91 : vector<16x256xf32>
    %cst_21 = arith.constant 1.000000e+00 : f32
    %93 = vector.broadcast %cst_21 : f32 to vector<16x256xf32>
    %94 = arith.addf %93, %92 : vector<16x256xf32>
    %95 = arith.divf %93, %94 : vector<16x256xf32>
    %96 = arith.mulf %87, %68 : vector<16x256xf32>
    %97 = arith.mulf %81, %89 : vector<16x256xf32>
    %98 = arith.addf %96, %97 : vector<16x256xf32>
    %99 = math.tanh %98 : vector<16x256xf32>
    %100 = arith.mulf %95, %99 : vector<16x256xf32>
    %101 = vector.extract_strided_slice %7 {offsets = [3, 0, 0], sizes = [1, 16, 1024], strides = [1, 1, 1]} : vector<8x16x1024xf32> to vector<1x16x1024xf32>
    %102 = vector.shape_cast %101 : vector<1x16x1024xf32> to vector<16x1024xf32>
    %103 = arith.truncf %100 : vector<16x256xf32> to vector<16x256xbf16>
    %cst_22 = arith.constant dense<0.000000e+00> : vector<16x1024xf32>
    %104 = tpu.matmul %103, %8, %cst_22 {dimension_numbers = #tpu.dot_dimension_numbers<[1], [0], [0], [1], [0, 0, 1, 1], [], []>} : vector<16x256xbf16>, vector<256x1024xbf16>, vector<16x1024xf32> -> vector<16x1024xf32>
    %105 = arith.addf %102, %104 : vector<16x1024xf32>
    %106 = vector.extract_strided_slice %105 {offsets = [0, 0], sizes = [16, 256], strides = [1, 1]} : vector<16x1024xf32> to vector<16x256xf32>
    %107 = arith.negf %106 : vector<16x256xf32>
    %108 = math.exp %107 : vector<16x256xf32>
    %cst_23 = arith.constant 1.000000e+00 : f32
    %109 = vector.broadcast %cst_23 : f32 to vector<16x256xf32>
    %110 = arith.addf %109, %108 : vector<16x256xf32>
    %111 = arith.divf %109, %110 : vector<16x256xf32>
    %112 = vector.extract_strided_slice %105 {offsets = [0, 256], sizes = [16, 256], strides = [1, 1]} : vector<16x1024xf32> to vector<16x256xf32>
    %113 = arith.negf %112 : vector<16x256xf32>
    %114 = math.exp %113 : vector<16x256xf32>
    %cst_24 = arith.constant 1.000000e+00 : f32
    %115 = vector.broadcast %cst_24 : f32 to vector<16x256xf32>
    %116 = arith.addf %115, %114 : vector<16x256xf32>
    %117 = arith.divf %115, %116 : vector<16x256xf32>
    %118 = vector.extract_strided_slice %105 {offsets = [0, 512], sizes = [16, 256], strides = [1, 1]} : vector<16x1024xf32> to vector<16x256xf32>
    %119 = math.tanh %118 : vector<16x256xf32>
    %120 = vector.extract_strided_slice %105 {offsets = [0, 768], sizes = [16, 256], strides = [1, 1]} : vector<16x1024xf32> to vector<16x256xf32>
    %121 = arith.negf %120 : vector<16x256xf32>
    %122 = math.exp %121 : vector<16x256xf32>
    %cst_25 = arith.constant 1.000000e+00 : f32
    %123 = vector.broadcast %cst_25 : f32 to vector<16x256xf32>
    %124 = arith.addf %123, %122 : vector<16x256xf32>
    %125 = arith.divf %123, %124 : vector<16x256xf32>
    %126 = arith.mulf %117, %98 : vector<16x256xf32>
    %127 = arith.mulf %111, %119 : vector<16x256xf32>
    %128 = arith.addf %126, %127 : vector<16x256xf32>
    %129 = math.tanh %128 : vector<16x256xf32>
    %130 = arith.mulf %125, %129 : vector<16x256xf32>
    %131 = vector.extract_strided_slice %7 {offsets = [4, 0, 0], sizes = [1, 16, 1024], strides = [1, 1, 1]} : vector<8x16x1024xf32> to vector<1x16x1024xf32>
    %132 = vector.shape_cast %131 : vector<1x16x1024xf32> to vector<16x1024xf32>
    %133 = arith.truncf %130 : vector<16x256xf32> to vector<16x256xbf16>
    %cst_26 = arith.constant dense<0.000000e+00> : vector<16x1024xf32>
    %134 = tpu.matmul %133, %8, %cst_26 {dimension_numbers = #tpu.dot_dimension_numbers<[1], [0], [0], [1], [0, 0, 1, 1], [], []>} : vector<16x256xbf16>, vector<256x1024xbf16>, vector<16x1024xf32> -> vector<16x1024xf32>
    %135 = arith.addf %132, %134 : vector<16x1024xf32>
    %136 = vector.extract_strided_slice %135 {offsets = [0, 0], sizes = [16, 256], strides = [1, 1]} : vector<16x1024xf32> to vector<16x256xf32>
    %137 = arith.negf %136 : vector<16x256xf32>
    %138 = math.exp %137 : vector<16x256xf32>
    %cst_27 = arith.constant 1.000000e+00 : f32
    %139 = vector.broadcast %cst_27 : f32 to vector<16x256xf32>
    %140 = arith.addf %139, %138 : vector<16x256xf32>
    %141 = arith.divf %139, %140 : vector<16x256xf32>
    %142 = vector.extract_strided_slice %135 {offsets = [0, 256], sizes = [16, 256], strides = [1, 1]} : vector<16x1024xf32> to vector<16x256xf32>
    %143 = arith.negf %142 : vector<16x256xf32>
    %144 = math.exp %143 : vector<16x256xf32>
    %cst_28 = arith.constant 1.000000e+00 : f32
    %145 = vector.broadcast %cst_28 : f32 to vector<16x256xf32>
    %146 = arith.addf %145, %144 : vector<16x256xf32>
    %147 = arith.divf %145, %146 : vector<16x256xf32>
    %148 = vector.extract_strided_slice %135 {offsets = [0, 512], sizes = [16, 256], strides = [1, 1]} : vector<16x1024xf32> to vector<16x256xf32>
    %149 = math.tanh %148 : vector<16x256xf32>
    %150 = vector.extract_strided_slice %135 {offsets = [0, 768], sizes = [16, 256], strides = [1, 1]} : vector<16x1024xf32> to vector<16x256xf32>
    %151 = arith.negf %150 : vector<16x256xf32>
    %152 = math.exp %151 : vector<16x256xf32>
    %cst_29 = arith.constant 1.000000e+00 : f32
    %153 = vector.broadcast %cst_29 : f32 to vector<16x256xf32>
    %154 = arith.addf %153, %152 : vector<16x256xf32>
    %155 = arith.divf %153, %154 : vector<16x256xf32>
    %156 = arith.mulf %147, %128 : vector<16x256xf32>
    %157 = arith.mulf %141, %149 : vector<16x256xf32>
    %158 = arith.addf %156, %157 : vector<16x256xf32>
    %159 = math.tanh %158 : vector<16x256xf32>
    %160 = arith.mulf %155, %159 : vector<16x256xf32>
    %161 = vector.extract_strided_slice %7 {offsets = [5, 0, 0], sizes = [1, 16, 1024], strides = [1, 1, 1]} : vector<8x16x1024xf32> to vector<1x16x1024xf32>
    %162 = vector.shape_cast %161 : vector<1x16x1024xf32> to vector<16x1024xf32>
    %163 = arith.truncf %160 : vector<16x256xf32> to vector<16x256xbf16>
    %cst_30 = arith.constant dense<0.000000e+00> : vector<16x1024xf32>
    %164 = tpu.matmul %163, %8, %cst_30 {dimension_numbers = #tpu.dot_dimension_numbers<[1], [0], [0], [1], [0, 0, 1, 1], [], []>} : vector<16x256xbf16>, vector<256x1024xbf16>, vector<16x1024xf32> -> vector<16x1024xf32>
    %165 = arith.addf %162, %164 : vector<16x1024xf32>
    %166 = vector.extract_strided_slice %165 {offsets = [0, 0], sizes = [16, 256], strides = [1, 1]} : vector<16x1024xf32> to vector<16x256xf32>
    %167 = arith.negf %166 : vector<16x256xf32>
    %168 = math.exp %167 : vector<16x256xf32>
    %cst_31 = arith.constant 1.000000e+00 : f32
    %169 = vector.broadcast %cst_31 : f32 to vector<16x256xf32>
    %170 = arith.addf %169, %168 : vector<16x256xf32>
    %171 = arith.divf %169, %170 : vector<16x256xf32>
    %172 = vector.extract_strided_slice %165 {offsets = [0, 256], sizes = [16, 256], strides = [1, 1]} : vector<16x1024xf32> to vector<16x256xf32>
    %173 = arith.negf %172 : vector<16x256xf32>
    %174 = math.exp %173 : vector<16x256xf32>
    %cst_32 = arith.constant 1.000000e+00 : f32
    %175 = vector.broadcast %cst_32 : f32 to vector<16x256xf32>
    %176 = arith.addf %175, %174 : vector<16x256xf32>
    %177 = arith.divf %175, %176 : vector<16x256xf32>
    %178 = vector.extract_strided_slice %165 {offsets = [0, 512], sizes = [16, 256], strides = [1, 1]} : vector<16x1024xf32> to vector<16x256xf32>
    %179 = math.tanh %178 : vector<16x256xf32>
    %180 = vector.extract_strided_slice %165 {offsets = [0, 768], sizes = [16, 256], strides = [1, 1]} : vector<16x1024xf32> to vector<16x256xf32>
    %181 = arith.negf %180 : vector<16x256xf32>
    %182 = math.exp %181 : vector<16x256xf32>
    %cst_33 = arith.constant 1.000000e+00 : f32
    %183 = vector.broadcast %cst_33 : f32 to vector<16x256xf32>
    %184 = arith.addf %183, %182 : vector<16x256xf32>
    %185 = arith.divf %183, %184 : vector<16x256xf32>
    %186 = arith.mulf %177, %158 : vector<16x256xf32>
    %187 = arith.mulf %171, %179 : vector<16x256xf32>
    %188 = arith.addf %186, %187 : vector<16x256xf32>
    %189 = math.tanh %188 : vector<16x256xf32>
    %190 = arith.mulf %185, %189 : vector<16x256xf32>
    %191 = vector.extract_strided_slice %7 {offsets = [6, 0, 0], sizes = [1, 16, 1024], strides = [1, 1, 1]} : vector<8x16x1024xf32> to vector<1x16x1024xf32>
    %192 = vector.shape_cast %191 : vector<1x16x1024xf32> to vector<16x1024xf32>
    %193 = arith.truncf %190 : vector<16x256xf32> to vector<16x256xbf16>
    %cst_34 = arith.constant dense<0.000000e+00> : vector<16x1024xf32>
    %194 = tpu.matmul %193, %8, %cst_34 {dimension_numbers = #tpu.dot_dimension_numbers<[1], [0], [0], [1], [0, 0, 1, 1], [], []>} : vector<16x256xbf16>, vector<256x1024xbf16>, vector<16x1024xf32> -> vector<16x1024xf32>
    %195 = arith.addf %192, %194 : vector<16x1024xf32>
    %196 = vector.extract_strided_slice %195 {offsets = [0, 0], sizes = [16, 256], strides = [1, 1]} : vector<16x1024xf32> to vector<16x256xf32>
    %197 = arith.negf %196 : vector<16x256xf32>
    %198 = math.exp %197 : vector<16x256xf32>
    %cst_35 = arith.constant 1.000000e+00 : f32
    %199 = vector.broadcast %cst_35 : f32 to vector<16x256xf32>
    %200 = arith.addf %199, %198 : vector<16x256xf32>
    %201 = arith.divf %199, %200 : vector<16x256xf32>
    %202 = vector.extract_strided_slice %195 {offsets = [0, 256], sizes = [16, 256], strides = [1, 1]} : vector<16x1024xf32> to vector<16x256xf32>
    %203 = arith.negf %202 : vector<16x256xf32>
    %204 = math.exp %203 : vector<16x256xf32>
    %cst_36 = arith.constant 1.000000e+00 : f32
    %205 = vector.broadcast %cst_36 : f32 to vector<16x256xf32>
    %206 = arith.addf %205, %204 : vector<16x256xf32>
    %207 = arith.divf %205, %206 : vector<16x256xf32>
    %208 = vector.extract_strided_slice %195 {offsets = [0, 512], sizes = [16, 256], strides = [1, 1]} : vector<16x1024xf32> to vector<16x256xf32>
    %209 = math.tanh %208 : vector<16x256xf32>
    %210 = vector.extract_strided_slice %195 {offsets = [0, 768], sizes = [16, 256], strides = [1, 1]} : vector<16x1024xf32> to vector<16x256xf32>
    %211 = arith.negf %210 : vector<16x256xf32>
    %212 = math.exp %211 : vector<16x256xf32>
    %cst_37 = arith.constant 1.000000e+00 : f32
    %213 = vector.broadcast %cst_37 : f32 to vector<16x256xf32>
    %214 = arith.addf %213, %212 : vector<16x256xf32>
    %215 = arith.divf %213, %214 : vector<16x256xf32>
    %216 = arith.mulf %207, %188 : vector<16x256xf32>
    %217 = arith.mulf %201, %209 : vector<16x256xf32>
    %218 = arith.addf %216, %217 : vector<16x256xf32>
    %219 = math.tanh %218 : vector<16x256xf32>
    %220 = arith.mulf %215, %219 : vector<16x256xf32>
    %221 = vector.extract_strided_slice %7 {offsets = [7, 0, 0], sizes = [1, 16, 1024], strides = [1, 1, 1]} : vector<8x16x1024xf32> to vector<1x16x1024xf32>
    %222 = vector.shape_cast %221 : vector<1x16x1024xf32> to vector<16x1024xf32>
    %223 = arith.truncf %220 : vector<16x256xf32> to vector<16x256xbf16>
    %cst_38 = arith.constant dense<0.000000e+00> : vector<16x1024xf32>
    %224 = tpu.matmul %223, %8, %cst_38 {dimension_numbers = #tpu.dot_dimension_numbers<[1], [0], [0], [1], [0, 0, 1, 1], [], []>} : vector<16x256xbf16>, vector<256x1024xbf16>, vector<16x1024xf32> -> vector<16x1024xf32>
    %225 = arith.addf %222, %224 : vector<16x1024xf32>
    %226 = vector.extract_strided_slice %225 {offsets = [0, 0], sizes = [16, 256], strides = [1, 1]} : vector<16x1024xf32> to vector<16x256xf32>
    %227 = arith.negf %226 : vector<16x256xf32>
    %228 = math.exp %227 : vector<16x256xf32>
    %cst_39 = arith.constant 1.000000e+00 : f32
    %229 = vector.broadcast %cst_39 : f32 to vector<16x256xf32>
    %230 = arith.addf %229, %228 : vector<16x256xf32>
    %231 = arith.divf %229, %230 : vector<16x256xf32>
    %232 = vector.extract_strided_slice %225 {offsets = [0, 256], sizes = [16, 256], strides = [1, 1]} : vector<16x1024xf32> to vector<16x256xf32>
    %233 = arith.negf %232 : vector<16x256xf32>
    %234 = math.exp %233 : vector<16x256xf32>
    %cst_40 = arith.constant 1.000000e+00 : f32
    %235 = vector.broadcast %cst_40 : f32 to vector<16x256xf32>
    %236 = arith.addf %235, %234 : vector<16x256xf32>
    %237 = arith.divf %235, %236 : vector<16x256xf32>
    %238 = vector.extract_strided_slice %225 {offsets = [0, 512], sizes = [16, 256], strides = [1, 1]} : vector<16x1024xf32> to vector<16x256xf32>
    %239 = math.tanh %238 : vector<16x256xf32>
    %240 = vector.extract_strided_slice %225 {offsets = [0, 768], sizes = [16, 256], strides = [1, 1]} : vector<16x1024xf32> to vector<16x256xf32>
    %241 = arith.negf %240 : vector<16x256xf32>
    %242 = math.exp %241 : vector<16x256xf32>
    %cst_41 = arith.constant 1.000000e+00 : f32
    %243 = vector.broadcast %cst_41 : f32 to vector<16x256xf32>
    %244 = arith.addf %243, %242 : vector<16x256xf32>
    %245 = arith.divf %243, %244 : vector<16x256xf32>
    %246 = arith.mulf %237, %218 : vector<16x256xf32>
    %247 = arith.mulf %231, %239 : vector<16x256xf32>
    %248 = arith.addf %246, %247 : vector<16x256xf32>
    %249 = math.tanh %248 : vector<16x256xf32>
    %250 = arith.mulf %245, %249 : vector<16x256xf32>
    %251 = arith.truncf %250 : vector<16x256xf32> to vector<16x256xbf16>
    %c0_42 = arith.constant 0 : index
    %c0_43 = arith.constant 0 : index
    %252 = vector.load %arg4[%c0_42, %c0_43] : memref<256x128xbf16, #tpu.memory_space<vmem>>, vector<256x128xbf16>
    %cst_44 = arith.constant dense<0.000000e+00> : vector<16x128xf32>
    %253 = tpu.matmul %251, %252, %cst_44 {dimension_numbers = #tpu.dot_dimension_numbers<[1], [0], [0], [1], [0, 0, 1, 1], [], []>} : vector<16x256xbf16>, vector<256x128xbf16>, vector<16x128xf32> -> vector<16x128xf32>
    %c0_45 = arith.constant 0 : index
    %c0_46 = arith.constant 0 : index
    %254 = vector.load %arg5[%c0_45, %c0_46] : memref<1x128xf32, #tpu.memory_space<vmem>>, vector<1x128xf32>
    %255 = vector.broadcast %254 : vector<1x128xf32> to vector<16x128xf32>
    %256 = arith.addf %253, %255 : vector<16x128xf32>
    %c0_47 = arith.constant 0 : index
    %c0_48 = arith.constant 0 : index
    %257 = vector.load %arg6[%c0_47, %c0_48] : memref<16x128xf32, #tpu.memory_space<vmem>>, vector<16x128xf32>
    tpu.vector_store %arg6[%c0_47, %c0_48], %256 {strides = array<i32>} : memref<16x128xf32, #tpu.memory_space<vmem>>, vector<16x128xf32>,
    return
  }
}

</mosaic_0001>

<llo_original>
// kernel: tpu_custom_call.1
$region0: #{tpu_custom_call.1}
  #allocation0 [shape = 'u32[]', space=smem, size = 0x4, offset = 0x4, fixed_abs, tag = 'smem constant byte address 0x4 - core index']
  #allocation1 [shape = 'u32[72,128]{1,0:T(1,128)}', space=vmem, size = 0x9000, scoped, tag = 'internal scratch']
  %s0 = inlined_call_operand.hbm [shape: bf16[8,16,512], index: 0, kind: input, shape index: {}]
  %s1 = inlined_call_operand.hbm [shape: bf16[512,1024], index: 1, kind: input, shape index: {}]
  %s2 = inlined_call_operand.hbm [shape: bf16[256,1024], index: 2, kind: input, shape index: {}]
  %s3 = inlined_call_operand.hbm [shape: f32[1,1024], index: 3, kind: input, shape index: {}]
  %s4 = inlined_call_operand.hbm [shape: bf16[256,128], index: 4, kind: input, shape index: {}]
  %s5 = inlined_call_operand.vmem [shape: f32[1,128], index: 5, kind: input, shape index: {}]
  %s6 = inlined_call_operand.hbm [shape: f32[16,128], index: 6, kind: output, shape index: {}]
  %s7 = sld [smem:[#allocation0]]
  $region54: #{tpu_custom_call.1} parent=0
    _
  %s9 = ssub.s32 1, %s7
  %s10 = scalar_select 0, %s9, %s7
  $region1: #{tpu_custom_call.1} parent=0
    #allocation2 [shape = 'u8[131072]{0}', space=vmem, size = 0x20000, scoped, tag = 'input window, operand 0, single buffered']
    #allocation3 [shape = 's32[1]{0}', space=sflag, size = 0x4, scoped, tag = 'scoped memory for tpu_custom_call.1']
    #allocation4 [shape = 's32[1]{0}', space=sflag, size = 0x4, scoped, tag = 'scoped memory for tpu_custom_call.1']
    #allocation5 [shape = 'u8[1048576]{0}', space=vmem, size = 0x100000, scoped, tag = 'input window, operand 1, single buffered']
    #allocation6 [shape = 's32[1]{0}', space=sflag, size = 0x4, scoped, tag = 'scoped memory for tpu_custom_call.1']
    #allocation7 [shape = 'u8[524288]{0}', space=vmem, size = 0x80000, scoped, tag = 'input window, operand 2, single buffered']
    #allocation8 [shape = 'u8[4096]{0}', space=vmem, size = 0x1000, scoped, tag = 'input window, operand 3, single buffered']
    #allocation9 [shape = 's32[1]{0}', space=sflag, size = 0x4, scoped, tag = 'scoped memory for tpu_custom_call.1']
    #allocation10 [shape = 'u8[65536]{0}', space=vmem, size = 0x10000, scoped, tag = 'input window, operand 4, single buffered']
    #allocation11 [shape = 'u8[8192]{0}', space=vmem, size = 0x2000, scoped, tag = 'output window, operand 0, single buffered']
    %11 = vsyncpa [#allocation3], 0
    %12 = vsyncpa [#allocation6], 0
    %13 = vsyncpa [#allocation9], 0
    %14 = vsyncpa [#allocation4], 0
    // Predicated region
    $region2: #{tpu_custom_call.1} parent=1 // pred_check
      _
    $region3: #{tpu_custom_call.1} parent=1 // pred_check_branch
      %16 = sbr.rel (0) target = $region5
    $region4: #{tpu_custom_call.1} parent=1 // pred_region
      %18 = vsyncadd [#allocation3], 0
      %s19 = sshll.u32 %s0, 4
      %s20 = int_to_ptr.hbm [resolvable:$true] %s19
      %s21 = sshll.u32 [#allocation2], 4
      %s22 = int_to_ptr.vmem [resolvable:$true] %s21
      %27 = dma.hbm_to_vmem [thread:$0]  %s20, 4096, %s22, [#allocation3], 256, 256, 16
    $region5: #{tpu_custom_call.1} parent=1 // pred_fallthru
      _
    // Predicated region
    $region6: #{tpu_custom_call.1} parent=1 // pred_check
      _
    $region7: #{tpu_custom_call.1} parent=1 // pred_check_branch
      %29 = sbr.rel (0) target = $region9
    $region8: #{tpu_custom_call.1} parent=1 // pred_region
      %31 = vsyncadd [#allocation6], 0
      %s32 = sshll.u32 %s1, 4
      %s33 = int_to_ptr.hbm [resolvable:$true] %s32
      %s34 = sshll.u32 [#allocation5], 4
      %s35 = int_to_ptr.vmem [resolvable:$true] %s34
      %40 = dma.hbm_to_vmem [thread:$0]  %s33, 32768, %s35, [#allocation6], 512, 512, 32
    $region9: #{tpu_custom_call.1} parent=1 // pred_fallthru
      _
    // Predicated region
    $region10: #{tpu_custom_call.1} parent=1 // pred_check
      _
    $region11: #{tpu_custom_call.1} parent=1 // pred_check_branch
      %42 = sbr.rel (0) target = $region13
    $region12: #{tpu_custom_call.1} parent=1 // pred_region
      %44 = vsyncadd [#allocation6], 0
      %s45 = sshll.u32 %s2, 4
      %s46 = int_to_ptr.hbm [resolvable:$true] %s45
      %s47 = sshll.u32 [#allocation7], 4
      %s48 = int_to_ptr.vmem [resolvable:$true] %s47
      %53 = dma.hbm_to_vmem [thread:$0]  %s46, 16384, %s48, [#allocation6], 512, 512, 32
    $region13: #{tpu_custom_call.1} parent=1 // pred_fallthru
      _
    // Predicated region
    $region14: #{tpu_custom_call.1} parent=1 // pred_check
      _
    $region15: #{tpu_custom_call.1} parent=1 // pred_check_branch
      %55 = sbr.rel (0) target = $region17
    $region16: #{tpu_custom_call.1} parent=1 // pred_region
      %57 = vsyncadd [#allocation9], 0
      %s59 = sshll.u32 %s3, 4
      %s60 = int_to_ptr.hbm [resolvable:$true] %s59
      %s61 = sshll.u32 [#allocation8], 4
      %s62 = int_to_ptr.vmem [resolvable:$true] %s61
      %64 = dma.hbm_to_vmem [thread:$0]  %s60, 128, %s62, [#allocation9]
    $region17: #{tpu_custom_call.1} parent=1 // pred_fallthru
      _
    // Predicated region
    $region18: #{tpu_custom_call.1} parent=1 // pred_check
      _
    $region19: #{tpu_custom_call.1} parent=1 // pred_check_branch
      %66 = sbr.rel (0) target = $region21
    $region20: #{tpu_custom_call.1} parent=1 // pred_region
      %68 = vsyncadd [#allocation9], 0
      %s69 = sshll.u32 %s4, 4
      %s70 = int_to_ptr.hbm [resolvable:$true] %s69
      %s71 = sshll.u32 [#allocation10], 4
      %s72 = int_to_ptr.vmem [resolvable:$true] %s71
      %77 = dma.hbm_to_vmem [thread:$0]  %s70, 2048, %s72, [#allocation9], 64, 64, 4
    $region21: #{tpu_custom_call.1} parent=1 // pred_fallthru
      _
    // Predicated region
    $region22: #{tpu_custom_call.1} parent=1 // pred_check
      _
    $region23: #{tpu_custom_call.1} parent=1 // pred_check_branch
      %79 = sbr.rel (0) target = $region25
    $region24: #{tpu_custom_call.1} parent=1 // pred_region
      _
    $region25: #{tpu_custom_call.1} parent=1 // pred_fallthru
      _
    // Predicated region
    $region26: #{tpu_custom_call.1} parent=1 // pred_check
      _
    $region27: #{tpu_custom_call.1} parent=1 // pred_check_branch
      %81 = sbr.rel (0) target = $region29
    $region28: #{tpu_custom_call.1} parent=1 // pred_region
      %83 = dma.done [#allocation3], 4096
    $region29: #{tpu_custom_call.1} parent=1 // pred_fallthru
      _
    // Predicated region
    $region30: #{tpu_custom_call.1} parent=1 // pred_check
      _
    $region31: #{tpu_custom_call.1} parent=1 // pred_check_branch
      %85 = sbr.rel (0) target = $region33
    $region32: #{tpu_custom_call.1} parent=1 // pred_region
      %87 = dma.done [#allocation6], 32768
    $region33: #{tpu_custom_call.1} parent=1 // pred_fallthru
      _
    // Predicated region
    $region34: #{tpu_custom_call.1} parent=1 // pred_check
      _
    $region35: #{tpu_custom_call.1} parent=1 // pred_check_branch
      %89 = sbr.rel (0) target = $region37
    $region36: #{tpu_custom_call.1} parent=1 // pred_region
      %91 = dma.done [#allocation6], 16384
    $region37: #{tpu_custom_call.1} parent=1 // pred_fallthru
      _
    // Predicated region
    $region38: #{tpu_custom_call.1} parent=1 // pred_check
      _
    $region39: #{tpu_custom_call.1} parent=1 // pred_check_branch
      %93 = sbr.rel (0) target = $region41
    $region40: #{tpu_custom_call.1} parent=1 // pred_region
      %95 = dma.done [#allocation9], 128
    $region41: #{tpu_custom_call.1} parent=1 // pred_fallthru
      _
    // Predicated region
    $region42: #{tpu_custom_call.1} parent=1 // pred_check
      _
    $region43: #{tpu_custom_call.1} parent=1 // pred_check_branch
      %97 = sbr.rel (0) target = $region45
    $region44: #{tpu_custom_call.1} parent=1 // pred_region
      %99 = dma.done [#allocation9], 2048
    $region45: #{tpu_custom_call.1} parent=1 // pred_fallthru
      _
    %v101 = vld [vmem:[#allocation2] sm:$0xff]
    %v102 = vld [vmem:[#allocation2 + $0x8] sm:$0xff]
    %v103 = vld [vmem:[#allocation2 + $0x10] sm:$0xff]
    %v104 = vld [vmem:[#allocation2 + $0x18] sm:$0xff]
    %v105 = vld [vmem:[#allocation2 + $0x20] sm:$0xff]
    %v106 = vld [vmem:[#allocation2 + $0x28] sm:$0xff]
    %v107 = vld [vmem:[#allocation2 + $0x30] sm:$0xff]
    %v108 = vld [vmem:[#allocation2 + $0x38] sm:$0xff]
    %v109 = vld [vmem:[#allocation2 + $0x40] sm:$0xff]
    %v110 = vld [vmem:[#allocation2 + $0x48] sm:$0xff]
    %v111 = vld [vmem:[#allocation2 + $0x50] sm:$0xff]
    %v112 = vld [vmem:[#allocation2 + $0x58] sm:$0xff]
    %v113 = vld [vmem:[#allocation2 + $0x60] sm:$0xff]
    %v114 = vld [vmem:[#allocation2 + $0x68] sm:$0xff]
    %v115 = vld [vmem:[#allocation2 + $0x70] sm:$0xff]
    %v116 = vld [vmem:[#allocation2 + $0x78] sm:$0xff]
    %v117 = vld [vmem:[#allocation2 + $0x80] sm:$0xff]
    %v118 = vld [vmem:[#allocation2 + $0x88] sm:$0xff]
    %v119 = vld [vmem:[#allocation2 + $0x90] sm:$0xff]
    %v120 = vld [vmem:[#allocation2 + $0x98] sm:$0xff]
    %v121 = vld [vmem:[#allocation2 + $0xa0] sm:$0xff]
    %v122 = vld [vmem:[#allocation2 + $0xa8] sm:$0xff]
    %v123 = vld [vmem:[#allocation2 + $0xb0] sm:$0xff]
    %v124 = vld [vmem:[#allocation2 + $0xb8] sm:$0xff]
    %v125 = vld [vmem:[#allocation2 + $0xc0] sm:$0xff]
    %v126 = vld [vmem:[#allocation2 + $0xc8] sm:$0xff]
    %v127 = vld [vmem:[#allocation2 + $0xd0] sm:$0xff]
    %v128 = vld [vmem:[#allocation2 + $0xd8] sm:$0xff]
    %v129 = vld [vmem:[#allocation2 + $0xe0] sm:$0xff]
    %v130 = vld [vmem:[#allocation2 + $0xe8] sm:$0xff]
    %v131 = vld [vmem:[#allocation2 + $0xf0] sm:$0xff]
    %v132 = vld [vmem:[#allocation2 + $0xf8] sm:$0xff]
    %v133 = vld [vmem:[#allocation5] sm:$0xff]
    %v134 = vld [vmem:[#allocation5 + $0x8] sm:$0xff]
    %v135 = vld [vmem:[#allocation5 + $0x10] sm:$0xff]
    %v136 = vld [vmem:[#allocation5 + $0x18] sm:$0xff]
    %v137 = vld [vmem:[#allocation5 + $0x20] sm:$0xff]
    %v138 = vld [vmem:[#allocation5 + $0x28] sm:$0xff]
    %v139 = vld [vmem:[#allocation5 + $0x30] sm:$0xff]
    %v140 = vld [vmem:[#allocation5 + $0x38] sm:$0xff]
    %v141 = vld [vmem:[#allocation5 + $0x40] sm:$0xff]
    %v142 = vld [vmem:[#allocation5 + $0x48] sm:$0xff]
    %v143 = vld [vmem:[#allocation5 + $0x50] sm:$0xff]
    %v144 = vld [vmem:[#allocation5 + $0x58] sm:$0xff]
    %v145 = vld [vmem:[#allocation5 + $0x60] sm:$0xff]
    %v146 = vld [vmem:[#allocation5 + $0x68] sm:$0xff]
    %v147 = vld [vmem:[#allocation5 + $0x70] sm:$0xff]
    %v148 = vld [vmem:[#allocation5 + $0x78] sm:$0xff]
    %v149 = vld [vmem:[#allocation5 + $0x80] sm:$0xff]
    %v150 = vld [vmem:[#allocation5 + $0x88] sm:$0xff]
    %v151 = vld [vmem:[#allocation5 + $0x90] sm:$0xff]
    %v152 = vld [vmem:[#allocation5 + $0x98] sm:$0xff]
    %v153 = vld [vmem:[#allocation5 + $0xa0] sm:$0xff]
    %v154 = vld [vmem:[#allocation5 + $0xa8] sm:$0xff]
    %v155 = vld [vmem:[#allocation5 + $0xb0] sm:$0xff]
    %v156 = vld [vmem:[#allocation5 + $0xb8] sm:$0xff]
    %v157 = vld [vmem:[#allocation5 + $0xc0] sm:$0xff]
    %v158 = vld [vmem:[#allocation5 + $0xc8] sm:$0xff]
    %v159 = vld [vmem:[#allocation5 + $0xd0] sm:$0xff]
    %v160 = vld [vmem:[#allocation5 + $0xd8] sm:$0xff]
    %v161 = vld [vmem:[#allocation5 + $0xe0] sm:$0xff]
    %v162 = vld [vmem:[#allocation5 + $0xe8] sm:$0xff]
    %v163 = vld [vmem:[#allocation5 + $0xf0] sm:$0xff]
    %v164 = vld [vmem:[#allocation5 + $0xf8] sm:$0xff]
    %v165 = vld [vmem:[#allocation5 + $0x100] sm:$0xff]
    %v166 = vld [vmem:[#allocation5 + $0x108] sm:$0xff]
    %v167 = vld [vmem:[#allocation5 + $0x110] sm:$0xff]
    %v168 = vld [vmem:[#allocation5 + $0x118] sm:$0xff]
    %v169 = vld [vmem:[#allocation5 + $0x120] sm:$0xff]
    %v170 = vld [vmem:[#allocation5 + $0x128] sm:$0xff]
    %v171 = vld [vmem:[#allocation5 + $0x130] sm:$0xff]
    %v172 = vld [vmem:[#allocation5 + $0x138] sm:$0xff]
    %v173 = vld [vmem:[#allocation5 + $0x140] sm:$0xff]
    %v174 = vld [vmem:[#allocation5 + $0x148] sm:$0xff]
    %v175 = vld [vmem:[#allocation5 + $0x150] sm:$0xff]
    %v176 = vld [vmem:[#allocation5 + $0x158] sm:$0xff]
    %v177 = vld [vmem:[#allocation5 + $0x160] sm:$0xff]
    %v178 = vld [vmem:[#allocation5 + $0x168] sm:$0xff]
    %v179 = vld [vmem:[#allocation5 + $0x170] sm:$0xff]
    %v180 = vld [vmem:[#allocation5 + $0x178] sm:$0xff]
    %v181 = vld [vmem:[#allocation5 + $0x180] sm:$0xff]
    %v182 = vld [vmem:[#allocation5 + $0x188] sm:$0xff]
    %v183 = vld [vmem:[#allocation5 + $0x190] sm:$0xff]
    %v184 = vld [vmem:[#allocation5 + $0x198] sm:$0xff]
    %v185 = vld [vmem:[#allocation5 + $0x1a0] sm:$0xff]
    %v186 = vld [vmem:[#allocation5 + $0x1a8] sm:$0xff]
    %v187 = vld [vmem:[#allocation5 + $0x1b0] sm:$0xff]
    %v188 = vld [vmem:[#allocation5 + $0x1b8] sm:$0xff]
    %v189 = vld [vmem:[#allocation5 + $0x1c0] sm:$0xff]
    %v190 = vld [vmem:[#allocation5 + $0x1c8] sm:$0xff]
    %v191 = vld [vmem:[#allocation5 + $0x1d0] sm:$0xff]
    %v192 = vld [vmem:[#allocation5 + $0x1d8] sm:$0xff]
    %v193 = vld [vmem:[#allocation5 + $0x1e0] sm:$0xff]
    %v194 = vld [vmem:[#allocation5 + $0x1e8] sm:$0xff]
    %v195 = vld [vmem:[#allocation5 + $0x1f0] sm:$0xff]
    %v196 = vld [vmem:[#allocation5 + $0x1f8] sm:$0xff]
    %v197 = vld [vmem:[#allocation5 + $0x200] sm:$0xff]
    %v198 = vld [vmem:[#allocation5 + $0x208] sm:$0xff]
    %v199 = vld [vmem:[#allocation5 + $0x210] sm:$0xff]
    %v200 = vld [vmem:[#allocation5 + $0x218] sm:$0xff]
    %v201 = vld [vmem:[#allocation5 + $0x220] sm:$0xff]
    %v202 = vld [vmem:[#allocation5 + $0x228] sm:$0xff]
    %v203 = vld [vmem:[#allocation5 + $0x230] sm:$0xff]
    %v204 = vld [vmem:[#allocation5 + $0x238] sm:$0xff]
    %v205 = vld [vmem:[#allocation5 + $0x240] sm:$0xff]
    %v206 = vld [vmem:[#allocation5 + $0x248] sm:$0xff]
    %v207 = vld [vmem:[#allocation5 + $0x250] sm:$0xff]
    %v208 = vld [vmem:[#allocation5 + $0x258] sm:$0xff]
    %v209 = vld [vmem:[#allocation5 + $0x260] sm:$0xff]
    %v210 = vld [vmem:[#allocation5 + $0x268] sm:$0xff]
    %v211 = vld [vmem:[#allocation5 + $0x270] sm:$0xff]
    %v212 = vld [vmem:[#allocation5 + $0x278] sm:$0xff]
    %v213 = vld [vmem:[#allocation5 + $0x280] sm:$0xff]
    %v214 = vld [vmem:[#allocation5 + $0x288] sm:$0xff]
    %v215 = vld [vmem:[#allocation5 + $0x290] sm:$0xff]
    %v216 = vld [vmem:[#allocation5 + $0x298] sm:$0xff]
    %v217 = vld [vmem:[#allocation5 + $0x2a0] sm:$0xff]
    %v218 = vld [vmem:[#allocation5 + $0x2a8] sm:$0xff]
    %v219 = vld [vmem:[#allocation5 + $0x2b0] sm:$0xff]
    %v220 = vld [vmem:[#allocation5 + $0x2b8] sm:$0xff]
    %v221 = vld [vmem:[#allocation5 + $0x2c0] sm:$0xff]
    %v222 = vld [vmem:[#allocation5 + $0x2c8] sm:$0xff]
    %v223 = vld [vmem:[#allocation5 + $0x2d0] sm:$0xff]
    %v224 = vld [vmem:[#allocation5 + $0x2d8] sm:$0xff]
    %v225 = vld [vmem:[#allocation5 + $0x2e0] sm:$0xff]
    %v226 = vld [vmem:[#allocation5 + $0x2e8] sm:$0xff]
    %v227 = vld [vmem:[#allocation5 + $0x2f0] sm:$0xff]
    %v228 = vld [vmem:[#allocation5 + $0x2f8] sm:$0xff]
    %v229 = vld [vmem:[#allocation5 + $0x300] sm:$0xff]
    %v230 = vld [vmem:[#allocation5 + $0x308] sm:$0xff]
    %v231 = vld [vmem:[#allocation5 + $0x310] sm:$0xff]
    %v232 = vld [vmem:[#allocation5 + $0x318] sm:$0xff]
    %v233 = vld [vmem:[#allocation5 + $0x320] sm:$0xff]
    %v234 = vld [vmem:[#allocation5 + $0x328] sm:$0xff]
    %v235 = vld [vmem:[#allocation5 + $0x330] sm:$0xff]
    %v236 = vld [vmem:[#allocation5 + $0x338] sm:$0xff]
    %v237 = vld [vmem:[#allocation5 + $0x340] sm:$0xff]
    %v238 = vld [vmem:[#allocation5 + $0x348] sm:$0xff]
    %v239 = vld [vmem:[#allocation5 + $0x350] sm:$0xff]
    %v240 = vld [vmem:[#allocation5 + $0x358] sm:$0xff]
    %v241 = vld [vmem:[#allocation5 + $0x360] sm:$0xff]
    %v242 = vld [vmem:[#allocation5 + $0x368] sm:$0xff]
    %v243 = vld [vmem:[#allocation5 + $0x370] sm:$0xff]
    %v244 = vld [vmem:[#allocation5 + $0x378] sm:$0xff]
    %v245 = vld [vmem:[#allocation5 + $0x380] sm:$0xff]
    %v246 = vld [vmem:[#allocation5 + $0x388] sm:$0xff]
    %v247 = vld [vmem:[#allocation5 + $0x390] sm:$0xff]
    %v248 = vld [vmem:[#allocation5 + $0x398] sm:$0xff]
    %v249 = vld [vmem:[#allocation5 + $0x3a0] sm:$0xff]
    %v250 = vld [vmem:[#allocation5 + $0x3a8] sm:$0xff]
    %v251 = vld [vmem:[#allocation5 + $0x3b0] sm:$0xff]
    %v252 = vld [vmem:[#allocation5 + $0x3b8] sm:$0xff]
    %v253 = vld [vmem:[#allocation5 + $0x3c0] sm:$0xff]
    %v254 = vld [vmem:[#allocation5 + $0x3c8] sm:$0xff]
    %v255 = vld [vmem:[#allocation5 + $0x3d0] sm:$0xff]
    %v256 = vld [vmem:[#allocation5 + $0x3d8] sm:$0xff]
    %v257 = vld [vmem:[#allocation5 + $0x3e0] sm:$0xff]
    %v258 = vld [vmem:[#allocation5 + $0x3e8] sm:$0xff]
    %v259 = vld [vmem:[#allocation5 + $0x3f0] sm:$0xff]
    %v260 = vld [vmem:[#allocation5 + $0x3f8] sm:$0xff]
    %v261 = vld [vmem:[#allocation5 + $0x400] sm:$0xff]
    %v262 = vld [vmem:[#allocation5 + $0x408] sm:$0xff]
    %v263 = vld [vmem:[#allocation5 + $0x410] sm:$0xff]
    %v264 = vld [vmem:[#allocation5 + $0x418] sm:$0xff]
    %v265 = vld [vmem:[#allocation5 + $0x420] sm:$0xff]
    %v266 = vld [vmem:[#allocation5 + $0x428] sm:$0xff]
    %v267 = vld [vmem:[#allocation5 + $0x430] sm:$0xff]
    %v268 = vld [vmem:[#allocation5 + $0x438] sm:$0xff]
    %v269 = vld [vmem:[#allocation5 + $0x440] sm:$0xff]
    %v270 = vld [vmem:[#allocation5 + $0x448] sm:$0xff]
    %v271 = vld [vmem:[#allocation5 + $0x450] sm:$0xff]
    %v272 = vld [vmem:[#allocation5 + $0x458] sm:$0xff]
    %v273 = vld [vmem:[#allocation5 + $0x460] sm:$0xff]
    %v274 = vld [vmem:[#allocation5 + $0x468] sm:$0xff]
    %v275 = vld [vmem:[#allocation5 + $0x470] sm:$0xff]
    %v276 = vld [vmem:[#allocation5 + $0x478] sm:$0xff]
    %v277 = vld [vmem:[#allocation5 + $0x480] sm:$0xff]
    %v278 = vld [vmem:[#allocation5 + $0x488] sm:$0xff]
    %v279 = vld [vmem:[#allocation5 + $0x490] sm:$0xff]
    %v280 = vld [vmem:[#allocation5 + $0x498] sm:$0xff]
    %v281 = vld [vmem:[#allocation5 + $0x4a0] sm:$0xff]
    %v282 = vld [vmem:[#allocation5 + $0x4a8] sm:$0xff]
    %v283 = vld [vmem:[#allocation5 + $0x4b0] sm:$0xff]
    %v284 = vld [vmem:[#allocation5 + $0x4b8] sm:$0xff]
    %v285 = vld [vmem:[#allocation5 + $0x4c0] sm:$0xff]
    %v286 = vld [vmem:[#allocation5 + $0x4c8] sm:$0xff]
    %v287 = vld [vmem:[#allocation5 + $0x4d0] sm:$0xff]
    %v288 = vld [vmem:[#allocation5 + $0x4d8] sm:$0xff]
    %v289 = vld [vmem:[#allocation5 + $0x4e0] sm:$0xff]
    %v290 = vld [vmem:[#allocation5 + $0x4e8] sm:$0xff]
    %v291 = vld [vmem:[#allocation5 + $0x4f0] sm:$0xff]
    %v292 = vld [vmem:[#allocation5 + $0x4f8] sm:$0xff]
    %v293 = vld [vmem:[#allocation5 + $0x500] sm:$0xff]
    %v294 = vld [vmem:[#allocation5 + $0x508] sm:$0xff]
    %v295 = vld [vmem:[#allocation5 + $0x510] sm:$0xff]
    %v296 = vld [vmem:[#allocation5 + $0x518] sm:$0xff]
    %v297 = vld [vmem:[#allocation5 + $0x520] sm:$0xff]
    %v298 = vld [vmem:[#allocation5 + $0x528] sm:$0xff]
    %v299 = vld [vmem:[#allocation5 + $0x530] sm:$0xff]
    %v300 = vld [vmem:[#allocation5 + $0x538] sm:$0xff]
    %v301 = vld [vmem:[#allocation5 + $0x540] sm:$0xff]
    %v302 = vld [vmem:[#allocation5 + $0x548] sm:$0xff]
    %v303 = vld [vmem:[#allocation5 + $0x550] sm:$0xff]
    %v304 = vld [vmem:[#allocation5 + $0x558] sm:$0xff]
    %v305 = vld [vmem:[#allocation5 + $0x560] sm:$0xff]
    %v306 = vld [vmem:[#allocation5 + $0x568] sm:$0xff]
    %v307 = vld [vmem:[#allocation5 + $0x570] sm:$0xff]
    %v308 = vld [vmem:[#allocation5 + $0x578] sm:$0xff]
    %v309 = vld [vmem:[#allocation5 + $0x580] sm:$0xff]
    %v310 = vld [vmem:[#allocation5 + $0x588] sm:$0xff]
    %v311 = vld [vmem:[#allocation5 + $0x590] sm:$0xff]
    %v312 = vld [vmem:[#allocation5 + $0x598] sm:$0xff]
    %v313 = vld [vmem:[#allocation5 + $0x5a0] sm:$0xff]
    %v314 = vld [vmem:[#allocation5 + $0x5a8] sm:$0xff]
    %v315 = vld [vmem:[#allocation5 + $0x5b0] sm:$0xff]
    %v316 = vld [vmem:[#allocation5 + $0x5b8] sm:$0xff]
    %v317 = vld [vmem:[#allocation5 + $0x5c0] sm:$0xff]
    %v318 = vld [vmem:[#allocation5 + $0x5c8] sm:$0xff]
    %v319 = vld [vmem:[#allocation5 + $0x5d0] sm:$0xff]
    %v320 = vld [vmem:[#allocation5 + $0x5d8] sm:$0xff]
    %v321 = vld [vmem:[#allocation5 + $0x5e0] sm:$0xff]
    %v322 = vld [vmem:[#allocation5 + $0x5e8] sm:$0xff]
    %v323 = vld [vmem:[#allocation5 + $0x5f0] sm:$0xff]
    %v324 = vld [vmem:[#allocation5 + $0x5f8] sm:$0xff]
    %v325 = vld [vmem:[#allocation5 + $0x600] sm:$0xff]
    %v326 = vld [vmem:[#allocation5 + $0x608] sm:$0xff]
    %v327 = vld [vmem:[#allocation5 + $0x610] sm:$0xff]
    %v328 = vld [vmem:[#allocation5 + $0x618] sm:$0xff]
    %v329 = vld [vmem:[#allocation5 + $0x620] sm:$0xff]
    %v330 = vld [vmem:[#allocation5 + $0x628] sm:$0xff]
    %v331 = vld [vmem:[#allocation5 + $0x630] sm:$0xff]
    %v332 = vld [vmem:[#allocation5 + $0x638] sm:$0xff]
    %v333 = vld [vmem:[#allocation5 + $0x640] sm:$0xff]
    %v334 = vld [vmem:[#allocation5 + $0x648] sm:$0xff]
    %v335 = vld [vmem:[#allocation5 + $0x650] sm:$0xff]
    %v336 = vld [vmem:[#allocation5 + $0x658] sm:$0xff]
    %v337 = vld [vmem:[#allocation5 + $0x660] sm:$0xff]
    %v338 = vld [vmem:[#allocation5 + $0x668] sm:$0xff]
    %v339 = vld [vmem:[#allocation5 + $0x670] sm:$0xff]
    %v340 = vld [vmem:[#allocation5 + $0x678] sm:$0xff]
    %v341 = vld [vmem:[#allocation5 + $0x680] sm:$0xff]
    %v342 = vld [vmem:[#allocation5 + $0x688] sm:$0xff]
    %v343 = vld [vmem:[#allocation5 + $0x690] sm:$0xff]
    %v344 = vld [vmem:[#allocation5 + $0x698] sm:$0xff]
    %v345 = vld [vmem:[#allocation5 + $0x6a0] sm:$0xff]
    %v346 = vld [vmem:[#allocation5 + $0x6a8] sm:$0xff]
    %v347 = vld [vmem:[#allocation5 + $0x6b0] sm:$0xff]
    %v348 = vld [vmem:[#allocation5 + $0x6b8] sm:$0xff]
    %v349 = vld [vmem:[#allocation5 + $0x6c0] sm:$0xff]
    %v350 = vld [vmem:[#allocation5 + $0x6c8] sm:$0xff]
    %v351 = vld [vmem:[#allocation5 + $0x6d0] sm:$0xff]
    %v352 = vld [vmem:[#allocation5 + $0x6d8] sm:$0xff]
    %v353 = vld [vmem:[#allocation5 + $0x6e0] sm:$0xff]
    %v354 = vld [vmem:[#allocation5 + $0x6e8] sm:$0xff]
    %v355 = vld [vmem:[#allocation5 + $0x6f0] sm:$0xff]
    %v356 = vld [vmem:[#allocation5 + $0x6f8] sm:$0xff]
    %v357 = vld [vmem:[#allocation5 + $0x700] sm:$0xff]
    %v358 = vld [vmem:[#allocation5 + $0x708] sm:$0xff]
    %v359 = vld [vmem:[#allocation5 + $0x710] sm:$0xff]
    %v360 = vld [vmem:[#allocation5 + $0x718] sm:$0xff]
    %v361 = vld [vmem:[#allocation5 + $0x720] sm:$0xff]
    %v362 = vld [vmem:[#allocation5 + $0x728] sm:$0xff]
    %v363 = vld [vmem:[#allocation5 + $0x730] sm:$0xff]
    %v364 = vld [vmem:[#allocation5 + $0x738] sm:$0xff]
    %v365 = vld [vmem:[#allocation5 + $0x740] sm:$0xff]
    %v366 = vld [vmem:[#allocation5 + $0x748] sm:$0xff]
    %v367 = vld [vmem:[#allocation5 + $0x750] sm:$0xff]
    %v368 = vld [vmem:[#allocation5 + $0x758] sm:$0xff]
    %v369 = vld [vmem:[#allocation5 + $0x760] sm:$0xff]
    %v370 = vld [vmem:[#allocation5 + $0x768] sm:$0xff]
    %v371 = vld [vmem:[#allocation5 + $0x770] sm:$0xff]
    %v372 = vld [vmem:[#allocation5 + $0x778] sm:$0xff]
    %v373 = vld [vmem:[#allocation5 + $0x780] sm:$0xff]
    %v374 = vld [vmem:[#allocation5 + $0x788] sm:$0xff]
    %v375 = vld [vmem:[#allocation5 + $0x790] sm:$0xff]
    %v376 = vld [vmem:[#allocation5 + $0x798] sm:$0xff]
    %v377 = vld [vmem:[#allocation5 + $0x7a0] sm:$0xff]
    %v378 = vld [vmem:[#allocation5 + $0x7a8] sm:$0xff]
    %v379 = vld [vmem:[#allocation5 + $0x7b0] sm:$0xff]
    %v380 = vld [vmem:[#allocation5 + $0x7b8] sm:$0xff]
    %v381 = vld [vmem:[#allocation5 + $0x7c0] sm:$0xff]
    %v382 = vld [vmem:[#allocation5 + $0x7c8] sm:$0xff]
    %v383 = vld [vmem:[#allocation5 + $0x7d0] sm:$0xff]
    %v384 = vld [vmem:[#allocation5 + $0x7d8] sm:$0xff]
    %v385 = vld [vmem:[#allocation5 + $0x7e0] sm:$0xff]
    %v386 = vld [vmem:[#allocation5 + $0x7e8] sm:$0xff]
    %v387 = vld [vmem:[#allocation5 + $0x7f0] sm:$0xff]
    %v388 = vld [vmem:[#allocation5 + $0x7f8] sm:$0xff]
    %v389 = vld [vmem:[#allocation8] sm:$0xff]
    %v391 = vperm.slane %v389, 0
    %v392 = vperm.slane %v389, 1
    %v393 = vperm.slane %v389, 2
    %v394 = vperm.slane %v389, 3
    %v395 = vperm.slane %v389, 4
    %v396 = vperm.slane %v389, 5
    %v397 = vperm.slane %v389, 6
    %v398 = vperm.slane %v389, 7
    %v439 = vunpack.c.l.b16 %v101
    %v440 = vunpack.c.h.b16 %v101
    %v441 = vunpack.c.l.b16 %v102
    %v442 = vunpack.c.h.b16 %v102
    %v443 = vunpack.c.l.b16 %v103
    %v444 = vunpack.c.h.b16 %v103
    %v445 = vunpack.c.l.b16 %v104
    %v446 = vunpack.c.h.b16 %v104
    %v447 = vunpack.c.l.b16 %v105
    %v448 = vunpack.c.h.b16 %v105
    %v449 = vunpack.c.l.b16 %v106
    %v450 = vunpack.c.h.b16 %v106
    %v451 = vunpack.c.l.b16 %v107
    %v452 = vunpack.c.h.b16 %v107
    %v453 = vunpack.c.l.b16 %v108
    %v454 = vunpack.c.h.b16 %v108
    %v455 = vunpack.c.l.b16 %v109
    %v456 = vunpack.c.h.b16 %v109
    %v457 = vunpack.c.l.b16 %v110
    %v458 = vunpack.c.h.b16 %v110
    %v459 = vunpack.c.l.b16 %v111
    %v460 = vunpack.c.h.b16 %v111
    %v461 = vunpack.c.l.b16 %v112
    %v462 = vunpack.c.h.b16 %v112
    %v463 = vunpack.c.l.b16 %v113
    %v464 = vunpack.c.h.b16 %v113
    %v465 = vunpack.c.l.b16 %v114
    %v466 = vunpack.c.h.b16 %v114
    %v467 = vunpack.c.l.b16 %v115
    %v468 = vunpack.c.h.b16 %v115
    %v469 = vunpack.c.l.b16 %v116
    %v470 = vunpack.c.h.b16 %v116
    %v471 = vunpack.c.l.b16 %v117
    %v472 = vunpack.c.h.b16 %v117
    %v473 = vunpack.c.l.b16 %v118
    %v474 = vunpack.c.h.b16 %v118
    %v475 = vunpack.c.l.b16 %v119
    %v476 = vunpack.c.h.b16 %v119
    %v477 = vunpack.c.l.b16 %v120
    %v478 = vunpack.c.h.b16 %v120
    %v479 = vunpack.c.l.b16 %v121
    %v480 = vunpack.c.h.b16 %v121
    %v481 = vunpack.c.l.b16 %v122
    %v482 = vunpack.c.h.b16 %v122
    %v483 = vunpack.c.l.b16 %v123
    %v484 = vunpack.c.h.b16 %v123
    %v485 = vunpack.c.l.b16 %v124
    %v486 = vunpack.c.h.b16 %v124
    %v487 = vunpack.c.l.b16 %v125
    %v488 = vunpack.c.h.b16 %v125
    %v489 = vunpack.c.l.b16 %v126
    %v490 = vunpack.c.h.b16 %v126
    %v491 = vunpack.c.l.b16 %v127
    %v492 = vunpack.c.h.b16 %v127
    %v493 = vunpack.c.l.b16 %v128
    %v494 = vunpack.c.h.b16 %v128
    %v495 = vunpack.c.l.b16 %v129
    %v496 = vunpack.c.h.b16 %v129
    %v497 = vunpack.c.l.b16 %v130
    %v498 = vunpack.c.h.b16 %v130
    %v499 = vunpack.c.l.b16 %v131
    %v500 = vunpack.c.h.b16 %v131
    %v501 = vunpack.c.l.b16 %v132
    %v502 = vunpack.c.h.b16 %v132
    %v503 = vpack.c.b16 %v443, %v439
    %v504 = vpack.c.b16 %v444, %v440
    %v505 = vpack.c.b16 %v445, %v441
    %v506 = vpack.c.b16 %v446, %v442
    %v507 = vpack.c.b16 %v451, %v447
    %v508 = vpack.c.b16 %v452, %v448
    %v509 = vpack.c.b16 %v453, %v449
    %v510 = vpack.c.b16 %v454, %v450
    %v511 = vpack.c.b16 %v459, %v455
    %v512 = vpack.c.b16 %v460, %v456
    %v513 = vpack.c.b16 %v461, %v457
    %v514 = vpack.c.b16 %v462, %v458
    %v515 = vpack.c.b16 %v467, %v463
    %v516 = vpack.c.b16 %v468, %v464
    %v517 = vpack.c.b16 %v469, %v465
    %v518 = vpack.c.b16 %v470, %v466
    %v519 = vpack.c.b16 %v475, %v471
    %v520 = vpack.c.b16 %v476, %v472
    %v521 = vpack.c.b16 %v477, %v473
    %v522 = vpack.c.b16 %v478, %v474
    %v523 = vpack.c.b16 %v483, %v479
    %v524 = vpack.c.b16 %v484, %v480
    %v525 = vpack.c.b16 %v485, %v481
    %v526 = vpack.c.b16 %v486, %v482
    %v527 = vpack.c.b16 %v491, %v487
    %v528 = vpack.c.b16 %v492, %v488
    %v529 = vpack.c.b16 %v493, %v489
    %v530 = vpack.c.b16 %v494, %v490
    %v531 = vpack.c.b16 %v499, %v495
    %v532 = vpack.c.b16 %v500, %v496
    %v533 = vpack.c.b16 %v501, %v497
    %v534 = vpack.c.b16 %v502, %v498
    %v823 = vunpack.c.l.b16 %v133
    %v824 = vunpack.c.h.b16 %v133
    %v825 = vunpack.c.l.b16 %v134
    %v826 = vunpack.c.h.b16 %v134
    %v827 = vunpack.c.l.b16 %v135
    %v828 = vunpack.c.h.b16 %v135
    %v829 = vunpack.c.l.b16 %v136
    %v830 = vunpack.c.h.b16 %v136
    %v831 = vunpack.c.l.b16 %v137
    %v832 = vunpack.c.h.b16 %v137
    %v833 = vunpack.c.l.b16 %v138
    %v834 = vunpack.c.h.b16 %v138
    %v835 = vunpack.c.l.b16 %v139
    %v836 = vunpack.c.h.b16 %v139
    %v837 = vunpack.c.l.b16 %v140
    %v838 = vunpack.c.h.b16 %v140
    %v839 = vunpack.c.l.b16 %v141
    %v840 = vunpack.c.h.b16 %v141
    %v841 = vunpack.c.l.b16 %v142
    %v842 = vunpack.c.h.b16 %v142
    %v843 = vunpack.c.l.b16 %v143
    %v844 = vunpack.c.h.b16 %v143
    %v845 = vunpack.c.l.b16 %v144
    %v846 = vunpack.c.h.b16 %v144
    %v847 = vunpack.c.l.b16 %v145
    %v848 = vunpack.c.h.b16 %v145
    %v849 = vunpack.c.l.b16 %v146
    %v850 = vunpack.c.h.b16 %v146
    %v851 = vunpack.c.l.b16 %v147
    %v852 = vunpack.c.h.b16 %v147
    %v853 = vunpack.c.l.b16 %v148
    %v854 = vunpack.c.h.b16 %v148
    %v855 = vunpack.c.l.b16 %v149
    %v856 = vunpack.c.h.b16 %v149
    %v857 = vunpack.c.l.b16 %v150
    %v858 = vunpack.c.h.b16 %v150
    %v859 = vunpack.c.l.b16 %v151
    %v860 = vunpack.c.h.b16 %v151
    %v861 = vunpack.c.l.b16 %v152
    %v862 = vunpack.c.h.b16 %v152
    %v863 = vunpack.c.l.b16 %v153
    %v864 = vunpack.c.h.b16 %v153
    %v865 = vunpack.c.l.b16 %v154
    %v866 = vunpack.c.h.b16 %v154
    %v867 = vunpack.c.l.b16 %v155
    %v868 = vunpack.c.h.b16 %v155
    %v869 = vunpack.c.l.b16 %v156
    %v870 = vunpack.c.h.b16 %v156
    %v871 = vunpack.c.l.b16 %v157
    %v872 = vunpack.c.h.b16 %v157
    %v873 = vunpack.c.l.b16 %v158
    %v874 = vunpack.c.h.b16 %v158
    %v875 = vunpack.c.l.b16 %v159
    %v876 = vunpack.c.h.b16 %v159
    %v877 = vunpack.c.l.b16 %v160
    %v878 = vunpack.c.h.b16 %v160
    %v879 = vunpack.c.l.b16 %v161
    %v880 = vunpack.c.h.b16 %v161
    %v881 = vunpack.c.l.b16 %v162
    %v882 = vunpack.c.h.b16 %v162
    %v883 = vunpack.c.l.b16 %v163
    %v884 = vunpack.c.h.b16 %v163
    %v885 = vunpack.c.l.b16 %v164
    %v886 = vunpack.c.h.b16 %v164
    %v887 = vunpack.c.l.b16 %v165
    %v888 = vunpack.c.h.b16 %v165
    %v889 = vunpack.c.l.b16 %v166
    %v890 = vunpack.c.h.b16 %v166
    %v891 = vunpack.c.l.b16 %v167
    %v892 = vunpack.c.h.b16 %v167
    %v893 = vunpack.c.l.b16 %v168
    %v894 = vunpack.c.h.b16 %v168
    %v895 = vunpack.c.l.b16 %v169
    %v896 = vunpack.c.h.b16 %v169
    %v897 = vunpack.c.l.b16 %v170
    %v898 = vunpack.c.h.b16 %v170
    %v899 = vunpack.c.l.b16 %v171
    %v900 = vunpack.c.h.b16 %v171
    %v901 = vunpack.c.l.b16 %v172
    %v902 = vunpack.c.h.b16 %v172
    %v903 = vunpack.c.l.b16 %v173
    %v904 = vunpack.c.h.b16 %v173
    %v905 = vunpack.c.l.b16 %v174
    %v906 = vunpack.c.h.b16 %v174
    %v907 = vunpack.c.l.b16 %v175
    %v908 = vunpack.c.h.b16 %v175
    %v909 = vunpack.c.l.b16 %v176
    %v910 = vunpack.c.h.b16 %v176
    %v911 = vunpack.c.l.b16 %v177
    %v912 = vunpack.c.h.b16 %v177
    %v913 = vunpack.c.l.b16 %v178
    %v914 = vunpack.c.h.b16 %v178
    %v915 = vunpack.c.l.b16 %v179
    %v916 = vunpack.c.h.b16 %v179
    %v917 = vunpack.c.l.b16 %v180
    %v918 = vunpack.c.h.b16 %v180
    %v919 = vunpack.c.l.b16 %v181
    %v920 = vunpack.c.h.b16 %v181
    %v921 = vunpack.c.l.b16 %v182
    %v922 = vunpack.c.h.b16 %v182
    %v923 = vunpack.c.l.b16 %v183
    %v924 = vunpack.c.h.b16 %v183
    %v925 = vunpack.c.l.b16 %v184
    %v926 = vunpack.c.h.b16 %v184
    %v927 = vunpack.c.l.b16 %v185
    %v928 = vunpack.c.h.b16 %v185
    %v929 = vunpack.c.l.b16 %v186
    %v930 = vunpack.c.h.b16 %v186
    %v931 = vunpack.c.l.b16 %v187
    %v932 = vunpack.c.h.b16 %v187
    %v933 = vunpack.c.l.b16 %v188
    %v934 = vunpack.c.h.b16 %v188
    %v935 = vunpack.c.l.b16 %v189
    %v936 = vunpack.c.h.b16 %v189
    %v937 = vunpack.c.l.b16 %v190
    %v938 = vunpack.c.h.b16 %v190
    %v939 = vunpack.c.l.b16 %v191
    %v940 = vunpack.c.h.b16 %v191
    %v941 = vunpack.c.l.b16 %v192
    %v942 = vunpack.c.h.b16 %v192
    %v943 = vunpack.c.l.b16 %v193
    %v944 = vunpack.c.h.b16 %v193
    %v945 = vunpack.c.l.b16 %v194
    %v946 = vunpack.c.h.b16 %v194
    %v947 = vunpack.c.l.b16 %v195
    %v948 = vunpack.c.h.b16 %v195
    %v949 = vunpack.c.l.b16 %v196
    %v950 = vunpack.c.h.b16 %v196
    %v951 = vunpack.c.l.b16 %v197
    %v952 = vunpack.c.h.b16 %v197
    %v953 = vunpack.c.l.b16 %v198
    %v954 = vunpack.c.h.b16 %v198
    %v955 = vunpack.c.l.b16 %v199
    %v956 = vunpack.c.h.b16 %v199
    %v957 = vunpack.c.l.b16 %v200
    %v958 = vunpack.c.h.b16 %v200
    %v959 = vunpack.c.l.b16 %v201
    %v960 = vunpack.c.h.b16 %v201
    %v961 = vunpack.c.l.b16 %v202
    %v962 = vunpack.c.h.b16 %v202
    %v963 = vunpack.c.l.b16 %v203
    %v964 = vunpack.c.h.b16 %v203
    %v965 = vunpack.c.l.b16 %v204
    %v966 = vunpack.c.h.b16 %v204
    %v967 = vunpack.c.l.b16 %v205
    %v968 = vunpack.c.h.b16 %v205
    %v969 = vunpack.c.l.b16 %v206
    %v970 = vunpack.c.h.b16 %v206
    %v971 = vunpack.c.l.b16 %v207
    %v972 = vunpack.c.h.b16 %v207
    %v973 = vunpack.c.l.b16 %v208
    %v974 = vunpack.c.h.b16 %v208
    %v975 = vunpack.c.l.b16 %v209
    %v976 = vunpack.c.h.b16 %v209
    %v977 = vunpack.c.l.b16 %v210
    %v978 = vunpack.c.h.b16 %v210
    %v979 = vunpack.c.l.b16 %v211
    %v980 = vunpack.c.h.b16 %v211
    %v981 = vunpack.c.l.b16 %v212
    %v982 = vunpack.c.h.b16 %v212
    %v983 = vunpack.c.l.b16 %v213
    %v984 = vunpack.c.h.b16 %v213
    %v985 = vunpack.c.l.b16 %v214
    %v986 = vunpack.c.h.b16 %v214
    %v987 = vunpack.c.l.b16 %v215
    %v988 = vunpack.c.h.b16 %v215
    %v989 = vunpack.c.l.b16 %v216
    %v990 = vunpack.c.h.b16 %v216
    %v991 = vunpack.c.l.b16 %v217
    %v992 = vunpack.c.h.b16 %v217
    %v993 = vunpack.c.l.b16 %v218
    %v994 = vunpack.c.h.b16 %v218
    %v995 = vunpack.c.l.b16 %v219
    %v996 = vunpack.c.h.b16 %v219
    %v997 = vunpack.c.l.b16 %v220
    %v998 = vunpack.c.h.b16 %v220
    %v999 = vunpack.c.l.b16 %v221
    %v1000 = vunpack.c.h.b16 %v221
    %v1001 = vunpack.c.l.b16 %v222
    %v1002 = vunpack.c.h.b16 %v222
    %v1003 = vunpack.c.l.b16 %v223
    %v1004 = vunpack.c.h.b16 %v223
    %v1005 = vunpack.c.l.b16 %v224
    %v1006 = vunpack.c.h.b16 %v224
    %v1007 = vunpack.c.l.b16 %v225
    %v1008 = vunpack.c.h.b16 %v225
    %v1009 = vunpack.c.l.b16 %v226
    %v1010 = vunpack.c.h.b16 %v226
    %v1011 = vunpack.c.l.b16 %v227
    %v1012 = vunpack.c.h.b16 %v227
    %v1013 = vunpack.c.l.b16 %v228
    %v1014 = vunpack.c.h.b16 %v228
    %v1015 = vunpack.c.l.b16 %v229
    %v1016 = vunpack.c.h.b16 %v229
    %v1017 = vunpack.c.l.b16 %v230
    %v1018 = vunpack.c.h.b16 %v230
    %v1019 = vunpack.c.l.b16 %v231
    %v1020 = vunpack.c.h.b16 %v231
    %v1021 = vunpack.c.l.b16 %v232
    %v1022 = vunpack.c.h.b16 %v232
    %v1023 = vunpack.c.l.b16 %v233
    %v1024 = vunpack.c.h.b16 %v233
    %v1025 = vunpack.c.l.b16 %v234
    %v1026 = vunpack.c.h.b16 %v234
    %v1027 = vunpack.c.l.b16 %v235
    %v1028 = vunpack.c.h.b16 %v235
    %v1029 = vunpack.c.l.b16 %v236
    %v1030 = vunpack.c.h.b16 %v236
    %v1031 = vunpack.c.l.b16 %v237
    %v1032 = vunpack.c.h.b16 %v237
    %v1033 = vunpack.c.l.b16 %v238
    %v1034 = vunpack.c.h.b16 %v238
    %v1035 = vunpack.c.l.b16 %v239
    %v1036 = vunpack.c.h.b16 %v239
    %v1037 = vunpack.c.l.b16 %v240
    %v1038 = vunpack.c.h.b16 %v240
    %v1039 = vunpack.c.l.b16 %v241
    %v1040 = vunpack.c.h.b16 %v241
    %v1041 = vunpack.c.l.b16 %v242
    %v1042 = vunpack.c.h.b16 %v242
    %v1043 = vunpack.c.l.b16 %v243
    %v1044 = vunpack.c.h.b16 %v243
    %v1045 = vunpack.c.l.b16 %v244
    %v1046 = vunpack.c.h.b16 %v244
    %v1047 = vunpack.c.l.b16 %v245
    %v1048 = vunpack.c.h.b16 %v245
    %v1049 = vunpack.c.l.b16 %v246
    %v1050 = vunpack.c.h.b16 %v246
    %v1051 = vunpack.c.l.b16 %v247
    %v1052 = vunpack.c.h.b16 %v247
    %v1053 = vunpack.c.l.b16 %v248
    %v1054 = vunpack.c.h.b16 %v248
    %v1055 = vunpack.c.l.b16 %v249
    %v1056 = vunpack.c.h.b16 %v249
    %v1057 = vunpack.c.l.b16 %v250
    %v1058 = vunpack.c.h.b16 %v250
    %v1059 = vunpack.c.l.b16 %v251
    %v1060 = vunpack.c.h.b16 %v251
    %v1061 = vunpack.c.l.b16 %v252
    %v1062 = vunpack.c.h.b16 %v252
    %v1063 = vunpack.c.l.b16 %v253
    %v1064 = vunpack.c.h.b16 %v253
    %v1065 = vunpack.c.l.b16 %v254
    %v1066 = vunpack.c.h.b16 %v254
    %v1067 = vunpack.c.l.b16 %v255
    %v1068 = vunpack.c.h.b16 %v255
    %v1069 = vunpack.c.l.b16 %v256
    %v1070 = vunpack.c.h.b16 %v256
    %v1071 = vunpack.c.l.b16 %v257
    %v1072 = vunpack.c.h.b16 %v257
    %v1073 = vunpack.c.l.b16 %v258
    %v1074 = vunpack.c.h.b16 %v258
    %v1075 = vunpack.c.l.b16 %v259
    %v1076 = vunpack.c.h.b16 %v259
    %v1077 = vunpack.c.l.b16 %v260
    %v1078 = vunpack.c.h.b16 %v260
    %v1079 = vunpack.c.l.b16 %v261
    %v1080 = vunpack.c.h.b16 %v261
    %v1081 = vunpack.c.l.b16 %v262
    %v1082 = vunpack.c.h.b16 %v262
    %v1083 = vunpack.c.l.b16 %v263
    %v1084 = vunpack.c.h.b16 %v263
    %v1085 = vunpack.c.l.b16 %v264
    %v1086 = vunpack.c.h.b16 %v264
    %v1087 = vunpack.c.l.b16 %v265
    %v1088 = vunpack.c.h.b16 %v265
    %v1089 = vunpack.c.l.b16 %v266
    %v1090 = vunpack.c.h.b16 %v266
    %v1091 = vunpack.c.l.b16 %v267
    %v1092 = vunpack.c.h.b16 %v267
    %v1093 = vunpack.c.l.b16 %v268
    %v1094 = vunpack.c.h.b16 %v268
    %v1095 = vunpack.c.l.b16 %v269
    %v1096 = vunpack.c.h.b16 %v269
    %v1097 = vunpack.c.l.b16 %v270
    %v1098 = vunpack.c.h.b16 %v270
    %v1099 = vunpack.c.l.b16 %v271
    %v1100 = vunpack.c.h.b16 %v271
    %v1101 = vunpack.c.l.b16 %v272
    %v1102 = vunpack.c.h.b16 %v272
    %v1103 = vunpack.c.l.b16 %v273
    %v1104 = vunpack.c.h.b16 %v273
    %v1105 = vunpack.c.l.b16 %v274
    %v1106 = vunpack.c.h.b16 %v274
    %v1107 = vunpack.c.l.b16 %v275
    %v1108 = vunpack.c.h.b16 %v275
    %v1109 = vunpack.c.l.b16 %v276
    %v1110 = vunpack.c.h.b16 %v276
    %v1111 = vunpack.c.l.b16 %v277
    %v1112 = vunpack.c.h.b16 %v277
    %v1113 = vunpack.c.l.b16 %v278
    %v1114 = vunpack.c.h.b16 %v278
    %v1115 = vunpack.c.l.b16 %v279
    %v1116 = vunpack.c.h.b16 %v279
    %v1117 = vunpack.c.l.b16 %v280
    %v1118 = vunpack.c.h.b16 %v280
    %v1119 = vunpack.c.l.b16 %v281
    %v1120 = vunpack.c.h.b16 %v281
    %v1121 = vunpack.c.l.b16 %v282
    %v1122 = vunpack.c.h.b16 %v282
    %v1123 = vunpack.c.l.b16 %v283
    %v1124 = vunpack.c.h.b16 %v283
    %v1125 = vunpack.c.l.b16 %v284
    %v1126 = vunpack.c.h.b16 %v284
    %v1127 = vunpack.c.l.b16 %v285
    %v1128 = vunpack.c.h.b16 %v285
    %v1129 = vunpack.c.l.b16 %v286
    %v1130 = vunpack.c.h.b16 %v286
    %v1131 = vunpack.c.l.b16 %v287
    %v1132 = vunpack.c.h.b16 %v287
    %v1133 = vunpack.c.l.b16 %v288
    %v1134 = vunpack.c.h.b16 %v288
    %v1135 = vunpack.c.l.b16 %v289
    %v1136 = vunpack.c.h.b16 %v289
    %v1137 = vunpack.c.l.b16 %v290
    %v1138 = vunpack.c.h.b16 %v290
    %v1139 = vunpack.c.l.b16 %v291
    %v1140 = vunpack.c.h.b16 %v291
    %v1141 = vunpack.c.l.b16 %v292
    %v1142 = vunpack.c.h.b16 %v292
    %v1143 = vunpack.c.l.b16 %v293
    %v1144 = vunpack.c.h.b16 %v293
    %v1145 = vunpack.c.l.b16 %v294
    %v1146 = vunpack.c.h.b16 %v294
    %v1147 = vunpack.c.l.b16 %v295
    %v1148 = vunpack.c.h.b16 %v295
    %v1149 = vunpack.c.l.b16 %v296
    %v1150 = vunpack.c.h.b16 %v296
    %v1151 = vunpack.c.l.b16 %v297
    %v1152 = vunpack.c.h.b16 %v297
    %v1153 = vunpack.c.l.b16 %v298
    %v1154 = vunpack.c.h.b16 %v298
    %v1155 = vunpack.c.l.b16 %v299
    %v1156 = vunpack.c.h.b16 %v299
    %v1157 = vunpack.c.l.b16 %v300
    %v1158 = vunpack.c.h.b16 %v300
    %v1159 = vunpack.c.l.b16 %v301
    %v1160 = vunpack.c.h.b16 %v301
    %v1161 = vunpack.c.l.b16 %v302
    %v1162 = vunpack.c.h.b16 %v302
    %v1163 = vunpack.c.l.b16 %v303
    %v1164 = vunpack.c.h.b16 %v303
    %v1165 = vunpack.c.l.b16 %v304
    %v1166 = vunpack.c.h.b16 %v304
    %v1167 = vunpack.c.l.b16 %v305
    %v1168 = vunpack.c.h.b16 %v305
    %v1169 = vunpack.c.l.b16 %v306
    %v1170 = vunpack.c.h.b16 %v306
    %v1171 = vunpack.c.l.b16 %v307
    %v1172 = vunpack.c.h.b16 %v307
    %v1173 = vunpack.c.l.b16 %v308
    %v1174 = vunpack.c.h.b16 %v308
    %v1175 = vunpack.c.l.b16 %v309
    %v1176 = vunpack.c.h.b16 %v309
    %v1177 = vunpack.c.l.b16 %v310
    %v1178 = vunpack.c.h.b16 %v310
    %v1179 = vunpack.c.l.b16 %v311
    %v1180 = vunpack.c.h.b16 %v311
    %v1181 = vunpack.c.l.b16 %v312
    %v1182 = vunpack.c.h.b16 %v312
    %v1183 = vunpack.c.l.b16 %v313
    %v1184 = vunpack.c.h.b16 %v313
    %v1185 = vunpack.c.l.b16 %v314
    %v1186 = vunpack.c.h.b16 %v314
    %v1187 = vunpack.c.l.b16 %v315
    %v1188 = vunpack.c.h.b16 %v315
    %v1189 = vunpack.c.l.b16 %v316
    %v1190 = vunpack.c.h.b16 %v316
    %v1191 = vunpack.c.l.b16 %v317
    %v1192 = vunpack.c.h.b16 %v317
    %v1193 = vunpack.c.l.b16 %v318
    %v1194 = vunpack.c.h.b16 %v318
    %v1195 = vunpack.c.l.b16 %v319
    %v1196 = vunpack.c.h.b16 %v319
    %v1197 = vunpack.c.l.b16 %v320
    %v1198 = vunpack.c.h.b16 %v320
    %v1199 = vunpack.c.l.b16 %v321
    %v1200 = vunpack.c.h.b16 %v321
    %v1201 = vunpack.c.l.b16 %v322
    %v1202 = vunpack.c.h.b16 %v322
    %v1203 = vunpack.c.l.b16 %v323
    %v1204 = vunpack.c.h.b16 %v323
    %v1205 = vunpack.c.l.b16 %v324
    %v1206 = vunpack.c.h.b16 %v324
    %v1207 = vunpack.c.l.b16 %v325
    %v1208 = vunpack.c.h.b16 %v325
    %v1209 = vunpack.c.l.b16 %v326
    %v1210 = vunpack.c.h.b16 %v326
    %v1211 = vunpack.c.l.b16 %v327
    %v1212 = vunpack.c.h.b16 %v327
    %v1213 = vunpack.c.l.b16 %v328
    %v1214 = vunpack.c.h.b16 %v328
    %v1215 = vunpack.c.l.b16 %v329
    %v1216 = vunpack.c.h.b16 %v329
    %v1217 = vunpack.c.l.b16 %v330
    %v1218 = vunpack.c.h.b16 %v330
    %v1219 = vunpack.c.l.b16 %v331
    %v1220 = vunpack.c.h.b16 %v331
    %v1221 = vunpack.c.l.b16 %v332
    %v1222 = vunpack.c.h.b16 %v332
    %v1223 = vunpack.c.l.b16 %v333
    %v1224 = vunpack.c.h.b16 %v333
    %v1225 = vunpack.c.l.b16 %v334
    %v1226 = vunpack.c.h.b16 %v334
    %v1227 = vunpack.c.l.b16 %v335
    %v1228 = vunpack.c.h.b16 %v335
    %v1229 = vunpack.c.l.b16 %v336
    %v1230 = vunpack.c.h.b16 %v336
    %v1231 = vunpack.c.l.b16 %v337
    %v1232 = vunpack.c.h.b16 %v337
    %v1233 = vunpack.c.l.b16 %v338
    %v1234 = vunpack.c.h.b16 %v338
    %v1235 = vunpack.c.l.b16 %v339
    %v1236 = vunpack.c.h.b16 %v339
    %v1237 = vunpack.c.l.b16 %v340
    %v1238 = vunpack.c.h.b16 %v340
    %v1239 = vunpack.c.l.b16 %v341
    %v1240 = vunpack.c.h.b16 %v341
    %v1241 = vunpack.c.l.b16 %v342
    %v1242 = vunpack.c.h.b16 %v342
    %v1243 = vunpack.c.l.b16 %v343
    %v1244 = vunpack.c.h.b16 %v343
    %v1245 = vunpack.c.l.b16 %v344
    %v1246 = vunpack.c.h.b16 %v344
    %v1247 = vunpack.c.l.b16 %v345
    %v1248 = vunpack.c.h.b16 %v345
    %v1249 = vunpack.c.l.b16 %v346
    %v1250 = vunpack.c.h.b16 %v346
    %v1251 = vunpack.c.l.b16 %v347
    %v1252 = vunpack.c.h.b16 %v347
    %v1253 = vunpack.c.l.b16 %v348
    %v1254 = vunpack.c.h.b16 %v348
    %v1255 = vunpack.c.l.b16 %v349
    %v1256 = vunpack.c.h.b16 %v349
    %v1257 = vunpack.c.l.b16 %v350
    %v1258 = vunpack.c.h.b16 %v350
    %v1259 = vunpack.c.l.b16 %v351
    %v1260 = vunpack.c.h.b16 %v351
    %v1261 = vunpack.c.l.b16 %v352
    %v1262 = vunpack.c.h.b16 %v352
    %v1263 = vunpack.c.l.b16 %v353
    %v1264 = vunpack.c.h.b16 %v353
    %v1265 = vunpack.c.l.b16 %v354
    %v1266 = vunpack.c.h.b16 %v354
    %v1267 = vunpack.c.l.b16 %v355
    %v1268 = vunpack.c.h.b16 %v355
    %v1269 = vunpack.c.l.b16 %v356
    %v1270 = vunpack.c.h.b16 %v356
    %v1271 = vunpack.c.l.b16 %v357
    %v1272 = vunpack.c.h.b16 %v357
    %v1273 = vunpack.c.l.b16 %v358
    %v1274 = vunpack.c.h.b16 %v358
    %v1275 = vunpack.c.l.b16 %v359
    %v1276 = vunpack.c.h.b16 %v359
    %v1277 = vunpack.c.l.b16 %v360
    %v1278 = vunpack.c.h.b16 %v360
    %v1279 = vunpack.c.l.b16 %v361
    %v1280 = vunpack.c.h.b16 %v361
    %v1281 = vunpack.c.l.b16 %v362
    %v1282 = vunpack.c.h.b16 %v362
    %v1283 = vunpack.c.l.b16 %v363
    %v1284 = vunpack.c.h.b16 %v363
    %v1285 = vunpack.c.l.b16 %v364
    %v1286 = vunpack.c.h.b16 %v364
    %v1287 = vunpack.c.l.b16 %v365
    %v1288 = vunpack.c.h.b16 %v365
    %v1289 = vunpack.c.l.b16 %v366
    %v1290 = vunpack.c.h.b16 %v366
    %v1291 = vunpack.c.l.b16 %v367
    %v1292 = vunpack.c.h.b16 %v367
    %v1293 = vunpack.c.l.b16 %v368
    %v1294 = vunpack.c.h.b16 %v368
    %v1295 = vunpack.c.l.b16 %v369
    %v1296 = vunpack.c.h.b16 %v369
    %v1297 = vunpack.c.l.b16 %v370
    %v1298 = vunpack.c.h.b16 %v370
    %v1299 = vunpack.c.l.b16 %v371
    %v1300 = vunpack.c.h.b16 %v371
    %v1301 = vunpack.c.l.b16 %v372
    %v1302 = vunpack.c.h.b16 %v372
    %v1303 = vunpack.c.l.b16 %v373
    %v1304 = vunpack.c.h.b16 %v373
    %v1305 = vunpack.c.l.b16 %v374
    %v1306 = vunpack.c.h.b16 %v374
    %v1307 = vunpack.c.l.b16 %v375
    %v1308 = vunpack.c.h.b16 %v375
    %v1309 = vunpack.c.l.b16 %v376
    %v1310 = vunpack.c.h.b16 %v376
    %v1311 = vunpack.c.l.b16 %v377
    %v1312 = vunpack.c.h.b16 %v377
    %v1313 = vunpack.c.l.b16 %v378
    %v1314 = vunpack.c.h.b16 %v378
    %v1315 = vunpack.c.l.b16 %v379
    %v1316 = vunpack.c.h.b16 %v379
    %v1317 = vunpack.c.l.b16 %v380
    %v1318 = vunpack.c.h.b16 %v380
    %v1319 = vunpack.c.l.b16 %v381
    %v1320 = vunpack.c.h.b16 %v381
    %v1321 = vunpack.c.l.b16 %v382
    %v1322 = vunpack.c.h.b16 %v382
    %v1323 = vunpack.c.l.b16 %v383
    %v1324 = vunpack.c.h.b16 %v383
    %v1325 = vunpack.c.l.b16 %v384
    %v1326 = vunpack.c.h.b16 %v384
    %v1327 = vunpack.c.l.b16 %v385
    %v1328 = vunpack.c.h.b16 %v385
    %v1329 = vunpack.c.l.b16 %v386
    %v1330 = vunpack.c.h.b16 %v386
    %v1331 = vunpack.c.l.b16 %v387
    %v1332 = vunpack.c.h.b16 %v387
    %v1333 = vunpack.c.l.b16 %v388
    %v1334 = vunpack.c.h.b16 %v388
    %v1335 = vpack.c.b16 %v831, %v823
    %v1336 = vpack.c.b16 %v832, %v824
    %v1337 = vpack.c.b16 %v833, %v825
    %v1338 = vpack.c.b16 %v834, %v826
    %v1339 = vpack.c.b16 %v835, %v827
    %v1340 = vpack.c.b16 %v836, %v828
    %v1341 = vpack.c.b16 %v837, %v829
    %v1342 = vpack.c.b16 %v838, %v830
    %v1343 = vpack.c.b16 %v847, %v839
    %v1344 = vpack.c.b16 %v848, %v840
    %v1345 = vpack.c.b16 %v849, %v841
    %v1346 = vpack.c.b16 %v850, %v842
    %v1347 = vpack.c.b16 %v851, %v843
    %v1348 = vpack.c.b16 %v852, %v844
    %v1349 = vpack.c.b16 %v853, %v845
    %v1350 = vpack.c.b16 %v854, %v846
    %v1351 = vpack.c.b16 %v863, %v855
    %v1352 = vpack.c.b16 %v864, %v856
    %v1353 = vpack.c.b16 %v865, %v857
    %v1354 = vpack.c.b16 %v866, %v858
    %v1355 = vpack.c.b16 %v867, %v859
    %v1356 = vpack.c.b16 %v868, %v860
    %v1357 = vpack.c.b16 %v869, %v861
    %v1358 = vpack.c.b16 %v870, %v862
    %v1359 = vpack.c.b16 %v879, %v871
    %v1360 = vpack.c.b16 %v880, %v872
    %v1361 = vpack.c.b16 %v881, %v873
    %v1362 = vpack.c.b16 %v882, %v874
    %v1363 = vpack.c.b16 %v883, %v875
    %v1364 = vpack.c.b16 %v884, %v876
    %v1365 = vpack.c.b16 %v885, %v877
    %v1366 = vpack.c.b16 %v886, %v878
    %v1367 = vpack.c.b16 %v895, %v887
    %v1368 = vpack.c.b16 %v896, %v888
    %v1369 = vpack.c.b16 %v897, %v889
    %v1370 = vpack.c.b16 %v898, %v890
    %v1371 = vpack.c.b16 %v899, %v891
    %v1372 = vpack.c.b16 %v900, %v892
    %v1373 = vpack.c.b16 %v901, %v893
    %v1374 = vpack.c.b16 %v902, %v894
    %v1375 = vpack.c.b16 %v911, %v903
    %v1376 = vpack.c.b16 %v912, %v904
    %v1377 = vpack.c.b16 %v913, %v905
    %v1378 = vpack.c.b16 %v914, %v906
    %v1379 = vpack.c.b16 %v915, %v907
    %v1380 = vpack.c.b16 %v916, %v908
    %v1381 = vpack.c.b16 %v917, %v909
    %v1382 = vpack.c.b16 %v918, %v910
    %v1383 = vpack.c.b16 %v927, %v919
    %v1384 = vpack.c.b16 %v928, %v920
    %v1385 = vpack.c.b16 %v929, %v921
    %v1386 = vpack.c.b16 %v930, %v922
    %v1387 = vpack.c.b16 %v931, %v923
    %v1388 = vpack.c.b16 %v932, %v924
    %v1389 = vpack.c.b16 %v933, %v925
    %v1390 = vpack.c.b16 %v934, %v926
    %v1391 = vpack.c.b16 %v943, %v935
    %v1392 = vpack.c.b16 %v944, %v936
    %v1393 = vpack.c.b16 %v945, %v937
    %v1394 = vpack.c.b16 %v946, %v938
    %v1395 = vpack.c.b16 %v947, %v939
    %v1396 = vpack.c.b16 %v948, %v940
    %v1397 = vpack.c.b16 %v949, %v941
    %v1398 = vpack.c.b16 %v950, %v942
    %v1399 = vpack.c.b16 %v959, %v951
    %v1400 = vpack.c.b16 %v960, %v952
    %v1401 = vpack.c.b16 %v961, %v953
    %v1402 = vpack.c.b16 %v962, %v954
    %v1403 = vpack.c.b16 %v963, %v955
    %v1404 = vpack.c.b16 %v964, %v956
    %v1405 = vpack.c.b16 %v965, %v957
    %v1406 = vpack.c.b16 %v966, %v958
    %v1407 = vpack.c.b16 %v975, %v967
    %v1408 = vpack.c.b16 %v976, %v968
    %v1409 = vpack.c.b16 %v977, %v969
    %v1410 = vpack.c.b16 %v978, %v970
    %v1411 = vpack.c.b16 %v979, %v971
    %v1412 = vpack.c.b16 %v980, %v972
    %v1413 = vpack.c.b16 %v981, %v973
    %v1414 = vpack.c.b16 %v982, %v974
    %v1415 = vpack.c.b16 %v991, %v983
    %v1416 = vpack.c.b16 %v992, %v984
    %v1417 = vpack.c.b16 %v993, %v985
    %v1418 = vpack.c.b16 %v994, %v986
    %v1419 = vpack.c.b16 %v995, %v987
    %v1420 = vpack.c.b16 %v996, %v988
    %v1421 = vpack.c.b16 %v997, %v989
    %v1422 = vpack.c.b16 %v998, %v990
    %v1423 = vpack.c.b16 %v1007, %v999
    %v1424 = vpack.c.b16 %v1008, %v1000
    %v1425 = vpack.c.b16 %v1009, %v1001
    %v1426 = vpack.c.b16 %v1010, %v1002
    %v1427 = vpack.c.b16 %v1011, %v1003
    %v1428 = vpack.c.b16 %v1012, %v1004
    %v1429 = vpack.c.b16 %v1013, %v1005
    %v1430 = vpack.c.b16 %v1014, %v1006
    %v1431 = vpack.c.b16 %v1023, %v1015
    %v1432 = vpack.c.b16 %v1024, %v1016
    %v1433 = vpack.c.b16 %v1025, %v1017
    %v1434 = vpack.c.b16 %v1026, %v1018
    %v1435 = vpack.c.b16 %v1027, %v1019
    %v1436 = vpack.c.b16 %v1028, %v1020
    %v1437 = vpack.c.b16 %v1029, %v1021
    %v1438 = vpack.c.b16 %v1030, %v1022
    %v1439 = vpack.c.b16 %v1039, %v1031
    %v1440 = vpack.c.b16 %v1040, %v1032
    %v1441 = vpack.c.b16 %v1041, %v1033
    %v1442 = vpack.c.b16 %v1042, %v1034
    %v1443 = vpack.c.b16 %v1043, %v1035
    %v1444 = vpack.c.b16 %v1044, %v1036
    %v1445 = vpack.c.b16 %v1045, %v1037
    %v1446 = vpack.c.b16 %v1046, %v1038
    %v1447 = vpack.c.b16 %v1055, %v1047
    %v1448 = vpack.c.b16 %v1056, %v1048
    %v1449 = vpack.c.b16 %v1057, %v1049
    %v1450 = vpack.c.b16 %v1058, %v1050
    %v1451 = vpack.c.b16 %v1059, %v1051
    %v1452 = vpack.c.b16 %v1060, %v1052
    %v1453 = vpack.c.b16 %v1061, %v1053
    %v1454 = vpack.c.b16 %v1062, %v1054
    %v1455 = vpack.c.b16 %v1071, %v1063
    %v1456 = vpack.c.b16 %v1072, %v1064
    %v1457 = vpack.c.b16 %v1073, %v1065
    %v1458 = vpack.c.b16 %v1074, %v1066
    %v1459 = vpack.c.b16 %v1075, %v1067
    %v1460 = vpack.c.b16 %v1076, %v1068
    %v1461 = vpack.c.b16 %v1077, %v1069
    %v1462 = vpack.c.b16 %v1078, %v1070
    %v1463 = vpack.c.b16 %v1087, %v1079
    %v1464 = vpack.c.b16 %v1088, %v1080
    %v1465 = vpack.c.b16 %v1089, %v1081
    %v1466 = vpack.c.b16 %v1090, %v1082
    %v1467 = vpack.c.b16 %v1091, %v1083
    %v1468 = vpack.c.b16 %v1092, %v1084
    %v1469 = vpack.c.b16 %v1093, %v1085
    %v1470 = vpack.c.b16 %v1094, %v1086
    %v1471 = vpack.c.b16 %v1103, %v1095
    %v1472 = vpack.c.b16 %v1104, %v1096
    %v1473 = vpack.c.b16 %v1105, %v1097
    %v1474 = vpack.c.b16 %v1106, %v1098
    %v1475 = vpack.c.b16 %v1107, %v1099
    %v1476 = vpack.c.b16 %v1108, %v1100
    %v1477 = vpack.c.b16 %v1109, %v1101
    %v1478 = vpack.c.b16 %v1110, %v1102
    %v1479 = vpack.c.b16 %v1119, %v1111
    %v1480 = vpack.c.b16 %v1120, %v1112
    %v1481 = vpack.c.b16 %v1121, %v1113
    %v1482 = vpack.c.b16 %v1122, %v1114
    %v1483 = vpack.c.b16 %v1123, %v1115
    %v1484 = vpack.c.b16 %v1124, %v1116
    %v1485 = vpack.c.b16 %v1125, %v1117
    %v1486 = vpack.c.b16 %v1126, %v1118
    %v1487 = vpack.c.b16 %v1135, %v1127
    %v1488 = vpack.c.b16 %v1136, %v1128
    %v1489 = vpack.c.b16 %v1137, %v1129
    %v1490 = vpack.c.b16 %v1138, %v1130
    %v1491 = vpack.c.b16 %v1139, %v1131
    %v1492 = vpack.c.b16 %v1140, %v1132
    %v1493 = vpack.c.b16 %v1141, %v1133
    %v1494 = vpack.c.b16 %v1142, %v1134
    %v1495 = vpack.c.b16 %v1151, %v1143
    %v1496 = vpack.c.b16 %v1152, %v1144
    %v1497 = vpack.c.b16 %v1153, %v1145
    %v1498 = vpack.c.b16 %v1154, %v1146
    %v1499 = vpack.c.b16 %v1155, %v1147
    %v1500 = vpack.c.b16 %v1156, %v1148
    %v1501 = vpack.c.b16 %v1157, %v1149
    %v1502 = vpack.c.b16 %v1158, %v1150
    %v1503 = vpack.c.b16 %v1167, %v1159
    %v1504 = vpack.c.b16 %v1168, %v1160
    %v1505 = vpack.c.b16 %v1169, %v1161
    %v1506 = vpack.c.b16 %v1170, %v1162
    %v1507 = vpack.c.b16 %v1171, %v1163
    %v1508 = vpack.c.b16 %v1172, %v1164
    %v1509 = vpack.c.b16 %v1173, %v1165
    %v1510 = vpack.c.b16 %v1174, %v1166
    %v1511 = vpack.c.b16 %v1183, %v1175
    %v1512 = vpack.c.b16 %v1184, %v1176
    %v1513 = vpack.c.b16 %v1185, %v1177
    %v1514 = vpack.c.b16 %v1186, %v1178
    %v1515 = vpack.c.b16 %v1187, %v1179
    %v1516 = vpack.c.b16 %v1188, %v1180
    %v1517 = vpack.c.b16 %v1189, %v1181
    %v1518 = vpack.c.b16 %v1190, %v1182
    %v1519 = vpack.c.b16 %v1199, %v1191
    %v1520 = vpack.c.b16 %v1200, %v1192
    %v1521 = vpack.c.b16 %v1201, %v1193
    %v1522 = vpack.c.b16 %v1202, %v1194
    %v1523 = vpack.c.b16 %v1203, %v1195
    %v1524 = vpack.c.b16 %v1204, %v1196
    %v1525 = vpack.c.b16 %v1205, %v1197
    %v1526 = vpack.c.b16 %v1206, %v1198
    %v1527 = vpack.c.b16 %v1215, %v1207
    %v1528 = vpack.c.b16 %v1216, %v1208
    %v1529 = vpack.c.b16 %v1217, %v1209
    %v1530 = vpack.c.b16 %v1218, %v1210
    %v1531 = vpack.c.b16 %v1219, %v1211
    %v1532 = vpack.c.b16 %v1220, %v1212
    %v1533 = vpack.c.b16 %v1221, %v1213
    %v1534 = vpack.c.b16 %v1222, %v1214
    %v1535 = vpack.c.b16 %v1231, %v1223
    %v1536 = vpack.c.b16 %v1232, %v1224
    %v1537 = vpack.c.b16 %v1233, %v1225
    %v1538 = vpack.c.b16 %v1234, %v1226
    %v1539 = vpack.c.b16 %v1235, %v1227
    %v1540 = vpack.c.b16 %v1236, %v1228
    %v1541 = vpack.c.b16 %v1237, %v1229
    %v1542 = vpack.c.b16 %v1238, %v1230
    %v1543 = vpack.c.b16 %v1247, %v1239
    %v1544 = vpack.c.b16 %v1248, %v1240
    %v1545 = vpack.c.b16 %v1249, %v1241
    %v1546 = vpack.c.b16 %v1250, %v1242
    %v1547 = vpack.c.b16 %v1251, %v1243
    %v1548 = vpack.c.b16 %v1252, %v1244
    %v1549 = vpack.c.b16 %v1253, %v1245
    %v1550 = vpack.c.b16 %v1254, %v1246
    %v1551 = vpack.c.b16 %v1263, %v1255
    %v1552 = vpack.c.b16 %v1264, %v1256
    %v1553 = vpack.c.b16 %v1265, %v1257
    %v1554 = vpack.c.b16 %v1266, %v1258
    %v1555 = vpack.c.b16 %v1267, %v1259
    %v1556 = vpack.c.b16 %v1268, %v1260
    %v1557 = vpack.c.b16 %v1269, %v1261
    %v1558 = vpack.c.b16 %v1270, %v1262
    %v1559 = vpack.c.b16 %v1279, %v1271
    %v1560 = vpack.c.b16 %v1280, %v1272
    %v1561 = vpack.c.b16 %v1281, %v1273
    %v1562 = vpack.c.b16 %v1282, %v1274
    %v1563 = vpack.c.b16 %v1283, %v1275
    %v1564 = vpack.c.b16 %v1284, %v1276
    %v1565 = vpack.c.b16 %v1285, %v1277
    %v1566 = vpack.c.b16 %v1286, %v1278
    %v1567 = vpack.c.b16 %v1295, %v1287
    %v1568 = vpack.c.b16 %v1296, %v1288
    %v1569 = vpack.c.b16 %v1297, %v1289
    %v1570 = vpack.c.b16 %v1298, %v1290
    %v1571 = vpack.c.b16 %v1299, %v1291
    %v1572 = vpack.c.b16 %v1300, %v1292
    %v1573 = vpack.c.b16 %v1301, %v1293
    %v1574 = vpack.c.b16 %v1302, %v1294
    %v1575 = vpack.c.b16 %v1311, %v1303
    %v1576 = vpack.c.b16 %v1312, %v1304
    %v1577 = vpack.c.b16 %v1313, %v1305
    %v1578 = vpack.c.b16 %v1314, %v1306
    %v1579 = vpack.c.b16 %v1315, %v1307
    %v1580 = vpack.c.b16 %v1316, %v1308
    %v1581 = vpack.c.b16 %v1317, %v1309
    %v1582 = vpack.c.b16 %v1318, %v1310
    %v1583 = vpack.c.b16 %v1327, %v1319
    %v1584 = vpack.c.b16 %v1328, %v1320
    %v1585 = vpack.c.b16 %v1329, %v1321
    %v1586 = vpack.c.b16 %v1330, %v1322
    %v1587 = vpack.c.b16 %v1331, %v1323
    %v1588 = vpack.c.b16 %v1332, %v1324
    %v1589 = vpack.c.b16 %v1333, %v1325
    %v1590 = vpack.c.b16 %v1334, %v1326
    %1847 = vmatpush.bf16.msra.mxu0 %v1391
    %1848 = vmatpush.bf16.msra.mxu0 %v1383
    %1849 = vmatpush.bf16.msra.mxu0 %v1375
    %1850 = vmatpush.bf16.msra.mxu0 %v1367
    %1851 = vmatpush.bf16.msra.mxu0 %v1359
    %1852 = vmatpush.bf16.msra.mxu0 %v1351
    %1853 = vmatpush.bf16.msra.mxu0 %v1343
    %1854 = vmatpush.bf16.msra.mxu0 %v1335
    %1855 = vmatmul.bf16.gmra.mxu0 %v503
    %v1856 = vpop.f32.mrf.mxu0
    %v1857 = vadd.f32 %v391, %v1856
    %v1858 = vpop.f32.mrf.mxu0
    %v1859 = vadd.f32 %v391, %v1858
    %1860 = vmatmul.bf16.gmra.mxu0 %v507
    %v1861 = vpop.f32.mrf.mxu0
    %v1862 = vadd.f32 %v391, %v1861
    %v1863 = vpop.f32.mrf.mxu0
    %v1864 = vadd.f32 %v391, %v1863
    %1865 = vmatmul.bf16.gmra.mxu0 %v511
    %v1866 = vpop.f32.mrf.mxu0
    %v1867 = vadd.f32 %v391, %v1866
    %v1868 = vpop.f32.mrf.mxu0
    %v1869 = vadd.f32 %v391, %v1868
    %1870 = vmatmul.bf16.gmra.mxu0 %v515
    %v1871 = vpop.f32.mrf.mxu0
    %v1872 = vadd.f32 %v391, %v1871
    %v1873 = vpop.f32.mrf.mxu0
    %v1874 = vadd.f32 %v391, %v1873
    %1875 = vmatmul.bf16.gmra.mxu0 %v519
    %v1876 = vpop.f32.mrf.mxu0
    %v1877 = vadd.f32 %v391, %v1876
    %v1878 = vpop.f32.mrf.mxu0
    %v1879 = vadd.f32 %v391, %v1878
    %1880 = vmatmul.bf16.gmra.mxu0 %v523
    %v1881 = vpop.f32.mrf.mxu0
    %v1882 = vadd.f32 %v391, %v1881
    %v1883 = vpop.f32.mrf.mxu0
    %v1884 = vadd.f32 %v391, %v1883
    %1885 = vmatmul.bf16.gmra.mxu0 %v527
    %v1886 = vpop.f32.mrf.mxu0
    %v1887 = vadd.f32 %v391, %v1886
    %v1888 = vpop.f32.mrf.mxu0
    %v1889 = vadd.f32 %v391, %v1888
    %1890 = vmatmul.bf16.gmra.mxu0 %v531
    %v1891 = vpop.f32.mrf.mxu0
    %v1892 = vadd.f32 %v391, %v1891
    %v1893 = vpop.f32.mrf.mxu0
    %v1894 = vadd.f32 %v391, %v1893
    %1895 = vdwg.mxu0
    %1896 = vmatpush.bf16.msra.mxu0 %v1455
    %1897 = vmatpush.bf16.msra.mxu0 %v1447
    %1898 = vmatpush.bf16.msra.mxu0 %v1439
    %1899 = vmatpush.bf16.msra.mxu0 %v1431
    %1900 = vmatpush.bf16.msra.mxu0 %v1423
    %1901 = vmatpush.bf16.msra.mxu0 %v1415
    %1902 = vmatpush.bf16.msra.mxu0 %v1407
    %1903 = vmatpush.bf16.msra.mxu0 %v1399
    %1904 = vmatmul.bf16.gmra.mxu0 %v504
    %v1905 = vpop.f32.mrf.mxu0
    %v1906 = vadd.f32 %v1857, %v1905
    %v1907 = vpop.f32.mrf.mxu0
    %v1908 = vadd.f32 %v1859, %v1907
    %1909 = vmatmul.bf16.gmra.mxu0 %v508
    %v1910 = vpop.f32.mrf.mxu0
    %v1911 = vadd.f32 %v1862, %v1910
    %v1912 = vpop.f32.mrf.mxu0
    %v1913 = vadd.f32 %v1864, %v1912
    %1914 = vmatmul.bf16.gmra.mxu0 %v512
    %v1915 = vpop.f32.mrf.mxu0
    %v1916 = vadd.f32 %v1867, %v1915
    %v1917 = vpop.f32.mrf.mxu0
    %v1918 = vadd.f32 %v1869, %v1917
    %1919 = vmatmul.bf16.gmra.mxu0 %v516
    %v1920 = vpop.f32.mrf.mxu0
    %v1921 = vadd.f32 %v1872, %v1920
    %v1922 = vpop.f32.mrf.mxu0
    %v1923 = vadd.f32 %v1874, %v1922
    %1924 = vmatmul.bf16.gmra.mxu0 %v520
    %v1925 = vpop.f32.mrf.mxu0
    %v1926 = vadd.f32 %v1877, %v1925
    %v1927 = vpop.f32.mrf.mxu0
    %v1928 = vadd.f32 %v1879, %v1927
    %1929 = vmatmul.bf16.gmra.mxu0 %v524
    %v1930 = vpop.f32.mrf.mxu0
    %v1931 = vadd.f32 %v1882, %v1930
    %v1932 = vpop.f32.mrf.mxu0
    %v1933 = vadd.f32 %v1884, %v1932
    %1934 = vmatmul.bf16.gmra.mxu0 %v528
    %v1935 = vpop.f32.mrf.mxu0
    %v1936 = vadd.f32 %v1887, %v1935
    %v1937 = vpop.f32.mrf.mxu0
    %v1938 = vadd.f32 %v1889, %v1937
    %1939 = vmatmul.bf16.gmra.mxu0 %v532
    %v1940 = vpop.f32.mrf.mxu0
    %v1941 = vadd.f32 %v1892, %v1940
    %v1942 = vpop.f32.mrf.mxu0
    %v1943 = vadd.f32 %v1894, %v1942
    %1944 = vdwg.mxu0
    %1945 = vmatpush.bf16.msra.mxu0 %v1519
    %1946 = vmatpush.bf16.msra.mxu0 %v1511
    %1947 = vmatpush.bf16.msra.mxu0 %v1503
    %1948 = vmatpush.bf16.msra.mxu0 %v1495
    %1949 = vmatpush.bf16.msra.mxu0 %v1487
    %1950 = vmatpush.bf16.msra.mxu0 %v1479
    %1951 = vmatpush.bf16.msra.mxu0 %v1471
    %1952 = vmatpush.bf16.msra.mxu0 %v1463
    %1953 = vmatmul.bf16.gmra.mxu0 %v505
    %v1954 = vpop.f32.mrf.mxu0
    %v1955 = vadd.f32 %v1906, %v1954
    %v1956 = vpop.f32.mrf.mxu0
    %v1957 = vadd.f32 %v1908, %v1956
    %1958 = vmatmul.bf16.gmra.mxu0 %v509
    %v1959 = vpop.f32.mrf.mxu0
    %v1960 = vadd.f32 %v1911, %v1959
    %v1961 = vpop.f32.mrf.mxu0
    %v1962 = vadd.f32 %v1913, %v1961
    %1963 = vmatmul.bf16.gmra.mxu0 %v513
    %v1964 = vpop.f32.mrf.mxu0
    %v1965 = vadd.f32 %v1916, %v1964
    %v1966 = vpop.f32.mrf.mxu0
    %v1967 = vadd.f32 %v1918, %v1966
    %1968 = vmatmul.bf16.gmra.mxu0 %v517
    %v1969 = vpop.f32.mrf.mxu0
    %v1970 = vadd.f32 %v1921, %v1969
    %v1971 = vpop.f32.mrf.mxu0
    %v1972 = vadd.f32 %v1923, %v1971
    %1973 = vmatmul.bf16.gmra.mxu0 %v521
    %v1974 = vpop.f32.mrf.mxu0
    %v1975 = vadd.f32 %v1926, %v1974
    %v1976 = vpop.f32.mrf.mxu0
    %v1977 = vadd.f32 %v1928, %v1976
    %1978 = vmatmul.bf16.gmra.mxu0 %v525
    %v1979 = vpop.f32.mrf.mxu0
    %v1980 = vadd.f32 %v1931, %v1979
    %v1981 = vpop.f32.mrf.mxu0
    %v1982 = vadd.f32 %v1933, %v1981
    %1983 = vmatmul.bf16.gmra.mxu0 %v529
    %v1984 = vpop.f32.mrf.mxu0
    %v1985 = vadd.f32 %v1936, %v1984
    %v1986 = vpop.f32.mrf.mxu0
    %v1987 = vadd.f32 %v1938, %v1986
    %1988 = vmatmul.bf16.gmra.mxu0 %v533
    %v1989 = vpop.f32.mrf.mxu0
    %v1990 = vadd.f32 %v1941, %v1989
    %v1991 = vpop.f32.mrf.mxu0
    %v1992 = vadd.f32 %v1943, %v1991
    %1993 = vdwg.mxu0
    %1994 = vmatpush.bf16.msra.mxu0 %v1583
    %1995 = vmatpush.bf16.msra.mxu0 %v1575
    %1996 = vmatpush.bf16.msra.mxu0 %v1567
    %1997 = vmatpush.bf16.msra.mxu0 %v1559
    %1998 = vmatpush.bf16.msra.mxu0 %v1551
    %1999 = vmatpush.bf16.msra.mxu0 %v1543
    %2000 = vmatpush.bf16.msra.mxu0 %v1535
    %2001 = vmatpush.bf16.msra.mxu0 %v1527
    %2002 = vmatmul.bf16.gmra.mxu0 %v506
    %v2003 = vpop.f32.mrf.mxu0
    %v2004 = vadd.f32 %v1955, %v2003
    %v2005 = vpop.f32.mrf.mxu0
    %v2006 = vadd.f32 %v1957, %v2005
    %2007 = vmatmul.bf16.gmra.mxu0 %v510
    %v2008 = vpop.f32.mrf.mxu0
    %v2009 = vadd.f32 %v1960, %v2008
    %v2010 = vpop.f32.mrf.mxu0
    %v2011 = vadd.f32 %v1962, %v2010
    %2012 = vmatmul.bf16.gmra.mxu0 %v514
    %v2013 = vpop.f32.mrf.mxu0
    %v2014 = vadd.f32 %v1965, %v2013
    %v2015 = vpop.f32.mrf.mxu0
    %v2016 = vadd.f32 %v1967, %v2015
    %2017 = vmatmul.bf16.gmra.mxu0 %v518
    %v2018 = vpop.f32.mrf.mxu0
    %v2019 = vadd.f32 %v1970, %v2018
    %v2020 = vpop.f32.mrf.mxu0
    %v2021 = vadd.f32 %v1972, %v2020
    %2022 = vmatmul.bf16.gmra.mxu0 %v522
    %v2023 = vpop.f32.mrf.mxu0
    %v2024 = vadd.f32 %v1975, %v2023
    %v2025 = vpop.f32.mrf.mxu0
    %v2026 = vadd.f32 %v1977, %v2025
    %2027 = vmatmul.bf16.gmra.mxu0 %v526
    %v2028 = vpop.f32.mrf.mxu0
    %v2029 = vadd.f32 %v1980, %v2028
    %v2030 = vpop.f32.mrf.mxu0
    %v2031 = vadd.f32 %v1982, %v2030
    %2032 = vmatmul.bf16.gmra.mxu0 %v530
    %v2033 = vpop.f32.mrf.mxu0
    %v2034 = vadd.f32 %v1985, %v2033
    %v2035 = vpop.f32.mrf.mxu0
    %v2036 = vadd.f32 %v1987, %v2035
    %2037 = vmatmul.bf16.gmra.mxu0 %v534
    %v2038 = vpop.f32.mrf.mxu0
    %v2039 = vadd.f32 %v1990, %v2038
    %v2040 = vpop.f32.mrf.mxu0
    %v2041 = vadd.f32 %v1992, %v2040
    %2042 = vdwg.mxu0
    %2043 = vmatpush.bf16.msra.mxu0 %v1392
    %2044 = vmatpush.bf16.msra.mxu0 %v1384
    %2045 = vmatpush.bf16.msra.mxu0 %v1376
    %2046 = vmatpush.bf16.msra.mxu0 %v1368
    %2047 = vmatpush.bf16.msra.mxu0 %v1360
    %2048 = vmatpush.bf16.msra.mxu0 %v1352
    %2049 = vmatpush.bf16.msra.mxu0 %v1344
    %2050 = vmatpush.bf16.msra.mxu0 %v1336
    %2051 = vmatmul.bf16.gmra.mxu0 %v503
    %v2052 = vpop.f32.mrf.mxu0
    %v2053 = vadd.f32 %v392, %v2052
    %v2054 = vpop.f32.mrf.mxu0
    %v2055 = vadd.f32 %v392, %v2054
    %2056 = vmatmul.bf16.gmra.mxu0 %v507
    %v2057 = vpop.f32.mrf.mxu0
    %v2058 = vadd.f32 %v392, %v2057
    %v2059 = vpop.f32.mrf.mxu0
    %v2060 = vadd.f32 %v392, %v2059
    %2061 = vmatmul.bf16.gmra.mxu0 %v511
    %v2062 = vpop.f32.mrf.mxu0
    %v2063 = vadd.f32 %v392, %v2062
    %v2064 = vpop.f32.mrf.mxu0
    %v2065 = vadd.f32 %v392, %v2064
    %2066 = vmatmul.bf16.gmra.mxu0 %v515
    %v2067 = vpop.f32.mrf.mxu0
    %v2068 = vadd.f32 %v392, %v2067
    %v2069 = vpop.f32.mrf.mxu0
    %v2070 = vadd.f32 %v392, %v2069
    %2071 = vmatmul.bf16.gmra.mxu0 %v519
    %v2072 = vpop.f32.mrf.mxu0
    %v2073 = vadd.f32 %v392, %v2072
    %v2074 = vpop.f32.mrf.mxu0
    %v2075 = vadd.f32 %v392, %v2074
    %2076 = vmatmul.bf16.gmra.mxu0 %v523
    %v2077 = vpop.f32.mrf.mxu0
    %v2078 = vadd.f32 %v392, %v2077
    %v2079 = vpop.f32.mrf.mxu0
    %v2080 = vadd.f32 %v392, %v2079
    %2081 = vmatmul.bf16.gmra.mxu0 %v527
    %v2082 = vpop.f32.mrf.mxu0
    %v2083 = vadd.f32 %v392, %v2082
    %v2084 = vpop.f32.mrf.mxu0
    %v2085 = vadd.f32 %v392, %v2084
    %2086 = vmatmul.bf16.gmra.mxu0 %v531
    %v2087 = vpop.f32.mrf.mxu0
    %v2088 = vadd.f32 %v392, %v2087
    %v2089 = vpop.f32.mrf.mxu0
    %v2090 = vadd.f32 %v392, %v2089
    %2091 = vdwg.mxu0
    %2092 = vmatpush.bf16.msra.mxu0 %v1456
    %2093 = vmatpush.bf16.msra.mxu0 %v1448
    %2094 = vmatpush.bf16.msra.mxu0 %v1440
    %2095 = vmatpush.bf16.msra.mxu0 %v1432
    %2096 = vmatpush.bf16.msra.mxu0 %v1424
    %2097 = vmatpush.bf16.msra.mxu0 %v1416
    %2098 = vmatpush.bf16.msra.mxu0 %v1408
    %2099 = vmatpush.bf16.msra.mxu0 %v1400
    %2100 = vmatmul.bf16.gmra.mxu0 %v504
    %v2101 = vpop.f32.mrf.mxu0
    %v2102 = vadd.f32 %v2053, %v2101
    %v2103 = vpop.f32.mrf.mxu0
    %v2104 = vadd.f32 %v2055, %v2103
    %2105 = vmatmul.bf16.gmra.mxu0 %v508
    %v2106 = vpop.f32.mrf.mxu0
    %v2107 = vadd.f32 %v2058, %v2106
    %v2108 = vpop.f32.mrf.mxu0
    %v2109 = vadd.f32 %v2060, %v2108
    %2110 = vmatmul.bf16.gmra.mxu0 %v512
    %v2111 = vpop.f32.mrf.mxu0
    %v2112 = vadd.f32 %v2063, %v2111
    %v2113 = vpop.f32.mrf.mxu0
    %v2114 = vadd.f32 %v2065, %v2113
    %2115 = vmatmul.bf16.gmra.mxu0 %v516
    %v2116 = vpop.f32.mrf.mxu0
    %v2117 = vadd.f32 %v2068, %v2116
    %v2118 = vpop.f32.mrf.mxu0
    %v2119 = vadd.f32 %v2070, %v2118
    %2120 = vmatmul.bf16.gmra.mxu0 %v520
    %v2121 = vpop.f32.mrf.mxu0
    %v2122 = vadd.f32 %v2073, %v2121
    %v2123 = vpop.f32.mrf.mxu0
    %v2124 = vadd.f32 %v2075, %v2123
    %2125 = vmatmul.bf16.gmra.mxu0 %v524
    %v2126 = vpop.f32.mrf.mxu0
    %v2127 = vadd.f32 %v2078, %v2126
    %v2128 = vpop.f32.mrf.mxu0
    %v2129 = vadd.f32 %v2080, %v2128
    %2130 = vmatmul.bf16.gmra.mxu0 %v528
    %v2131 = vpop.f32.mrf.mxu0
    %v2132 = vadd.f32 %v2083, %v2131
    %v2133 = vpop.f32.mrf.mxu0
    %v2134 = vadd.f32 %v2085, %v2133
    %2135 = vmatmul.bf16.gmra.mxu0 %v532
    %v2136 = vpop.f32.mrf.mxu0
    %v2137 = vadd.f32 %v2088, %v2136
    %v2138 = vpop.f32.mrf.mxu0
    %v2139 = vadd.f32 %v2090, %v2138
    %2140 = vdwg.mxu0
    %2141 = vmatpush.bf16.msra.mxu0 %v1520
    %2142 = vmatpush.bf16.msra.mxu0 %v1512
    %2143 = vmatpush.bf16.msra.mxu0 %v1504
    %2144 = vmatpush.bf16.msra.mxu0 %v1496
    %2145 = vmatpush.bf16.msra.mxu0 %v1488
    %2146 = vmatpush.bf16.msra.mxu0 %v1480
    %2147 = vmatpush.bf16.msra.mxu0 %v1472
    %2148 = vmatpush.bf16.msra.mxu0 %v1464
    %2149 = vmatmul.bf16.gmra.mxu0 %v505
    %v2150 = vpop.f32.mrf.mxu0
    %v2151 = vadd.f32 %v2102, %v2150
    %v2152 = vpop.f32.mrf.mxu0
    %v2153 = vadd.f32 %v2104, %v2152
    %2154 = vmatmul.bf16.gmra.mxu0 %v509
    %v2155 = vpop.f32.mrf.mxu0
    %v2156 = vadd.f32 %v2107, %v2155
    %v2157 = vpop.f32.mrf.mxu0
    %v2158 = vadd.f32 %v2109, %v2157
    %2159 = vmatmul.bf16.gmra.mxu0 %v513
    %v2160 = vpop.f32.mrf.mxu0
    %v2161 = vadd.f32 %v2112, %v2160
    %v2162 = vpop.f32.mrf.mxu0
    %v2163 = vadd.f32 %v2114, %v2162
    %2164 = vmatmul.bf16.gmra.mxu0 %v517
    %v2165 = vpop.f32.mrf.mxu0
    %v2166 = vadd.f32 %v2117, %v2165
    %v2167 = vpop.f32.mrf.mxu0
    %v2168 = vadd.f32 %v2119, %v2167
    %2169 = vmatmul.bf16.gmra.mxu0 %v521
    %v2170 = vpop.f32.mrf.mxu0
    %v2171 = vadd.f32 %v2122, %v2170
    %v2172 = vpop.f32.mrf.mxu0
    %v2173 = vadd.f32 %v2124, %v2172
    %2174 = vmatmul.bf16.gmra.mxu0 %v525
    %v2175 = vpop.f32.mrf.mxu0
    %v2176 = vadd.f32 %v2127, %v2175
    %v2177 = vpop.f32.mrf.mxu0
    %v2178 = vadd.f32 %v2129, %v2177
    %2179 = vmatmul.bf16.gmra.mxu0 %v529
    %v2180 = vpop.f32.mrf.mxu0
    %v2181 = vadd.f32 %v2132, %v2180
    %v2182 = vpop.f32.mrf.mxu0
    %v2183 = vadd.f32 %v2134, %v2182
    %2184 = vmatmul.bf16.gmra.mxu0 %v533
    %v2185 = vpop.f32.mrf.mxu0
    %v2186 = vadd.f32 %v2137, %v2185
    %v2187 = vpop.f32.mrf.mxu0
    %v2188 = vadd.f32 %v2139, %v2187
    %2189 = vdwg.mxu0
    %2190 = vmatpush.bf16.msra.mxu0 %v1584
    %2191 = vmatpush.bf16.msra.mxu0 %v1576
    %2192 = vmatpush.bf16.msra.mxu0 %v1568
    %2193 = vmatpush.bf16.msra.mxu0 %v1560
    %2194 = vmatpush.bf16.msra.mxu0 %v1552
    %2195 = vmatpush.bf16.msra.mxu0 %v1544
    %2196 = vmatpush.bf16.msra.mxu0 %v1536
    %2197 = vmatpush.bf16.msra.mxu0 %v1528
    %2198 = vmatmul.bf16.gmra.mxu0 %v506
    %v2199 = vpop.f32.mrf.mxu0
    %v2200 = vadd.f32 %v2151, %v2199
    %v2201 = vpop.f32.mrf.mxu0
    %v2202 = vadd.f32 %v2153, %v2201
    %2203 = vmatmul.bf16.gmra.mxu0 %v510
    %v2204 = vpop.f32.mrf.mxu0
    %v2205 = vadd.f32 %v2156, %v2204
    %v2206 = vpop.f32.mrf.mxu0
    %v2207 = vadd.f32 %v2158, %v2206
    %2208 = vmatmul.bf16.gmra.mxu0 %v514
    %v2209 = vpop.f32.mrf.mxu0
    %v2210 = vadd.f32 %v2161, %v2209
    %v2211 = vpop.f32.mrf.mxu0
    %v2212 = vadd.f32 %v2163, %v2211
    %2213 = vmatmul.bf16.gmra.mxu0 %v518
    %v2214 = vpop.f32.mrf.mxu0
    %v2215 = vadd.f32 %v2166, %v2214
    %v2216 = vpop.f32.mrf.mxu0
    %v2217 = vadd.f32 %v2168, %v2216
    %2218 = vmatmul.bf16.gmra.mxu0 %v522
    %v2219 = vpop.f32.mrf.mxu0
    %v2220 = vadd.f32 %v2171, %v2219
    %v2221 = vpop.f32.mrf.mxu0
    %v2222 = vadd.f32 %v2173, %v2221
    %2223 = vmatmul.bf16.gmra.mxu0 %v526
    %v2224 = vpop.f32.mrf.mxu0
    %v2225 = vadd.f32 %v2176, %v2224
    %v2226 = vpop.f32.mrf.mxu0
    %v2227 = vadd.f32 %v2178, %v2226
    %2228 = vmatmul.bf16.gmra.mxu0 %v530
    %v2229 = vpop.f32.mrf.mxu0
    %v2230 = vadd.f32 %v2181, %v2229
    %v2231 = vpop.f32.mrf.mxu0
    %v2232 = vadd.f32 %v2183, %v2231
    %2233 = vmatmul.bf16.gmra.mxu0 %v534
    %v2234 = vpop.f32.mrf.mxu0
    %v2235 = vadd.f32 %v2186, %v2234
    %v2236 = vpop.f32.mrf.mxu0
    %v2237 = vadd.f32 %v2188, %v2236
    %2238 = vdwg.mxu0
    %2239 = vmatpush.bf16.msra.mxu0 %v1393
    %2240 = vmatpush.bf16.msra.mxu0 %v1385
    %2241 = vmatpush.bf16.msra.mxu0 %v1377
    %2242 = vmatpush.bf16.msra.mxu0 %v1369
    %2243 = vmatpush.bf16.msra.mxu0 %v1361
    %2244 = vmatpush.bf16.msra.mxu0 %v1353
    %2245 = vmatpush.bf16.msra.mxu0 %v1345
    %2246 = vmatpush.bf16.msra.mxu0 %v1337
    %2247 = vmatmul.bf16.gmra.mxu0 %v503
    %v2248 = vpop.f32.mrf.mxu0
    %v2249 = vadd.f32 %v393, %v2248
    %v2250 = vpop.f32.mrf.mxu0
    %v2251 = vadd.f32 %v393, %v2250
    %2252 = vmatmul.bf16.gmra.mxu0 %v507
    %v2253 = vpop.f32.mrf.mxu0
    %v2254 = vadd.f32 %v393, %v2253
    %v2255 = vpop.f32.mrf.mxu0
    %v2256 = vadd.f32 %v393, %v2255
    %2257 = vmatmul.bf16.gmra.mxu0 %v511
    %v2258 = vpop.f32.mrf.mxu0
    %v2259 = vadd.f32 %v393, %v2258
    %v2260 = vpop.f32.mrf.mxu0
    %v2261 = vadd.f32 %v393, %v2260
    %2262 = vmatmul.bf16.gmra.mxu0 %v515
    %v2263 = vpop.f32.mrf.mxu0
    %v2264 = vadd.f32 %v393, %v2263
    %v2265 = vpop.f32.mrf.mxu0
    %v2266 = vadd.f32 %v393, %v2265
    %2267 = vmatmul.bf16.gmra.mxu0 %v519
    %v2268 = vpop.f32.mrf.mxu0
    %v2269 = vadd.f32 %v393, %v2268
    %v2270 = vpop.f32.mrf.mxu0
    %v2271 = vadd.f32 %v393, %v2270
    %2272 = vmatmul.bf16.gmra.mxu0 %v523
    %v2273 = vpop.f32.mrf.mxu0
    %v2274 = vadd.f32 %v393, %v2273
    %v2275 = vpop.f32.mrf.mxu0
    %v2276 = vadd.f32 %v393, %v2275
    %2277 = vmatmul.bf16.gmra.mxu0 %v527
    %v2278 = vpop.f32.mrf.mxu0
    %v2279 = vadd.f32 %v393, %v2278
    %v2280 = vpop.f32.mrf.mxu0
    %v2281 = vadd.f32 %v393, %v2280
    %2282 = vmatmul.bf16.gmra.mxu0 %v531
    %v2283 = vpop.f32.mrf.mxu0
    %v2284 = vadd.f32 %v393, %v2283
    %v2285 = vpop.f32.mrf.mxu0
    %v2286 = vadd.f32 %v393, %v2285
    %2287 = vdwg.mxu0
    %2288 = vmatpush.bf16.msra.mxu0 %v1457
    %2289 = vmatpush.bf16.msra.mxu0 %v1449
    %2290 = vmatpush.bf16.msra.mxu0 %v1441
    %2291 = vmatpush.bf16.msra.mxu0 %v1433
    %2292 = vmatpush.bf16.msra.mxu0 %v1425
    %2293 = vmatpush.bf16.msra.mxu0 %v1417
    %2294 = vmatpush.bf16.msra.mxu0 %v1409
    %2295 = vmatpush.bf16.msra.mxu0 %v1401
    %2296 = vmatmul.bf16.gmra.mxu0 %v504
    %v2297 = vpop.f32.mrf.mxu0
    %v2298 = vadd.f32 %v2249, %v2297
    %v2299 = vpop.f32.mrf.mxu0
    %v2300 = vadd.f32 %v2251, %v2299
    %2301 = vmatmul.bf16.gmra.mxu0 %v508
    %v2302 = vpop.f32.mrf.mxu0
    %v2303 = vadd.f32 %v2254, %v2302
    %v2304 = vpop.f32.mrf.mxu0
    %v2305 = vadd.f32 %v2256, %v2304
    %2306 = vmatmul.bf16.gmra.mxu0 %v512
    %v2307 = vpop.f32.mrf.mxu0
    %v2308 = vadd.f32 %v2259, %v2307
    %v2309 = vpop.f32.mrf.mxu0
    %v2310 = vadd.f32 %v2261, %v2309
    %2311 = vmatmul.bf16.gmra.mxu0 %v516
    %v2312 = vpop.f32.mrf.mxu0
    %v2313 = vadd.f32 %v2264, %v2312
    %v2314 = vpop.f32.mrf.mxu0
    %v2315 = vadd.f32 %v2266, %v2314
    %2316 = vmatmul.bf16.gmra.mxu0 %v520
    %v2317 = vpop.f32.mrf.mxu0
    %v2318 = vadd.f32 %v2269, %v2317
    %v2319 = vpop.f32.mrf.mxu0
    %v2320 = vadd.f32 %v2271, %v2319
    %2321 = vmatmul.bf16.gmra.mxu0 %v524
    %v2322 = vpop.f32.mrf.mxu0
    %v2323 = vadd.f32 %v2274, %v2322
    %v2324 = vpop.f32.mrf.mxu0
    %v2325 = vadd.f32 %v2276, %v2324
    %2326 = vmatmul.bf16.gmra.mxu0 %v528
    %v2327 = vpop.f32.mrf.mxu0
    %v2328 = vadd.f32 %v2279, %v2327
    %v2329 = vpop.f32.mrf.mxu0
    %v2330 = vadd.f32 %v2281, %v2329
    %2331 = vmatmul.bf16.gmra.mxu0 %v532
    %v2332 = vpop.f32.mrf.mxu0
    %v2333 = vadd.f32 %v2284, %v2332
    %v2334 = vpop.f32.mrf.mxu0
    %v2335 = vadd.f32 %v2286, %v2334
    %2336 = vdwg.mxu0
    %2337 = vmatpush.bf16.msra.mxu0 %v1521
    %2338 = vmatpush.bf16.msra.mxu0 %v1513
    %2339 = vmatpush.bf16.msra.mxu0 %v1505
    %2340 = vmatpush.bf16.msra.mxu0 %v1497
    %2341 = vmatpush.bf16.msra.mxu0 %v1489
    %2342 = vmatpush.bf16.msra.mxu0 %v1481
    %2343 = vmatpush.bf16.msra.mxu0 %v1473
    %2344 = vmatpush.bf16.msra.mxu0 %v1465
    %2345 = vmatmul.bf16.gmra.mxu0 %v505
    %v2346 = vpop.f32.mrf.mxu0
    %v2347 = vadd.f32 %v2298, %v2346
    %v2348 = vpop.f32.mrf.mxu0
    %v2349 = vadd.f32 %v2300, %v2348
    %2350 = vmatmul.bf16.gmra.mxu0 %v509
    %v2351 = vpop.f32.mrf.mxu0
    %v2352 = vadd.f32 %v2303, %v2351
    %v2353 = vpop.f32.mrf.mxu0
    %v2354 = vadd.f32 %v2305, %v2353
    %2355 = vmatmul.bf16.gmra.mxu0 %v513
    %v2356 = vpop.f32.mrf.mxu0
    %v2357 = vadd.f32 %v2308, %v2356
    %v2358 = vpop.f32.mrf.mxu0
    %v2359 = vadd.f32 %v2310, %v2358
    %2360 = vmatmul.bf16.gmra.mxu0 %v517
    %v2361 = vpop.f32.mrf.mxu0
    %v2362 = vadd.f32 %v2313, %v2361
    %v2363 = vpop.f32.mrf.mxu0
    %v2364 = vadd.f32 %v2315, %v2363
    %2365 = vmatmul.bf16.gmra.mxu0 %v521
    %v2366 = vpop.f32.mrf.mxu0
    %v2367 = vadd.f32 %v2318, %v2366
    %v2368 = vpop.f32.mrf.mxu0
    %v2369 = vadd.f32 %v2320, %v2368
    %2370 = vmatmul.bf16.gmra.mxu0 %v525
    %v2371 = vpop.f32.mrf.mxu0
    %v2372 = vadd.f32 %v2323, %v2371
    %v2373 = vpop.f32.mrf.mxu0
    %v2374 = vadd.f32 %v2325, %v2373
    %2375 = vmatmul.bf16.gmra.mxu0 %v529
    %v2376 = vpop.f32.mrf.mxu0
    %v2377 = vadd.f32 %v2328, %v2376
    %v2378 = vpop.f32.mrf.mxu0
    %v2379 = vadd.f32 %v2330, %v2378
    %2380 = vmatmul.bf16.gmra.mxu0 %v533
    %v2381 = vpop.f32.mrf.mxu0
    %v2382 = vadd.f32 %v2333, %v2381
    %v2383 = vpop.f32.mrf.mxu0
    %v2384 = vadd.f32 %v2335, %v2383
    %2385 = vdwg.mxu0
    %2386 = vmatpush.bf16.msra.mxu0 %v1585
    %2387 = vmatpush.bf16.msra.mxu0 %v1577
    %2388 = vmatpush.bf16.msra.mxu0 %v1569
    %2389 = vmatpush.bf16.msra.mxu0 %v1561
    %2390 = vmatpush.bf16.msra.mxu0 %v1553
    %2391 = vmatpush.bf16.msra.mxu0 %v1545
    %2392 = vmatpush.bf16.msra.mxu0 %v1537
    %2393 = vmatpush.bf16.msra.mxu0 %v1529
    %2394 = vmatmul.bf16.gmra.mxu0 %v506
    %v2395 = vpop.f32.mrf.mxu0
    %v2396 = vadd.f32 %v2347, %v2395
    %v2397 = vpop.f32.mrf.mxu0
    %v2398 = vadd.f32 %v2349, %v2397
    %2399 = vmatmul.bf16.gmra.mxu0 %v510
    %v2400 = vpop.f32.mrf.mxu0
    %v2401 = vadd.f32 %v2352, %v2400
    %v2402 = vpop.f32.mrf.mxu0
    %v2403 = vadd.f32 %v2354, %v2402
    %2404 = vmatmul.bf16.gmra.mxu0 %v514
    %v2405 = vpop.f32.mrf.mxu0
    %v2406 = vadd.f32 %v2357, %v2405
    %v2407 = vpop.f32.mrf.mxu0
    %v2408 = vadd.f32 %v2359, %v2407
    %2409 = vmatmul.bf16.gmra.mxu0 %v518
    %v2410 = vpop.f32.mrf.mxu0
    %v2411 = vadd.f32 %v2362, %v2410
    %v2412 = vpop.f32.mrf.mxu0
    %v2413 = vadd.f32 %v2364, %v2412
    %2414 = vmatmul.bf16.gmra.mxu0 %v522
    %v2415 = vpop.f32.mrf.mxu0
    %v2416 = vadd.f32 %v2367, %v2415
    %v2417 = vpop.f32.mrf.mxu0
    %v2418 = vadd.f32 %v2369, %v2417
    %2419 = vmatmul.bf16.gmra.mxu0 %v526
    %v2420 = vpop.f32.mrf.mxu0
    %v2421 = vadd.f32 %v2372, %v2420
    %v2422 = vpop.f32.mrf.mxu0
    %v2423 = vadd.f32 %v2374, %v2422
    %2424 = vmatmul.bf16.gmra.mxu0 %v530
    %v2425 = vpop.f32.mrf.mxu0
    %v2426 = vadd.f32 %v2377, %v2425
    %v2427 = vpop.f32.mrf.mxu0
    %v2428 = vadd.f32 %v2379, %v2427
    %2429 = vmatmul.bf16.gmra.mxu0 %v534
    %v2430 = vpop.f32.mrf.mxu0
    %v2431 = vadd.f32 %v2382, %v2430
    %v2432 = vpop.f32.mrf.mxu0
    %v2433 = vadd.f32 %v2384, %v2432
    %2434 = vdwg.mxu0
    %2435 = vmatpush.bf16.msra.mxu0 %v1394
    %2436 = vmatpush.bf16.msra.mxu0 %v1386
    %2437 = vmatpush.bf16.msra.mxu0 %v1378
    %2438 = vmatpush.bf16.msra.mxu0 %v1370
    %2439 = vmatpush.bf16.msra.mxu0 %v1362
    %2440 = vmatpush.bf16.msra.mxu0 %v1354
    %2441 = vmatpush.bf16.msra.mxu0 %v1346
    %2442 = vmatpush.bf16.msra.mxu0 %v1338
    %2443 = vmatmul.bf16.gmra.mxu0 %v503
    %v2444 = vpop.f32.mrf.mxu0
    %v2445 = vadd.f32 %v394, %v2444
    %v2446 = vpop.f32.mrf.mxu0
    %v2447 = vadd.f32 %v394, %v2446
    %2448 = vmatmul.bf16.gmra.mxu0 %v507
    %v2449 = vpop.f32.mrf.mxu0
    %v2450 = vadd.f32 %v394, %v2449
    %v2451 = vpop.f32.mrf.mxu0
    %v2452 = vadd.f32 %v394, %v2451
    %2453 = vmatmul.bf16.gmra.mxu0 %v511
    %v2454 = vpop.f32.mrf.mxu0
    %v2455 = vadd.f32 %v394, %v2454
    %v2456 = vpop.f32.mrf.mxu0
    %v2457 = vadd.f32 %v394, %v2456
    %2458 = vmatmul.bf16.gmra.mxu0 %v515
    %v2459 = vpop.f32.mrf.mxu0
    %v2460 = vadd.f32 %v394, %v2459
    %v2461 = vpop.f32.mrf.mxu0
    %v2462 = vadd.f32 %v394, %v2461
    %2463 = vmatmul.bf16.gmra.mxu0 %v519
    %v2464 = vpop.f32.mrf.mxu0
    %v2465 = vadd.f32 %v394, %v2464
    %v2466 = vpop.f32.mrf.mxu0
    %v2467 = vadd.f32 %v394, %v2466
    %2468 = vmatmul.bf16.gmra.mxu0 %v523
    %v2469 = vpop.f32.mrf.mxu0
    %v2470 = vadd.f32 %v394, %v2469
    %v2471 = vpop.f32.mrf.mxu0
    %v2472 = vadd.f32 %v394, %v2471
    %2473 = vmatmul.bf16.gmra.mxu0 %v527
    %v2474 = vpop.f32.mrf.mxu0
    %v2475 = vadd.f32 %v394, %v2474
    %v2476 = vpop.f32.mrf.mxu0
    %v2477 = vadd.f32 %v394, %v2476
    %2478 = vmatmul.bf16.gmra.mxu0 %v531
    %v2479 = vpop.f32.mrf.mxu0
    %v2480 = vadd.f32 %v394, %v2479
    %v2481 = vpop.f32.mrf.mxu0
    %v2482 = vadd.f32 %v394, %v2481
    %2483 = vdwg.mxu0
    %2484 = vmatpush.bf16.msra.mxu0 %v1458
    %2485 = vmatpush.bf16.msra.mxu0 %v1450
    %2486 = vmatpush.bf16.msra.mxu0 %v1442
    %2487 = vmatpush.bf16.msra.mxu0 %v1434
    %2488 = vmatpush.bf16.msra.mxu0 %v1426
    %2489 = vmatpush.bf16.msra.mxu0 %v1418
    %2490 = vmatpush.bf16.msra.mxu0 %v1410
    %2491 = vmatpush.bf16.msra.mxu0 %v1402
    %2492 = vmatmul.bf16.gmra.mxu0 %v504
    %v2493 = vpop.f32.mrf.mxu0
    %v2494 = vadd.f32 %v2445, %v2493
    %v2495 = vpop.f32.mrf.mxu0
    %v2496 = vadd.f32 %v2447, %v2495
    %2497 = vmatmul.bf16.gmra.mxu0 %v508
    %v2498 = vpop.f32.mrf.mxu0
    %v2499 = vadd.f32 %v2450, %v2498
    %v2500 = vpop.f32.mrf.mxu0
    %v2501 = vadd.f32 %v2452, %v2500
    %2502 = vmatmul.bf16.gmra.mxu0 %v512
    %v2503 = vpop.f32.mrf.mxu0
    %v2504 = vadd.f32 %v2455, %v2503
    %v2505 = vpop.f32.mrf.mxu0
    %v2506 = vadd.f32 %v2457, %v2505
    %2507 = vmatmul.bf16.gmra.mxu0 %v516
    %v2508 = vpop.f32.mrf.mxu0
    %v2509 = vadd.f32 %v2460, %v2508
    %v2510 = vpop.f32.mrf.mxu0
    %v2511 = vadd.f32 %v2462, %v2510
    %2512 = vmatmul.bf16.gmra.mxu0 %v520
    %v2513 = vpop.f32.mrf.mxu0
    %v2514 = vadd.f32 %v2465, %v2513
    %v2515 = vpop.f32.mrf.mxu0
    %v2516 = vadd.f32 %v2467, %v2515
    %2517 = vmatmul.bf16.gmra.mxu0 %v524
    %v2518 = vpop.f32.mrf.mxu0
    %v2519 = vadd.f32 %v2470, %v2518
    %v2520 = vpop.f32.mrf.mxu0
    %v2521 = vadd.f32 %v2472, %v2520
    %2522 = vmatmul.bf16.gmra.mxu0 %v528
    %v2523 = vpop.f32.mrf.mxu0
    %v2524 = vadd.f32 %v2475, %v2523
    %v2525 = vpop.f32.mrf.mxu0
    %v2526 = vadd.f32 %v2477, %v2525
    %2527 = vmatmul.bf16.gmra.mxu0 %v532
    %v2528 = vpop.f32.mrf.mxu0
    %v2529 = vadd.f32 %v2480, %v2528
    %v2530 = vpop.f32.mrf.mxu0
    %v2531 = vadd.f32 %v2482, %v2530
    %2532 = vdwg.mxu0
    %2533 = vmatpush.bf16.msra.mxu0 %v1522
    %2534 = vmatpush.bf16.msra.mxu0 %v1514
    %2535 = vmatpush.bf16.msra.mxu0 %v1506
    %2536 = vmatpush.bf16.msra.mxu0 %v1498
    %2537 = vmatpush.bf16.msra.mxu0 %v1490
    %2538 = vmatpush.bf16.msra.mxu0 %v1482
    %2539 = vmatpush.bf16.msra.mxu0 %v1474
    %2540 = vmatpush.bf16.msra.mxu0 %v1466
    %2541 = vmatmul.bf16.gmra.mxu0 %v505
    %v2542 = vpop.f32.mrf.mxu0
    %v2543 = vadd.f32 %v2494, %v2542
    %v2544 = vpop.f32.mrf.mxu0
    %v2545 = vadd.f32 %v2496, %v2544
    %2546 = vmatmul.bf16.gmra.mxu0 %v509
    %v2547 = vpop.f32.mrf.mxu0
    %v2548 = vadd.f32 %v2499, %v2547
    %v2549 = vpop.f32.mrf.mxu0
    %v2550 = vadd.f32 %v2501, %v2549
    %2551 = vmatmul.bf16.gmra.mxu0 %v513
    %v2552 = vpop.f32.mrf.mxu0
    %v2553 = vadd.f32 %v2504, %v2552
    %v2554 = vpop.f32.mrf.mxu0
    %v2555 = vadd.f32 %v2506, %v2554
    %2556 = vmatmul.bf16.gmra.mxu0 %v517
    %v2557 = vpop.f32.mrf.mxu0
    %v2558 = vadd.f32 %v2509, %v2557
    %v2559 = vpop.f32.mrf.mxu0
    %v2560 = vadd.f32 %v2511, %v2559
    %2561 = vmatmul.bf16.gmra.mxu0 %v521
    %v2562 = vpop.f32.mrf.mxu0
    %v2563 = vadd.f32 %v2514, %v2562
    %v2564 = vpop.f32.mrf.mxu0
    %v2565 = vadd.f32 %v2516, %v2564
    %2566 = vmatmul.bf16.gmra.mxu0 %v525
    %v2567 = vpop.f32.mrf.mxu0
    %v2568 = vadd.f32 %v2519, %v2567
    %v2569 = vpop.f32.mrf.mxu0
    %v2570 = vadd.f32 %v2521, %v2569
    %2571 = vmatmul.bf16.gmra.mxu0 %v529
    %v2572 = vpop.f32.mrf.mxu0
    %v2573 = vadd.f32 %v2524, %v2572
    %v2574 = vpop.f32.mrf.mxu0
    %v2575 = vadd.f32 %v2526, %v2574
    %2576 = vmatmul.bf16.gmra.mxu0 %v533
    %v2577 = vpop.f32.mrf.mxu0
    %v2578 = vadd.f32 %v2529, %v2577
    %v2579 = vpop.f32.mrf.mxu0
    %v2580 = vadd.f32 %v2531, %v2579
    %2581 = vdwg.mxu0
    %2582 = vmatpush.bf16.msra.mxu0 %v1586
    %2583 = vmatpush.bf16.msra.mxu0 %v1578
    %2584 = vmatpush.bf16.msra.mxu0 %v1570
    %2585 = vmatpush.bf16.msra.mxu0 %v1562
    %2586 = vmatpush.bf16.msra.mxu0 %v1554
    %2587 = vmatpush.bf16.msra.mxu0 %v1546
    %2588 = vmatpush.bf16.msra.mxu0 %v1538
    %2589 = vmatpush.bf16.msra.mxu0 %v1530
    %2590 = vmatmul.bf16.gmra.mxu0 %v506
    %v2591 = vpop.f32.mrf.mxu0
    %v2592 = vadd.f32 %v2543, %v2591
    %v2593 = vpop.f32.mrf.mxu0
    %v2594 = vadd.f32 %v2545, %v2593
    %2595 = vmatmul.bf16.gmra.mxu0 %v510
    %v2596 = vpop.f32.mrf.mxu0
    %v2597 = vadd.f32 %v2548, %v2596
    %v2598 = vpop.f32.mrf.mxu0
    %v2599 = vadd.f32 %v2550, %v2598
    %2600 = vmatmul.bf16.gmra.mxu0 %v514
    %v2601 = vpop.f32.mrf.mxu0
    %v2602 = vadd.f32 %v2553, %v2601
    %v2603 = vpop.f32.mrf.mxu0
    %v2604 = vadd.f32 %v2555, %v2603
    %2605 = vmatmul.bf16.gmra.mxu0 %v518
    %v2606 = vpop.f32.mrf.mxu0
    %v2607 = vadd.f32 %v2558, %v2606
    %v2608 = vpop.f32.mrf.mxu0
    %v2609 = vadd.f32 %v2560, %v2608
    %2610 = vmatmul.bf16.gmra.mxu0 %v522
    %v2611 = vpop.f32.mrf.mxu0
    %v2612 = vadd.f32 %v2563, %v2611
    %v2613 = vpop.f32.mrf.mxu0
    %v2614 = vadd.f32 %v2565, %v2613
    %2615 = vmatmul.bf16.gmra.mxu0 %v526
    %v2616 = vpop.f32.mrf.mxu0
    %v2617 = vadd.f32 %v2568, %v2616
    %v2618 = vpop.f32.mrf.mxu0
    %v2619 = vadd.f32 %v2570, %v2618
    %2620 = vmatmul.bf16.gmra.mxu0 %v530
    %v2621 = vpop.f32.mrf.mxu0
    %v2622 = vadd.f32 %v2573, %v2621
    %v2623 = vpop.f32.mrf.mxu0
    %v2624 = vadd.f32 %v2575, %v2623
    %2625 = vmatmul.bf16.gmra.mxu0 %v534
    %v2626 = vpop.f32.mrf.mxu0
    %v2627 = vadd.f32 %v2578, %v2626
    %v2628 = vpop.f32.mrf.mxu0
    %v2629 = vadd.f32 %v2580, %v2628
    %2630 = vdwg.mxu0
    %2631 = vmatpush.bf16.msra.mxu0 %v1395
    %2632 = vmatpush.bf16.msra.mxu0 %v1387
    %2633 = vmatpush.bf16.msra.mxu0 %v1379
    %2634 = vmatpush.bf16.msra.mxu0 %v1371
    %2635 = vmatpush.bf16.msra.mxu0 %v1363
    %2636 = vmatpush.bf16.msra.mxu0 %v1355
    %2637 = vmatpush.bf16.msra.mxu0 %v1347
    %2638 = vmatpush.bf16.msra.mxu0 %v1339
    %2639 = vmatmul.bf16.gmra.mxu0 %v503
    %v2640 = vpop.f32.mrf.mxu0
    %v2641 = vadd.f32 %v395, %v2640
    %v2642 = vpop.f32.mrf.mxu0
    %v2643 = vadd.f32 %v395, %v2642
    %2644 = vmatmul.bf16.gmra.mxu0 %v507
    %v2645 = vpop.f32.mrf.mxu0
    %v2646 = vadd.f32 %v395, %v2645
    %v2647 = vpop.f32.mrf.mxu0
    %v2648 = vadd.f32 %v395, %v2647
    %2649 = vmatmul.bf16.gmra.mxu0 %v511
    %v2650 = vpop.f32.mrf.mxu0
    %v2651 = vadd.f32 %v395, %v2650
    %v2652 = vpop.f32.mrf.mxu0
    %v2653 = vadd.f32 %v395, %v2652
    %2654 = vmatmul.bf16.gmra.mxu0 %v515
    %v2655 = vpop.f32.mrf.mxu0
    %v2656 = vadd.f32 %v395, %v2655
    %v2657 = vpop.f32.mrf.mxu0
    %v2658 = vadd.f32 %v395, %v2657
    %2659 = vmatmul.bf16.gmra.mxu0 %v519
    %v2660 = vpop.f32.mrf.mxu0
    %v2661 = vadd.f32 %v395, %v2660
    %v2662 = vpop.f32.mrf.mxu0
    %v2663 = vadd.f32 %v395, %v2662
    %2664 = vmatmul.bf16.gmra.mxu0 %v523
    %v2665 = vpop.f32.mrf.mxu0
    %v2666 = vadd.f32 %v395, %v2665
    %v2667 = vpop.f32.mrf.mxu0
    %v2668 = vadd.f32 %v395, %v2667
    %2669 = vmatmul.bf16.gmra.mxu0 %v527
    %v2670 = vpop.f32.mrf.mxu0
    %v2671 = vadd.f32 %v395, %v2670
    %v2672 = vpop.f32.mrf.mxu0
    %v2673 = vadd.f32 %v395, %v2672
    %2674 = vmatmul.bf16.gmra.mxu0 %v531
    %v2675 = vpop.f32.mrf.mxu0
    %v2676 = vadd.f32 %v395, %v2675
    %v2677 = vpop.f32.mrf.mxu0
    %v2678 = vadd.f32 %v395, %v2677
    %2679 = vdwg.mxu0
    %2680 = vmatpush.bf16.msra.mxu0 %v1459
    %2681 = vmatpush.bf16.msra.mxu0 %v1451
    %2682 = vmatpush.bf16.msra.mxu0 %v1443
    %2683 = vmatpush.bf16.msra.mxu0 %v1435
    %2684 = vmatpush.bf16.msra.mxu0 %v1427
    %2685 = vmatpush.bf16.msra.mxu0 %v1419
    %2686 = vmatpush.bf16.msra.mxu0 %v1411
    %2687 = vmatpush.bf16.msra.mxu0 %v1403
    %2688 = vmatmul.bf16.gmra.mxu0 %v504
    %v2689 = vpop.f32.mrf.mxu0
    %v2690 = vadd.f32 %v2641, %v2689
    %v2691 = vpop.f32.mrf.mxu0
    %v2692 = vadd.f32 %v2643, %v2691
    %2693 = vmatmul.bf16.gmra.mxu0 %v508
    %v2694 = vpop.f32.mrf.mxu0
    %v2695 = vadd.f32 %v2646, %v2694
    %v2696 = vpop.f32.mrf.mxu0
    %v2697 = vadd.f32 %v2648, %v2696
    %2698 = vmatmul.bf16.gmra.mxu0 %v512
    %v2699 = vpop.f32.mrf.mxu0
    %v2700 = vadd.f32 %v2651, %v2699
    %v2701 = vpop.f32.mrf.mxu0
    %v2702 = vadd.f32 %v2653, %v2701
    %2703 = vmatmul.bf16.gmra.mxu0 %v516
    %v2704 = vpop.f32.mrf.mxu0
    %v2705 = vadd.f32 %v2656, %v2704
    %v2706 = vpop.f32.mrf.mxu0
    %v2707 = vadd.f32 %v2658, %v2706
    %2708 = vmatmul.bf16.gmra.mxu0 %v520
    %v2709 = vpop.f32.mrf.mxu0
    %v2710 = vadd.f32 %v2661, %v2709
    %v2711 = vpop.f32.mrf.mxu0
    %v2712 = vadd.f32 %v2663, %v2711
    %2713 = vmatmul.bf16.gmra.mxu0 %v524
    %v2714 = vpop.f32.mrf.mxu0
    %v2715 = vadd.f32 %v2666, %v2714
    %v2716 = vpop.f32.mrf.mxu0
    %v2717 = vadd.f32 %v2668, %v2716
    %2718 = vmatmul.bf16.gmra.mxu0 %v528
    %v2719 = vpop.f32.mrf.mxu0
    %v2720 = vadd.f32 %v2671, %v2719
    %v2721 = vpop.f32.mrf.mxu0
    %v2722 = vadd.f32 %v2673, %v2721
    %2723 = vmatmul.bf16.gmra.mxu0 %v532
    %v2724 = vpop.f32.mrf.mxu0
    %v2725 = vadd.f32 %v2676, %v2724
    %v2726 = vpop.f32.mrf.mxu0
    %v2727 = vadd.f32 %v2678, %v2726
    %2728 = vdwg.mxu0
    %2729 = vmatpush.bf16.msra.mxu0 %v1523
    %2730 = vmatpush.bf16.msra.mxu0 %v1515
    %2731 = vmatpush.bf16.msra.mxu0 %v1507
    %2732 = vmatpush.bf16.msra.mxu0 %v1499
    %2733 = vmatpush.bf16.msra.mxu0 %v1491
    %2734 = vmatpush.bf16.msra.mxu0 %v1483
    %2735 = vmatpush.bf16.msra.mxu0 %v1475
    %2736 = vmatpush.bf16.msra.mxu0 %v1467
    %2737 = vmatmul.bf16.gmra.mxu0 %v505
    %v2738 = vpop.f32.mrf.mxu0
    %v2739 = vadd.f32 %v2690, %v2738
    %v2740 = vpop.f32.mrf.mxu0
    %v2741 = vadd.f32 %v2692, %v2740
    %2742 = vmatmul.bf16.gmra.mxu0 %v509
    %v2743 = vpop.f32.mrf.mxu0
    %v2744 = vadd.f32 %v2695, %v2743
    %v2745 = vpop.f32.mrf.mxu0
    %v2746 = vadd.f32 %v2697, %v2745
    %2747 = vmatmul.bf16.gmra.mxu0 %v513
    %v2748 = vpop.f32.mrf.mxu0
    %v2749 = vadd.f32 %v2700, %v2748
    %v2750 = vpop.f32.mrf.mxu0
    %v2751 = vadd.f32 %v2702, %v2750
    %2752 = vmatmul.bf16.gmra.mxu0 %v517
    %v2753 = vpop.f32.mrf.mxu0
    %v2754 = vadd.f32 %v2705, %v2753
    %v2755 = vpop.f32.mrf.mxu0
    %v2756 = vadd.f32 %v2707, %v2755
    %2757 = vmatmul.bf16.gmra.mxu0 %v521
    %v2758 = vpop.f32.mrf.mxu0
    %v2759 = vadd.f32 %v2710, %v2758
    %v2760 = vpop.f32.mrf.mxu0
    %v2761 = vadd.f32 %v2712, %v2760
    %2762 = vmatmul.bf16.gmra.mxu0 %v525
    %v2763 = vpop.f32.mrf.mxu0
    %v2764 = vadd.f32 %v2715, %v2763
    %v2765 = vpop.f32.mrf.mxu0
    %v2766 = vadd.f32 %v2717, %v2765
    %2767 = vmatmul.bf16.gmra.mxu0 %v529
    %v2768 = vpop.f32.mrf.mxu0
    %v2769 = vadd.f32 %v2720, %v2768
    %v2770 = vpop.f32.mrf.mxu0
    %v2771 = vadd.f32 %v2722, %v2770
    %2772 = vmatmul.bf16.gmra.mxu0 %v533
    %v2773 = vpop.f32.mrf.mxu0
    %v2774 = vadd.f32 %v2725, %v2773
    %v2775 = vpop.f32.mrf.mxu0
    %v2776 = vadd.f32 %v2727, %v2775
    %2777 = vdwg.mxu0
    %2778 = vmatpush.bf16.msra.mxu0 %v1587
    %2779 = vmatpush.bf16.msra.mxu0 %v1579
    %2780 = vmatpush.bf16.msra.mxu0 %v1571
    %2781 = vmatpush.bf16.msra.mxu0 %v1563
    %2782 = vmatpush.bf16.msra.mxu0 %v1555
    %2783 = vmatpush.bf16.msra.mxu0 %v1547
    %2784 = vmatpush.bf16.msra.mxu0 %v1539
    %2785 = vmatpush.bf16.msra.mxu0 %v1531
    %2786 = vmatmul.bf16.gmra.mxu0 %v506
    %v2787 = vpop.f32.mrf.mxu0
    %v2788 = vadd.f32 %v2739, %v2787
    %v2789 = vpop.f32.mrf.mxu0
    %v2790 = vadd.f32 %v2741, %v2789
    %2791 = vmatmul.bf16.gmra.mxu0 %v510
    %v2792 = vpop.f32.mrf.mxu0
    %v2793 = vadd.f32 %v2744, %v2792
    %v2794 = vpop.f32.mrf.mxu0
    %v2795 = vadd.f32 %v2746, %v2794
    %2796 = vmatmul.bf16.gmra.mxu0 %v514
    %v2797 = vpop.f32.mrf.mxu0
    %v2798 = vadd.f32 %v2749, %v2797
    %v2799 = vpop.f32.mrf.mxu0
    %v2800 = vadd.f32 %v2751, %v2799
    %2801 = vmatmul.bf16.gmra.mxu0 %v518
    %v2802 = vpop.f32.mrf.mxu0
    %v2803 = vadd.f32 %v2754, %v2802
    %v2804 = vpop.f32.mrf.mxu0
    %v2805 = vadd.f32 %v2756, %v2804
    %2806 = vmatmul.bf16.gmra.mxu0 %v522
    %v2807 = vpop.f32.mrf.mxu0
    %v2808 = vadd.f32 %v2759, %v2807
    %v2809 = vpop.f32.mrf.mxu0
    %v2810 = vadd.f32 %v2761, %v2809
    %2811 = vmatmul.bf16.gmra.mxu0 %v526
    %v2812 = vpop.f32.mrf.mxu0
    %v2813 = vadd.f32 %v2764, %v2812
    %v2814 = vpop.f32.mrf.mxu0
    %v2815 = vadd.f32 %v2766, %v2814
    %2816 = vmatmul.bf16.gmra.mxu0 %v530
    %v2817 = vpop.f32.mrf.mxu0
    %v2818 = vadd.f32 %v2769, %v2817
    %v2819 = vpop.f32.mrf.mxu0
    %v2820 = vadd.f32 %v2771, %v2819
    %2821 = vmatmul.bf16.gmra.mxu0 %v534
    %v2822 = vpop.f32.mrf.mxu0
    %v2823 = vadd.f32 %v2774, %v2822
    %v2824 = vpop.f32.mrf.mxu0
    %v2825 = vadd.f32 %v2776, %v2824
    %2826 = vdwg.mxu0
    %2827 = vmatpush.bf16.msra.mxu0 %v1396
    %2828 = vmatpush.bf16.msra.mxu0 %v1388
    %2829 = vmatpush.bf16.msra.mxu0 %v1380
    %2830 = vmatpush.bf16.msra.mxu0 %v1372
    %2831 = vmatpush.bf16.msra.mxu0 %v1364
    %2832 = vmatpush.bf16.msra.mxu0 %v1356
    %2833 = vmatpush.bf16.msra.mxu0 %v1348
    %2834 = vmatpush.bf16.msra.mxu0 %v1340
    %2835 = vmatmul.bf16.gmra.mxu0 %v503
    %v2836 = vpop.f32.mrf.mxu0
    %v2837 = vadd.f32 %v396, %v2836
    %v2838 = vpop.f32.mrf.mxu0
    %v2839 = vadd.f32 %v396, %v2838
    %2840 = vmatmul.bf16.gmra.mxu0 %v507
    %v2841 = vpop.f32.mrf.mxu0
    %v2842 = vadd.f32 %v396, %v2841
    %v2843 = vpop.f32.mrf.mxu0
    %v2844 = vadd.f32 %v396, %v2843
    %2845 = vmatmul.bf16.gmra.mxu0 %v511
    %v2846 = vpop.f32.mrf.mxu0
    %v2847 = vadd.f32 %v396, %v2846
    %v2848 = vpop.f32.mrf.mxu0
    %v2849 = vadd.f32 %v396, %v2848
    %2850 = vmatmul.bf16.gmra.mxu0 %v515
    %v2851 = vpop.f32.mrf.mxu0
    %v2852 = vadd.f32 %v396, %v2851
    %v2853 = vpop.f32.mrf.mxu0
    %v2854 = vadd.f32 %v396, %v2853
    %2855 = vmatmul.bf16.gmra.mxu0 %v519
    %v2856 = vpop.f32.mrf.mxu0
    %v2857 = vadd.f32 %v396, %v2856
    %v2858 = vpop.f32.mrf.mxu0
    %v2859 = vadd.f32 %v396, %v2858
    %2860 = vmatmul.bf16.gmra.mxu0 %v523
    %v2861 = vpop.f32.mrf.mxu0
    %v2862 = vadd.f32 %v396, %v2861
    %v2863 = vpop.f32.mrf.mxu0
    %v2864 = vadd.f32 %v396, %v2863
    %2865 = vmatmul.bf16.gmra.mxu0 %v527
    %v2866 = vpop.f32.mrf.mxu0
    %v2867 = vadd.f32 %v396, %v2866
    %v2868 = vpop.f32.mrf.mxu0
    %v2869 = vadd.f32 %v396, %v2868
    %2870 = vmatmul.bf16.gmra.mxu0 %v531
    %v2871 = vpop.f32.mrf.mxu0
    %v2872 = vadd.f32 %v396, %v2871
    %v2873 = vpop.f32.mrf.mxu0
    %v2874 = vadd.f32 %v396, %v2873
    %2875 = vdwg.mxu0
    %2876 = vmatpush.bf16.msra.mxu0 %v1460
    %2877 = vmatpush.bf16.msra.mxu0 %v1452
    %2878 = vmatpush.bf16.msra.mxu0 %v1444
    %2879 = vmatpush.bf16.msra.mxu0 %v1436
    %2880 = vmatpush.bf16.msra.mxu0 %v1428
    %2881 = vmatpush.bf16.msra.mxu0 %v1420
    %2882 = vmatpush.bf16.msra.mxu0 %v1412
    %2883 = vmatpush.bf16.msra.mxu0 %v1404
    %2884 = vmatmul.bf16.gmra.mxu0 %v504
    %v2885 = vpop.f32.mrf.mxu0
    %v2886 = vadd.f32 %v2837, %v2885
    %v2887 = vpop.f32.mrf.mxu0
    %v2888 = vadd.f32 %v2839, %v2887
    %2889 = vmatmul.bf16.gmra.mxu0 %v508
    %v2890 = vpop.f32.mrf.mxu0
    %v2891 = vadd.f32 %v2842, %v2890
    %v2892 = vpop.f32.mrf.mxu0
    %v2893 = vadd.f32 %v2844, %v2892
    %2894 = vmatmul.bf16.gmra.mxu0 %v512
    %v2895 = vpop.f32.mrf.mxu0
    %v2896 = vadd.f32 %v2847, %v2895
    %v2897 = vpop.f32.mrf.mxu0
    %v2898 = vadd.f32 %v2849, %v2897
    %2899 = vmatmul.bf16.gmra.mxu0 %v516
    %v2900 = vpop.f32.mrf.mxu0
    %v2901 = vadd.f32 %v2852, %v2900
    %v2902 = vpop.f32.mrf.mxu0
    %v2903 = vadd.f32 %v2854, %v2902
    %2904 = vmatmul.bf16.gmra.mxu0 %v520
    %v2905 = vpop.f32.mrf.mxu0
    %v2906 = vadd.f32 %v2857, %v2905
    %v2907 = vpop.f32.mrf.mxu0
    %v2908 = vadd.f32 %v2859, %v2907
    %2909 = vmatmul.bf16.gmra.mxu0 %v524
    %v2910 = vpop.f32.mrf.mxu0
    %v2911 = vadd.f32 %v2862, %v2910
    %v2912 = vpop.f32.mrf.mxu0
    %v2913 = vadd.f32 %v2864, %v2912
    %2914 = vmatmul.bf16.gmra.mxu0 %v528
    %v2915 = vpop.f32.mrf.mxu0
    %v2916 = vadd.f32 %v2867, %v2915
    %v2917 = vpop.f32.mrf.mxu0
    %v2918 = vadd.f32 %v2869, %v2917
    %2919 = vmatmul.bf16.gmra.mxu0 %v532
    %v2920 = vpop.f32.mrf.mxu0
    %v2921 = vadd.f32 %v2872, %v2920
    %v2922 = vpop.f32.mrf.mxu0
    %v2923 = vadd.f32 %v2874, %v2922
    %2924 = vdwg.mxu0
    %2925 = vmatpush.bf16.msra.mxu0 %v1524
    %2926 = vmatpush.bf16.msra.mxu0 %v1516
    %2927 = vmatpush.bf16.msra.mxu0 %v1508
    %2928 = vmatpush.bf16.msra.mxu0 %v1500
    %2929 = vmatpush.bf16.msra.mxu0 %v1492
    %2930 = vmatpush.bf16.msra.mxu0 %v1484
    %2931 = vmatpush.bf16.msra.mxu0 %v1476
    %2932 = vmatpush.bf16.msra.mxu0 %v1468
    %2933 = vmatmul.bf16.gmra.mxu0 %v505
    %v2934 = vpop.f32.mrf.mxu0
    %v2935 = vadd.f32 %v2886, %v2934
    %v2936 = vpop.f32.mrf.mxu0
    %v2937 = vadd.f32 %v2888, %v2936
    %2938 = vmatmul.bf16.gmra.mxu0 %v509
    %v2939 = vpop.f32.mrf.mxu0
    %v2940 = vadd.f32 %v2891, %v2939
    %v2941 = vpop.f32.mrf.mxu0
    %v2942 = vadd.f32 %v2893, %v2941
    %2943 = vmatmul.bf16.gmra.mxu0 %v513
    %v2944 = vpop.f32.mrf.mxu0
    %v2945 = vadd.f32 %v2896, %v2944
    %v2946 = vpop.f32.mrf.mxu0
    %v2947 = vadd.f32 %v2898, %v2946
    %2948 = vmatmul.bf16.gmra.mxu0 %v517
    %v2949 = vpop.f32.mrf.mxu0
    %v2950 = vadd.f32 %v2901, %v2949
    %v2951 = vpop.f32.mrf.mxu0
    %v2952 = vadd.f32 %v2903, %v2951
    %2953 = vmatmul.bf16.gmra.mxu0 %v521
    %v2954 = vpop.f32.mrf.mxu0
    %v2955 = vadd.f32 %v2906, %v2954
    %v2956 = vpop.f32.mrf.mxu0
    %v2957 = vadd.f32 %v2908, %v2956
    %2958 = vmatmul.bf16.gmra.mxu0 %v525
    %v2959 = vpop.f32.mrf.mxu0
    %v2960 = vadd.f32 %v2911, %v2959
    %v2961 = vpop.f32.mrf.mxu0
    %v2962 = vadd.f32 %v2913, %v2961
    %2963 = vmatmul.bf16.gmra.mxu0 %v529
    %v2964 = vpop.f32.mrf.mxu0
    %v2965 = vadd.f32 %v2916, %v2964
    %v2966 = vpop.f32.mrf.mxu0
    %v2967 = vadd.f32 %v2918, %v2966
    %2968 = vmatmul.bf16.gmra.mxu0 %v533
    %v2969 = vpop.f32.mrf.mxu0
    %v2970 = vadd.f32 %v2921, %v2969
    %v2971 = vpop.f32.mrf.mxu0
    %v2972 = vadd.f32 %v2923, %v2971
    %2973 = vdwg.mxu0
    %2974 = vmatpush.bf16.msra.mxu0 %v1588
    %2975 = vmatpush.bf16.msra.mxu0 %v1580
    %2976 = vmatpush.bf16.msra.mxu0 %v1572
    %2977 = vmatpush.bf16.msra.mxu0 %v1564
    %2978 = vmatpush.bf16.msra.mxu0 %v1556
    %2979 = vmatpush.bf16.msra.mxu0 %v1548
    %2980 = vmatpush.bf16.msra.mxu0 %v1540
    %2981 = vmatpush.bf16.msra.mxu0 %v1532
    %2982 = vmatmul.bf16.gmra.mxu0 %v506
    %v2983 = vpop.f32.mrf.mxu0
    %v2984 = vadd.f32 %v2935, %v2983
    %v2985 = vpop.f32.mrf.mxu0
    %v2986 = vadd.f32 %v2937, %v2985
    %2987 = vmatmul.bf16.gmra.mxu0 %v510
    %v2988 = vpop.f32.mrf.mxu0
    %v2989 = vadd.f32 %v2940, %v2988
    %v2990 = vpop.f32.mrf.mxu0
    %v2991 = vadd.f32 %v2942, %v2990
    %2992 = vmatmul.bf16.gmra.mxu0 %v514
    %v2993 = vpop.f32.mrf.mxu0
    %v2994 = vadd.f32 %v2945, %v2993
    %v2995 = vpop.f32.mrf.mxu0
    %v2996 = vadd.f32 %v2947, %v2995
    %2997 = vmatmul.bf16.gmra.mxu0 %v518
    %v2998 = vpop.f32.mrf.mxu0
    %v2999 = vadd.f32 %v2950, %v2998
    %v3000 = vpop.f32.mrf.mxu0
    %v3001 = vadd.f32 %v2952, %v3000
    %3002 = vmatmul.bf16.gmra.mxu0 %v522
    %v3003 = vpop.f32.mrf.mxu0
    %v3004 = vadd.f32 %v2955, %v3003
    %v3005 = vpop.f32.mrf.mxu0
    %v3006 = vadd.f32 %v2957, %v3005
    %3007 = vmatmul.bf16.gmra.mxu0 %v526
    %v3008 = vpop.f32.mrf.mxu0
    %v3009 = vadd.f32 %v2960, %v3008
    %v3010 = vpop.f32.mrf.mxu0
    %v3011 = vadd.f32 %v2962, %v3010
    %3012 = vmatmul.bf16.gmra.mxu0 %v530
    %v3013 = vpop.f32.mrf.mxu0
    %v3014 = vadd.f32 %v2965, %v3013
    %v3015 = vpop.f32.mrf.mxu0
    %v3016 = vadd.f32 %v2967, %v3015
    %3017 = vmatmul.bf16.gmra.mxu0 %v534
    %v3018 = vpop.f32.mrf.mxu0
    %v3019 = vadd.f32 %v2970, %v3018
    %v3020 = vpop.f32.mrf.mxu0
    %v3021 = vadd.f32 %v2972, %v3020
    %3022 = vdwg.mxu0
    %3023 = vmatpush.bf16.msra.mxu0 %v1397
    %3024 = vmatpush.bf16.msra.mxu0 %v1389
    %3025 = vmatpush.bf16.msra.mxu0 %v1381
    %3026 = vmatpush.bf16.msra.mxu0 %v1373
    %3027 = vmatpush.bf16.msra.mxu0 %v1365
    %3028 = vmatpush.bf16.msra.mxu0 %v1357
    %3029 = vmatpush.bf16.msra.mxu0 %v1349
    %3030 = vmatpush.bf16.msra.mxu0 %v1341
    %3031 = vmatmul.bf16.gmra.mxu0 %v503
    %v3032 = vpop.f32.mrf.mxu0
    %v3033 = vadd.f32 %v397, %v3032
    %v3034 = vpop.f32.mrf.mxu0
    %v3035 = vadd.f32 %v397, %v3034
    %3036 = vmatmul.bf16.gmra.mxu0 %v507
    %v3037 = vpop.f32.mrf.mxu0
    %v3038 = vadd.f32 %v397, %v3037
    %v3039 = vpop.f32.mrf.mxu0
    %v3040 = vadd.f32 %v397, %v3039
    %3041 = vmatmul.bf16.gmra.mxu0 %v511
    %v3042 = vpop.f32.mrf.mxu0
    %v3043 = vadd.f32 %v397, %v3042
    %v3044 = vpop.f32.mrf.mxu0
    %v3045 = vadd.f32 %v397, %v3044
    %3046 = vmatmul.bf16.gmra.mxu0 %v515
    %v3047 = vpop.f32.mrf.mxu0
    %v3048 = vadd.f32 %v397, %v3047
    %v3049 = vpop.f32.mrf.mxu0
    %v3050 = vadd.f32 %v397, %v3049
    %3051 = vmatmul.bf16.gmra.mxu0 %v519
    %v3052 = vpop.f32.mrf.mxu0
    %v3053 = vadd.f32 %v397, %v3052
    %v3054 = vpop.f32.mrf.mxu0
    %v3055 = vadd.f32 %v397, %v3054
    %3056 = vmatmul.bf16.gmra.mxu0 %v523
    %v3057 = vpop.f32.mrf.mxu0
    %v3058 = vadd.f32 %v397, %v3057
    %v3059 = vpop.f32.mrf.mxu0
    %v3060 = vadd.f32 %v397, %v3059
    %3061 = vmatmul.bf16.gmra.mxu0 %v527
    %v3062 = vpop.f32.mrf.mxu0
    %v3063 = vadd.f32 %v397, %v3062
    %v3064 = vpop.f32.mrf.mxu0
    %v3065 = vadd.f32 %v397, %v3064
    %3066 = vmatmul.bf16.gmra.mxu0 %v531
    %v3067 = vpop.f32.mrf.mxu0
    %v3068 = vadd.f32 %v397, %v3067
    %v3069 = vpop.f32.mrf.mxu0
    %v3070 = vadd.f32 %v397, %v3069
    %3071 = vdwg.mxu0
    %3072 = vmatpush.bf16.msra.mxu0 %v1461
    %3073 = vmatpush.bf16.msra.mxu0 %v1453
    %3074 = vmatpush.bf16.msra.mxu0 %v1445
    %3075 = vmatpush.bf16.msra.mxu0 %v1437
    %3076 = vmatpush.bf16.msra.mxu0 %v1429
    %3077 = vmatpush.bf16.msra.mxu0 %v1421
    %3078 = vmatpush.bf16.msra.mxu0 %v1413
    %3079 = vmatpush.bf16.msra.mxu0 %v1405
    %3080 = vmatmul.bf16.gmra.mxu0 %v504
    %v3081 = vpop.f32.mrf.mxu0
    %v3082 = vadd.f32 %v3033, %v3081
    %v3083 = vpop.f32.mrf.mxu0
    %v3084 = vadd.f32 %v3035, %v3083
    %3085 = vmatmul.bf16.gmra.mxu0 %v508
    %v3086 = vpop.f32.mrf.mxu0
    %v3087 = vadd.f32 %v3038, %v3086
    %v3088 = vpop.f32.mrf.mxu0
    %v3089 = vadd.f32 %v3040, %v3088
    %3090 = vmatmul.bf16.gmra.mxu0 %v512
    %v3091 = vpop.f32.mrf.mxu0
    %v3092 = vadd.f32 %v3043, %v3091
    %v3093 = vpop.f32.mrf.mxu0
    %v3094 = vadd.f32 %v3045, %v3093
    %3095 = vmatmul.bf16.gmra.mxu0 %v516
    %v3096 = vpop.f32.mrf.mxu0
    %v3097 = vadd.f32 %v3048, %v3096
    %v3098 = vpop.f32.mrf.mxu0
    %v3099 = vadd.f32 %v3050, %v3098
    %3100 = vmatmul.bf16.gmra.mxu0 %v520
    %v3101 = vpop.f32.mrf.mxu0
    %v3102 = vadd.f32 %v3053, %v3101
    %v3103 = vpop.f32.mrf.mxu0
    %v3104 = vadd.f32 %v3055, %v3103
    %3105 = vmatmul.bf16.gmra.mxu0 %v524
    %v3106 = vpop.f32.mrf.mxu0
    %v3107 = vadd.f32 %v3058, %v3106
    %v3108 = vpop.f32.mrf.mxu0
    %v3109 = vadd.f32 %v3060, %v3108
    %3110 = vmatmul.bf16.gmra.mxu0 %v528
    %v3111 = vpop.f32.mrf.mxu0
    %v3112 = vadd.f32 %v3063, %v3111
    %v3113 = vpop.f32.mrf.mxu0
    %v3114 = vadd.f32 %v3065, %v3113
    %3115 = vmatmul.bf16.gmra.mxu0 %v532
    %v3116 = vpop.f32.mrf.mxu0
    %v3117 = vadd.f32 %v3068, %v3116
    %v3118 = vpop.f32.mrf.mxu0
    %v3119 = vadd.f32 %v3070, %v3118
    %3120 = vdwg.mxu0
    %3121 = vmatpush.bf16.msra.mxu0 %v1525
    %3122 = vmatpush.bf16.msra.mxu0 %v1517
    %3123 = vmatpush.bf16.msra.mxu0 %v1509
    %3124 = vmatpush.bf16.msra.mxu0 %v1501
    %3125 = vmatpush.bf16.msra.mxu0 %v1493
    %3126 = vmatpush.bf16.msra.mxu0 %v1485
    %3127 = vmatpush.bf16.msra.mxu0 %v1477
    %3128 = vmatpush.bf16.msra.mxu0 %v1469
    %3129 = vmatmul.bf16.gmra.mxu0 %v505
    %v3130 = vpop.f32.mrf.mxu0
    %v3131 = vadd.f32 %v3082, %v3130
    %v3132 = vpop.f32.mrf.mxu0
    %v3133 = vadd.f32 %v3084, %v3132
    %3134 = vmatmul.bf16.gmra.mxu0 %v509
    %v3135 = vpop.f32.mrf.mxu0
    %v3136 = vadd.f32 %v3087, %v3135
    %v3137 = vpop.f32.mrf.mxu0
    %v3138 = vadd.f32 %v3089, %v3137
    %3139 = vmatmul.bf16.gmra.mxu0 %v513
    %v3140 = vpop.f32.mrf.mxu0
    %v3141 = vadd.f32 %v3092, %v3140
    %v3142 = vpop.f32.mrf.mxu0
    %v3143 = vadd.f32 %v3094, %v3142
    %3144 = vmatmul.bf16.gmra.mxu0 %v517
    %v3145 = vpop.f32.mrf.mxu0
    %v3146 = vadd.f32 %v3097, %v3145
    %v3147 = vpop.f32.mrf.mxu0
    %v3148 = vadd.f32 %v3099, %v3147
    %3149 = vmatmul.bf16.gmra.mxu0 %v521
    %v3150 = vpop.f32.mrf.mxu0
    %v3151 = vadd.f32 %v3102, %v3150
    %v3152 = vpop.f32.mrf.mxu0
    %v3153 = vadd.f32 %v3104, %v3152
    %3154 = vmatmul.bf16.gmra.mxu0 %v525
    %v3155 = vpop.f32.mrf.mxu0
    %v3156 = vadd.f32 %v3107, %v3155
    %v3157 = vpop.f32.mrf.mxu0
    %v3158 = vadd.f32 %v3109, %v3157
    %3159 = vmatmul.bf16.gmra.mxu0 %v529
    %v3160 = vpop.f32.mrf.mxu0
    %v3161 = vadd.f32 %v3112, %v3160
    %v3162 = vpop.f32.mrf.mxu0
    %v3163 = vadd.f32 %v3114, %v3162
    %3164 = vmatmul.bf16.gmra.mxu0 %v533
    %v3165 = vpop.f32.mrf.mxu0
    %v3166 = vadd.f32 %v3117, %v3165
    %v3167 = vpop.f32.mrf.mxu0
    %v3168 = vadd.f32 %v3119, %v3167
    %3169 = vdwg.mxu0
    %3170 = vmatpush.bf16.msra.mxu0 %v1589
    %3171 = vmatpush.bf16.msra.mxu0 %v1581
    %3172 = vmatpush.bf16.msra.mxu0 %v1573
    %3173 = vmatpush.bf16.msra.mxu0 %v1565
    %3174 = vmatpush.bf16.msra.mxu0 %v1557
    %3175 = vmatpush.bf16.msra.mxu0 %v1549
    %3176 = vmatpush.bf16.msra.mxu0 %v1541
    %3177 = vmatpush.bf16.msra.mxu0 %v1533
    %3178 = vmatmul.bf16.gmra.mxu0 %v506
    %v3179 = vpop.f32.mrf.mxu0
    %v3180 = vadd.f32 %v3131, %v3179
    %v3181 = vpop.f32.mrf.mxu0
    %v3182 = vadd.f32 %v3133, %v3181
    %3183 = vmatmul.bf16.gmra.mxu0 %v510
    %v3184 = vpop.f32.mrf.mxu0
    %v3185 = vadd.f32 %v3136, %v3184
    %v3186 = vpop.f32.mrf.mxu0
    %v3187 = vadd.f32 %v3138, %v3186
    %3188 = vmatmul.bf16.gmra.mxu0 %v514
    %v3189 = vpop.f32.mrf.mxu0
    %v3190 = vadd.f32 %v3141, %v3189
    %v3191 = vpop.f32.mrf.mxu0
    %v3192 = vadd.f32 %v3143, %v3191
    %3193 = vmatmul.bf16.gmra.mxu0 %v518
    %v3194 = vpop.f32.mrf.mxu0
    %v3195 = vadd.f32 %v3146, %v3194
    %v3196 = vpop.f32.mrf.mxu0
    %v3197 = vadd.f32 %v3148, %v3196
    %3198 = vmatmul.bf16.gmra.mxu0 %v522
    %v3199 = vpop.f32.mrf.mxu0
    %v3200 = vadd.f32 %v3151, %v3199
    %v3201 = vpop.f32.mrf.mxu0
    %v3202 = vadd.f32 %v3153, %v3201
    %3203 = vmatmul.bf16.gmra.mxu0 %v526
    %v3204 = vpop.f32.mrf.mxu0
    %v3205 = vadd.f32 %v3156, %v3204
    %v3206 = vpop.f32.mrf.mxu0
    %v3207 = vadd.f32 %v3158, %v3206
    %3208 = vmatmul.bf16.gmra.mxu0 %v530
    %v3209 = vpop.f32.mrf.mxu0
    %v3210 = vadd.f32 %v3161, %v3209
    %v3211 = vpop.f32.mrf.mxu0
    %v3212 = vadd.f32 %v3163, %v3211
    %3213 = vmatmul.bf16.gmra.mxu0 %v534
    %v3214 = vpop.f32.mrf.mxu0
    %v3215 = vadd.f32 %v3166, %v3214
    %v3216 = vpop.f32.mrf.mxu0
    %v3217 = vadd.f32 %v3168, %v3216
    %3218 = vdwg.mxu0
    %3219 = vmatpush.bf16.msra.mxu0 %v1398
    %3220 = vmatpush.bf16.msra.mxu0 %v1390
    %3221 = vmatpush.bf16.msra.mxu0 %v1382
    %3222 = vmatpush.bf16.msra.mxu0 %v1374
    %3223 = vmatpush.bf16.msra.mxu0 %v1366
    %3224 = vmatpush.bf16.msra.mxu0 %v1358
    %3225 = vmatpush.bf16.msra.mxu0 %v1350
    %3226 = vmatpush.bf16.msra.mxu0 %v1342
    %3227 = vmatmul.bf16.gmra.mxu0 %v503
    %v3228 = vpop.f32.mrf.mxu0
    %v3229 = vadd.f32 %v398, %v3228
    %v3230 = vpop.f32.mrf.mxu0
    %v3231 = vadd.f32 %v398, %v3230
    %3232 = vmatmul.bf16.gmra.mxu0 %v507
    %v3233 = vpop.f32.mrf.mxu0
    %v3234 = vadd.f32 %v398, %v3233
    %v3235 = vpop.f32.mrf.mxu0
    %v3236 = vadd.f32 %v398, %v3235
    %3237 = vmatmul.bf16.gmra.mxu0 %v511
    %v3238 = vpop.f32.mrf.mxu0
    %v3239 = vadd.f32 %v398, %v3238
    %v3240 = vpop.f32.mrf.mxu0
    %v3241 = vadd.f32 %v398, %v3240
    %3242 = vmatmul.bf16.gmra.mxu0 %v515
    %v3243 = vpop.f32.mrf.mxu0
    %v3244 = vadd.f32 %v398, %v3243
    %v3245 = vpop.f32.mrf.mxu0
    %v3246 = vadd.f32 %v398, %v3245
    %3247 = vmatmul.bf16.gmra.mxu0 %v519
    %v3248 = vpop.f32.mrf.mxu0
    %v3249 = vadd.f32 %v398, %v3248
    %v3250 = vpop.f32.mrf.mxu0
    %v3251 = vadd.f32 %v398, %v3250
    %3252 = vmatmul.bf16.gmra.mxu0 %v523
    %v3253 = vpop.f32.mrf.mxu0
    %v3254 = vadd.f32 %v398, %v3253
    %v3255 = vpop.f32.mrf.mxu0
    %v3256 = vadd.f32 %v398, %v3255
    %3257 = vmatmul.bf16.gmra.mxu0 %v527
    %v3258 = vpop.f32.mrf.mxu0
    %v3259 = vadd.f32 %v398, %v3258
    %v3260 = vpop.f32.mrf.mxu0
    %v3261 = vadd.f32 %v398, %v3260
    %3262 = vmatmul.bf16.gmra.mxu0 %v531
    %v3263 = vpop.f32.mrf.mxu0
    %v3264 = vadd.f32 %v398, %v3263
    %v3265 = vpop.f32.mrf.mxu0
    %v3266 = vadd.f32 %v398, %v3265
    %3267 = vdwg.mxu0
    %3268 = vmatpush.bf16.msra.mxu0 %v1462
    %3269 = vmatpush.bf16.msra.mxu0 %v1454
    %3270 = vmatpush.bf16.msra.mxu0 %v1446
    %3271 = vmatpush.bf16.msra.mxu0 %v1438
    %3272 = vmatpush.bf16.msra.mxu0 %v1430
    %3273 = vmatpush.bf16.msra.mxu0 %v1422
    %3274 = vmatpush.bf16.msra.mxu0 %v1414
    %3275 = vmatpush.bf16.msra.mxu0 %v1406
    %3276 = vmatmul.bf16.gmra.mxu0 %v504
    %v3277 = vpop.f32.mrf.mxu0
    %v3278 = vadd.f32 %v3229, %v3277
    %v3279 = vpop.f32.mrf.mxu0
    %v3280 = vadd.f32 %v3231, %v3279
    %3281 = vmatmul.bf16.gmra.mxu0 %v508
    %v3282 = vpop.f32.mrf.mxu0
    %v3283 = vadd.f32 %v3234, %v3282
    %v3284 = vpop.f32.mrf.mxu0
    %v3285 = vadd.f32 %v3236, %v3284
    %3286 = vmatmul.bf16.gmra.mxu0 %v512
    %v3287 = vpop.f32.mrf.mxu0
    %v3288 = vadd.f32 %v3239, %v3287
    %v3289 = vpop.f32.mrf.mxu0
    %v3290 = vadd.f32 %v3241, %v3289
    %3291 = vmatmul.bf16.gmra.mxu0 %v516
    %v3292 = vpop.f32.mrf.mxu0
    %v3293 = vadd.f32 %v3244, %v3292
    %v3294 = vpop.f32.mrf.mxu0
    %v3295 = vadd.f32 %v3246, %v3294
    %3296 = vmatmul.bf16.gmra.mxu0 %v520
    %v3297 = vpop.f32.mrf.mxu0
    %v3298 = vadd.f32 %v3249, %v3297
    %v3299 = vpop.f32.mrf.mxu0
    %v3300 = vadd.f32 %v3251, %v3299
    %3301 = vmatmul.bf16.gmra.mxu0 %v524
    %v3302 = vpop.f32.mrf.mxu0
    %v3303 = vadd.f32 %v3254, %v3302
    %v3304 = vpop.f32.mrf.mxu0
    %v3305 = vadd.f32 %v3256, %v3304
    %3306 = vmatmul.bf16.gmra.mxu0 %v528
    %v3307 = vpop.f32.mrf.mxu0
    %v3308 = vadd.f32 %v3259, %v3307
    %v3309 = vpop.f32.mrf.mxu0
    %v3310 = vadd.f32 %v3261, %v3309
    %3311 = vmatmul.bf16.gmra.mxu0 %v532
    %v3312 = vpop.f32.mrf.mxu0
    %v3313 = vadd.f32 %v3264, %v3312
    %v3314 = vpop.f32.mrf.mxu0
    %v3315 = vadd.f32 %v3266, %v3314
    %3316 = vdwg.mxu0
    %3317 = vmatpush.bf16.msra.mxu0 %v1526
    %3318 = vmatpush.bf16.msra.mxu0 %v1518
    %3319 = vmatpush.bf16.msra.mxu0 %v1510
    %3320 = vmatpush.bf16.msra.mxu0 %v1502
    %3321 = vmatpush.bf16.msra.mxu0 %v1494
    %3322 = vmatpush.bf16.msra.mxu0 %v1486
    %3323 = vmatpush.bf16.msra.mxu0 %v1478
    %3324 = vmatpush.bf16.msra.mxu0 %v1470
    %3325 = vmatmul.bf16.gmra.mxu0 %v505
    %v3326 = vpop.f32.mrf.mxu0
    %v3327 = vadd.f32 %v3278, %v3326
    %v3328 = vpop.f32.mrf.mxu0
    %v3329 = vadd.f32 %v3280, %v3328
    %3330 = vmatmul.bf16.gmra.mxu0 %v509
    %v3331 = vpop.f32.mrf.mxu0
    %v3332 = vadd.f32 %v3283, %v3331
    %v3333 = vpop.f32.mrf.mxu0
    %v3334 = vadd.f32 %v3285, %v3333
    %3335 = vmatmul.bf16.gmra.mxu0 %v513
    %v3336 = vpop.f32.mrf.mxu0
    %v3337 = vadd.f32 %v3288, %v3336
    %v3338 = vpop.f32.mrf.mxu0
    %v3339 = vadd.f32 %v3290, %v3338
    %3340 = vmatmul.bf16.gmra.mxu0 %v517
    %v3341 = vpop.f32.mrf.mxu0
    %v3342 = vadd.f32 %v3293, %v3341
    %v3343 = vpop.f32.mrf.mxu0
    %v3344 = vadd.f32 %v3295, %v3343
    %3345 = vmatmul.bf16.gmra.mxu0 %v521
    %v3346 = vpop.f32.mrf.mxu0
    %v3347 = vadd.f32 %v3298, %v3346
    %v3348 = vpop.f32.mrf.mxu0
    %v3349 = vadd.f32 %v3300, %v3348
    %3350 = vmatmul.bf16.gmra.mxu0 %v525
    %v3351 = vpop.f32.mrf.mxu0
    %v3352 = vadd.f32 %v3303, %v3351
    %v3353 = vpop.f32.mrf.mxu0
    %v3354 = vadd.f32 %v3305, %v3353
    %3355 = vmatmul.bf16.gmra.mxu0 %v529
    %v3356 = vpop.f32.mrf.mxu0
    %v3357 = vadd.f32 %v3308, %v3356
    %v3358 = vpop.f32.mrf.mxu0
    %v3359 = vadd.f32 %v3310, %v3358
    %3360 = vmatmul.bf16.gmra.mxu0 %v533
    %v3361 = vpop.f32.mrf.mxu0
    %v3362 = vadd.f32 %v3313, %v3361
    %v3363 = vpop.f32.mrf.mxu0
    %v3364 = vadd.f32 %v3315, %v3363
    %3365 = vdwg.mxu0
    %3366 = vmatpush.bf16.msra.mxu0 %v1590
    %3367 = vmatpush.bf16.msra.mxu0 %v1582
    %3368 = vmatpush.bf16.msra.mxu0 %v1574
    %3369 = vmatpush.bf16.msra.mxu0 %v1566
    %3370 = vmatpush.bf16.msra.mxu0 %v1558
    %3371 = vmatpush.bf16.msra.mxu0 %v1550
    %3372 = vmatpush.bf16.msra.mxu0 %v1542
    %3373 = vmatpush.bf16.msra.mxu0 %v1534
    %3374 = vmatmul.bf16.gmra.mxu0 %v506
    %v3375 = vpop.f32.mrf.mxu0
    %v3376 = vadd.f32 %v3327, %v3375
    %v3377 = vpop.f32.mrf.mxu0
    %v3378 = vadd.f32 %v3329, %v3377
    %3379 = vmatmul.bf16.gmra.mxu0 %v510
    %v3380 = vpop.f32.mrf.mxu0
    %v3381 = vadd.f32 %v3332, %v3380
    %v3382 = vpop.f32.mrf.mxu0
    %v3383 = vadd.f32 %v3334, %v3382
    %3384 = vmatmul.bf16.gmra.mxu0 %v514
    %v3385 = vpop.f32.mrf.mxu0
    %v3386 = vadd.f32 %v3337, %v3385
    %v3387 = vpop.f32.mrf.mxu0
    %v3388 = vadd.f32 %v3339, %v3387
    %3389 = vmatmul.bf16.gmra.mxu0 %v518
    %v3390 = vpop.f32.mrf.mxu0
    %v3391 = vadd.f32 %v3342, %v3390
    %v3392 = vpop.f32.mrf.mxu0
    %v3393 = vadd.f32 %v3344, %v3392
    %3394 = vmatmul.bf16.gmra.mxu0 %v522
    %v3395 = vpop.f32.mrf.mxu0
    %v3396 = vadd.f32 %v3347, %v3395
    %v3397 = vpop.f32.mrf.mxu0
    %v3398 = vadd.f32 %v3349, %v3397
    %3399 = vmatmul.bf16.gmra.mxu0 %v526
    %v3400 = vpop.f32.mrf.mxu0
    %v3401 = vadd.f32 %v3352, %v3400
    %v3402 = vpop.f32.mrf.mxu0
    %v3403 = vadd.f32 %v3354, %v3402
    %3404 = vmatmul.bf16.gmra.mxu0 %v530
    %v3405 = vpop.f32.mrf.mxu0
    %v3406 = vadd.f32 %v3357, %v3405
    %v3407 = vpop.f32.mrf.mxu0
    %v3408 = vadd.f32 %v3359, %v3407
    %3409 = vmatmul.bf16.gmra.mxu0 %v534
    %v3410 = vpop.f32.mrf.mxu0
    %v3411 = vadd.f32 %v3362, %v3410
    %v3412 = vpop.f32.mrf.mxu0
    %v3413 = vadd.f32 %v3364, %v3412
    %3414 = vdwg.mxu0
    %v3415 = vld [vmem:[#allocation7] sm:$0xff]
    %v3416 = vld [vmem:[#allocation7 + $0x8] sm:$0xff]
    %v3417 = vld [vmem:[#allocation7 + $0x10] sm:$0xff]
    %v3418 = vld [vmem:[#allocation7 + $0x18] sm:$0xff]
    %v3419 = vld [vmem:[#allocation7 + $0x20] sm:$0xff]
    %v3420 = vld [vmem:[#allocation7 + $0x28] sm:$0xff]
    %v3421 = vld [vmem:[#allocation7 + $0x30] sm:$0xff]
    %v3422 = vld [vmem:[#allocation7 + $0x38] sm:$0xff]
    %v3423 = vld [vmem:[#allocation7 + $0x40] sm:$0xff]
    %v3424 = vld [vmem:[#allocation7 + $0x48] sm:$0xff]
    %v3425 = vld [vmem:[#allocation7 + $0x50] sm:$0xff]
    %v3426 = vld [vmem:[#allocation7 + $0x58] sm:$0xff]
    %v3427 = vld [vmem:[#allocation7 + $0x60] sm:$0xff]
    %v3428 = vld [vmem:[#allocation7 + $0x68] sm:$0xff]
    %v3429 = vld [vmem:[#allocation7 + $0x70] sm:$0xff]
    %v3430 = vld [vmem:[#allocation7 + $0x78] sm:$0xff]
    %v3431 = vld [vmem:[#allocation7 + $0x80] sm:$0xff]
    %v3432 = vld [vmem:[#allocation7 + $0x88] sm:$0xff]
    %v3433 = vld [vmem:[#allocation7 + $0x90] sm:$0xff]
    %v3434 = vld [vmem:[#allocation7 + $0x98] sm:$0xff]
    %v3435 = vld [vmem:[#allocation7 + $0xa0] sm:$0xff]
    %v3436 = vld [vmem:[#allocation7 + $0xa8] sm:$0xff]
    %v3437 = vld [vmem:[#allocation7 + $0xb0] sm:$0xff]
    %v3438 = vld [vmem:[#allocation7 + $0xb8] sm:$0xff]
    %v3439 = vld [vmem:[#allocation7 + $0xc0] sm:$0xff]
    %v3440 = vld [vmem:[#allocation7 + $0xc8] sm:$0xff]
    %v3441 = vld [vmem:[#allocation7 + $0xd0] sm:$0xff]
    %v3442 = vld [vmem:[#allocation7 + $0xd8] sm:$0xff]
    %v3443 = vld [vmem:[#allocation7 + $0xe0] sm:$0xff]
    %v3444 = vld [vmem:[#allocation7 + $0xe8] sm:$0xff]
    %v3445 = vld [vmem:[#allocation7 + $0xf0] sm:$0xff]
    %v3446 = vld [vmem:[#allocation7 + $0xf8] sm:$0xff]
    %v3447 = vld [vmem:[#allocation7 + $0x100] sm:$0xff]
    %v3448 = vld [vmem:[#allocation7 + $0x108] sm:$0xff]
    %v3449 = vld [vmem:[#allocation7 + $0x110] sm:$0xff]
    %v3450 = vld [vmem:[#allocation7 + $0x118] sm:$0xff]
    %v3451 = vld [vmem:[#allocation7 + $0x120] sm:$0xff]
    %v3452 = vld [vmem:[#allocation7 + $0x128] sm:$0xff]
    %v3453 = vld [vmem:[#allocation7 + $0x130] sm:$0xff]
    %v3454 = vld [vmem:[#allocation7 + $0x138] sm:$0xff]
    %v3455 = vld [vmem:[#allocation7 + $0x140] sm:$0xff]
    %v3456 = vld [vmem:[#allocation7 + $0x148] sm:$0xff]
    %v3457 = vld [vmem:[#allocation7 + $0x150] sm:$0xff]
    %v3458 = vld [vmem:[#allocation7 + $0x158] sm:$0xff]
    %v3459 = vld [vmem:[#allocation7 + $0x160] sm:$0xff]
    %v3460 = vld [vmem:[#allocation7 + $0x168] sm:$0xff]
    %v3461 = vld [vmem:[#allocation7 + $0x170] sm:$0xff]
    %v3462 = vld [vmem:[#allocation7 + $0x178] sm:$0xff]
    %v3463 = vld [vmem:[#allocation7 + $0x180] sm:$0xff]
    %v3464 = vld [vmem:[#allocation7 + $0x188] sm:$0xff]
    %v3465 = vld [vmem:[#allocation7 + $0x190] sm:$0xff]
    %v3466 = vld [vmem:[#allocation7 + $0x198] sm:$0xff]
    %v3467 = vld [vmem:[#allocation7 + $0x1a0] sm:$0xff]
    %v3468 = vld [vmem:[#allocation7 + $0x1a8] sm:$0xff]
    %v3469 = vld [vmem:[#allocation7 + $0x1b0] sm:$0xff]
    %v3470 = vld [vmem:[#allocation7 + $0x1b8] sm:$0xff]
    %v3471 = vld [vmem:[#allocation7 + $0x1c0] sm:$0xff]
    %v3472 = vld [vmem:[#allocation7 + $0x1c8] sm:$0xff]
    %v3473 = vld [vmem:[#allocation7 + $0x1d0] sm:$0xff]
    %v3474 = vld [vmem:[#allocation7 + $0x1d8] sm:$0xff]
    %v3475 = vld [vmem:[#allocation7 + $0x1e0] sm:$0xff]
    %v3476 = vld [vmem:[#allocation7 + $0x1e8] sm:$0xff]
    %v3477 = vld [vmem:[#allocation7 + $0x1f0] sm:$0xff]
    %v3478 = vld [vmem:[#allocation7 + $0x1f8] sm:$0xff]
    %v3479 = vld [vmem:[#allocation7 + $0x200] sm:$0xff]
    %v3480 = vld [vmem:[#allocation7 + $0x208] sm:$0xff]
    %v3481 = vld [vmem:[#allocation7 + $0x210] sm:$0xff]
    %v3482 = vld [vmem:[#allocation7 + $0x218] sm:$0xff]
    %v3483 = vld [vmem:[#allocation7 + $0x220] sm:$0xff]
    %v3484 = vld [vmem:[#allocation7 + $0x228] sm:$0xff]
    %v3485 = vld [vmem:[#allocation7 + $0x230] sm:$0xff]
    %v3486 = vld [vmem:[#allocation7 + $0x238] sm:$0xff]
    %v3487 = vld [vmem:[#allocation7 + $0x240] sm:$0xff]
    %v3488 = vld [vmem:[#allocation7 + $0x248] sm:$0xff]
    %v3489 = vld [vmem:[#allocation7 + $0x250] sm:$0xff]
    %v3490 = vld [vmem:[#allocation7 + $0x258] sm:$0xff]
    %v3491 = vld [vmem:[#allocation7 + $0x260] sm:$0xff]
    %v3492 = vld [vmem:[#allocation7 + $0x268] sm:$0xff]
    %v3493 = vld [vmem:[#allocation7 + $0x270] sm:$0xff]
    %v3494 = vld [vmem:[#allocation7 + $0x278] sm:$0xff]
    %v3495 = vld [vmem:[#allocation7 + $0x280] sm:$0xff]
    %v3496 = vld [vmem:[#allocation7 + $0x288] sm:$0xff]
    %v3497 = vld [vmem:[#allocation7 + $0x290] sm:$0xff]
    %v3498 = vld [vmem:[#allocation7 + $0x298] sm:$0xff]
    %v3499 = vld [vmem:[#allocation7 + $0x2a0] sm:$0xff]
    %v3500 = vld [vmem:[#allocation7 + $0x2a8] sm:$0xff]
    %v3501 = vld [vmem:[#allocation7 + $0x2b0] sm:$0xff]
    %v3502 = vld [vmem:[#allocation7 + $0x2b8] sm:$0xff]
    %v3503 = vld [vmem:[#allocation7 + $0x2c0] sm:$0xff]
    %v3504 = vld [vmem:[#allocation7 + $0x2c8] sm:$0xff]
    %v3505 = vld [vmem:[#allocation7 + $0x2d0] sm:$0xff]
    %v3506 = vld [vmem:[#allocation7 + $0x2d8] sm:$0xff]
    %v3507 = vld [vmem:[#allocation7 + $0x2e0] sm:$0xff]
    %v3508 = vld [vmem:[#allocation7 + $0x2e8] sm:$0xff]
    %v3509 = vld [vmem:[#allocation7 + $0x2f0] sm:$0xff]
    %v3510 = vld [vmem:[#allocation7 + $0x2f8] sm:$0xff]
    %v3511 = vld [vmem:[#allocation7 + $0x300] sm:$0xff]
    %v3512 = vld [vmem:[#allocation7 + $0x308] sm:$0xff]
    %v3513 = vld [vmem:[#allocation7 + $0x310] sm:$0xff]
    %v3514 = vld [vmem:[#allocation7 + $0x318] sm:$0xff]
    %v3515 = vld [vmem:[#allocation7 + $0x320] sm:$0xff]
    %v3516 = vld [vmem:[#allocation7 + $0x328] sm:$0xff]
    %v3517 = vld [vmem:[#allocation7 + $0x330] sm:$0xff]
    %v3518 = vld [vmem:[#allocation7 + $0x338] sm:$0xff]
    %v3519 = vld [vmem:[#allocation7 + $0x340] sm:$0xff]
    %v3520 = vld [vmem:[#allocation7 + $0x348] sm:$0xff]
    %v3521 = vld [vmem:[#allocation7 + $0x350] sm:$0xff]
    %v3522 = vld [vmem:[#allocation7 + $0x358] sm:$0xff]
    %v3523 = vld [vmem:[#allocation7 + $0x360] sm:$0xff]
    %v3524 = vld [vmem:[#allocation7 + $0x368] sm:$0xff]
    %v3525 = vld [vmem:[#allocation7 + $0x370] sm:$0xff]
    %v3526 = vld [vmem:[#allocation7 + $0x378] sm:$0xff]
    %v3527 = vld [vmem:[#allocation7 + $0x380] sm:$0xff]
    %v3528 = vld [vmem:[#allocation7 + $0x388] sm:$0xff]
    %v3529 = vld [vmem:[#allocation7 + $0x390] sm:$0xff]
    %v3530 = vld [vmem:[#allocation7 + $0x398] sm:$0xff]
    %v3531 = vld [vmem:[#allocation7 + $0x3a0] sm:$0xff]
    %v3532 = vld [vmem:[#allocation7 + $0x3a8] sm:$0xff]
    %v3533 = vld [vmem:[#allocation7 + $0x3b0] sm:$0xff]
    %v3534 = vld [vmem:[#allocation7 + $0x3b8] sm:$0xff]
    %v3535 = vld [vmem:[#allocation7 + $0x3c0] sm:$0xff]
    %v3536 = vld [vmem:[#allocation7 + $0x3c8] sm:$0xff]
    %v3537 = vld [vmem:[#allocation7 + $0x3d0] sm:$0xff]
    %v3538 = vld [vmem:[#allocation7 + $0x3d8] sm:$0xff]
    %v3539 = vld [vmem:[#allocation7 + $0x3e0] sm:$0xff]
    %v3540 = vld [vmem:[#allocation7 + $0x3e8] sm:$0xff]
    %v3541 = vld [vmem:[#allocation7 + $0x3f0] sm:$0xff]
    %v3542 = vld [vmem:[#allocation7 + $0x3f8] sm:$0xff]
    %v3671 = vunpack.c.l.b16 %v3415
    %v3672 = vunpack.c.h.b16 %v3415
    %v3673 = vunpack.c.l.b16 %v3416
    %v3674 = vunpack.c.h.b16 %v3416
    %v3675 = vunpack.c.l.b16 %v3417
    %v3676 = vunpack.c.h.b16 %v3417
    %v3677 = vunpack.c.l.b16 %v3418
    %v3678 = vunpack.c.h.b16 %v3418
    %v3679 = vunpack.c.l.b16 %v3419
    %v3680 = vunpack.c.h.b16 %v3419
    %v3681 = vunpack.c.l.b16 %v3420
    %v3682 = vunpack.c.h.b16 %v3420
    %v3683 = vunpack.c.l.b16 %v3421
    %v3684 = vunpack.c.h.b16 %v3421
    %v3685 = vunpack.c.l.b16 %v3422
    %v3686 = vunpack.c.h.b16 %v3422
    %v3687 = vunpack.c.l.b16 %v3423
    %v3688 = vunpack.c.h.b16 %v3423
    %v3689 = vunpack.c.l.b16 %v3424
    %v3690 = vunpack.c.h.b16 %v3424
    %v3691 = vunpack.c.l.b16 %v3425
    %v3692 = vunpack.c.h.b16 %v3425
    %v3693 = vunpack.c.l.b16 %v3426
    %v3694 = vunpack.c.h.b16 %v3426
    %v3695 = vunpack.c.l.b16 %v3427
    %v3696 = vunpack.c.h.b16 %v3427
    %v3697 = vunpack.c.l.b16 %v3428
    %v3698 = vunpack.c.h.b16 %v3428
    %v3699 = vunpack.c.l.b16 %v3429
    %v3700 = vunpack.c.h.b16 %v3429
    %v3701 = vunpack.c.l.b16 %v3430
    %v3702 = vunpack.c.h.b16 %v3430
    %v3703 = vunpack.c.l.b16 %v3431
    %v3704 = vunpack.c.h.b16 %v3431
    %v3705 = vunpack.c.l.b16 %v3432
    %v3706 = vunpack.c.h.b16 %v3432
    %v3707 = vunpack.c.l.b16 %v3433
    %v3708 = vunpack.c.h.b16 %v3433
    %v3709 = vunpack.c.l.b16 %v3434
    %v3710 = vunpack.c.h.b16 %v3434
    %v3711 = vunpack.c.l.b16 %v3435
    %v3712 = vunpack.c.h.b16 %v3435
    %v3713 = vunpack.c.l.b16 %v3436
    %v3714 = vunpack.c.h.b16 %v3436
    %v3715 = vunpack.c.l.b16 %v3437
    %v3716 = vunpack.c.h.b16 %v3437
    %v3717 = vunpack.c.l.b16 %v3438
    %v3718 = vunpack.c.h.b16 %v3438
    %v3719 = vunpack.c.l.b16 %v3439
    %v3720 = vunpack.c.h.b16 %v3439
    %v3721 = vunpack.c.l.b16 %v3440
    %v3722 = vunpack.c.h.b16 %v3440
    %v3723 = vunpack.c.l.b16 %v3441
    %v3724 = vunpack.c.h.b16 %v3441
    %v3725 = vunpack.c.l.b16 %v3442
    %v3726 = vunpack.c.h.b16 %v3442
    %v3727 = vunpack.c.l.b16 %v3443
    %v3728 = vunpack.c.h.b16 %v3443
    %v3729 = vunpack.c.l.b16 %v3444
    %v3730 = vunpack.c.h.b16 %v3444
    %v3731 = vunpack.c.l.b16 %v3445
    %v3732 = vunpack.c.h.b16 %v3445
    %v3733 = vunpack.c.l.b16 %v3446
    %v3734 = vunpack.c.h.b16 %v3446
    %v3735 = vunpack.c.l.b16 %v3447
    %v3736 = vunpack.c.h.b16 %v3447
    %v3737 = vunpack.c.l.b16 %v3448
    %v3738 = vunpack.c.h.b16 %v3448
    %v3739 = vunpack.c.l.b16 %v3449
    %v3740 = vunpack.c.h.b16 %v3449
    %v3741 = vunpack.c.l.b16 %v3450
    %v3742 = vunpack.c.h.b16 %v3450
    %v3743 = vunpack.c.l.b16 %v3451
    %v3744 = vunpack.c.h.b16 %v3451
    %v3745 = vunpack.c.l.b16 %v3452
    %v3746 = vunpack.c.h.b16 %v3452
    %v3747 = vunpack.c.l.b16 %v3453
    %v3748 = vunpack.c.h.b16 %v3453
    %v3749 = vunpack.c.l.b16 %v3454
    %v3750 = vunpack.c.h.b16 %v3454
    %v3751 = vunpack.c.l.b16 %v3455
    %v3752 = vunpack.c.h.b16 %v3455
    %v3753 = vunpack.c.l.b16 %v3456
    %v3754 = vunpack.c.h.b16 %v3456
    %v3755 = vunpack.c.l.b16 %v3457
    %v3756 = vunpack.c.h.b16 %v3457
    %v3757 = vunpack.c.l.b16 %v3458
    %v3758 = vunpack.c.h.b16 %v3458
    %v3759 = vunpack.c.l.b16 %v3459
    %v3760 = vunpack.c.h.b16 %v3459
    %v3761 = vunpack.c.l.b16 %v3460
    %v3762 = vunpack.c.h.b16 %v3460
    %v3763 = vunpack.c.l.b16 %v3461
    %v3764 = vunpack.c.h.b16 %v3461
    %v3765 = vunpack.c.l.b16 %v3462
    %v3766 = vunpack.c.h.b16 %v3462
    %v3767 = vunpack.c.l.b16 %v3463
    %v3768 = vunpack.c.h.b16 %v3463
    %v3769 = vunpack.c.l.b16 %v3464
    %v3770 = vunpack.c.h.b16 %v3464
    %v3771 = vunpack.c.l.b16 %v3465
    %v3772 = vunpack.c.h.b16 %v3465
    %v3773 = vunpack.c.l.b16 %v3466
    %v3774 = vunpack.c.h.b16 %v3466
    %v3775 = vunpack.c.l.b16 %v3467
    %v3776 = vunpack.c.h.b16 %v3467
    %v3777 = vunpack.c.l.b16 %v3468
    %v3778 = vunpack.c.h.b16 %v3468
    %v3779 = vunpack.c.l.b16 %v3469
    %v3780 = vunpack.c.h.b16 %v3469
    %v3781 = vunpack.c.l.b16 %v3470
    %v3782 = vunpack.c.h.b16 %v3470
    %v3783 = vunpack.c.l.b16 %v3471
    %v3784 = vunpack.c.h.b16 %v3471
    %v3785 = vunpack.c.l.b16 %v3472
    %v3786 = vunpack.c.h.b16 %v3472
    %v3787 = vunpack.c.l.b16 %v3473
    %v3788 = vunpack.c.h.b16 %v3473
    %v3789 = vunpack.c.l.b16 %v3474
    %v3790 = vunpack.c.h.b16 %v3474
    %v3791 = vunpack.c.l.b16 %v3475
    %v3792 = vunpack.c.h.b16 %v3475
    %v3793 = vunpack.c.l.b16 %v3476
    %v3794 = vunpack.c.h.b16 %v3476
    %v3795 = vunpack.c.l.b16 %v3477
    %v3796 = vunpack.c.h.b16 %v3477
    %v3797 = vunpack.c.l.b16 %v3478
    %v3798 = vunpack.c.h.b16 %v3478
    %v3799 = vunpack.c.l.b16 %v3479
    %v3800 = vunpack.c.h.b16 %v3479
    %v3801 = vunpack.c.l.b16 %v3480
    %v3802 = vunpack.c.h.b16 %v3480
    %v3803 = vunpack.c.l.b16 %v3481
    %v3804 = vunpack.c.h.b16 %v3481
    %v3805 = vunpack.c.l.b16 %v3482
    %v3806 = vunpack.c.h.b16 %v3482
    %v3807 = vunpack.c.l.b16 %v3483
    %v3808 = vunpack.c.h.b16 %v3483
    %v3809 = vunpack.c.l.b16 %v3484
    %v3810 = vunpack.c.h.b16 %v3484
    %v3811 = vunpack.c.l.b16 %v3485
    %v3812 = vunpack.c.h.b16 %v3485
    %v3813 = vunpack.c.l.b16 %v3486
    %v3814 = vunpack.c.h.b16 %v3486
    %v3815 = vunpack.c.l.b16 %v3487
    %v3816 = vunpack.c.h.b16 %v3487
    %v3817 = vunpack.c.l.b16 %v3488
    %v3818 = vunpack.c.h.b16 %v3488
    %v3819 = vunpack.c.l.b16 %v3489
    %v3820 = vunpack.c.h.b16 %v3489
    %v3821 = vunpack.c.l.b16 %v3490
    %v3822 = vunpack.c.h.b16 %v3490
    %v3823 = vunpack.c.l.b16 %v3491
    %v3824 = vunpack.c.h.b16 %v3491
    %v3825 = vunpack.c.l.b16 %v3492
    %v3826 = vunpack.c.h.b16 %v3492
    %v3827 = vunpack.c.l.b16 %v3493
    %v3828 = vunpack.c.h.b16 %v3493
    %v3829 = vunpack.c.l.b16 %v3494
    %v3830 = vunpack.c.h.b16 %v3494
    %v3831 = vunpack.c.l.b16 %v3495
    %v3832 = vunpack.c.h.b16 %v3495
    %v3833 = vunpack.c.l.b16 %v3496
    %v3834 = vunpack.c.h.b16 %v3496
    %v3835 = vunpack.c.l.b16 %v3497
    %v3836 = vunpack.c.h.b16 %v3497
    %v3837 = vunpack.c.l.b16 %v3498
    %v3838 = vunpack.c.h.b16 %v3498
    %v3839 = vunpack.c.l.b16 %v3499
    %v3840 = vunpack.c.h.b16 %v3499
    %v3841 = vunpack.c.l.b16 %v3500
    %v3842 = vunpack.c.h.b16 %v3500
    %v3843 = vunpack.c.l.b16 %v3501
    %v3844 = vunpack.c.h.b16 %v3501
    %v3845 = vunpack.c.l.b16 %v3502
    %v3846 = vunpack.c.h.b16 %v3502
    %v3847 = vunpack.c.l.b16 %v3503
    %v3848 = vunpack.c.h.b16 %v3503
    %v3849 = vunpack.c.l.b16 %v3504
    %v3850 = vunpack.c.h.b16 %v3504
    %v3851 = vunpack.c.l.b16 %v3505
    %v3852 = vunpack.c.h.b16 %v3505
    %v3853 = vunpack.c.l.b16 %v3506
    %v3854 = vunpack.c.h.b16 %v3506
    %v3855 = vunpack.c.l.b16 %v3507
    %v3856 = vunpack.c.h.b16 %v3507
    %v3857 = vunpack.c.l.b16 %v3508
    %v3858 = vunpack.c.h.b16 %v3508
    %v3859 = vunpack.c.l.b16 %v3509
    %v3860 = vunpack.c.h.b16 %v3509
    %v3861 = vunpack.c.l.b16 %v3510
    %v3862 = vunpack.c.h.b16 %v3510
    %v3863 = vunpack.c.l.b16 %v3511
    %v3864 = vunpack.c.h.b16 %v3511
    %v3865 = vunpack.c.l.b16 %v3512
    %v3866 = vunpack.c.h.b16 %v3512
    %v3867 = vunpack.c.l.b16 %v3513
    %v3868 = vunpack.c.h.b16 %v3513
    %v3869 = vunpack.c.l.b16 %v3514
    %v3870 = vunpack.c.h.b16 %v3514
    %v3871 = vunpack.c.l.b16 %v3515
    %v3872 = vunpack.c.h.b16 %v3515
    %v3873 = vunpack.c.l.b16 %v3516
    %v3874 = vunpack.c.h.b16 %v3516
    %v3875 = vunpack.c.l.b16 %v3517
    %v3876 = vunpack.c.h.b16 %v3517
    %v3877 = vunpack.c.l.b16 %v3518
    %v3878 = vunpack.c.h.b16 %v3518
    %v3879 = vunpack.c.l.b16 %v3519
    %v3880 = vunpack.c.h.b16 %v3519
    %v3881 = vunpack.c.l.b16 %v3520
    %v3882 = vunpack.c.h.b16 %v3520
    %v3883 = vunpack.c.l.b16 %v3521
    %v3884 = vunpack.c.h.b16 %v3521
    %v3885 = vunpack.c.l.b16 %v3522
    %v3886 = vunpack.c.h.b16 %v3522
    %v3887 = vunpack.c.l.b16 %v3523
    %v3888 = vunpack.c.h.b16 %v3523
    %v3889 = vunpack.c.l.b16 %v3524
    %v3890 = vunpack.c.h.b16 %v3524
    %v3891 = vunpack.c.l.b16 %v3525
    %v3892 = vunpack.c.h.b16 %v3525
    %v3893 = vunpack.c.l.b16 %v3526
    %v3894 = vunpack.c.h.b16 %v3526
    %v3895 = vunpack.c.l.b16 %v3527
    %v3896 = vunpack.c.h.b16 %v3527
    %v3897 = vunpack.c.l.b16 %v3528
    %v3898 = vunpack.c.h.b16 %v3528
    %v3899 = vunpack.c.l.b16 %v3529
    %v3900 = vunpack.c.h.b16 %v3529
    %v3901 = vunpack.c.l.b16 %v3530
    %v3902 = vunpack.c.h.b16 %v3530
    %v3903 = vunpack.c.l.b16 %v3531
    %v3904 = vunpack.c.h.b16 %v3531
    %v3905 = vunpack.c.l.b16 %v3532
    %v3906 = vunpack.c.h.b16 %v3532
    %v3907 = vunpack.c.l.b16 %v3533
    %v3908 = vunpack.c.h.b16 %v3533
    %v3909 = vunpack.c.l.b16 %v3534
    %v3910 = vunpack.c.h.b16 %v3534
    %v3911 = vunpack.c.l.b16 %v3535
    %v3912 = vunpack.c.h.b16 %v3535
    %v3913 = vunpack.c.l.b16 %v3536
    %v3914 = vunpack.c.h.b16 %v3536
    %v3915 = vunpack.c.l.b16 %v3537
    %v3916 = vunpack.c.h.b16 %v3537
    %v3917 = vunpack.c.l.b16 %v3538
    %v3918 = vunpack.c.h.b16 %v3538
    %v3919 = vunpack.c.l.b16 %v3539
    %v3920 = vunpack.c.h.b16 %v3539
    %v3921 = vunpack.c.l.b16 %v3540
    %v3922 = vunpack.c.h.b16 %v3540
    %v3923 = vunpack.c.l.b16 %v3541
    %v3924 = vunpack.c.h.b16 %v3541
    %v3925 = vunpack.c.l.b16 %v3542
    %v3926 = vunpack.c.h.b16 %v3542
    %v3927 = vpack.c.b16 %v3679, %v3671
    %v3928 = vpack.c.b16 %v3680, %v3672
    %v3929 = vpack.c.b16 %v3681, %v3673
    %v3930 = vpack.c.b16 %v3682, %v3674
    %v3931 = vpack.c.b16 %v3683, %v3675
    %v3932 = vpack.c.b16 %v3684, %v3676
    %v3933 = vpack.c.b16 %v3685, %v3677
    %v3934 = vpack.c.b16 %v3686, %v3678
    %v3935 = vpack.c.b16 %v3695, %v3687
    %v3936 = vpack.c.b16 %v3696, %v3688
    %v3937 = vpack.c.b16 %v3697, %v3689
    %v3938 = vpack.c.b16 %v3698, %v3690
    %v3939 = vpack.c.b16 %v3699, %v3691
    %v3940 = vpack.c.b16 %v3700, %v3692
    %v3941 = vpack.c.b16 %v3701, %v3693
    %v3942 = vpack.c.b16 %v3702, %v3694
    %v3943 = vpack.c.b16 %v3711, %v3703
    %v3944 = vpack.c.b16 %v3712, %v3704
    %v3945 = vpack.c.b16 %v3713, %v3705
    %v3946 = vpack.c.b16 %v3714, %v3706
    %v3947 = vpack.c.b16 %v3715, %v3707
    %v3948 = vpack.c.b16 %v3716, %v3708
    %v3949 = vpack.c.b16 %v3717, %v3709
    %v3950 = vpack.c.b16 %v3718, %v3710
    %v3951 = vpack.c.b16 %v3727, %v3719
    %v3952 = vpack.c.b16 %v3728, %v3720
    %v3953 = vpack.c.b16 %v3729, %v3721
    %v3954 = vpack.c.b16 %v3730, %v3722
    %v3955 = vpack.c.b16 %v3731, %v3723
    %v3956 = vpack.c.b16 %v3732, %v3724
    %v3957 = vpack.c.b16 %v3733, %v3725
    %v3958 = vpack.c.b16 %v3734, %v3726
    %v3959 = vpack.c.b16 %v3743, %v3735
    %v3960 = vpack.c.b16 %v3744, %v3736
    %v3961 = vpack.c.b16 %v3745, %v3737
    %v3962 = vpack.c.b16 %v3746, %v3738
    %v3963 = vpack.c.b16 %v3747, %v3739
    %v3964 = vpack.c.b16 %v3748, %v3740
    %v3965 = vpack.c.b16 %v3749, %v3741
    %v3966 = vpack.c.b16 %v3750, %v3742
    %v3967 = vpack.c.b16 %v3759, %v3751
    %v3968 = vpack.c.b16 %v3760, %v3752
    %v3969 = vpack.c.b16 %v3761, %v3753
    %v3970 = vpack.c.b16 %v3762, %v3754
    %v3971 = vpack.c.b16 %v3763, %v3755
    %v3972 = vpack.c.b16 %v3764, %v3756
    %v3973 = vpack.c.b16 %v3765, %v3757
    %v3974 = vpack.c.b16 %v3766, %v3758
    %v3975 = vpack.c.b16 %v3775, %v3767
    %v3976 = vpack.c.b16 %v3776, %v3768
    %v3977 = vpack.c.b16 %v3777, %v3769
    %v3978 = vpack.c.b16 %v3778, %v3770
    %v3979 = vpack.c.b16 %v3779, %v3771
    %v3980 = vpack.c.b16 %v3780, %v3772
    %v3981 = vpack.c.b16 %v3781, %v3773
    %v3982 = vpack.c.b16 %v3782, %v3774
    %v3983 = vpack.c.b16 %v3791, %v3783
    %v3984 = vpack.c.b16 %v3792, %v3784
    %v3985 = vpack.c.b16 %v3793, %v3785
    %v3986 = vpack.c.b16 %v3794, %v3786
    %v3987 = vpack.c.b16 %v3795, %v3787
    %v3988 = vpack.c.b16 %v3796, %v3788
    %v3989 = vpack.c.b16 %v3797, %v3789
    %v3990 = vpack.c.b16 %v3798, %v3790
    %v3991 = vpack.c.b16 %v3807, %v3799
    %v3992 = vpack.c.b16 %v3808, %v3800
    %v3993 = vpack.c.b16 %v3809, %v3801
    %v3994 = vpack.c.b16 %v3810, %v3802
    %v3995 = vpack.c.b16 %v3811, %v3803
    %v3996 = vpack.c.b16 %v3812, %v3804
    %v3997 = vpack.c.b16 %v3813, %v3805
    %v3998 = vpack.c.b16 %v3814, %v3806
    %v3999 = vpack.c.b16 %v3823, %v3815
    %v4000 = vpack.c.b16 %v3824, %v3816
    %v4001 = vpack.c.b16 %v3825, %v3817
    %v4002 = vpack.c.b16 %v3826, %v3818
    %v4003 = vpack.c.b16 %v3827, %v3819
    %v4004 = vpack.c.b16 %v3828, %v3820
    %v4005 = vpack.c.b16 %v3829, %v3821
    %v4006 = vpack.c.b16 %v3830, %v3822
    %v4007 = vpack.c.b16 %v3839, %v3831
    %v4008 = vpack.c.b16 %v3840, %v3832
    %v4009 = vpack.c.b16 %v3841, %v3833
    %v4010 = vpack.c.b16 %v3842, %v3834
    %v4011 = vpack.c.b16 %v3843, %v3835
    %v4012 = vpack.c.b16 %v3844, %v3836
    %v4013 = vpack.c.b16 %v3845, %v3837
    %v4014 = vpack.c.b16 %v3846, %v3838
    %v4015 = vpack.c.b16 %v3855, %v3847
    %v4016 = vpack.c.b16 %v3856, %v3848
    %v4017 = vpack.c.b16 %v3857, %v3849
    %v4018 = vpack.c.b16 %v3858, %v3850
    %v4019 = vpack.c.b16 %v3859, %v3851
    %v4020 = vpack.c.b16 %v3860, %v3852
    %v4021 = vpack.c.b16 %v3861, %v3853
    %v4022 = vpack.c.b16 %v3862, %v3854
    %v4023 = vpack.c.b16 %v3871, %v3863
    %v4024 = vpack.c.b16 %v3872, %v3864
    %v4025 = vpack.c.b16 %v3873, %v3865
    %v4026 = vpack.c.b16 %v3874, %v3866
    %v4027 = vpack.c.b16 %v3875, %v3867
    %v4028 = vpack.c.b16 %v3876, %v3868
    %v4029 = vpack.c.b16 %v3877, %v3869
    %v4030 = vpack.c.b16 %v3878, %v3870
    %v4031 = vpack.c.b16 %v3887, %v3879
    %v4032 = vpack.c.b16 %v3888, %v3880
    %v4033 = vpack.c.b16 %v3889, %v3881
    %v4034 = vpack.c.b16 %v3890, %v3882
    %v4035 = vpack.c.b16 %v3891, %v3883
    %v4036 = vpack.c.b16 %v3892, %v3884
    %v4037 = vpack.c.b16 %v3893, %v3885
    %v4038 = vpack.c.b16 %v3894, %v3886
    %v4039 = vpack.c.b16 %v3903, %v3895
    %v4040 = vpack.c.b16 %v3904, %v3896
    %v4041 = vpack.c.b16 %v3905, %v3897
    %v4042 = vpack.c.b16 %v3906, %v3898
    %v4043 = vpack.c.b16 %v3907, %v3899
    %v4044 = vpack.c.b16 %v3908, %v3900
    %v4045 = vpack.c.b16 %v3909, %v3901
    %v4046 = vpack.c.b16 %v3910, %v3902
    %v4047 = vpack.c.b16 %v3919, %v3911
    %v4048 = vpack.c.b16 %v3920, %v3912
    %v4049 = vpack.c.b16 %v3921, %v3913
    %v4050 = vpack.c.b16 %v3922, %v3914
    %v4051 = vpack.c.b16 %v3923, %v3915
    %v4052 = vpack.c.b16 %v3924, %v3916
    %v4053 = vpack.c.b16 %v3925, %v3917
    %v4054 = vpack.c.b16 %v3926, %v3918
    %4183 = vmatpush.bf16.msra.mxu0 %v3983
    %4184 = vmatpush.bf16.msra.mxu0 %v3975
    %4185 = vmatpush.bf16.msra.mxu0 %v3967
    %4186 = vmatpush.bf16.msra.mxu0 %v3959
    %4187 = vmatpush.bf16.msra.mxu0 %v3951
    %4188 = vmatpush.bf16.msra.mxu0 %v3943
    %4189 = vmatpush.bf16.msra.mxu0 %v3935
    %4190 = vmatpush.bf16.msra.mxu0 %v3927
    %4191 = vmatmul.bf16.gmra.mxu0 0
    %v4192 = vpop.f32.mrf.mxu0
    %v4193 = vadd.f32 0.0, %v4192
    %v4194 = vpop.f32.mrf.mxu0
    %v4195 = vadd.f32 0.0, %v4194
    %4196 = vdwg.mxu0
    %4197 = vmatpush.bf16.msra.mxu0 %v4047
    %4198 = vmatpush.bf16.msra.mxu0 %v4039
    %4199 = vmatpush.bf16.msra.mxu0 %v4031
    %4200 = vmatpush.bf16.msra.mxu0 %v4023
    %4201 = vmatpush.bf16.msra.mxu0 %v4015
    %4202 = vmatpush.bf16.msra.mxu0 %v4007
    %4203 = vmatpush.bf16.msra.mxu0 %v3999
    %4204 = vmatpush.bf16.msra.mxu0 %v3991
    %4205 = vmatmul.bf16.gmra.mxu0 0
    %v4206 = vpop.f32.mrf.mxu0
    %v4207 = vadd.f32 %v4193, %v4206
    %v4208 = vpop.f32.mrf.mxu0
    %v4209 = vadd.f32 %v4195, %v4208
    %4210 = vdwg.mxu0
    %4211 = vmatpush.bf16.msra.mxu0 %v3984
    %4212 = vmatpush.bf16.msra.mxu0 %v3976
    %4213 = vmatpush.bf16.msra.mxu0 %v3968
    %4214 = vmatpush.bf16.msra.mxu0 %v3960
    %4215 = vmatpush.bf16.msra.mxu0 %v3952
    %4216 = vmatpush.bf16.msra.mxu0 %v3944
    %4217 = vmatpush.bf16.msra.mxu0 %v3936
    %4218 = vmatpush.bf16.msra.mxu0 %v3928
    %4219 = vmatmul.bf16.gmra.mxu0 0
    %v4220 = vpop.f32.mrf.mxu0
    %v4221 = vadd.f32 0.0, %v4220
    %v4222 = vpop.f32.mrf.mxu0
    %v4223 = vadd.f32 0.0, %v4222
    %4224 = vdwg.mxu0
    %4225 = vmatpush.bf16.msra.mxu0 %v4048
    %4226 = vmatpush.bf16.msra.mxu0 %v4040
    %4227 = vmatpush.bf16.msra.mxu0 %v4032
    %4228 = vmatpush.bf16.msra.mxu0 %v4024
    %4229 = vmatpush.bf16.msra.mxu0 %v4016
    %4230 = vmatpush.bf16.msra.mxu0 %v4008
    %4231 = vmatpush.bf16.msra.mxu0 %v4000
    %4232 = vmatpush.bf16.msra.mxu0 %v3992
    %4233 = vmatmul.bf16.gmra.mxu0 0
    %v4234 = vpop.f32.mrf.mxu0
    %v4235 = vadd.f32 %v4221, %v4234
    %v4236 = vpop.f32.mrf.mxu0
    %v4237 = vadd.f32 %v4223, %v4236
    %4238 = vdwg.mxu0
    %4239 = vmatpush.bf16.msra.mxu0 %v3985
    %4240 = vmatpush.bf16.msra.mxu0 %v3977
    %4241 = vmatpush.bf16.msra.mxu0 %v3969
    %4242 = vmatpush.bf16.msra.mxu0 %v3961
    %4243 = vmatpush.bf16.msra.mxu0 %v3953
    %4244 = vmatpush.bf16.msra.mxu0 %v3945
    %4245 = vmatpush.bf16.msra.mxu0 %v3937
    %4246 = vmatpush.bf16.msra.mxu0 %v3929
    %4247 = vmatmul.bf16.gmra.mxu0 0
    %v4248 = vpop.f32.mrf.mxu0
    %v4249 = vadd.f32 0.0, %v4248
    %v4250 = vpop.f32.mrf.mxu0
    %v4251 = vadd.f32 0.0, %v4250
    %4252 = vdwg.mxu0
    %4253 = vmatpush.bf16.msra.mxu0 %v4049
    %4254 = vmatpush.bf16.msra.mxu0 %v4041
    %4255 = vmatpush.bf16.msra.mxu0 %v4033
    %4256 = vmatpush.bf16.msra.mxu0 %v4025
    %4257 = vmatpush.bf16.msra.mxu0 %v4017
    %4258 = vmatpush.bf16.msra.mxu0 %v4009
    %4259 = vmatpush.bf16.msra.mxu0 %v4001
    %4260 = vmatpush.bf16.msra.mxu0 %v3993
    %4261 = vmatmul.bf16.gmra.mxu0 0
    %v4262 = vpop.f32.mrf.mxu0
    %v4263 = vadd.f32 %v4249, %v4262
    %v4264 = vpop.f32.mrf.mxu0
    %v4265 = vadd.f32 %v4251, %v4264
    %4266 = vdwg.mxu0
    %4267 = vmatpush.bf16.msra.mxu0 %v3986
    %4268 = vmatpush.bf16.msra.mxu0 %v3978
    %4269 = vmatpush.bf16.msra.mxu0 %v3970
    %4270 = vmatpush.bf16.msra.mxu0 %v3962
    %4271 = vmatpush.bf16.msra.mxu0 %v3954
    %4272 = vmatpush.bf16.msra.mxu0 %v3946
    %4273 = vmatpush.bf16.msra.mxu0 %v3938
    %4274 = vmatpush.bf16.msra.mxu0 %v3930
    %4275 = vmatmul.bf16.gmra.mxu0 0
    %v4276 = vpop.f32.mrf.mxu0
    %v4277 = vadd.f32 0.0, %v4276
    %v4278 = vpop.f32.mrf.mxu0
    %v4279 = vadd.f32 0.0, %v4278
    %4280 = vdwg.mxu0
    %4281 = vmatpush.bf16.msra.mxu0 %v4050
    %4282 = vmatpush.bf16.msra.mxu0 %v4042
    %4283 = vmatpush.bf16.msra.mxu0 %v4034
    %4284 = vmatpush.bf16.msra.mxu0 %v4026
    %4285 = vmatpush.bf16.msra.mxu0 %v4018
    %4286 = vmatpush.bf16.msra.mxu0 %v4010
    %4287 = vmatpush.bf16.msra.mxu0 %v4002
    %4288 = vmatpush.bf16.msra.mxu0 %v3994
    %4289 = vmatmul.bf16.gmra.mxu0 0
    %v4290 = vpop.f32.mrf.mxu0
    %v4291 = vadd.f32 %v4277, %v4290
    %v4292 = vpop.f32.mrf.mxu0
    %v4293 = vadd.f32 %v4279, %v4292
    %4294 = vdwg.mxu0
    %4295 = vmatpush.bf16.msra.mxu0 %v3987
    %4296 = vmatpush.bf16.msra.mxu0 %v3979
    %4297 = vmatpush.bf16.msra.mxu0 %v3971
    %4298 = vmatpush.bf16.msra.mxu0 %v3963
    %4299 = vmatpush.bf16.msra.mxu0 %v3955
    %4300 = vmatpush.bf16.msra.mxu0 %v3947
    %4301 = vmatpush.bf16.msra.mxu0 %v3939
    %4302 = vmatpush.bf16.msra.mxu0 %v3931
    %4303 = vmatmul.bf16.gmra.mxu0 0
    %v4304 = vpop.f32.mrf.mxu0
    %v4305 = vadd.f32 0.0, %v4304
    %v4306 = vpop.f32.mrf.mxu0
    %v4307 = vadd.f32 0.0, %v4306
    %4308 = vdwg.mxu0
    %4309 = vmatpush.bf16.msra.mxu0 %v4051
    %4310 = vmatpush.bf16.msra.mxu0 %v4043
    %4311 = vmatpush.bf16.msra.mxu0 %v4035
    %4312 = vmatpush.bf16.msra.mxu0 %v4027
    %4313 = vmatpush.bf16.msra.mxu0 %v4019
    %4314 = vmatpush.bf16.msra.mxu0 %v4011
    %4315 = vmatpush.bf16.msra.mxu0 %v4003
    %4316 = vmatpush.bf16.msra.mxu0 %v3995
    %4317 = vmatmul.bf16.gmra.mxu0 0
    %v4318 = vpop.f32.mrf.mxu0
    %v4319 = vadd.f32 %v4305, %v4318
    %v4320 = vpop.f32.mrf.mxu0
    %v4321 = vadd.f32 %v4307, %v4320
    %4322 = vdwg.mxu0
    %4323 = vmatpush.bf16.msra.mxu0 %v3988
    %4324 = vmatpush.bf16.msra.mxu0 %v3980
    %4325 = vmatpush.bf16.msra.mxu0 %v3972
    %4326 = vmatpush.bf16.msra.mxu0 %v3964
    %4327 = vmatpush.bf16.msra.mxu0 %v3956
    %4328 = vmatpush.bf16.msra.mxu0 %v3948
    %4329 = vmatpush.bf16.msra.mxu0 %v3940
    %4330 = vmatpush.bf16.msra.mxu0 %v3932
    %4331 = vmatmul.bf16.gmra.mxu0 0
    %v4332 = vpop.f32.mrf.mxu0
    %v4333 = vadd.f32 0.0, %v4332
    %v4334 = vpop.f32.mrf.mxu0
    %v4335 = vadd.f32 0.0, %v4334
    %4336 = vdwg.mxu0
    %4337 = vmatpush.bf16.msra.mxu0 %v4052
    %4338 = vmatpush.bf16.msra.mxu0 %v4044
    %4339 = vmatpush.bf16.msra.mxu0 %v4036
    %4340 = vmatpush.bf16.msra.mxu0 %v4028
    %4341 = vmatpush.bf16.msra.mxu0 %v4020
    %4342 = vmatpush.bf16.msra.mxu0 %v4012
    %4343 = vmatpush.bf16.msra.mxu0 %v4004
    %4344 = vmatpush.bf16.msra.mxu0 %v3996
    %4345 = vmatmul.bf16.gmra.mxu0 0
    %v4346 = vpop.f32.mrf.mxu0
    %v4347 = vadd.f32 %v4333, %v4346
    %v4348 = vpop.f32.mrf.mxu0
    %v4349 = vadd.f32 %v4335, %v4348
    %4350 = vdwg.mxu0
    %4351 = vmatpush.bf16.msra.mxu0 %v3989
    %4352 = vmatpush.bf16.msra.mxu0 %v3981
    %4353 = vmatpush.bf16.msra.mxu0 %v3973
    %4354 = vmatpush.bf16.msra.mxu0 %v3965
    %4355 = vmatpush.bf16.msra.mxu0 %v3957
    %4356 = vmatpush.bf16.msra.mxu0 %v3949
    %4357 = vmatpush.bf16.msra.mxu0 %v3941
    %4358 = vmatpush.bf16.msra.mxu0 %v3933
    %4359 = vmatmul.bf16.gmra.mxu0 0
    %v4360 = vpop.f32.mrf.mxu0
    %v4361 = vadd.f32 0.0, %v4360
    %v4362 = vpop.f32.mrf.mxu0
    %v4363 = vadd.f32 0.0, %v4362
    %4364 = vdwg.mxu0
    %4365 = vmatpush.bf16.msra.mxu0 %v4053
    %4366 = vmatpush.bf16.msra.mxu0 %v4045
    %4367 = vmatpush.bf16.msra.mxu0 %v4037
    %4368 = vmatpush.bf16.msra.mxu0 %v4029
    %4369 = vmatpush.bf16.msra.mxu0 %v4021
    %4370 = vmatpush.bf16.msra.mxu0 %v4013
    %4371 = vmatpush.bf16.msra.mxu0 %v4005
    %4372 = vmatpush.bf16.msra.mxu0 %v3997
    %4373 = vmatmul.bf16.gmra.mxu0 0
    %v4374 = vpop.f32.mrf.mxu0
    %v4375 = vadd.f32 %v4361, %v4374
    %v4376 = vpop.f32.mrf.mxu0
    %v4377 = vadd.f32 %v4363, %v4376
    %4378 = vdwg.mxu0
    %4379 = vmatpush.bf16.msra.mxu0 %v3990
    %4380 = vmatpush.bf16.msra.mxu0 %v3982
    %4381 = vmatpush.bf16.msra.mxu0 %v3974
    %4382 = vmatpush.bf16.msra.mxu0 %v3966
    %4383 = vmatpush.bf16.msra.mxu0 %v3958
    %4384 = vmatpush.bf16.msra.mxu0 %v3950
    %4385 = vmatpush.bf16.msra.mxu0 %v3942
    %4386 = vmatpush.bf16.msra.mxu0 %v3934
    %4387 = vmatmul.bf16.gmra.mxu0 0
    %v4388 = vpop.f32.mrf.mxu0
    %v4389 = vadd.f32 0.0, %v4388
    %v4390 = vpop.f32.mrf.mxu0
    %v4391 = vadd.f32 0.0, %v4390
    %4392 = vdwg.mxu0
    %4393 = vmatpush.bf16.msra.mxu0 %v4054
    %4394 = vmatpush.bf16.msra.mxu0 %v4046
    %4395 = vmatpush.bf16.msra.mxu0 %v4038
    %4396 = vmatpush.bf16.msra.mxu0 %v4030
    %4397 = vmatpush.bf16.msra.mxu0 %v4022
    %4398 = vmatpush.bf16.msra.mxu0 %v4014
    %4399 = vmatpush.bf16.msra.mxu0 %v4006
    %4400 = vmatpush.bf16.msra.mxu0 %v3998
    %4401 = vmatmul.bf16.gmra.mxu0 0
    %v4402 = vpop.f32.mrf.mxu0
    %v4403 = vadd.f32 %v4389, %v4402
    %v4404 = vpop.f32.mrf.mxu0
    %v4405 = vadd.f32 %v4391, %v4404
    %4406 = vdwg.mxu0
    %v4407 = vadd.f32 %v2004, %v4207
    %v4408 = vadd.f32 %v2200, %v4235
    %v4409 = vadd.f32 %v2396, %v4263
    %v4410 = vadd.f32 %v2592, %v4291
    %v4411 = vadd.f32 %v2788, %v4319
    %v4412 = vadd.f32 %v2984, %v4347
    %v4413 = vadd.f32 %v3180, %v4375
    %v4414 = vadd.f32 %v3376, %v4403
    %v4415 = vadd.f32 %v2006, %v4209
    %v4416 = vadd.f32 %v2202, %v4237
    %v4417 = vadd.f32 %v2398, %v4265
    %v4418 = vadd.f32 %v2594, %v4293
    %v4419 = vadd.f32 %v2790, %v4321
    %v4420 = vadd.f32 %v2986, %v4349
    %v4421 = vadd.f32 %v3182, %v4377
    %v4422 = vadd.f32 %v3378, %v4405
    %v4423 = vxor.u32 %v4407, 2147483648
    %v4424 = vxor.u32 %v4408, 2147483648
    %v4425 = vxor.u32 %v4415, 2147483648
    %v4426 = vxor.u32 %v4416, 2147483648
    %v4427 = vmul.f32 %v4423, 1.442695
    %v4428 = vpow.pop %v4427
    %v4429 = vmul.f32 %v4424, 1.442695
    %v4430 = vpow.pop %v4429
    %v4431 = vmul.f32 %v4425, 1.442695
    %v4432 = vpow.pop %v4431
    %v4433 = vmul.f32 %v4426, 1.442695
    %v4434 = vpow.pop %v4433
    %v4435 = vadd.f32 %v4428, 1.0
    %v4436 = vadd.f32 %v4430, 1.0
    %v4437 = vadd.f32 %v4432, 1.0
    %v4438 = vadd.f32 %v4434, 1.0
    %v4439 = vrcp.pop %v4435
    %v4440 = vmul.f32 %v4435, %v4439
    %v4441 = vsub.f32 1.0, %v4440
    %v4442 = vmul.f32 %v4439, %v4441
    %v4443 = vadd.f32 %v4439, %v4442
    %vm4444 = vweird.f32 %v4435
    %vm4445 = vweird.f32 %v4439
    %vm4446 = vmor %vm4444, %vm4445
    %v4447 = vsel %vm4446, %v4439, %v4443
    %v4448 = vand.u32 2147483647, %v4435
    %vm4449 = vcmp.eq.f32.partialorder %v4448, 8.507059e+37
    %v4450 = vand.u32 %v4435, 2147483648
    %v4451 = vor.u32 1.1754944e-38, %v4450
    %v4452 = vsel %vm4449, %v4451, %v4447
    %v4453 = vmul.f32 1.0, %v4452
    %v4454 = vrcp.pop %v4436
    %v4455 = vmul.f32 %v4436, %v4454
    %v4456 = vsub.f32 1.0, %v4455
    %v4457 = vmul.f32 %v4454, %v4456
    %v4458 = vadd.f32 %v4454, %v4457
    %vm4459 = vweird.f32 %v4436
    %vm4460 = vweird.f32 %v4454
    %vm4461 = vmor %vm4459, %vm4460
    %v4462 = vsel %vm4461, %v4454, %v4458
    %v4463 = vand.u32 2147483647, %v4436
    %vm4464 = vcmp.eq.f32.partialorder %v4463, 8.507059e+37
    %v4465 = vand.u32 %v4436, 2147483648
    %v4466 = vor.u32 1.1754944e-38, %v4465
    %v4467 = vsel %vm4464, %v4466, %v4462
    %v4468 = vmul.f32 1.0, %v4467
    %v4469 = vrcp.pop %v4437
    %v4470 = vmul.f32 %v4437, %v4469
    %v4471 = vsub.f32 1.0, %v4470
    %v4472 = vmul.f32 %v4469, %v4471
    %v4473 = vadd.f32 %v4469, %v4472
    %vm4474 = vweird.f32 %v4437
    %vm4475 = vweird.f32 %v4469
    %vm4476 = vmor %vm4474, %vm4475
    %v4477 = vsel %vm4476, %v4469, %v4473
    %v4478 = vand.u32 2147483647, %v4437
    %vm4479 = vcmp.eq.f32.partialorder %v4478, 8.507059e+37
    %v4480 = vand.u32 %v4437, 2147483648
    %v4481 = vor.u32 1.1754944e-38, %v4480
    %v4482 = vsel %vm4479, %v4481, %v4477
    %v4483 = vmul.f32 1.0, %v4482
    %v4484 = vrcp.pop %v4438
    %v4485 = vmul.f32 %v4438, %v4484
    %v4486 = vsub.f32 1.0, %v4485
    %v4487 = vmul.f32 %v4484, %v4486
    %v4488 = vadd.f32 %v4484, %v4487
    %vm4489 = vweird.f32 %v4438
    %vm4490 = vweird.f32 %v4484
    %vm4491 = vmor %vm4489, %vm4490
    %v4492 = vsel %vm4491, %v4484, %v4488
    %v4493 = vand.u32 2147483647, %v4438
    %vm4494 = vcmp.eq.f32.partialorder %v4493, 8.507059e+37
    %v4495 = vand.u32 %v4438, 2147483648
    %v4496 = vor.u32 1.1754944e-38, %v4495
    %v4497 = vsel %vm4494, %v4496, %v4492
    %v4498 = vmul.f32 1.0, %v4497
    %v4499 = vxor.u32 %v4409, 2147483648
    %v4500 = vxor.u32 %v4410, 2147483648
    %v4501 = vxor.u32 %v4417, 2147483648
    %v4502 = vxor.u32 %v4418, 2147483648
    %v4503 = vmul.f32 %v4499, 1.442695
    %v4504 = vpow.pop %v4503
    %v4505 = vmul.f32 %v4500, 1.442695
    %v4506 = vpow.pop %v4505
    %v4507 = vmul.f32 %v4501, 1.442695
    %v4508 = vpow.pop %v4507
    %v4509 = vmul.f32 %v4502, 1.442695
    %v4510 = vpow.pop %v4509
    %v4511 = vadd.f32 %v4504, 1.0
    %v4512 = vadd.f32 %v4506, 1.0
    %v4513 = vadd.f32 %v4508, 1.0
    %v4514 = vadd.f32 %v4510, 1.0
    %v4515 = vrcp.pop %v4511
    %v4516 = vmul.f32 %v4511, %v4515
    %v4517 = vsub.f32 1.0, %v4516
    %v4518 = vmul.f32 %v4515, %v4517
    %v4519 = vadd.f32 %v4515, %v4518
    %vm4520 = vweird.f32 %v4511
    %vm4521 = vweird.f32 %v4515
    %vm4522 = vmor %vm4520, %vm4521
    %v4523 = vsel %vm4522, %v4515, %v4519
    %v4524 = vand.u32 2147483647, %v4511
    %vm4525 = vcmp.eq.f32.partialorder %v4524, 8.507059e+37
    %v4526 = vand.u32 %v4511, 2147483648
    %v4527 = vor.u32 1.1754944e-38, %v4526
    %v4528 = vsel %vm4525, %v4527, %v4523
    %v4529 = vmul.f32 1.0, %v4528
    %v4530 = vrcp.pop %v4512
    %v4531 = vmul.f32 %v4512, %v4530
    %v4532 = vsub.f32 1.0, %v4531
    %v4533 = vmul.f32 %v4530, %v4532
    %v4534 = vadd.f32 %v4530, %v4533
    %vm4535 = vweird.f32 %v4512
    %vm4536 = vweird.f32 %v4530
    %vm4537 = vmor %vm4535, %vm4536
    %v4538 = vsel %vm4537, %v4530, %v4534
    %v4539 = vand.u32 2147483647, %v4512
    %vm4540 = vcmp.eq.f32.partialorder %v4539, 8.507059e+37
    %v4541 = vand.u32 %v4512, 2147483648
    %v4542 = vor.u32 1.1754944e-38, %v4541
    %v4543 = vsel %vm4540, %v4542, %v4538
    %v4544 = vmul.f32 1.0, %v4543
    %v4545 = vrcp.pop %v4513
    %v4546 = vmul.f32 %v4513, %v4545
    %v4547 = vsub.f32 1.0, %v4546
    %v4548 = vmul.f32 %v4545, %v4547
    %v4549 = vadd.f32 %v4545, %v4548
    %vm4550 = vweird.f32 %v4513
    %vm4551 = vweird.f32 %v4545
    %vm4552 = vmor %vm4550, %vm4551
    %v4553 = vsel %vm4552, %v4545, %v4549
    %v4554 = vand.u32 2147483647, %v4513
    %vm4555 = vcmp.eq.f32.partialorder %v4554, 8.507059e+37
    %v4556 = vand.u32 %v4513, 2147483648
    %v4557 = vor.u32 1.1754944e-38, %v4556
    %v4558 = vsel %vm4555, %v4557, %v4553
    %v4559 = vmul.f32 1.0, %v4558
    %v4560 = vrcp.pop %v4514
    %v4561 = vmul.f32 %v4514, %v4560
    %v4562 = vsub.f32 1.0, %v4561
    %v4563 = vmul.f32 %v4560, %v4562
    %v4564 = vadd.f32 %v4560, %v4563
    %vm4565 = vweird.f32 %v4514
    %vm4566 = vweird.f32 %v4560
    %vm4567 = vmor %vm4565, %vm4566
    %v4568 = vsel %vm4567, %v4560, %v4564
    %v4569 = vand.u32 2147483647, %v4514
    %vm4570 = vcmp.eq.f32.partialorder %v4569, 8.507059e+37
    %v4571 = vand.u32 %v4514, 2147483648
    %v4572 = vor.u32 1.1754944e-38, %v4571
    %v4573 = vsel %vm4570, %v4572, %v4568
    %v4574 = vmul.f32 1.0, %v4573
    %v4575 = vtanh.pop %v4411
    %v4576 = vtanh.pop %v4412
    %v4577 = vtanh.pop %v4419
    %v4578 = vtanh.pop %v4420
    %v4579 = vxor.u32 %v4413, 2147483648
    %v4580 = vxor.u32 %v4414, 2147483648
    %v4581 = vxor.u32 %v4421, 2147483648
    %v4582 = vxor.u32 %v4422, 2147483648
    %v4583 = vmul.f32 %v4579, 1.442695
    %v4584 = vpow.pop %v4583
    %v4585 = vmul.f32 %v4580, 1.442695
    %v4586 = vpow.pop %v4585
    %v4587 = vmul.f32 %v4581, 1.442695
    %v4588 = vpow.pop %v4587
    %v4589 = vmul.f32 %v4582, 1.442695
    %v4590 = vpow.pop %v4589
    %v4591 = vadd.f32 %v4584, 1.0
    %v4592 = vadd.f32 %v4586, 1.0
    %v4593 = vadd.f32 %v4588, 1.0
    %v4594 = vadd.f32 %v4590, 1.0
    %v4595 = vrcp.pop %v4591
    %v4596 = vmul.f32 %v4591, %v4595
    %v4597 = vsub.f32 1.0, %v4596
    %v4598 = vmul.f32 %v4595, %v4597
    %v4599 = vadd.f32 %v4595, %v4598
    %vm4600 = vweird.f32 %v4591
    %vm4601 = vweird.f32 %v4595
    %vm4602 = vmor %vm4600, %vm4601
    %v4603 = vsel %vm4602, %v4595, %v4599
    %v4604 = vand.u32 2147483647, %v4591
    %vm4605 = vcmp.eq.f32.partialorder %v4604, 8.507059e+37
    %v4606 = vand.u32 %v4591, 2147483648
    %v4607 = vor.u32 1.1754944e-38, %v4606
    %v4608 = vsel %vm4605, %v4607, %v4603
    %v4609 = vmul.f32 1.0, %v4608
    %v4610 = vrcp.pop %v4592
    %v4611 = vmul.f32 %v4592, %v4610
    %v4612 = vsub.f32 1.0, %v4611
    %v4613 = vmul.f32 %v4610, %v4612
    %v4614 = vadd.f32 %v4610, %v4613
    %vm4615 = vweird.f32 %v4592
    %vm4616 = vweird.f32 %v4610
    %vm4617 = vmor %vm4615, %vm4616
    %v4618 = vsel %vm4617, %v4610, %v4614
    %v4619 = vand.u32 2147483647, %v4592
    %vm4620 = vcmp.eq.f32.partialorder %v4619, 8.507059e+37
    %v4621 = vand.u32 %v4592, 2147483648
    %v4622 = vor.u32 1.1754944e-38, %v4621
    %v4623 = vsel %vm4620, %v4622, %v4618
    %v4624 = vmul.f32 1.0, %v4623
    %v4625 = vrcp.pop %v4593
    %v4626 = vmul.f32 %v4593, %v4625
    %v4627 = vsub.f32 1.0, %v4626
    %v4628 = vmul.f32 %v4625, %v4627
    %v4629 = vadd.f32 %v4625, %v4628
    %vm4630 = vweird.f32 %v4593
    %vm4631 = vweird.f32 %v4625
    %vm4632 = vmor %vm4630, %vm4631
    %v4633 = vsel %vm4632, %v4625, %v4629
    %v4634 = vand.u32 2147483647, %v4593
    %vm4635 = vcmp.eq.f32.partialorder %v4634, 8.507059e+37
    %v4636 = vand.u32 %v4593, 2147483648
    %v4637 = vor.u32 1.1754944e-38, %v4636
    %v4638 = vsel %vm4635, %v4637, %v4633
    %v4639 = vmul.f32 1.0, %v4638
    %v4640 = vrcp.pop %v4594
    %v4641 = vmul.f32 %v4594, %v4640
    %v4642 = vsub.f32 1.0, %v4641
    %v4643 = vmul.f32 %v4640, %v4642
    %v4644 = vadd.f32 %v4640, %v4643
    %vm4645 = vweird.f32 %v4594
    %vm4646 = vweird.f32 %v4640
    %vm4647 = vmor %vm4645, %vm4646
    %v4648 = vsel %vm4647, %v4640, %v4644
    %v4649 = vand.u32 2147483647, %v4594
    %vm4650 = vcmp.eq.f32.partialorder %v4649, 8.507059e+37
    %v4651 = vand.u32 %v4594, 2147483648
    %v4652 = vor.u32 1.1754944e-38, %v4651
    %v4653 = vsel %vm4650, %v4652, %v4648
    %v4654 = vmul.f32 1.0, %v4653
    %v4655 = vmul.f32 %v4529, 0.0
    %v4656 = vmul.f32 %v4544, 0.0
    %v4657 = vmul.f32 %v4559, 0.0
    %v4658 = vmul.f32 %v4574, 0.0
    %v4659 = vmul.f32 %v4453, %v4575
    %v4660 = vmul.f32 %v4468, %v4576
    %v4661 = vmul.f32 %v4483, %v4577
    %v4662 = vmul.f32 %v4498, %v4578
    %v4663 = vadd.f32 %v4655, %v4659
    %v4664 = vadd.f32 %v4656, %v4660
    %v4665 = vadd.f32 %v4657, %v4661
    %v4666 = vadd.f32 %v4658, %v4662
    %v4667 = vtanh.pop %v4663
    %v4668 = vtanh.pop %v4664
    %v4669 = vtanh.pop %v4665
    %v4670 = vtanh.pop %v4666
    %v4671 = vmul.f32 %v4609, %v4667
    %v4672 = vmul.f32 %v4624, %v4668
    %v4673 = vmul.f32 %v4639, %v4669
    %v4674 = vmul.f32 %v4654, %v4670
    %v4675 = vpack.c.bf16 %v4673, %v4671
    %v4676 = vpack.c.bf16 %v4674, %v4672
    %4677 = vmatpush.bf16.msra.mxu0 %v3983
    %4678 = vmatpush.bf16.msra.mxu0 %v3975
    %4679 = vmatpush.bf16.msra.mxu0 %v3967
    %4680 = vmatpush.bf16.msra.mxu0 %v3959
    %4681 = vmatpush.bf16.msra.mxu0 %v3951
    %4682 = vmatpush.bf16.msra.mxu0 %v3943
    %4683 = vmatpush.bf16.msra.mxu0 %v3935
    %4684 = vmatpush.bf16.msra.mxu0 %v3927
    %4685 = vmatmul.bf16.gmra.mxu0 %v4675
    %v4686 = vpop.f32.mrf.mxu0
    %v4687 = vadd.f32 0.0, %v4686
    %v4688 = vpop.f32.mrf.mxu0
    %v4689 = vadd.f32 0.0, %v4688
    %4690 = vdwg.mxu0
    %4691 = vmatpush.bf16.msra.mxu0 %v4047
    %4692 = vmatpush.bf16.msra.mxu0 %v4039
    %4693 = vmatpush.bf16.msra.mxu0 %v4031
    %4694 = vmatpush.bf16.msra.mxu0 %v4023
    %4695 = vmatpush.bf16.msra.mxu0 %v4015
    %4696 = vmatpush.bf16.msra.mxu0 %v4007
    %4697 = vmatpush.bf16.msra.mxu0 %v3999
    %4698 = vmatpush.bf16.msra.mxu0 %v3991
    %4699 = vmatmul.bf16.gmra.mxu0 %v4676
    %v4700 = vpop.f32.mrf.mxu0
    %v4701 = vadd.f32 %v4687, %v4700
    %v4702 = vpop.f32.mrf.mxu0
    %v4703 = vadd.f32 %v4689, %v4702
    %4704 = vdwg.mxu0
    %4705 = vmatpush.bf16.msra.mxu0 %v3984
    %4706 = vmatpush.bf16.msra.mxu0 %v3976
    %4707 = vmatpush.bf16.msra.mxu0 %v3968
    %4708 = vmatpush.bf16.msra.mxu0 %v3960
    %4709 = vmatpush.bf16.msra.mxu0 %v3952
    %4710 = vmatpush.bf16.msra.mxu0 %v3944
    %4711 = vmatpush.bf16.msra.mxu0 %v3936
    %4712 = vmatpush.bf16.msra.mxu0 %v3928
    %4713 = vmatmul.bf16.gmra.mxu0 %v4675
    %v4714 = vpop.f32.mrf.mxu0
    %v4715 = vadd.f32 0.0, %v4714
    %v4716 = vpop.f32.mrf.mxu0
    %v4717 = vadd.f32 0.0, %v4716
    %4718 = vdwg.mxu0
    %4719 = vmatpush.bf16.msra.mxu0 %v4048
    %4720 = vmatpush.bf16.msra.mxu0 %v4040
    %4721 = vmatpush.bf16.msra.mxu0 %v4032
    %4722 = vmatpush.bf16.msra.mxu0 %v4024
    %4723 = vmatpush.bf16.msra.mxu0 %v4016
    %4724 = vmatpush.bf16.msra.mxu0 %v4008
    %4725 = vmatpush.bf16.msra.mxu0 %v4000
    %4726 = vmatpush.bf16.msra.mxu0 %v3992
    %4727 = vmatmul.bf16.gmra.mxu0 %v4676
    %v4728 = vpop.f32.mrf.mxu0
    %v4729 = vadd.f32 %v4715, %v4728
    %v4730 = vpop.f32.mrf.mxu0
    %v4731 = vadd.f32 %v4717, %v4730
    %4732 = vdwg.mxu0
    %4733 = vmatpush.bf16.msra.mxu0 %v3985
    %4734 = vmatpush.bf16.msra.mxu0 %v3977
    %4735 = vmatpush.bf16.msra.mxu0 %v3969
    %4736 = vmatpush.bf16.msra.mxu0 %v3961
    %4737 = vmatpush.bf16.msra.mxu0 %v3953
    %4738 = vmatpush.bf16.msra.mxu0 %v3945
    %4739 = vmatpush.bf16.msra.mxu0 %v3937
    %4740 = vmatpush.bf16.msra.mxu0 %v3929
    %4741 = vmatmul.bf16.gmra.mxu0 %v4675
    %v4742 = vpop.f32.mrf.mxu0
    %v4743 = vadd.f32 0.0, %v4742
    %v4744 = vpop.f32.mrf.mxu0
    %v4745 = vadd.f32 0.0, %v4744
    %4746 = vdwg.mxu0
    %4747 = vmatpush.bf16.msra.mxu0 %v4049
    %4748 = vmatpush.bf16.msra.mxu0 %v4041
    %4749 = vmatpush.bf16.msra.mxu0 %v4033
    %4750 = vmatpush.bf16.msra.mxu0 %v4025
    %4751 = vmatpush.bf16.msra.mxu0 %v4017
    %4752 = vmatpush.bf16.msra.mxu0 %v4009
    %4753 = vmatpush.bf16.msra.mxu0 %v4001
    %4754 = vmatpush.bf16.msra.mxu0 %v3993
    %4755 = vmatmul.bf16.gmra.mxu0 %v4676
    %v4756 = vpop.f32.mrf.mxu0
    %v4757 = vadd.f32 %v4743, %v4756
    %v4758 = vpop.f32.mrf.mxu0
    %v4759 = vadd.f32 %v4745, %v4758
    %4760 = vdwg.mxu0
    %4761 = vmatpush.bf16.msra.mxu0 %v3986
    %4762 = vmatpush.bf16.msra.mxu0 %v3978
    %4763 = vmatpush.bf16.msra.mxu0 %v3970
    %4764 = vmatpush.bf16.msra.mxu0 %v3962
    %4765 = vmatpush.bf16.msra.mxu0 %v3954
    %4766 = vmatpush.bf16.msra.mxu0 %v3946
    %4767 = vmatpush.bf16.msra.mxu0 %v3938
    %4768 = vmatpush.bf16.msra.mxu0 %v3930
    %4769 = vmatmul.bf16.gmra.mxu0 %v4675
    %v4770 = vpop.f32.mrf.mxu0
    %v4771 = vadd.f32 0.0, %v4770
    %v4772 = vpop.f32.mrf.mxu0
    %v4773 = vadd.f32 0.0, %v4772
    %4774 = vdwg.mxu0
    %4775 = vmatpush.bf16.msra.mxu0 %v4050
    %4776 = vmatpush.bf16.msra.mxu0 %v4042
    %4777 = vmatpush.bf16.msra.mxu0 %v4034
    %4778 = vmatpush.bf16.msra.mxu0 %v4026
    %4779 = vmatpush.bf16.msra.mxu0 %v4018
    %4780 = vmatpush.bf16.msra.mxu0 %v4010
    %4781 = vmatpush.bf16.msra.mxu0 %v4002
    %4782 = vmatpush.bf16.msra.mxu0 %v3994
    %4783 = vmatmul.bf16.gmra.mxu0 %v4676
    %v4784 = vpop.f32.mrf.mxu0
    %v4785 = vadd.f32 %v4771, %v4784
    %v4786 = vpop.f32.mrf.mxu0
    %v4787 = vadd.f32 %v4773, %v4786
    %4788 = vdwg.mxu0
    %4789 = vmatpush.bf16.msra.mxu0 %v3987
    %4790 = vmatpush.bf16.msra.mxu0 %v3979
    %4791 = vmatpush.bf16.msra.mxu0 %v3971
    %4792 = vmatpush.bf16.msra.mxu0 %v3963
    %4793 = vmatpush.bf16.msra.mxu0 %v3955
    %4794 = vmatpush.bf16.msra.mxu0 %v3947
    %4795 = vmatpush.bf16.msra.mxu0 %v3939
    %4796 = vmatpush.bf16.msra.mxu0 %v3931
    %4797 = vmatmul.bf16.gmra.mxu0 %v4675
    %v4798 = vpop.f32.mrf.mxu0
    %v4799 = vadd.f32 0.0, %v4798
    %v4800 = vpop.f32.mrf.mxu0
    %v4801 = vadd.f32 0.0, %v4800
    %4802 = vdwg.mxu0
    %4803 = vmatpush.bf16.msra.mxu0 %v4051
    %4804 = vmatpush.bf16.msra.mxu0 %v4043
    %4805 = vmatpush.bf16.msra.mxu0 %v4035
    %4806 = vmatpush.bf16.msra.mxu0 %v4027
    %4807 = vmatpush.bf16.msra.mxu0 %v4019
    %4808 = vmatpush.bf16.msra.mxu0 %v4011
    %4809 = vmatpush.bf16.msra.mxu0 %v4003
    %4810 = vmatpush.bf16.msra.mxu0 %v3995
    %4811 = vmatmul.bf16.gmra.mxu0 %v4676
    %v4812 = vpop.f32.mrf.mxu0
    %v4813 = vadd.f32 %v4799, %v4812
    %v4814 = vpop.f32.mrf.mxu0
    %v4815 = vadd.f32 %v4801, %v4814
    %4816 = vdwg.mxu0
    %4817 = vmatpush.bf16.msra.mxu0 %v3988
    %4818 = vmatpush.bf16.msra.mxu0 %v3980
    %4819 = vmatpush.bf16.msra.mxu0 %v3972
    %4820 = vmatpush.bf16.msra.mxu0 %v3964
    %4821 = vmatpush.bf16.msra.mxu0 %v3956
    %4822 = vmatpush.bf16.msra.mxu0 %v3948
    %4823 = vmatpush.bf16.msra.mxu0 %v3940
    %4824 = vmatpush.bf16.msra.mxu0 %v3932
    %4825 = vmatmul.bf16.gmra.mxu0 %v4675
    %v4826 = vpop.f32.mrf.mxu0
    %v4827 = vadd.f32 0.0, %v4826
    %v4828 = vpop.f32.mrf.mxu0
    %v4829 = vadd.f32 0.0, %v4828
    %4830 = vdwg.mxu0
    %4831 = vmatpush.bf16.msra.mxu0 %v4052
    %4832 = vmatpush.bf16.msra.mxu0 %v4044
    %4833 = vmatpush.bf16.msra.mxu0 %v4036
    %4834 = vmatpush.bf16.msra.mxu0 %v4028
    %4835 = vmatpush.bf16.msra.mxu0 %v4020
    %4836 = vmatpush.bf16.msra.mxu0 %v4012
    %4837 = vmatpush.bf16.msra.mxu0 %v4004
    %4838 = vmatpush.bf16.msra.mxu0 %v3996
    %4839 = vmatmul.bf16.gmra.mxu0 %v4676
    %v4840 = vpop.f32.mrf.mxu0
    %v4841 = vadd.f32 %v4827, %v4840
    %v4842 = vpop.f32.mrf.mxu0
    %v4843 = vadd.f32 %v4829, %v4842
    %4844 = vdwg.mxu0
    %4845 = vmatpush.bf16.msra.mxu0 %v3989
    %4846 = vmatpush.bf16.msra.mxu0 %v3981
    %4847 = vmatpush.bf16.msra.mxu0 %v3973
    %4848 = vmatpush.bf16.msra.mxu0 %v3965
    %4849 = vmatpush.bf16.msra.mxu0 %v3957
    %4850 = vmatpush.bf16.msra.mxu0 %v3949
    %4851 = vmatpush.bf16.msra.mxu0 %v3941
    %4852 = vmatpush.bf16.msra.mxu0 %v3933
    %4853 = vmatmul.bf16.gmra.mxu0 %v4675
    %v4854 = vpop.f32.mrf.mxu0
    %v4855 = vadd.f32 0.0, %v4854
    %v4856 = vpop.f32.mrf.mxu0
    %v4857 = vadd.f32 0.0, %v4856
    %4858 = vdwg.mxu0
    %4859 = vmatpush.bf16.msra.mxu0 %v4053
    %4860 = vmatpush.bf16.msra.mxu0 %v4045
    %4861 = vmatpush.bf16.msra.mxu0 %v4037
    %4862 = vmatpush.bf16.msra.mxu0 %v4029
    %4863 = vmatpush.bf16.msra.mxu0 %v4021
    %4864 = vmatpush.bf16.msra.mxu0 %v4013
    %4865 = vmatpush.bf16.msra.mxu0 %v4005
    %4866 = vmatpush.bf16.msra.mxu0 %v3997
    %4867 = vmatmul.bf16.gmra.mxu0 %v4676
    %v4868 = vpop.f32.mrf.mxu0
    %v4869 = vadd.f32 %v4855, %v4868
    %v4870 = vpop.f32.mrf.mxu0
    %v4871 = vadd.f32 %v4857, %v4870
    %4872 = vdwg.mxu0
    %4873 = vmatpush.bf16.msra.mxu0 %v3990
    %4874 = vmatpush.bf16.msra.mxu0 %v3982
    %4875 = vmatpush.bf16.msra.mxu0 %v3974
    %4876 = vmatpush.bf16.msra.mxu0 %v3966
    %4877 = vmatpush.bf16.msra.mxu0 %v3958
    %4878 = vmatpush.bf16.msra.mxu0 %v3950
    %4879 = vmatpush.bf16.msra.mxu0 %v3942
    %4880 = vmatpush.bf16.msra.mxu0 %v3934
    %4881 = vmatmul.bf16.gmra.mxu0 %v4675
    %v4882 = vpop.f32.mrf.mxu0
    %v4883 = vadd.f32 0.0, %v4882
    %v4884 = vpop.f32.mrf.mxu0
    %v4885 = vadd.f32 0.0, %v4884
    %4886 = vdwg.mxu0
    %4887 = vmatpush.bf16.msra.mxu0 %v4054
    %4888 = vmatpush.bf16.msra.mxu0 %v4046
    %4889 = vmatpush.bf16.msra.mxu0 %v4038
    %4890 = vmatpush.bf16.msra.mxu0 %v4030
    %4891 = vmatpush.bf16.msra.mxu0 %v4022
    %4892 = vmatpush.bf16.msra.mxu0 %v4014
    %4893 = vmatpush.bf16.msra.mxu0 %v4006
    %4894 = vmatpush.bf16.msra.mxu0 %v3998
    %4895 = vmatmul.bf16.gmra.mxu0 %v4676
    %v4896 = vpop.f32.mrf.mxu0
    %v4897 = vadd.f32 %v4883, %v4896
    %v4898 = vpop.f32.mrf.mxu0
    %v4899 = vadd.f32 %v4885, %v4898
    %4900 = vdwg.mxu0
    %v4901 = vadd.f32 %v2009, %v4701
    %v4902 = vadd.f32 %v2205, %v4729
    %v4903 = vadd.f32 %v2401, %v4757
    %v4904 = vadd.f32 %v2597, %v4785
    %v4905 = vadd.f32 %v2793, %v4813
    %v4906 = vadd.f32 %v2989, %v4841
    %v4907 = vadd.f32 %v3185, %v4869
    %v4908 = vadd.f32 %v3381, %v4897
    %v4909 = vadd.f32 %v2011, %v4703
    %v4910 = vadd.f32 %v2207, %v4731
    %v4911 = vadd.f32 %v2403, %v4759
    %v4912 = vadd.f32 %v2599, %v4787
    %v4913 = vadd.f32 %v2795, %v4815
    %v4914 = vadd.f32 %v2991, %v4843
    %v4915 = vadd.f32 %v3187, %v4871
    %v4916 = vadd.f32 %v3383, %v4899
    %v4917 = vxor.u32 %v4901, 2147483648
    %v4918 = vxor.u32 %v4902, 2147483648
    %v4919 = vxor.u32 %v4909, 2147483648
    %v4920 = vxor.u32 %v4910, 2147483648
    %v4921 = vmul.f32 %v4917, 1.442695
    %v4922 = vpow.pop %v4921
    %v4923 = vmul.f32 %v4918, 1.442695
    %v4924 = vpow.pop %v4923
    %v4925 = vmul.f32 %v4919, 1.442695
    %v4926 = vpow.pop %v4925
    %v4927 = vmul.f32 %v4920, 1.442695
    %v4928 = vpow.pop %v4927
    %v4929 = vadd.f32 %v4922, 1.0
    %v4930 = vadd.f32 %v4924, 1.0
    %v4931 = vadd.f32 %v4926, 1.0
    %v4932 = vadd.f32 %v4928, 1.0
    %v4933 = vrcp.pop %v4929
    %v4934 = vmul.f32 %v4929, %v4933
    %v4935 = vsub.f32 1.0, %v4934
    %v4936 = vmul.f32 %v4933, %v4935
    %v4937 = vadd.f32 %v4933, %v4936
    %vm4938 = vweird.f32 %v4929
    %vm4939 = vweird.f32 %v4933
    %vm4940 = vmor %vm4938, %vm4939
    %v4941 = vsel %vm4940, %v4933, %v4937
    %v4942 = vand.u32 2147483647, %v4929
    %vm4943 = vcmp.eq.f32.partialorder %v4942, 8.507059e+37
    %v4944 = vand.u32 %v4929, 2147483648
    %v4945 = vor.u32 1.1754944e-38, %v4944
    %v4946 = vsel %vm4943, %v4945, %v4941
    %v4947 = vmul.f32 1.0, %v4946
    %v4948 = vrcp.pop %v4930
    %v4949 = vmul.f32 %v4930, %v4948
    %v4950 = vsub.f32 1.0, %v4949
    %v4951 = vmul.f32 %v4948, %v4950
    %v4952 = vadd.f32 %v4948, %v4951
    %vm4953 = vweird.f32 %v4930
    %vm4954 = vweird.f32 %v4948
    %vm4955 = vmor %vm4953, %vm4954
    %v4956 = vsel %vm4955, %v4948, %v4952
    %v4957 = vand.u32 2147483647, %v4930
    %vm4958 = vcmp.eq.f32.partialorder %v4957, 8.507059e+37
    %v4959 = vand.u32 %v4930, 2147483648
    %v4960 = vor.u32 1.1754944e-38, %v4959
    %v4961 = vsel %vm4958, %v4960, %v4956
    %v4962 = vmul.f32 1.0, %v4961
    %v4963 = vrcp.pop %v4931
    %v4964 = vmul.f32 %v4931, %v4963
    %v4965 = vsub.f32 1.0, %v4964
    %v4966 = vmul.f32 %v4963, %v4965
    %v4967 = vadd.f32 %v4963, %v4966
    %vm4968 = vweird.f32 %v4931
    %vm4969 = vweird.f32 %v4963
    %vm4970 = vmor %vm4968, %vm4969
    %v4971 = vsel %vm4970, %v4963, %v4967
    %v4972 = vand.u32 2147483647, %v4931
    %vm4973 = vcmp.eq.f32.partialorder %v4972, 8.507059e+37
    %v4974 = vand.u32 %v4931, 2147483648
    %v4975 = vor.u32 1.1754944e-38, %v4974
    %v4976 = vsel %vm4973, %v4975, %v4971
    %v4977 = vmul.f32 1.0, %v4976
    %v4978 = vrcp.pop %v4932
    %v4979 = vmul.f32 %v4932, %v4978
    %v4980 = vsub.f32 1.0, %v4979
    %v4981 = vmul.f32 %v4978, %v4980
    %v4982 = vadd.f32 %v4978, %v4981
    %vm4983 = vweird.f32 %v4932
    %vm4984 = vweird.f32 %v4978
    %vm4985 = vmor %vm4983, %vm4984
    %v4986 = vsel %vm4985, %v4978, %v4982
    %v4987 = vand.u32 2147483647, %v4932
    %vm4988 = vcmp.eq.f32.partialorder %v4987, 8.507059e+37
    %v4989 = vand.u32 %v4932, 2147483648
    %v4990 = vor.u32 1.1754944e-38, %v4989
    %v4991 = vsel %vm4988, %v4990, %v4986
    %v4992 = vmul.f32 1.0, %v4991
    %v4993 = vxor.u32 %v4903, 2147483648
    %v4994 = vxor.u32 %v4904, 2147483648
    %v4995 = vxor.u32 %v4911, 2147483648
    %v4996 = vxor.u32 %v4912, 2147483648
    %v4997 = vmul.f32 %v4993, 1.442695
    %v4998 = vpow.pop %v4997
    %v4999 = vmul.f32 %v4994, 1.442695
    %v5000 = vpow.pop %v4999
    %v5001 = vmul.f32 %v4995, 1.442695
    %v5002 = vpow.pop %v5001
    %v5003 = vmul.f32 %v4996, 1.442695
    %v5004 = vpow.pop %v5003
    %v5005 = vadd.f32 %v4998, 1.0
    %v5006 = vadd.f32 %v5000, 1.0
    %v5007 = vadd.f32 %v5002, 1.0
    %v5008 = vadd.f32 %v5004, 1.0
    %v5009 = vrcp.pop %v5005
    %v5010 = vmul.f32 %v5005, %v5009
    %v5011 = vsub.f32 1.0, %v5010
    %v5012 = vmul.f32 %v5009, %v5011
    %v5013 = vadd.f32 %v5009, %v5012
    %vm5014 = vweird.f32 %v5005
    %vm5015 = vweird.f32 %v5009
    %vm5016 = vmor %vm5014, %vm5015
    %v5017 = vsel %vm5016, %v5009, %v5013
    %v5018 = vand.u32 2147483647, %v5005
    %vm5019 = vcmp.eq.f32.partialorder %v5018, 8.507059e+37
    %v5020 = vand.u32 %v5005, 2147483648
    %v5021 = vor.u32 1.1754944e-38, %v5020
    %v5022 = vsel %vm5019, %v5021, %v5017
    %v5023 = vmul.f32 1.0, %v5022
    %v5024 = vrcp.pop %v5006
    %v5025 = vmul.f32 %v5006, %v5024
    %v5026 = vsub.f32 1.0, %v5025
    %v5027 = vmul.f32 %v5024, %v5026
    %v5028 = vadd.f32 %v5024, %v5027
    %vm5029 = vweird.f32 %v5006
    %vm5030 = vweird.f32 %v5024
    %vm5031 = vmor %vm5029, %vm5030
    %v5032 = vsel %vm5031, %v5024, %v5028
    %v5033 = vand.u32 2147483647, %v5006
    %vm5034 = vcmp.eq.f32.partialorder %v5033, 8.507059e+37
    %v5035 = vand.u32 %v5006, 2147483648
    %v5036 = vor.u32 1.1754944e-38, %v5035
    %v5037 = vsel %vm5034, %v5036, %v5032
    %v5038 = vmul.f32 1.0, %v5037
    %v5039 = vrcp.pop %v5007
    %v5040 = vmul.f32 %v5007, %v5039
    %v5041 = vsub.f32 1.0, %v5040
    %v5042 = vmul.f32 %v5039, %v5041
    %v5043 = vadd.f32 %v5039, %v5042
    %vm5044 = vweird.f32 %v5007
    %vm5045 = vweird.f32 %v5039
    %vm5046 = vmor %vm5044, %vm5045
    %v5047 = vsel %vm5046, %v5039, %v5043
    %v5048 = vand.u32 2147483647, %v5007
    %vm5049 = vcmp.eq.f32.partialorder %v5048, 8.507059e+37
    %v5050 = vand.u32 %v5007, 2147483648
    %v5051 = vor.u32 1.1754944e-38, %v5050
    %v5052 = vsel %vm5049, %v5051, %v5047
    %v5053 = vmul.f32 1.0, %v5052
    %v5054 = vrcp.pop %v5008
    %v5055 = vmul.f32 %v5008, %v5054
    %v5056 = vsub.f32 1.0, %v5055
    %v5057 = vmul.f32 %v5054, %v5056
    %v5058 = vadd.f32 %v5054, %v5057
    %vm5059 = vweird.f32 %v5008
    %vm5060 = vweird.f32 %v5054
    %vm5061 = vmor %vm5059, %vm5060
    %v5062 = vsel %vm5061, %v5054, %v5058
    %v5063 = vand.u32 2147483647, %v5008
    %vm5064 = vcmp.eq.f32.partialorder %v5063, 8.507059e+37
    %v5065 = vand.u32 %v5008, 2147483648
    %v5066 = vor.u32 1.1754944e-38, %v5065
    %v5067 = vsel %vm5064, %v5066, %v5062
    %v5068 = vmul.f32 1.0, %v5067
    %v5069 = vtanh.pop %v4905
    %v5070 = vtanh.pop %v4906
    %v5071 = vtanh.pop %v4913
    %v5072 = vtanh.pop %v4914
    %v5073 = vxor.u32 %v4907, 2147483648
    %v5074 = vxor.u32 %v4908, 2147483648
    %v5075 = vxor.u32 %v4915, 2147483648
    %v5076 = vxor.u32 %v4916, 2147483648
    %v5077 = vmul.f32 %v5073, 1.442695
    %v5078 = vpow.pop %v5077
    %v5079 = vmul.f32 %v5074, 1.442695
    %v5080 = vpow.pop %v5079
    %v5081 = vmul.f32 %v5075, 1.442695
    %v5082 = vpow.pop %v5081
    %v5083 = vmul.f32 %v5076, 1.442695
    %v5084 = vpow.pop %v5083
    %v5085 = vadd.f32 %v5078, 1.0
    %v5086 = vadd.f32 %v5080, 1.0
    %v5087 = vadd.f32 %v5082, 1.0
    %v5088 = vadd.f32 %v5084, 1.0
    %v5089 = vrcp.pop %v5085
    %v5090 = vmul.f32 %v5085, %v5089
    %v5091 = vsub.f32 1.0, %v5090
    %v5092 = vmul.f32 %v5089, %v5091
    %v5093 = vadd.f32 %v5089, %v5092
    %vm5094 = vweird.f32 %v5085
    %vm5095 = vweird.f32 %v5089
    %vm5096 = vmor %vm5094, %vm5095
    %v5097 = vsel %vm5096, %v5089, %v5093
    %v5098 = vand.u32 2147483647, %v5085
    %vm5099 = vcmp.eq.f32.partialorder %v5098, 8.507059e+37
    %v5100 = vand.u32 %v5085, 2147483648
    %v5101 = vor.u32 1.1754944e-38, %v5100
    %v5102 = vsel %vm5099, %v5101, %v5097
    %v5103 = vmul.f32 1.0, %v5102
    %v5104 = vrcp.pop %v5086
    %v5105 = vmul.f32 %v5086, %v5104
    %v5106 = vsub.f32 1.0, %v5105
    %v5107 = vmul.f32 %v5104, %v5106
    %v5108 = vadd.f32 %v5104, %v5107
    %vm5109 = vweird.f32 %v5086
    %vm5110 = vweird.f32 %v5104
    %vm5111 = vmor %vm5109, %vm5110
    %v5112 = vsel %vm5111, %v5104, %v5108
    %v5113 = vand.u32 2147483647, %v5086
    %vm5114 = vcmp.eq.f32.partialorder %v5113, 8.507059e+37
    %v5115 = vand.u32 %v5086, 2147483648
    %v5116 = vor.u32 1.1754944e-38, %v5115
    %v5117 = vsel %vm5114, %v5116, %v5112
    %v5118 = vmul.f32 1.0, %v5117
    %v5119 = vrcp.pop %v5087
    %v5120 = vmul.f32 %v5087, %v5119
    %v5121 = vsub.f32 1.0, %v5120
    %v5122 = vmul.f32 %v5119, %v5121
    %v5123 = vadd.f32 %v5119, %v5122
    %vm5124 = vweird.f32 %v5087
    %vm5125 = vweird.f32 %v5119
    %vm5126 = vmor %vm5124, %vm5125
    %v5127 = vsel %vm5126, %v5119, %v5123
    %v5128 = vand.u32 2147483647, %v5087
    %vm5129 = vcmp.eq.f32.partialorder %v5128, 8.507059e+37
    %v5130 = vand.u32 %v5087, 2147483648
    %v5131 = vor.u32 1.1754944e-38, %v5130
    %v5132 = vsel %vm5129, %v5131, %v5127
    %v5133 = vmul.f32 1.0, %v5132
    %v5134 = vrcp.pop %v5088
    %v5135 = vmul.f32 %v5088, %v5134
    %v5136 = vsub.f32 1.0, %v5135
    %v5137 = vmul.f32 %v5134, %v5136
    %v5138 = vadd.f32 %v5134, %v5137
    %vm5139 = vweird.f32 %v5088
    %vm5140 = vweird.f32 %v5134
    %vm5141 = vmor %vm5139, %vm5140
    %v5142 = vsel %vm5141, %v5134, %v5138
    %v5143 = vand.u32 2147483647, %v5088
    %vm5144 = vcmp.eq.f32.partialorder %v5143, 8.507059e+37
    %v5145 = vand.u32 %v5088, 2147483648
    %v5146 = vor.u32 1.1754944e-38, %v5145
    %v5147 = vsel %vm5144, %v5146, %v5142
    %v5148 = vmul.f32 1.0, %v5147
    %v5149 = vmul.f32 %v5023, %v4663
    %v5150 = vmul.f32 %v5038, %v4664
    %v5151 = vmul.f32 %v5053, %v4665
    %v5152 = vmul.f32 %v5068, %v4666
    %v5153 = vmul.f32 %v4947, %v5069
    %v5154 = vmul.f32 %v4962, %v5070
    %v5155 = vmul.f32 %v4977, %v5071
    %v5156 = vmul.f32 %v4992, %v5072
    %v5157 = vadd.f32 %v5149, %v5153
    %v5158 = vadd.f32 %v5150, %v5154
    %v5159 = vadd.f32 %v5151, %v5155
    %v5160 = vadd.f32 %v5152, %v5156
    %v5161 = vtanh.pop %v5157
    %v5162 = vtanh.pop %v5158
    %v5163 = vtanh.pop %v5159
    %v5164 = vtanh.pop %v5160
    %v5165 = vmul.f32 %v5103, %v5161
    %v5166 = vmul.f32 %v5118, %v5162
    %v5167 = vmul.f32 %v5133, %v5163
    %v5168 = vmul.f32 %v5148, %v5164
    %v5169 = vpack.c.bf16 %v5167, %v5165
    %v5170 = vpack.c.bf16 %v5168, %v5166
    %5171 = vmatpush.bf16.msra.mxu0 %v3983
    %5172 = vmatpush.bf16.msra.mxu0 %v3975
    %5173 = vmatpush.bf16.msra.mxu0 %v3967
    %5174 = vmatpush.bf16.msra.mxu0 %v3959
    %5175 = vmatpush.bf16.msra.mxu0 %v3951
    %5176 = vmatpush.bf16.msra.mxu0 %v3943
    %5177 = vmatpush.bf16.msra.mxu0 %v3935
    %5178 = vmatpush.bf16.msra.mxu0 %v3927
    %5179 = vmatmul.bf16.gmra.mxu0 %v5169
    %v5180 = vpop.f32.mrf.mxu0
    %v5181 = vadd.f32 0.0, %v5180
    %v5182 = vpop.f32.mrf.mxu0
    %v5183 = vadd.f32 0.0, %v5182
    %5184 = vdwg.mxu0
    %5185 = vmatpush.bf16.msra.mxu0 %v4047
    %5186 = vmatpush.bf16.msra.mxu0 %v4039
    %5187 = vmatpush.bf16.msra.mxu0 %v4031
    %5188 = vmatpush.bf16.msra.mxu0 %v4023
    %5189 = vmatpush.bf16.msra.mxu0 %v4015
    %5190 = vmatpush.bf16.msra.mxu0 %v4007
    %5191 = vmatpush.bf16.msra.mxu0 %v3999
    %5192 = vmatpush.bf16.msra.mxu0 %v3991
    %5193 = vmatmul.bf16.gmra.mxu0 %v5170
    %v5194 = vpop.f32.mrf.mxu0
    %v5195 = vadd.f32 %v5181, %v5194
    %v5196 = vpop.f32.mrf.mxu0
    %v5197 = vadd.f32 %v5183, %v5196
    %5198 = vdwg.mxu0
    %5199 = vmatpush.bf16.msra.mxu0 %v3984
    %5200 = vmatpush.bf16.msra.mxu0 %v3976
    %5201 = vmatpush.bf16.msra.mxu0 %v3968
    %5202 = vmatpush.bf16.msra.mxu0 %v3960
    %5203 = vmatpush.bf16.msra.mxu0 %v3952
    %5204 = vmatpush.bf16.msra.mxu0 %v3944
    %5205 = vmatpush.bf16.msra.mxu0 %v3936
    %5206 = vmatpush.bf16.msra.mxu0 %v3928
    %5207 = vmatmul.bf16.gmra.mxu0 %v5169
    %v5208 = vpop.f32.mrf.mxu0
    %v5209 = vadd.f32 0.0, %v5208
    %v5210 = vpop.f32.mrf.mxu0
    %v5211 = vadd.f32 0.0, %v5210
    %5212 = vdwg.mxu0
    %5213 = vmatpush.bf16.msra.mxu0 %v4048
    %5214 = vmatpush.bf16.msra.mxu0 %v4040
    %5215 = vmatpush.bf16.msra.mxu0 %v4032
    %5216 = vmatpush.bf16.msra.mxu0 %v4024
    %5217 = vmatpush.bf16.msra.mxu0 %v4016
    %5218 = vmatpush.bf16.msra.mxu0 %v4008
    %5219 = vmatpush.bf16.msra.mxu0 %v4000
    %5220 = vmatpush.bf16.msra.mxu0 %v3992
    %5221 = vmatmul.bf16.gmra.mxu0 %v5170
    %v5222 = vpop.f32.mrf.mxu0
    %v5223 = vadd.f32 %v5209, %v5222
    %v5224 = vpop.f32.mrf.mxu0
    %v5225 = vadd.f32 %v5211, %v5224
    %5226 = vdwg.mxu0
    %5227 = vmatpush.bf16.msra.mxu0 %v3985
    %5228 = vmatpush.bf16.msra.mxu0 %v3977
    %5229 = vmatpush.bf16.msra.mxu0 %v3969
    %5230 = vmatpush.bf16.msra.mxu0 %v3961
    %5231 = vmatpush.bf16.msra.mxu0 %v3953
    %5232 = vmatpush.bf16.msra.mxu0 %v3945
    %5233 = vmatpush.bf16.msra.mxu0 %v3937
    %5234 = vmatpush.bf16.msra.mxu0 %v3929
    %5235 = vmatmul.bf16.gmra.mxu0 %v5169
    %v5236 = vpop.f32.mrf.mxu0
    %v5237 = vadd.f32 0.0, %v5236
    %v5238 = vpop.f32.mrf.mxu0
    %v5239 = vadd.f32 0.0, %v5238
    %5240 = vdwg.mxu0
    %5241 = vmatpush.bf16.msra.mxu0 %v4049
    %5242 = vmatpush.bf16.msra.mxu0 %v4041
    %5243 = vmatpush.bf16.msra.mxu0 %v4033
    %5244 = vmatpush.bf16.msra.mxu0 %v4025
    %5245 = vmatpush.bf16.msra.mxu0 %v4017
    %5246 = vmatpush.bf16.msra.mxu0 %v4009
    %5247 = vmatpush.bf16.msra.mxu0 %v4001
    %5248 = vmatpush.bf16.msra.mxu0 %v3993
    %5249 = vmatmul.bf16.gmra.mxu0 %v5170
    %v5250 = vpop.f32.mrf.mxu0
    %v5251 = vadd.f32 %v5237, %v5250
    %v5252 = vpop.f32.mrf.mxu0
    %v5253 = vadd.f32 %v5239, %v5252
    %5254 = vdwg.mxu0
    %5255 = vmatpush.bf16.msra.mxu0 %v3986
    %5256 = vmatpush.bf16.msra.mxu0 %v3978
    %5257 = vmatpush.bf16.msra.mxu0 %v3970
    %5258 = vmatpush.bf16.msra.mxu0 %v3962
    %5259 = vmatpush.bf16.msra.mxu0 %v3954
    %5260 = vmatpush.bf16.msra.mxu0 %v3946
    %5261 = vmatpush.bf16.msra.mxu0 %v3938
    %5262 = vmatpush.bf16.msra.mxu0 %v3930
    %5263 = vmatmul.bf16.gmra.mxu0 %v5169
    %v5264 = vpop.f32.mrf.mxu0
    %v5265 = vadd.f32 0.0, %v5264
    %v5266 = vpop.f32.mrf.mxu0
    %v5267 = vadd.f32 0.0, %v5266
    %5268 = vdwg.mxu0
    %5269 = vmatpush.bf16.msra.mxu0 %v4050
    %5270 = vmatpush.bf16.msra.mxu0 %v4042
    %5271 = vmatpush.bf16.msra.mxu0 %v4034
    %5272 = vmatpush.bf16.msra.mxu0 %v4026
    %5273 = vmatpush.bf16.msra.mxu0 %v4018
    %5274 = vmatpush.bf16.msra.mxu0 %v4010
    %5275 = vmatpush.bf16.msra.mxu0 %v4002
    %5276 = vmatpush.bf16.msra.mxu0 %v3994
    %5277 = vmatmul.bf16.gmra.mxu0 %v5170
    %v5278 = vpop.f32.mrf.mxu0
    %v5279 = vadd.f32 %v5265, %v5278
    %v5280 = vpop.f32.mrf.mxu0
    %v5281 = vadd.f32 %v5267, %v5280
    %5282 = vdwg.mxu0
    %5283 = vmatpush.bf16.msra.mxu0 %v3987
    %5284 = vmatpush.bf16.msra.mxu0 %v3979
    %5285 = vmatpush.bf16.msra.mxu0 %v3971
    %5286 = vmatpush.bf16.msra.mxu0 %v3963
    %5287 = vmatpush.bf16.msra.mxu0 %v3955
    %5288 = vmatpush.bf16.msra.mxu0 %v3947
    %5289 = vmatpush.bf16.msra.mxu0 %v3939
    %5290 = vmatpush.bf16.msra.mxu0 %v3931
    %5291 = vmatmul.bf16.gmra.mxu0 %v5169
    %v5292 = vpop.f32.mrf.mxu0
    %v5293 = vadd.f32 0.0, %v5292
    %v5294 = vpop.f32.mrf.mxu0
    %v5295 = vadd.f32 0.0, %v5294
    %5296 = vdwg.mxu0
    %5297 = vmatpush.bf16.msra.mxu0 %v4051
    %5298 = vmatpush.bf16.msra.mxu0 %v4043
    %5299 = vmatpush.bf16.msra.mxu0 %v4035
    %5300 = vmatpush.bf16.msra.mxu0 %v4027
    %5301 = vmatpush.bf16.msra.mxu0 %v4019
    %5302 = vmatpush.bf16.msra.mxu0 %v4011
    %5303 = vmatpush.bf16.msra.mxu0 %v4003
    %5304 = vmatpush.bf16.msra.mxu0 %v3995
    %5305 = vmatmul.bf16.gmra.mxu0 %v5170
    %v5306 = vpop.f32.mrf.mxu0
    %v5307 = vadd.f32 %v5293, %v5306
    %v5308 = vpop.f32.mrf.mxu0
    %v5309 = vadd.f32 %v5295, %v5308
    %5310 = vdwg.mxu0
    %5311 = vmatpush.bf16.msra.mxu0 %v3988
    %5312 = vmatpush.bf16.msra.mxu0 %v3980
    %5313 = vmatpush.bf16.msra.mxu0 %v3972
    %5314 = vmatpush.bf16.msra.mxu0 %v3964
    %5315 = vmatpush.bf16.msra.mxu0 %v3956
    %5316 = vmatpush.bf16.msra.mxu0 %v3948
    %5317 = vmatpush.bf16.msra.mxu0 %v3940
    %5318 = vmatpush.bf16.msra.mxu0 %v3932
    %5319 = vmatmul.bf16.gmra.mxu0 %v5169
    %v5320 = vpop.f32.mrf.mxu0
    %v5321 = vadd.f32 0.0, %v5320
    %v5322 = vpop.f32.mrf.mxu0
    %v5323 = vadd.f32 0.0, %v5322
    %5324 = vdwg.mxu0
    %5325 = vmatpush.bf16.msra.mxu0 %v4052
    %5326 = vmatpush.bf16.msra.mxu0 %v4044
    %5327 = vmatpush.bf16.msra.mxu0 %v4036
    %5328 = vmatpush.bf16.msra.mxu0 %v4028
    %5329 = vmatpush.bf16.msra.mxu0 %v4020
    %5330 = vmatpush.bf16.msra.mxu0 %v4012
    %5331 = vmatpush.bf16.msra.mxu0 %v4004
    %5332 = vmatpush.bf16.msra.mxu0 %v3996
    %5333 = vmatmul.bf16.gmra.mxu0 %v5170
    %v5334 = vpop.f32.mrf.mxu0
    %v5335 = vadd.f32 %v5321, %v5334
    %v5336 = vpop.f32.mrf.mxu0
    %v5337 = vadd.f32 %v5323, %v5336
    %5338 = vdwg.mxu0
    %5339 = vmatpush.bf16.msra.mxu0 %v3989
    %5340 = vmatpush.bf16.msra.mxu0 %v3981
    %5341 = vmatpush.bf16.msra.mxu0 %v3973
    %5342 = vmatpush.bf16.msra.mxu0 %v3965
    %5343 = vmatpush.bf16.msra.mxu0 %v3957
    %5344 = vmatpush.bf16.msra.mxu0 %v3949
    %5345 = vmatpush.bf16.msra.mxu0 %v3941
    %5346 = vmatpush.bf16.msra.mxu0 %v3933
    %5347 = vmatmul.bf16.gmra.mxu0 %v5169
    %v5348 = vpop.f32.mrf.mxu0
    %v5349 = vadd.f32 0.0, %v5348
    %v5350 = vpop.f32.mrf.mxu0
    %v5351 = vadd.f32 0.0, %v5350
    %5352 = vdwg.mxu0
    %5353 = vmatpush.bf16.msra.mxu0 %v4053
    %5354 = vmatpush.bf16.msra.mxu0 %v4045
    %5355 = vmatpush.bf16.msra.mxu0 %v4037
    %5356 = vmatpush.bf16.msra.mxu0 %v4029
    %5357 = vmatpush.bf16.msra.mxu0 %v4021
    %5358 = vmatpush.bf16.msra.mxu0 %v4013
    %5359 = vmatpush.bf16.msra.mxu0 %v4005
    %5360 = vmatpush.bf16.msra.mxu0 %v3997
    %5361 = vmatmul.bf16.gmra.mxu0 %v5170
    %v5362 = vpop.f32.mrf.mxu0
    %v5363 = vadd.f32 %v5349, %v5362
    %v5364 = vpop.f32.mrf.mxu0
    %v5365 = vadd.f32 %v5351, %v5364
    %5366 = vdwg.mxu0
    %5367 = vmatpush.bf16.msra.mxu0 %v3990
    %5368 = vmatpush.bf16.msra.mxu0 %v3982
    %5369 = vmatpush.bf16.msra.mxu0 %v3974
    %5370 = vmatpush.bf16.msra.mxu0 %v3966
    %5371 = vmatpush.bf16.msra.mxu0 %v3958
    %5372 = vmatpush.bf16.msra.mxu0 %v3950
    %5373 = vmatpush.bf16.msra.mxu0 %v3942
    %5374 = vmatpush.bf16.msra.mxu0 %v3934
    %5375 = vmatmul.bf16.gmra.mxu0 %v5169
    %v5376 = vpop.f32.mrf.mxu0
    %v5377 = vadd.f32 0.0, %v5376
    %v5378 = vpop.f32.mrf.mxu0
    %v5379 = vadd.f32 0.0, %v5378
    %5380 = vdwg.mxu0
    %5381 = vmatpush.bf16.msra.mxu0 %v4054
    %5382 = vmatpush.bf16.msra.mxu0 %v4046
    %5383 = vmatpush.bf16.msra.mxu0 %v4038
    %5384 = vmatpush.bf16.msra.mxu0 %v4030
    %5385 = vmatpush.bf16.msra.mxu0 %v4022
    %5386 = vmatpush.bf16.msra.mxu0 %v4014
    %5387 = vmatpush.bf16.msra.mxu0 %v4006
    %5388 = vmatpush.bf16.msra.mxu0 %v3998
    %5389 = vmatmul.bf16.gmra.mxu0 %v5170
    %v5390 = vpop.f32.mrf.mxu0
    %v5391 = vadd.f32 %v5377, %v5390
    %v5392 = vpop.f32.mrf.mxu0
    %v5393 = vadd.f32 %v5379, %v5392
    %5394 = vdwg.mxu0
    %v5395 = vadd.f32 %v2014, %v5195
    %v5396 = vadd.f32 %v2210, %v5223
    %v5397 = vadd.f32 %v2406, %v5251
    %v5398 = vadd.f32 %v2602, %v5279
    %v5399 = vadd.f32 %v2798, %v5307
    %v5400 = vadd.f32 %v2994, %v5335
    %v5401 = vadd.f32 %v3190, %v5363
    %v5402 = vadd.f32 %v3386, %v5391
    %v5403 = vadd.f32 %v2016, %v5197
    %v5404 = vadd.f32 %v2212, %v5225
    %v5405 = vadd.f32 %v2408, %v5253
    %v5406 = vadd.f32 %v2604, %v5281
    %v5407 = vadd.f32 %v2800, %v5309
    %v5408 = vadd.f32 %v2996, %v5337
    %v5409 = vadd.f32 %v3192, %v5365
    %v5410 = vadd.f32 %v3388, %v5393
    %v5411 = vxor.u32 %v5395, 2147483648
    %v5412 = vxor.u32 %v5396, 2147483648
    %v5413 = vxor.u32 %v5403, 2147483648
    %v5414 = vxor.u32 %v5404, 2147483648
    %v5415 = vmul.f32 %v5411, 1.442695
    %v5416 = vpow.pop %v5415
    %v5417 = vmul.f32 %v5412, 1.442695
    %v5418 = vpow.pop %v5417
    %v5419 = vmul.f32 %v5413, 1.442695
    %v5420 = vpow.pop %v5419
    %v5421 = vmul.f32 %v5414, 1.442695
    %v5422 = vpow.pop %v5421
    %v5423 = vadd.f32 %v5416, 1.0
    %v5424 = vadd.f32 %v5418, 1.0
    %v5425 = vadd.f32 %v5420, 1.0
    %v5426 = vadd.f32 %v5422, 1.0
    %v5427 = vrcp.pop %v5423
    %v5428 = vmul.f32 %v5423, %v5427
    %v5429 = vsub.f32 1.0, %v5428
    %v5430 = vmul.f32 %v5427, %v5429
    %v5431 = vadd.f32 %v5427, %v5430
    %vm5432 = vweird.f32 %v5423
    %vm5433 = vweird.f32 %v5427
    %vm5434 = vmor %vm5432, %vm5433
    %v5435 = vsel %vm5434, %v5427, %v5431
    %v5436 = vand.u32 2147483647, %v5423
    %vm5437 = vcmp.eq.f32.partialorder %v5436, 8.507059e+37
    %v5438 = vand.u32 %v5423, 2147483648
    %v5439 = vor.u32 1.1754944e-38, %v5438
    %v5440 = vsel %vm5437, %v5439, %v5435
    %v5441 = vmul.f32 1.0, %v5440
    %v5442 = vrcp.pop %v5424
    %v5443 = vmul.f32 %v5424, %v5442
    %v5444 = vsub.f32 1.0, %v5443
    %v5445 = vmul.f32 %v5442, %v5444
    %v5446 = vadd.f32 %v5442, %v5445
    %vm5447 = vweird.f32 %v5424
    %vm5448 = vweird.f32 %v5442
    %vm5449 = vmor %vm5447, %vm5448
    %v5450 = vsel %vm5449, %v5442, %v5446
    %v5451 = vand.u32 2147483647, %v5424
    %vm5452 = vcmp.eq.f32.partialorder %v5451, 8.507059e+37
    %v5453 = vand.u32 %v5424, 2147483648
    %v5454 = vor.u32 1.1754944e-38, %v5453
    %v5455 = vsel %vm5452, %v5454, %v5450
    %v5456 = vmul.f32 1.0, %v5455
    %v5457 = vrcp.pop %v5425
    %v5458 = vmul.f32 %v5425, %v5457
    %v5459 = vsub.f32 1.0, %v5458
    %v5460 = vmul.f32 %v5457, %v5459
    %v5461 = vadd.f32 %v5457, %v5460
    %vm5462 = vweird.f32 %v5425
    %vm5463 = vweird.f32 %v5457
    %vm5464 = vmor %vm5462, %vm5463
    %v5465 = vsel %vm5464, %v5457, %v5461
    %v5466 = vand.u32 2147483647, %v5425
    %vm5467 = vcmp.eq.f32.partialorder %v5466, 8.507059e+37
    %v5468 = vand.u32 %v5425, 2147483648
    %v5469 = vor.u32 1.1754944e-38, %v5468
    %v5470 = vsel %vm5467, %v5469, %v5465
    %v5471 = vmul.f32 1.0, %v5470
    %v5472 = vrcp.pop %v5426
    %v5473 = vmul.f32 %v5426, %v5472
    %v5474 = vsub.f32 1.0, %v5473
    %v5475 = vmul.f32 %v5472, %v5474
    %v5476 = vadd.f32 %v5472, %v5475
    %vm5477 = vweird.f32 %v5426
    %vm5478 = vweird.f32 %v5472
    %vm5479 = vmor %vm5477, %vm5478
    %v5480 = vsel %vm5479, %v5472, %v5476
    %v5481 = vand.u32 2147483647, %v5426
    %vm5482 = vcmp.eq.f32.partialorder %v5481, 8.507059e+37
    %v5483 = vand.u32 %v5426, 2147483648
    %v5484 = vor.u32 1.1754944e-38, %v5483
    %v5485 = vsel %vm5482, %v5484, %v5480
    %v5486 = vmul.f32 1.0, %v5485
    %v5487 = vxor.u32 %v5397, 2147483648
    %v5488 = vxor.u32 %v5398, 2147483648
    %v5489 = vxor.u32 %v5405, 2147483648
    %v5490 = vxor.u32 %v5406, 2147483648
    %v5491 = vmul.f32 %v5487, 1.442695
    %v5492 = vpow.pop %v5491
    %v5493 = vmul.f32 %v5488, 1.442695
    %v5494 = vpow.pop %v5493
    %v5495 = vmul.f32 %v5489, 1.442695
    %v5496 = vpow.pop %v5495
    %v5497 = vmul.f32 %v5490, 1.442695
    %v5498 = vpow.pop %v5497
    %v5499 = vadd.f32 %v5492, 1.0
    %v5500 = vadd.f32 %v5494, 1.0
    %v5501 = vadd.f32 %v5496, 1.0
    %v5502 = vadd.f32 %v5498, 1.0
    %v5503 = vrcp.pop %v5499
    %v5504 = vmul.f32 %v5499, %v5503
    %v5505 = vsub.f32 1.0, %v5504
    %v5506 = vmul.f32 %v5503, %v5505
    %v5507 = vadd.f32 %v5503, %v5506
    %vm5508 = vweird.f32 %v5499
    %vm5509 = vweird.f32 %v5503
    %vm5510 = vmor %vm5508, %vm5509
    %v5511 = vsel %vm5510, %v5503, %v5507
    %v5512 = vand.u32 2147483647, %v5499
    %vm5513 = vcmp.eq.f32.partialorder %v5512, 8.507059e+37
    %v5514 = vand.u32 %v5499, 2147483648
    %v5515 = vor.u32 1.1754944e-38, %v5514
    %v5516 = vsel %vm5513, %v5515, %v5511
    %v5517 = vmul.f32 1.0, %v5516
    %v5518 = vrcp.pop %v5500
    %v5519 = vmul.f32 %v5500, %v5518
    %v5520 = vsub.f32 1.0, %v5519
    %v5521 = vmul.f32 %v5518, %v5520
    %v5522 = vadd.f32 %v5518, %v5521
    %vm5523 = vweird.f32 %v5500
    %vm5524 = vweird.f32 %v5518
    %vm5525 = vmor %vm5523, %vm5524
    %v5526 = vsel %vm5525, %v5518, %v5522
    %v5527 = vand.u32 2147483647, %v5500
    %vm5528 = vcmp.eq.f32.partialorder %v5527, 8.507059e+37
    %v5529 = vand.u32 %v5500, 2147483648
    %v5530 = vor.u32 1.1754944e-38, %v5529
    %v5531 = vsel %vm5528, %v5530, %v5526
    %v5532 = vmul.f32 1.0, %v5531
    %v5533 = vrcp.pop %v5501
    %v5534 = vmul.f32 %v5501, %v5533
    %v5535 = vsub.f32 1.0, %v5534
    %v5536 = vmul.f32 %v5533, %v5535
    %v5537 = vadd.f32 %v5533, %v5536
    %vm5538 = vweird.f32 %v5501
    %vm5539 = vweird.f32 %v5533
    %vm5540 = vmor %vm5538, %vm5539
    %v5541 = vsel %vm5540, %v5533, %v5537
    %v5542 = vand.u32 2147483647, %v5501
    %vm5543 = vcmp.eq.f32.partialorder %v5542, 8.507059e+37
    %v5544 = vand.u32 %v5501, 2147483648
    %v5545 = vor.u32 1.1754944e-38, %v5544
    %v5546 = vsel %vm5543, %v5545, %v5541
    %v5547 = vmul.f32 1.0, %v5546
    %v5548 = vrcp.pop %v5502
    %v5549 = vmul.f32 %v5502, %v5548
    %v5550 = vsub.f32 1.0, %v5549
    %v5551 = vmul.f32 %v5548, %v5550
    %v5552 = vadd.f32 %v5548, %v5551
    %vm5553 = vweird.f32 %v5502
    %vm5554 = vweird.f32 %v5548
    %vm5555 = vmor %vm5553, %vm5554
    %v5556 = vsel %vm5555, %v5548, %v5552
    %v5557 = vand.u32 2147483647, %v5502
    %vm5558 = vcmp.eq.f32.partialorder %v5557, 8.507059e+37
    %v5559 = vand.u32 %v5502, 2147483648
    %v5560 = vor.u32 1.1754944e-38, %v5559
    %v5561 = vsel %vm5558, %v5560, %v5556
    %v5562 = vmul.f32 1.0, %v5561
    %v5563 = vtanh.pop %v5399
    %v5564 = vtanh.pop %v5400
    %v5565 = vtanh.pop %v5407
    %v5566 = vtanh.pop %v5408
    %v5567 = vxor.u32 %v5401, 2147483648
    %v5568 = vxor.u32 %v5402, 2147483648
    %v5569 = vxor.u32 %v5409, 2147483648
    %v5570 = vxor.u32 %v5410, 2147483648
    %v5571 = vmul.f32 %v5567, 1.442695
    %v5572 = vpow.pop %v5571
    %v5573 = vmul.f32 %v5568, 1.442695
    %v5574 = vpow.pop %v5573
    %v5575 = vmul.f32 %v5569, 1.442695
    %v5576 = vpow.pop %v5575
    %v5577 = vmul.f32 %v5570, 1.442695
    %v5578 = vpow.pop %v5577
    %v5579 = vadd.f32 %v5572, 1.0
    %v5580 = vadd.f32 %v5574, 1.0
    %v5581 = vadd.f32 %v5576, 1.0
    %v5582 = vadd.f32 %v5578, 1.0
    %v5583 = vrcp.pop %v5579
    %v5584 = vmul.f32 %v5579, %v5583
    %v5585 = vsub.f32 1.0, %v5584
    %v5586 = vmul.f32 %v5583, %v5585
    %v5587 = vadd.f32 %v5583, %v5586
    %vm5588 = vweird.f32 %v5579
    %vm5589 = vweird.f32 %v5583
    %vm5590 = vmor %vm5588, %vm5589
    %v5591 = vsel %vm5590, %v5583, %v5587
    %v5592 = vand.u32 2147483647, %v5579
    %vm5593 = vcmp.eq.f32.partialorder %v5592, 8.507059e+37
    %v5594 = vand.u32 %v5579, 2147483648
    %v5595 = vor.u32 1.1754944e-38, %v5594
    %v5596 = vsel %vm5593, %v5595, %v5591
    %v5597 = vmul.f32 1.0, %v5596
    %v5598 = vrcp.pop %v5580
    %v5599 = vmul.f32 %v5580, %v5598
    %v5600 = vsub.f32 1.0, %v5599
    %v5601 = vmul.f32 %v5598, %v5600
    %v5602 = vadd.f32 %v5598, %v5601
    %vm5603 = vweird.f32 %v5580
    %vm5604 = vweird.f32 %v5598
    %vm5605 = vmor %vm5603, %vm5604
    %v5606 = vsel %vm5605, %v5598, %v5602
    %v5607 = vand.u32 2147483647, %v5580
    %vm5608 = vcmp.eq.f32.partialorder %v5607, 8.507059e+37
    %v5609 = vand.u32 %v5580, 2147483648
    %v5610 = vor.u32 1.1754944e-38, %v5609
    %v5611 = vsel %vm5608, %v5610, %v5606
    %v5612 = vmul.f32 1.0, %v5611
    %v5613 = vrcp.pop %v5581
    %v5614 = vmul.f32 %v5581, %v5613
    %v5615 = vsub.f32 1.0, %v5614
    %v5616 = vmul.f32 %v5613, %v5615
    %v5617 = vadd.f32 %v5613, %v5616
    %vm5618 = vweird.f32 %v5581
    %vm5619 = vweird.f32 %v5613
    %vm5620 = vmor %vm5618, %vm5619
    %v5621 = vsel %vm5620, %v5613, %v5617
    %v5622 = vand.u32 2147483647, %v5581
    %vm5623 = vcmp.eq.f32.partialorder %v5622, 8.507059e+37
    %v5624 = vand.u32 %v5581, 2147483648
    %v5625 = vor.u32 1.1754944e-38, %v5624
    %v5626 = vsel %vm5623, %v5625, %v5621
    %v5627 = vmul.f32 1.0, %v5626
    %v5628 = vrcp.pop %v5582
    %v5629 = vmul.f32 %v5582, %v5628
    %v5630 = vsub.f32 1.0, %v5629
    %v5631 = vmul.f32 %v5628, %v5630
    %v5632 = vadd.f32 %v5628, %v5631
    %vm5633 = vweird.f32 %v5582
    %vm5634 = vweird.f32 %v5628
    %vm5635 = vmor %vm5633, %vm5634
    %v5636 = vsel %vm5635, %v5628, %v5632
    %v5637 = vand.u32 2147483647, %v5582
    %vm5638 = vcmp.eq.f32.partialorder %v5637, 8.507059e+37
    %v5639 = vand.u32 %v5582, 2147483648
    %v5640 = vor.u32 1.1754944e-38, %v5639
    %v5641 = vsel %vm5638, %v5640, %v5636
    %v5642 = vmul.f32 1.0, %v5641
    %v5643 = vmul.f32 %v5517, %v5157
    %v5644 = vmul.f32 %v5532, %v5158
    %v5645 = vmul.f32 %v5547, %v5159
    %v5646 = vmul.f32 %v5562, %v5160
    %v5647 = vmul.f32 %v5441, %v5563
    %v5648 = vmul.f32 %v5456, %v5564
    %v5649 = vmul.f32 %v5471, %v5565
    %v5650 = vmul.f32 %v5486, %v5566
    %v5651 = vadd.f32 %v5643, %v5647
    %v5652 = vadd.f32 %v5644, %v5648
    %v5653 = vadd.f32 %v5645, %v5649
    %v5654 = vadd.f32 %v5646, %v5650
    %v5655 = vtanh.pop %v5651
    %v5656 = vtanh.pop %v5652
    %v5657 = vtanh.pop %v5653
    %v5658 = vtanh.pop %v5654
    %v5659 = vmul.f32 %v5597, %v5655
    %v5660 = vmul.f32 %v5612, %v5656
    %v5661 = vmul.f32 %v5627, %v5657
    %v5662 = vmul.f32 %v5642, %v5658
    %v5663 = vpack.c.bf16 %v5661, %v5659
    %v5664 = vpack.c.bf16 %v5662, %v5660
    %5665 = vmatpush.bf16.msra.mxu0 %v3983
    %5666 = vmatpush.bf16.msra.mxu0 %v3975
    %5667 = vmatpush.bf16.msra.mxu0 %v3967
    %5668 = vmatpush.bf16.msra.mxu0 %v3959
    %5669 = vmatpush.bf16.msra.mxu0 %v3951
    %5670 = vmatpush.bf16.msra.mxu0 %v3943
    %5671 = vmatpush.bf16.msra.mxu0 %v3935
    %5672 = vmatpush.bf16.msra.mxu0 %v3927
    %5673 = vmatmul.bf16.gmra.mxu0 %v5663
    %v5674 = vpop.f32.mrf.mxu0
    %v5675 = vadd.f32 0.0, %v5674
    %v5676 = vpop.f32.mrf.mxu0
    %v5677 = vadd.f32 0.0, %v5676
    %5678 = vdwg.mxu0
    %5679 = vmatpush.bf16.msra.mxu0 %v4047
    %5680 = vmatpush.bf16.msra.mxu0 %v4039
    %5681 = vmatpush.bf16.msra.mxu0 %v4031
    %5682 = vmatpush.bf16.msra.mxu0 %v4023
    %5683 = vmatpush.bf16.msra.mxu0 %v4015
    %5684 = vmatpush.bf16.msra.mxu0 %v4007
    %5685 = vmatpush.bf16.msra.mxu0 %v3999
    %5686 = vmatpush.bf16.msra.mxu0 %v3991
    %5687 = vmatmul.bf16.gmra.mxu0 %v5664
    %v5688 = vpop.f32.mrf.mxu0
    %v5689 = vadd.f32 %v5675, %v5688
    %v5690 = vpop.f32.mrf.mxu0
    %v5691 = vadd.f32 %v5677, %v5690
    %5692 = vdwg.mxu0
    %5693 = vmatpush.bf16.msra.mxu0 %v3984
    %5694 = vmatpush.bf16.msra.mxu0 %v3976
    %5695 = vmatpush.bf16.msra.mxu0 %v3968
    %5696 = vmatpush.bf16.msra.mxu0 %v3960
    %5697 = vmatpush.bf16.msra.mxu0 %v3952
    %5698 = vmatpush.bf16.msra.mxu0 %v3944
    %5699 = vmatpush.bf16.msra.mxu0 %v3936
    %5700 = vmatpush.bf16.msra.mxu0 %v3928
    %5701 = vmatmul.bf16.gmra.mxu0 %v5663
    %v5702 = vpop.f32.mrf.mxu0
    %v5703 = vadd.f32 0.0, %v5702
    %v5704 = vpop.f32.mrf.mxu0
    %v5705 = vadd.f32 0.0, %v5704
    %5706 = vdwg.mxu0
    %5707 = vmatpush.bf16.msra.mxu0 %v4048
    %5708 = vmatpush.bf16.msra.mxu0 %v4040
    %5709 = vmatpush.bf16.msra.mxu0 %v4032
    %5710 = vmatpush.bf16.msra.mxu0 %v4024
    %5711 = vmatpush.bf16.msra.mxu0 %v4016
    %5712 = vmatpush.bf16.msra.mxu0 %v4008
    %5713 = vmatpush.bf16.msra.mxu0 %v4000
    %5714 = vmatpush.bf16.msra.mxu0 %v3992
    %5715 = vmatmul.bf16.gmra.mxu0 %v5664
    %v5716 = vpop.f32.mrf.mxu0
    %v5717 = vadd.f32 %v5703, %v5716
    %v5718 = vpop.f32.mrf.mxu0
    %v5719 = vadd.f32 %v5705, %v5718
    %5720 = vdwg.mxu0
    %5721 = vmatpush.bf16.msra.mxu0 %v3985
    %5722 = vmatpush.bf16.msra.mxu0 %v3977
    %5723 = vmatpush.bf16.msra.mxu0 %v3969
    %5724 = vmatpush.bf16.msra.mxu0 %v3961
    %5725 = vmatpush.bf16.msra.mxu0 %v3953
    %5726 = vmatpush.bf16.msra.mxu0 %v3945
    %5727 = vmatpush.bf16.msra.mxu0 %v3937
    %5728 = vmatpush.bf16.msra.mxu0 %v3929
    %5729 = vmatmul.bf16.gmra.mxu0 %v5663
    %v5730 = vpop.f32.mrf.mxu0
    %v5731 = vadd.f32 0.0, %v5730
    %v5732 = vpop.f32.mrf.mxu0
    %v5733 = vadd.f32 0.0, %v5732
    %5734 = vdwg.mxu0
    %5735 = vmatpush.bf16.msra.mxu0 %v4049
    %5736 = vmatpush.bf16.msra.mxu0 %v4041
    %5737 = vmatpush.bf16.msra.mxu0 %v4033
    %5738 = vmatpush.bf16.msra.mxu0 %v4025
    %5739 = vmatpush.bf16.msra.mxu0 %v4017
    %5740 = vmatpush.bf16.msra.mxu0 %v4009
    %5741 = vmatpush.bf16.msra.mxu0 %v4001
    %5742 = vmatpush.bf16.msra.mxu0 %v3993
    %5743 = vmatmul.bf16.gmra.mxu0 %v5664
    %v5744 = vpop.f32.mrf.mxu0
    %v5745 = vadd.f32 %v5731, %v5744
    %v5746 = vpop.f32.mrf.mxu0
    %v5747 = vadd.f32 %v5733, %v5746
    %5748 = vdwg.mxu0
    %5749 = vmatpush.bf16.msra.mxu0 %v3986
    %5750 = vmatpush.bf16.msra.mxu0 %v3978
    %5751 = vmatpush.bf16.msra.mxu0 %v3970
    %5752 = vmatpush.bf16.msra.mxu0 %v3962
    %5753 = vmatpush.bf16.msra.mxu0 %v3954
    %5754 = vmatpush.bf16.msra.mxu0 %v3946
    %5755 = vmatpush.bf16.msra.mxu0 %v3938
    %5756 = vmatpush.bf16.msra.mxu0 %v3930
    %5757 = vmatmul.bf16.gmra.mxu0 %v5663
    %v5758 = vpop.f32.mrf.mxu0
    %v5759 = vadd.f32 0.0, %v5758
    %v5760 = vpop.f32.mrf.mxu0
    %v5761 = vadd.f32 0.0, %v5760
    %5762 = vdwg.mxu0
    %5763 = vmatpush.bf16.msra.mxu0 %v4050
    %5764 = vmatpush.bf16.msra.mxu0 %v4042
    %5765 = vmatpush.bf16.msra.mxu0 %v4034
    %5766 = vmatpush.bf16.msra.mxu0 %v4026
    %5767 = vmatpush.bf16.msra.mxu0 %v4018
    %5768 = vmatpush.bf16.msra.mxu0 %v4010
    %5769 = vmatpush.bf16.msra.mxu0 %v4002
    %5770 = vmatpush.bf16.msra.mxu0 %v3994
    %5771 = vmatmul.bf16.gmra.mxu0 %v5664
    %v5772 = vpop.f32.mrf.mxu0
    %v5773 = vadd.f32 %v5759, %v5772
    %v5774 = vpop.f32.mrf.mxu0
    %v5775 = vadd.f32 %v5761, %v5774
    %5776 = vdwg.mxu0
    %5777 = vmatpush.bf16.msra.mxu0 %v3987
    %5778 = vmatpush.bf16.msra.mxu0 %v3979
    %5779 = vmatpush.bf16.msra.mxu0 %v3971
    %5780 = vmatpush.bf16.msra.mxu0 %v3963
    %5781 = vmatpush.bf16.msra.mxu0 %v3955
    %5782 = vmatpush.bf16.msra.mxu0 %v3947
    %5783 = vmatpush.bf16.msra.mxu0 %v3939
    %5784 = vmatpush.bf16.msra.mxu0 %v3931
    %5785 = vmatmul.bf16.gmra.mxu0 %v5663
    %v5786 = vpop.f32.mrf.mxu0
    %v5787 = vadd.f32 0.0, %v5786
    %v5788 = vpop.f32.mrf.mxu0
    %v5789 = vadd.f32 0.0, %v5788
    %5790 = vdwg.mxu0
    %5791 = vmatpush.bf16.msra.mxu0 %v4051
    %5792 = vmatpush.bf16.msra.mxu0 %v4043
    %5793 = vmatpush.bf16.msra.mxu0 %v4035
    %5794 = vmatpush.bf16.msra.mxu0 %v4027
    %5795 = vmatpush.bf16.msra.mxu0 %v4019
    %5796 = vmatpush.bf16.msra.mxu0 %v4011
    %5797 = vmatpush.bf16.msra.mxu0 %v4003
    %5798 = vmatpush.bf16.msra.mxu0 %v3995
    %5799 = vmatmul.bf16.gmra.mxu0 %v5664
    %v5800 = vpop.f32.mrf.mxu0
    %v5801 = vadd.f32 %v5787, %v5800
    %v5802 = vpop.f32.mrf.mxu0
    %v5803 = vadd.f32 %v5789, %v5802
    %5804 = vdwg.mxu0
    %5805 = vmatpush.bf16.msra.mxu0 %v3988
    %5806 = vmatpush.bf16.msra.mxu0 %v3980
    %5807 = vmatpush.bf16.msra.mxu0 %v3972
    %5808 = vmatpush.bf16.msra.mxu0 %v3964
    %5809 = vmatpush.bf16.msra.mxu0 %v3956
    %5810 = vmatpush.bf16.msra.mxu0 %v3948
    %5811 = vmatpush.bf16.msra.mxu0 %v3940
    %5812 = vmatpush.bf16.msra.mxu0 %v3932
    %5813 = vmatmul.bf16.gmra.mxu0 %v5663
    %v5814 = vpop.f32.mrf.mxu0
    %v5815 = vadd.f32 0.0, %v5814
    %v5816 = vpop.f32.mrf.mxu0
    %v5817 = vadd.f32 0.0, %v5816
    %5818 = vdwg.mxu0
    %5819 = vmatpush.bf16.msra.mxu0 %v4052
    %5820 = vmatpush.bf16.msra.mxu0 %v4044
    %5821 = vmatpush.bf16.msra.mxu0 %v4036
    %5822 = vmatpush.bf16.msra.mxu0 %v4028
    %5823 = vmatpush.bf16.msra.mxu0 %v4020
    %5824 = vmatpush.bf16.msra.mxu0 %v4012
    %5825 = vmatpush.bf16.msra.mxu0 %v4004
    %5826 = vmatpush.bf16.msra.mxu0 %v3996
    %5827 = vmatmul.bf16.gmra.mxu0 %v5664
    %v5828 = vpop.f32.mrf.mxu0
    %v5829 = vadd.f32 %v5815, %v5828
    %v5830 = vpop.f32.mrf.mxu0
    %v5831 = vadd.f32 %v5817, %v5830
    %5832 = vdwg.mxu0
    %5833 = vmatpush.bf16.msra.mxu0 %v3989
    %5834 = vmatpush.bf16.msra.mxu0 %v3981
    %5835 = vmatpush.bf16.msra.mxu0 %v3973
    %5836 = vmatpush.bf16.msra.mxu0 %v3965
    %5837 = vmatpush.bf16.msra.mxu0 %v3957
    %5838 = vmatpush.bf16.msra.mxu0 %v3949
    %5839 = vmatpush.bf16.msra.mxu0 %v3941
    %5840 = vmatpush.bf16.msra.mxu0 %v3933
    %5841 = vmatmul.bf16.gmra.mxu0 %v5663
    %v5842 = vpop.f32.mrf.mxu0
    %v5843 = vadd.f32 0.0, %v5842
    %v5844 = vpop.f32.mrf.mxu0
    %v5845 = vadd.f32 0.0, %v5844
    %5846 = vdwg.mxu0
    %5847 = vmatpush.bf16.msra.mxu0 %v4053
    %5848 = vmatpush.bf16.msra.mxu0 %v4045
    %5849 = vmatpush.bf16.msra.mxu0 %v4037
    %5850 = vmatpush.bf16.msra.mxu0 %v4029
    %5851 = vmatpush.bf16.msra.mxu0 %v4021
    %5852 = vmatpush.bf16.msra.mxu0 %v4013
    %5853 = vmatpush.bf16.msra.mxu0 %v4005
    %5854 = vmatpush.bf16.msra.mxu0 %v3997
    %5855 = vmatmul.bf16.gmra.mxu0 %v5664
    %v5856 = vpop.f32.mrf.mxu0
    %v5857 = vadd.f32 %v5843, %v5856
    %v5858 = vpop.f32.mrf.mxu0
    %v5859 = vadd.f32 %v5845, %v5858
    %5860 = vdwg.mxu0
    %5861 = vmatpush.bf16.msra.mxu0 %v3990
    %5862 = vmatpush.bf16.msra.mxu0 %v3982
    %5863 = vmatpush.bf16.msra.mxu0 %v3974
    %5864 = vmatpush.bf16.msra.mxu0 %v3966
    %5865 = vmatpush.bf16.msra.mxu0 %v3958
    %5866 = vmatpush.bf16.msra.mxu0 %v3950
    %5867 = vmatpush.bf16.msra.mxu0 %v3942
    %5868 = vmatpush.bf16.msra.mxu0 %v3934
    %5869 = vmatmul.bf16.gmra.mxu0 %v5663
    %v5870 = vpop.f32.mrf.mxu0
    %v5871 = vadd.f32 0.0, %v5870
    %v5872 = vpop.f32.mrf.mxu0
    %v5873 = vadd.f32 0.0, %v5872
    %5874 = vdwg.mxu0
    %5875 = vmatpush.bf16.msra.mxu0 %v4054
    %5876 = vmatpush.bf16.msra.mxu0 %v4046
    %5877 = vmatpush.bf16.msra.mxu0 %v4038
    %5878 = vmatpush.bf16.msra.mxu0 %v4030
    %5879 = vmatpush.bf16.msra.mxu0 %v4022
    %5880 = vmatpush.bf16.msra.mxu0 %v4014
    %5881 = vmatpush.bf16.msra.mxu0 %v4006
    %5882 = vmatpush.bf16.msra.mxu0 %v3998
    %5883 = vmatmul.bf16.gmra.mxu0 %v5664
    %v5884 = vpop.f32.mrf.mxu0
    %v5885 = vadd.f32 %v5871, %v5884
    %v5886 = vpop.f32.mrf.mxu0
    %v5887 = vadd.f32 %v5873, %v5886
    %5888 = vdwg.mxu0
    %v5889 = vadd.f32 %v2019, %v5689
    %v5890 = vadd.f32 %v2215, %v5717
    %v5891 = vadd.f32 %v2411, %v5745
    %v5892 = vadd.f32 %v2607, %v5773
    %v5893 = vadd.f32 %v2803, %v5801
    %v5894 = vadd.f32 %v2999, %v5829
    %v5895 = vadd.f32 %v3195, %v5857
    %v5896 = vadd.f32 %v3391, %v5885
    %v5897 = vadd.f32 %v2021, %v5691
    %v5898 = vadd.f32 %v2217, %v5719
    %v5899 = vadd.f32 %v2413, %v5747
    %v5900 = vadd.f32 %v2609, %v5775
    %v5901 = vadd.f32 %v2805, %v5803
    %v5902 = vadd.f32 %v3001, %v5831
    %v5903 = vadd.f32 %v3197, %v5859
    %v5904 = vadd.f32 %v3393, %v5887
    %v5905 = vxor.u32 %v5889, 2147483648
    %v5906 = vxor.u32 %v5890, 2147483648
    %v5907 = vxor.u32 %v5897, 2147483648
    %v5908 = vxor.u32 %v5898, 2147483648
    %v5909 = vmul.f32 %v5905, 1.442695
    %v5910 = vpow.pop %v5909
    %v5911 = vmul.f32 %v5906, 1.442695
    %v5912 = vpow.pop %v5911
    %v5913 = vmul.f32 %v5907, 1.442695
    %v5914 = vpow.pop %v5913
    %v5915 = vmul.f32 %v5908, 1.442695
    %v5916 = vpow.pop %v5915
    %v5917 = vadd.f32 %v5910, 1.0
    %v5918 = vadd.f32 %v5912, 1.0
    %v5919 = vadd.f32 %v5914, 1.0
    %v5920 = vadd.f32 %v5916, 1.0
    %v5921 = vrcp.pop %v5917
    %v5922 = vmul.f32 %v5917, %v5921
    %v5923 = vsub.f32 1.0, %v5922
    %v5924 = vmul.f32 %v5921, %v5923
    %v5925 = vadd.f32 %v5921, %v5924
    %vm5926 = vweird.f32 %v5917
    %vm5927 = vweird.f32 %v5921
    %vm5928 = vmor %vm5926, %vm5927
    %v5929 = vsel %vm5928, %v5921, %v5925
    %v5930 = vand.u32 2147483647, %v5917
    %vm5931 = vcmp.eq.f32.partialorder %v5930, 8.507059e+37
    %v5932 = vand.u32 %v5917, 2147483648
    %v5933 = vor.u32 1.1754944e-38, %v5932
    %v5934 = vsel %vm5931, %v5933, %v5929
    %v5935 = vmul.f32 1.0, %v5934
    %v5936 = vrcp.pop %v5918
    %v5937 = vmul.f32 %v5918, %v5936
    %v5938 = vsub.f32 1.0, %v5937
    %v5939 = vmul.f32 %v5936, %v5938
    %v5940 = vadd.f32 %v5936, %v5939
    %vm5941 = vweird.f32 %v5918
    %vm5942 = vweird.f32 %v5936
    %vm5943 = vmor %vm5941, %vm5942
    %v5944 = vsel %vm5943, %v5936, %v5940
    %v5945 = vand.u32 2147483647, %v5918
    %vm5946 = vcmp.eq.f32.partialorder %v5945, 8.507059e+37
    %v5947 = vand.u32 %v5918, 2147483648
    %v5948 = vor.u32 1.1754944e-38, %v5947
    %v5949 = vsel %vm5946, %v5948, %v5944
    %v5950 = vmul.f32 1.0, %v5949
    %v5951 = vrcp.pop %v5919
    %v5952 = vmul.f32 %v5919, %v5951
    %v5953 = vsub.f32 1.0, %v5952
    %v5954 = vmul.f32 %v5951, %v5953
    %v5955 = vadd.f32 %v5951, %v5954
    %vm5956 = vweird.f32 %v5919
    %vm5957 = vweird.f32 %v5951
    %vm5958 = vmor %vm5956, %vm5957
    %v5959 = vsel %vm5958, %v5951, %v5955
    %v5960 = vand.u32 2147483647, %v5919
    %vm5961 = vcmp.eq.f32.partialorder %v5960, 8.507059e+37
    %v5962 = vand.u32 %v5919, 2147483648
    %v5963 = vor.u32 1.1754944e-38, %v5962
    %v5964 = vsel %vm5961, %v5963, %v5959
    %v5965 = vmul.f32 1.0, %v5964
    %v5966 = vrcp.pop %v5920
    %v5967 = vmul.f32 %v5920, %v5966
    %v5968 = vsub.f32 1.0, %v5967
    %v5969 = vmul.f32 %v5966, %v5968
    %v5970 = vadd.f32 %v5966, %v5969
    %vm5971 = vweird.f32 %v5920
    %vm5972 = vweird.f32 %v5966
    %vm5973 = vmor %vm5971, %vm5972
    %v5974 = vsel %vm5973, %v5966, %v5970
    %v5975 = vand.u32 2147483647, %v5920
    %vm5976 = vcmp.eq.f32.partialorder %v5975, 8.507059e+37
    %v5977 = vand.u32 %v5920, 2147483648
    %v5978 = vor.u32 1.1754944e-38, %v5977
    %v5979 = vsel %vm5976, %v5978, %v5974
    %v5980 = vmul.f32 1.0, %v5979
    %v5981 = vxor.u32 %v5891, 2147483648
    %v5982 = vxor.u32 %v5892, 2147483648
    %v5983 = vxor.u32 %v5899, 2147483648
    %v5984 = vxor.u32 %v5900, 2147483648
    %v5985 = vmul.f32 %v5981, 1.442695
    %v5986 = vpow.pop %v5985
    %v5987 = vmul.f32 %v5982, 1.442695
    %v5988 = vpow.pop %v5987
    %v5989 = vmul.f32 %v5983, 1.442695
    %v5990 = vpow.pop %v5989
    %v5991 = vmul.f32 %v5984, 1.442695
    %v5992 = vpow.pop %v5991
    %v5993 = vadd.f32 %v5986, 1.0
    %v5994 = vadd.f32 %v5988, 1.0
    %v5995 = vadd.f32 %v5990, 1.0
    %v5996 = vadd.f32 %v5992, 1.0
    %v5997 = vrcp.pop %v5993
    %v5998 = vmul.f32 %v5993, %v5997
    %v5999 = vsub.f32 1.0, %v5998
    %v6000 = vmul.f32 %v5997, %v5999
    %v6001 = vadd.f32 %v5997, %v6000
    %vm6002 = vweird.f32 %v5993
    %vm6003 = vweird.f32 %v5997
    %vm6004 = vmor %vm6002, %vm6003
    %v6005 = vsel %vm6004, %v5997, %v6001
    %v6006 = vand.u32 2147483647, %v5993
    %vm6007 = vcmp.eq.f32.partialorder %v6006, 8.507059e+37
    %v6008 = vand.u32 %v5993, 2147483648
    %v6009 = vor.u32 1.1754944e-38, %v6008
    %v6010 = vsel %vm6007, %v6009, %v6005
    %v6011 = vmul.f32 1.0, %v6010
    %v6012 = vrcp.pop %v5994
    %v6013 = vmul.f32 %v5994, %v6012
    %v6014 = vsub.f32 1.0, %v6013
    %v6015 = vmul.f32 %v6012, %v6014
    %v6016 = vadd.f32 %v6012, %v6015
    %vm6017 = vweird.f32 %v5994
    %vm6018 = vweird.f32 %v6012
    %vm6019 = vmor %vm6017, %vm6018
    %v6020 = vsel %vm6019, %v6012, %v6016
    %v6021 = vand.u32 2147483647, %v5994
    %vm6022 = vcmp.eq.f32.partialorder %v6021, 8.507059e+37
    %v6023 = vand.u32 %v5994, 2147483648
    %v6024 = vor.u32 1.1754944e-38, %v6023
    %v6025 = vsel %vm6022, %v6024, %v6020
    %v6026 = vmul.f32 1.0, %v6025
    %v6027 = vrcp.pop %v5995
    %v6028 = vmul.f32 %v5995, %v6027
    %v6029 = vsub.f32 1.0, %v6028
    %v6030 = vmul.f32 %v6027, %v6029
    %v6031 = vadd.f32 %v6027, %v6030
    %vm6032 = vweird.f32 %v5995
    %vm6033 = vweird.f32 %v6027
    %vm6034 = vmor %vm6032, %vm6033
    %v6035 = vsel %vm6034, %v6027, %v6031
    %v6036 = vand.u32 2147483647, %v5995
    %vm6037 = vcmp.eq.f32.partialorder %v6036, 8.507059e+37
    %v6038 = vand.u32 %v5995, 2147483648
    %v6039 = vor.u32 1.1754944e-38, %v6038
    %v6040 = vsel %vm6037, %v6039, %v6035
    %v6041 = vmul.f32 1.0, %v6040
    %v6042 = vrcp.pop %v5996
    %v6043 = vmul.f32 %v5996, %v6042
    %v6044 = vsub.f32 1.0, %v6043
    %v6045 = vmul.f32 %v6042, %v6044
    %v6046 = vadd.f32 %v6042, %v6045
    %vm6047 = vweird.f32 %v5996
    %vm6048 = vweird.f32 %v6042
    %vm6049 = vmor %vm6047, %vm6048
    %v6050 = vsel %vm6049, %v6042, %v6046
    %v6051 = vand.u32 2147483647, %v5996
    %vm6052 = vcmp.eq.f32.partialorder %v6051, 8.507059e+37
    %v6053 = vand.u32 %v5996, 2147483648
    %v6054 = vor.u32 1.1754944e-38, %v6053
    %v6055 = vsel %vm6052, %v6054, %v6050
    %v6056 = vmul.f32 1.0, %v6055
    %v6057 = vtanh.pop %v5893
    %v6058 = vtanh.pop %v5894
    %v6059 = vtanh.pop %v5901
    %v6060 = vtanh.pop %v5902
    %v6061 = vxor.u32 %v5895, 2147483648
    %v6062 = vxor.u32 %v5896, 2147483648
    %v6063 = vxor.u32 %v5903, 2147483648
    %v6064 = vxor.u32 %v5904, 2147483648
    %v6065 = vmul.f32 %v6061, 1.442695
    %v6066 = vpow.pop %v6065
    %v6067 = vmul.f32 %v6062, 1.442695
    %v6068 = vpow.pop %v6067
    %v6069 = vmul.f32 %v6063, 1.442695
    %v6070 = vpow.pop %v6069
    %v6071 = vmul.f32 %v6064, 1.442695
    %v6072 = vpow.pop %v6071
    %v6073 = vadd.f32 %v6066, 1.0
    %v6074 = vadd.f32 %v6068, 1.0
    %v6075 = vadd.f32 %v6070, 1.0
    %v6076 = vadd.f32 %v6072, 1.0
    %v6077 = vrcp.pop %v6073
    %v6078 = vmul.f32 %v6073, %v6077
    %v6079 = vsub.f32 1.0, %v6078
    %v6080 = vmul.f32 %v6077, %v6079
    %v6081 = vadd.f32 %v6077, %v6080
    %vm6082 = vweird.f32 %v6073
    %vm6083 = vweird.f32 %v6077
    %vm6084 = vmor %vm6082, %vm6083
    %v6085 = vsel %vm6084, %v6077, %v6081
    %v6086 = vand.u32 2147483647, %v6073
    %vm6087 = vcmp.eq.f32.partialorder %v6086, 8.507059e+37
    %v6088 = vand.u32 %v6073, 2147483648
    %v6089 = vor.u32 1.1754944e-38, %v6088
    %v6090 = vsel %vm6087, %v6089, %v6085
    %v6091 = vmul.f32 1.0, %v6090
    %v6092 = vrcp.pop %v6074
    %v6093 = vmul.f32 %v6074, %v6092
    %v6094 = vsub.f32 1.0, %v6093
    %v6095 = vmul.f32 %v6092, %v6094
    %v6096 = vadd.f32 %v6092, %v6095
    %vm6097 = vweird.f32 %v6074
    %vm6098 = vweird.f32 %v6092
    %vm6099 = vmor %vm6097, %vm6098
    %v6100 = vsel %vm6099, %v6092, %v6096
    %v6101 = vand.u32 2147483647, %v6074
    %vm6102 = vcmp.eq.f32.partialorder %v6101, 8.507059e+37
    %v6103 = vand.u32 %v6074, 2147483648
    %v6104 = vor.u32 1.1754944e-38, %v6103
    %v6105 = vsel %vm6102, %v6104, %v6100
    %v6106 = vmul.f32 1.0, %v6105
    %v6107 = vrcp.pop %v6075
    %v6108 = vmul.f32 %v6075, %v6107
    %v6109 = vsub.f32 1.0, %v6108
    %v6110 = vmul.f32 %v6107, %v6109
    %v6111 = vadd.f32 %v6107, %v6110
    %vm6112 = vweird.f32 %v6075
    %vm6113 = vweird.f32 %v6107
    %vm6114 = vmor %vm6112, %vm6113
    %v6115 = vsel %vm6114, %v6107, %v6111
    %v6116 = vand.u32 2147483647, %v6075
    %vm6117 = vcmp.eq.f32.partialorder %v6116, 8.507059e+37
    %v6118 = vand.u32 %v6075, 2147483648
    %v6119 = vor.u32 1.1754944e-38, %v6118
    %v6120 = vsel %vm6117, %v6119, %v6115
    %v6121 = vmul.f32 1.0, %v6120
    %v6122 = vrcp.pop %v6076
    %v6123 = vmul.f32 %v6076, %v6122
    %v6124 = vsub.f32 1.0, %v6123
    %v6125 = vmul.f32 %v6122, %v6124
    %v6126 = vadd.f32 %v6122, %v6125
    %vm6127 = vweird.f32 %v6076
    %vm6128 = vweird.f32 %v6122
    %vm6129 = vmor %vm6127, %vm6128
    %v6130 = vsel %vm6129, %v6122, %v6126
    %v6131 = vand.u32 2147483647, %v6076
    %vm6132 = vcmp.eq.f32.partialorder %v6131, 8.507059e+37
    %v6133 = vand.u32 %v6076, 2147483648
    %v6134 = vor.u32 1.1754944e-38, %v6133
    %v6135 = vsel %vm6132, %v6134, %v6130
    %v6136 = vmul.f32 1.0, %v6135
    %v6137 = vmul.f32 %v6011, %v5651
    %v6138 = vmul.f32 %v6026, %v5652
    %v6139 = vmul.f32 %v6041, %v5653
    %v6140 = vmul.f32 %v6056, %v5654
    %v6141 = vmul.f32 %v5935, %v6057
    %v6142 = vmul.f32 %v5950, %v6058
    %v6143 = vmul.f32 %v5965, %v6059
    %v6144 = vmul.f32 %v5980, %v6060
    %v6145 = vadd.f32 %v6137, %v6141
    %v6146 = vadd.f32 %v6138, %v6142
    %v6147 = vadd.f32 %v6139, %v6143
    %v6148 = vadd.f32 %v6140, %v6144
    %v6149 = vtanh.pop %v6145
    %v6150 = vtanh.pop %v6146
    %v6151 = vtanh.pop %v6147
    %v6152 = vtanh.pop %v6148
    %v6153 = vmul.f32 %v6091, %v6149
    %v6154 = vmul.f32 %v6106, %v6150
    %v6155 = vmul.f32 %v6121, %v6151
    %v6156 = vmul.f32 %v6136, %v6152
    %v6157 = vpack.c.bf16 %v6155, %v6153
    %v6158 = vpack.c.bf16 %v6156, %v6154
    %6159 = vmatpush.bf16.msra.mxu0 %v3983
    %6160 = vmatpush.bf16.msra.mxu0 %v3975
    %6161 = vmatpush.bf16.msra.mxu0 %v3967
    %6162 = vmatpush.bf16.msra.mxu0 %v3959
    %6163 = vmatpush.bf16.msra.mxu0 %v3951
    %6164 = vmatpush.bf16.msra.mxu0 %v3943
    %6165 = vmatpush.bf16.msra.mxu0 %v3935
    %6166 = vmatpush.bf16.msra.mxu0 %v3927
    %6167 = vmatmul.bf16.gmra.mxu0 %v6157
    %v6168 = vpop.f32.mrf.mxu0
    %v6169 = vadd.f32 0.0, %v6168
    %v6170 = vpop.f32.mrf.mxu0
    %v6171 = vadd.f32 0.0, %v6170
    %6172 = vdwg.mxu0
    %6173 = vmatpush.bf16.msra.mxu0 %v4047
    %6174 = vmatpush.bf16.msra.mxu0 %v4039
    %6175 = vmatpush.bf16.msra.mxu0 %v4031
    %6176 = vmatpush.bf16.msra.mxu0 %v4023
    %6177 = vmatpush.bf16.msra.mxu0 %v4015
    %6178 = vmatpush.bf16.msra.mxu0 %v4007
    %6179 = vmatpush.bf16.msra.mxu0 %v3999
    %6180 = vmatpush.bf16.msra.mxu0 %v3991
    %6181 = vmatmul.bf16.gmra.mxu0 %v6158
    %v6182 = vpop.f32.mrf.mxu0
    %v6183 = vadd.f32 %v6169, %v6182
    %v6184 = vpop.f32.mrf.mxu0
    %v6185 = vadd.f32 %v6171, %v6184
    %6186 = vdwg.mxu0
    %6187 = vmatpush.bf16.msra.mxu0 %v3984
    %6188 = vmatpush.bf16.msra.mxu0 %v3976
    %6189 = vmatpush.bf16.msra.mxu0 %v3968
    %6190 = vmatpush.bf16.msra.mxu0 %v3960
    %6191 = vmatpush.bf16.msra.mxu0 %v3952
    %6192 = vmatpush.bf16.msra.mxu0 %v3944
    %6193 = vmatpush.bf16.msra.mxu0 %v3936
    %6194 = vmatpush.bf16.msra.mxu0 %v3928
    %6195 = vmatmul.bf16.gmra.mxu0 %v6157
    %v6196 = vpop.f32.mrf.mxu0
    %v6197 = vadd.f32 0.0, %v6196
    %v6198 = vpop.f32.mrf.mxu0
    %v6199 = vadd.f32 0.0, %v6198
    %6200 = vdwg.mxu0
    %6201 = vmatpush.bf16.msra.mxu0 %v4048
    %6202 = vmatpush.bf16.msra.mxu0 %v4040
    %6203 = vmatpush.bf16.msra.mxu0 %v4032
    %6204 = vmatpush.bf16.msra.mxu0 %v4024
    %6205 = vmatpush.bf16.msra.mxu0 %v4016
    %6206 = vmatpush.bf16.msra.mxu0 %v4008
    %6207 = vmatpush.bf16.msra.mxu0 %v4000
    %6208 = vmatpush.bf16.msra.mxu0 %v3992
    %6209 = vmatmul.bf16.gmra.mxu0 %v6158
    %v6210 = vpop.f32.mrf.mxu0
    %v6211 = vadd.f32 %v6197, %v6210
    %v6212 = vpop.f32.mrf.mxu0
    %v6213 = vadd.f32 %v6199, %v6212
    %6214 = vdwg.mxu0
    %6215 = vmatpush.bf16.msra.mxu0 %v3985
    %6216 = vmatpush.bf16.msra.mxu0 %v3977
    %6217 = vmatpush.bf16.msra.mxu0 %v3969
    %6218 = vmatpush.bf16.msra.mxu0 %v3961
    %6219 = vmatpush.bf16.msra.mxu0 %v3953
    %6220 = vmatpush.bf16.msra.mxu0 %v3945
    %6221 = vmatpush.bf16.msra.mxu0 %v3937
    %6222 = vmatpush.bf16.msra.mxu0 %v3929
    %6223 = vmatmul.bf16.gmra.mxu0 %v6157
    %v6224 = vpop.f32.mrf.mxu0
    %v6225 = vadd.f32 0.0, %v6224
    %v6226 = vpop.f32.mrf.mxu0
    %v6227 = vadd.f32 0.0, %v6226
    %6228 = vdwg.mxu0
    %6229 = vmatpush.bf16.msra.mxu0 %v4049
    %6230 = vmatpush.bf16.msra.mxu0 %v4041
    %6231 = vmatpush.bf16.msra.mxu0 %v4033
    %6232 = vmatpush.bf16.msra.mxu0 %v4025
    %6233 = vmatpush.bf16.msra.mxu0 %v4017
    %6234 = vmatpush.bf16.msra.mxu0 %v4009
    %6235 = vmatpush.bf16.msra.mxu0 %v4001
    %6236 = vmatpush.bf16.msra.mxu0 %v3993
    %6237 = vmatmul.bf16.gmra.mxu0 %v6158
    %v6238 = vpop.f32.mrf.mxu0
    %v6239 = vadd.f32 %v6225, %v6238
    %v6240 = vpop.f32.mrf.mxu0
    %v6241 = vadd.f32 %v6227, %v6240
    %6242 = vdwg.mxu0
    %6243 = vmatpush.bf16.msra.mxu0 %v3986
    %6244 = vmatpush.bf16.msra.mxu0 %v3978
    %6245 = vmatpush.bf16.msra.mxu0 %v3970
    %6246 = vmatpush.bf16.msra.mxu0 %v3962
    %6247 = vmatpush.bf16.msra.mxu0 %v3954
    %6248 = vmatpush.bf16.msra.mxu0 %v3946
    %6249 = vmatpush.bf16.msra.mxu0 %v3938
    %6250 = vmatpush.bf16.msra.mxu0 %v3930
    %6251 = vmatmul.bf16.gmra.mxu0 %v6157
    %v6252 = vpop.f32.mrf.mxu0
    %v6253 = vadd.f32 0.0, %v6252
    %v6254 = vpop.f32.mrf.mxu0
    %v6255 = vadd.f32 0.0, %v6254
    %6256 = vdwg.mxu0
    %6257 = vmatpush.bf16.msra.mxu0 %v4050
    %6258 = vmatpush.bf16.msra.mxu0 %v4042
    %6259 = vmatpush.bf16.msra.mxu0 %v4034
    %6260 = vmatpush.bf16.msra.mxu0 %v4026
    %6261 = vmatpush.bf16.msra.mxu0 %v4018
    %6262 = vmatpush.bf16.msra.mxu0 %v4010
    %6263 = vmatpush.bf16.msra.mxu0 %v4002
    %6264 = vmatpush.bf16.msra.mxu0 %v3994
    %6265 = vmatmul.bf16.gmra.mxu0 %v6158
    %v6266 = vpop.f32.mrf.mxu0
    %v6267 = vadd.f32 %v6253, %v6266
    %v6268 = vpop.f32.mrf.mxu0
    %v6269 = vadd.f32 %v6255, %v6268
    %6270 = vdwg.mxu0
    %6271 = vmatpush.bf16.msra.mxu0 %v3987
    %6272 = vmatpush.bf16.msra.mxu0 %v3979
    %6273 = vmatpush.bf16.msra.mxu0 %v3971
    %6274 = vmatpush.bf16.msra.mxu0 %v3963
    %6275 = vmatpush.bf16.msra.mxu0 %v3955
    %6276 = vmatpush.bf16.msra.mxu0 %v3947
    %6277 = vmatpush.bf16.msra.mxu0 %v3939
    %6278 = vmatpush.bf16.msra.mxu0 %v3931
    %6279 = vmatmul.bf16.gmra.mxu0 %v6157
    %v6280 = vpop.f32.mrf.mxu0
    %v6281 = vadd.f32 0.0, %v6280
    %v6282 = vpop.f32.mrf.mxu0
    %v6283 = vadd.f32 0.0, %v6282
    %6284 = vdwg.mxu0
    %6285 = vmatpush.bf16.msra.mxu0 %v4051
    %6286 = vmatpush.bf16.msra.mxu0 %v4043
    %6287 = vmatpush.bf16.msra.mxu0 %v4035
    %6288 = vmatpush.bf16.msra.mxu0 %v4027
    %6289 = vmatpush.bf16.msra.mxu0 %v4019
    %6290 = vmatpush.bf16.msra.mxu0 %v4011
    %6291 = vmatpush.bf16.msra.mxu0 %v4003
    %6292 = vmatpush.bf16.msra.mxu0 %v3995
    %6293 = vmatmul.bf16.gmra.mxu0 %v6158
    %v6294 = vpop.f32.mrf.mxu0
    %v6295 = vadd.f32 %v6281, %v6294
    %v6296 = vpop.f32.mrf.mxu0
    %v6297 = vadd.f32 %v6283, %v6296
    %6298 = vdwg.mxu0
    %6299 = vmatpush.bf16.msra.mxu0 %v3988
    %6300 = vmatpush.bf16.msra.mxu0 %v3980
    %6301 = vmatpush.bf16.msra.mxu0 %v3972
    %6302 = vmatpush.bf16.msra.mxu0 %v3964
    %6303 = vmatpush.bf16.msra.mxu0 %v3956
    %6304 = vmatpush.bf16.msra.mxu0 %v3948
    %6305 = vmatpush.bf16.msra.mxu0 %v3940
    %6306 = vmatpush.bf16.msra.mxu0 %v3932
    %6307 = vmatmul.bf16.gmra.mxu0 %v6157
    %v6308 = vpop.f32.mrf.mxu0
    %v6309 = vadd.f32 0.0, %v6308
    %v6310 = vpop.f32.mrf.mxu0
    %v6311 = vadd.f32 0.0, %v6310
    %6312 = vdwg.mxu0
    %6313 = vmatpush.bf16.msra.mxu0 %v4052
    %6314 = vmatpush.bf16.msra.mxu0 %v4044
    %6315 = vmatpush.bf16.msra.mxu0 %v4036
    %6316 = vmatpush.bf16.msra.mxu0 %v4028
    %6317 = vmatpush.bf16.msra.mxu0 %v4020
    %6318 = vmatpush.bf16.msra.mxu0 %v4012
    %6319 = vmatpush.bf16.msra.mxu0 %v4004
    %6320 = vmatpush.bf16.msra.mxu0 %v3996
    %6321 = vmatmul.bf16.gmra.mxu0 %v6158
    %v6322 = vpop.f32.mrf.mxu0
    %v6323 = vadd.f32 %v6309, %v6322
    %v6324 = vpop.f32.mrf.mxu0
    %v6325 = vadd.f32 %v6311, %v6324
    %6326 = vdwg.mxu0
    %6327 = vmatpush.bf16.msra.mxu0 %v3989
    %6328 = vmatpush.bf16.msra.mxu0 %v3981
    %6329 = vmatpush.bf16.msra.mxu0 %v3973
    %6330 = vmatpush.bf16.msra.mxu0 %v3965
    %6331 = vmatpush.bf16.msra.mxu0 %v3957
    %6332 = vmatpush.bf16.msra.mxu0 %v3949
    %6333 = vmatpush.bf16.msra.mxu0 %v3941
    %6334 = vmatpush.bf16.msra.mxu0 %v3933
    %6335 = vmatmul.bf16.gmra.mxu0 %v6157
    %v6336 = vpop.f32.mrf.mxu0
    %v6337 = vadd.f32 0.0, %v6336
    %v6338 = vpop.f32.mrf.mxu0
    %v6339 = vadd.f32 0.0, %v6338
    %6340 = vdwg.mxu0
    %6341 = vmatpush.bf16.msra.mxu0 %v4053
    %6342 = vmatpush.bf16.msra.mxu0 %v4045
    %6343 = vmatpush.bf16.msra.mxu0 %v4037
    %6344 = vmatpush.bf16.msra.mxu0 %v4029
    %6345 = vmatpush.bf16.msra.mxu0 %v4021
    %6346 = vmatpush.bf16.msra.mxu0 %v4013
    %6347 = vmatpush.bf16.msra.mxu0 %v4005
    %6348 = vmatpush.bf16.msra.mxu0 %v3997
    %6349 = vmatmul.bf16.gmra.mxu0 %v6158
    %v6350 = vpop.f32.mrf.mxu0
    %v6351 = vadd.f32 %v6337, %v6350
    %v6352 = vpop.f32.mrf.mxu0
    %v6353 = vadd.f32 %v6339, %v6352
    %6354 = vdwg.mxu0
    %6355 = vmatpush.bf16.msra.mxu0 %v3990
    %6356 = vmatpush.bf16.msra.mxu0 %v3982
    %6357 = vmatpush.bf16.msra.mxu0 %v3974
    %6358 = vmatpush.bf16.msra.mxu0 %v3966
    %6359 = vmatpush.bf16.msra.mxu0 %v3958
    %6360 = vmatpush.bf16.msra.mxu0 %v3950
    %6361 = vmatpush.bf16.msra.mxu0 %v3942
    %6362 = vmatpush.bf16.msra.mxu0 %v3934
    %6363 = vmatmul.bf16.gmra.mxu0 %v6157
    %v6364 = vpop.f32.mrf.mxu0
    %v6365 = vadd.f32 0.0, %v6364
    %v6366 = vpop.f32.mrf.mxu0
    %v6367 = vadd.f32 0.0, %v6366
    %6368 = vdwg.mxu0
    %6369 = vmatpush.bf16.msra.mxu0 %v4054
    %6370 = vmatpush.bf16.msra.mxu0 %v4046
    %6371 = vmatpush.bf16.msra.mxu0 %v4038
    %6372 = vmatpush.bf16.msra.mxu0 %v4030
    %6373 = vmatpush.bf16.msra.mxu0 %v4022
    %6374 = vmatpush.bf16.msra.mxu0 %v4014
    %6375 = vmatpush.bf16.msra.mxu0 %v4006
    %6376 = vmatpush.bf16.msra.mxu0 %v3998
    %6377 = vmatmul.bf16.gmra.mxu0 %v6158
    %v6378 = vpop.f32.mrf.mxu0
    %v6379 = vadd.f32 %v6365, %v6378
    %v6380 = vpop.f32.mrf.mxu0
    %v6381 = vadd.f32 %v6367, %v6380
    %6382 = vdwg.mxu0
    %v6383 = vadd.f32 %v2024, %v6183
    %v6384 = vadd.f32 %v2220, %v6211
    %v6385 = vadd.f32 %v2416, %v6239
    %v6386 = vadd.f32 %v2612, %v6267
    %v6387 = vadd.f32 %v2808, %v6295
    %v6388 = vadd.f32 %v3004, %v6323
    %v6389 = vadd.f32 %v3200, %v6351
    %v6390 = vadd.f32 %v3396, %v6379
    %v6391 = vadd.f32 %v2026, %v6185
    %v6392 = vadd.f32 %v2222, %v6213
    %v6393 = vadd.f32 %v2418, %v6241
    %v6394 = vadd.f32 %v2614, %v6269
    %v6395 = vadd.f32 %v2810, %v6297
    %v6396 = vadd.f32 %v3006, %v6325
    %v6397 = vadd.f32 %v3202, %v6353
    %v6398 = vadd.f32 %v3398, %v6381
    %v6399 = vxor.u32 %v6383, 2147483648
    %v6400 = vxor.u32 %v6384, 2147483648
    %v6401 = vxor.u32 %v6391, 2147483648
    %v6402 = vxor.u32 %v6392, 2147483648
    %v6403 = vmul.f32 %v6399, 1.442695
    %v6404 = vpow.pop %v6403
    %v6405 = vmul.f32 %v6400, 1.442695
    %v6406 = vpow.pop %v6405
    %v6407 = vmul.f32 %v6401, 1.442695
    %v6408 = vpow.pop %v6407
    %v6409 = vmul.f32 %v6402, 1.442695
    %v6410 = vpow.pop %v6409
    %v6411 = vadd.f32 %v6404, 1.0
    %v6412 = vadd.f32 %v6406, 1.0
    %v6413 = vadd.f32 %v6408, 1.0
    %v6414 = vadd.f32 %v6410, 1.0
    %v6415 = vrcp.pop %v6411
    %v6416 = vmul.f32 %v6411, %v6415
    %v6417 = vsub.f32 1.0, %v6416
    %v6418 = vmul.f32 %v6415, %v6417
    %v6419 = vadd.f32 %v6415, %v6418
    %vm6420 = vweird.f32 %v6411
    %vm6421 = vweird.f32 %v6415
    %vm6422 = vmor %vm6420, %vm6421
    %v6423 = vsel %vm6422, %v6415, %v6419
    %v6424 = vand.u32 2147483647, %v6411
    %vm6425 = vcmp.eq.f32.partialorder %v6424, 8.507059e+37
    %v6426 = vand.u32 %v6411, 2147483648
    %v6427 = vor.u32 1.1754944e-38, %v6426
    %v6428 = vsel %vm6425, %v6427, %v6423
    %v6429 = vmul.f32 1.0, %v6428
    %v6430 = vrcp.pop %v6412
    %v6431 = vmul.f32 %v6412, %v6430
    %v6432 = vsub.f32 1.0, %v6431
    %v6433 = vmul.f32 %v6430, %v6432
    %v6434 = vadd.f32 %v6430, %v6433
    %vm6435 = vweird.f32 %v6412
    %vm6436 = vweird.f32 %v6430
    %vm6437 = vmor %vm6435, %vm6436
    %v6438 = vsel %vm6437, %v6430, %v6434
    %v6439 = vand.u32 2147483647, %v6412
    %vm6440 = vcmp.eq.f32.partialorder %v6439, 8.507059e+37
    %v6441 = vand.u32 %v6412, 2147483648
    %v6442 = vor.u32 1.1754944e-38, %v6441
    %v6443 = vsel %vm6440, %v6442, %v6438
    %v6444 = vmul.f32 1.0, %v6443
    %v6445 = vrcp.pop %v6413
    %v6446 = vmul.f32 %v6413, %v6445
    %v6447 = vsub.f32 1.0, %v6446
    %v6448 = vmul.f32 %v6445, %v6447
    %v6449 = vadd.f32 %v6445, %v6448
    %vm6450 = vweird.f32 %v6413
    %vm6451 = vweird.f32 %v6445
    %vm6452 = vmor %vm6450, %vm6451
    %v6453 = vsel %vm6452, %v6445, %v6449
    %v6454 = vand.u32 2147483647, %v6413
    %vm6455 = vcmp.eq.f32.partialorder %v6454, 8.507059e+37
    %v6456 = vand.u32 %v6413, 2147483648
    %v6457 = vor.u32 1.1754944e-38, %v6456
    %v6458 = vsel %vm6455, %v6457, %v6453
    %v6459 = vmul.f32 1.0, %v6458
    %v6460 = vrcp.pop %v6414
    %v6461 = vmul.f32 %v6414, %v6460
    %v6462 = vsub.f32 1.0, %v6461
    %v6463 = vmul.f32 %v6460, %v6462
    %v6464 = vadd.f32 %v6460, %v6463
    %vm6465 = vweird.f32 %v6414
    %vm6466 = vweird.f32 %v6460
    %vm6467 = vmor %vm6465, %vm6466
    %v6468 = vsel %vm6467, %v6460, %v6464
    %v6469 = vand.u32 2147483647, %v6414
    %vm6470 = vcmp.eq.f32.partialorder %v6469, 8.507059e+37
    %v6471 = vand.u32 %v6414, 2147483648
    %v6472 = vor.u32 1.1754944e-38, %v6471
    %v6473 = vsel %vm6470, %v6472, %v6468
    %v6474 = vmul.f32 1.0, %v6473
    %v6475 = vxor.u32 %v6385, 2147483648
    %v6476 = vxor.u32 %v6386, 2147483648
    %v6477 = vxor.u32 %v6393, 2147483648
    %v6478 = vxor.u32 %v6394, 2147483648
    %v6479 = vmul.f32 %v6475, 1.442695
    %v6480 = vpow.pop %v6479
    %v6481 = vmul.f32 %v6476, 1.442695
    %v6482 = vpow.pop %v6481
    %v6483 = vmul.f32 %v6477, 1.442695
    %v6484 = vpow.pop %v6483
    %v6485 = vmul.f32 %v6478, 1.442695
    %v6486 = vpow.pop %v6485
    %v6487 = vadd.f32 %v6480, 1.0
    %v6488 = vadd.f32 %v6482, 1.0
    %v6489 = vadd.f32 %v6484, 1.0
    %v6490 = vadd.f32 %v6486, 1.0
    %v6491 = vrcp.pop %v6487
    %v6492 = vmul.f32 %v6487, %v6491
    %v6493 = vsub.f32 1.0, %v6492
    %v6494 = vmul.f32 %v6491, %v6493
    %v6495 = vadd.f32 %v6491, %v6494
    %vm6496 = vweird.f32 %v6487
    %vm6497 = vweird.f32 %v6491
    %vm6498 = vmor %vm6496, %vm6497
    %v6499 = vsel %vm6498, %v6491, %v6495
    %v6500 = vand.u32 2147483647, %v6487
    %vm6501 = vcmp.eq.f32.partialorder %v6500, 8.507059e+37
    %v6502 = vand.u32 %v6487, 2147483648
    %v6503 = vor.u32 1.1754944e-38, %v6502
    %v6504 = vsel %vm6501, %v6503, %v6499
    %v6505 = vmul.f32 1.0, %v6504
    %v6506 = vrcp.pop %v6488
    %v6507 = vmul.f32 %v6488, %v6506
    %v6508 = vsub.f32 1.0, %v6507
    %v6509 = vmul.f32 %v6506, %v6508
    %v6510 = vadd.f32 %v6506, %v6509
    %vm6511 = vweird.f32 %v6488
    %vm6512 = vweird.f32 %v6506
    %vm6513 = vmor %vm6511, %vm6512
    %v6514 = vsel %vm6513, %v6506, %v6510
    %v6515 = vand.u32 2147483647, %v6488
    %vm6516 = vcmp.eq.f32.partialorder %v6515, 8.507059e+37
    %v6517 = vand.u32 %v6488, 2147483648
    %v6518 = vor.u32 1.1754944e-38, %v6517
    %v6519 = vsel %vm6516, %v6518, %v6514
    %v6520 = vmul.f32 1.0, %v6519
    %v6521 = vrcp.pop %v6489
    %v6522 = vmul.f32 %v6489, %v6521
    %v6523 = vsub.f32 1.0, %v6522
    %v6524 = vmul.f32 %v6521, %v6523
    %v6525 = vadd.f32 %v6521, %v6524
    %vm6526 = vweird.f32 %v6489
    %vm6527 = vweird.f32 %v6521
    %vm6528 = vmor %vm6526, %vm6527
    %v6529 = vsel %vm6528, %v6521, %v6525
    %v6530 = vand.u32 2147483647, %v6489
    %vm6531 = vcmp.eq.f32.partialorder %v6530, 8.507059e+37
    %v6532 = vand.u32 %v6489, 2147483648
    %v6533 = vor.u32 1.1754944e-38, %v6532
    %v6534 = vsel %vm6531, %v6533, %v6529
    %v6535 = vmul.f32 1.0, %v6534
    %v6536 = vrcp.pop %v6490
    %v6537 = vmul.f32 %v6490, %v6536
    %v6538 = vsub.f32 1.0, %v6537
    %v6539 = vmul.f32 %v6536, %v6538
    %v6540 = vadd.f32 %v6536, %v6539
    %vm6541 = vweird.f32 %v6490
    %vm6542 = vweird.f32 %v6536
    %vm6543 = vmor %vm6541, %vm6542
    %v6544 = vsel %vm6543, %v6536, %v6540
    %v6545 = vand.u32 2147483647, %v6490
    %vm6546 = vcmp.eq.f32.partialorder %v6545, 8.507059e+37
    %v6547 = vand.u32 %v6490, 2147483648
    %v6548 = vor.u32 1.1754944e-38, %v6547
    %v6549 = vsel %vm6546, %v6548, %v6544
    %v6550 = vmul.f32 1.0, %v6549
    %v6551 = vtanh.pop %v6387
    %v6552 = vtanh.pop %v6388
    %v6553 = vtanh.pop %v6395
    %v6554 = vtanh.pop %v6396
    %v6555 = vxor.u32 %v6389, 2147483648
    %v6556 = vxor.u32 %v6390, 2147483648
    %v6557 = vxor.u32 %v6397, 2147483648
    %v6558 = vxor.u32 %v6398, 2147483648
    %v6559 = vmul.f32 %v6555, 1.442695
    %v6560 = vpow.pop %v6559
    %v6561 = vmul.f32 %v6556, 1.442695
    %v6562 = vpow.pop %v6561
    %v6563 = vmul.f32 %v6557, 1.442695
    %v6564 = vpow.pop %v6563
    %v6565 = vmul.f32 %v6558, 1.442695
    %v6566 = vpow.pop %v6565
    %v6567 = vadd.f32 %v6560, 1.0
    %v6568 = vadd.f32 %v6562, 1.0
    %v6569 = vadd.f32 %v6564, 1.0
    %v6570 = vadd.f32 %v6566, 1.0
    %v6571 = vrcp.pop %v6567
    %v6572 = vmul.f32 %v6567, %v6571
    %v6573 = vsub.f32 1.0, %v6572
    %v6574 = vmul.f32 %v6571, %v6573
    %v6575 = vadd.f32 %v6571, %v6574
    %vm6576 = vweird.f32 %v6567
    %vm6577 = vweird.f32 %v6571
    %vm6578 = vmor %vm6576, %vm6577
    %v6579 = vsel %vm6578, %v6571, %v6575
    %v6580 = vand.u32 2147483647, %v6567
    %vm6581 = vcmp.eq.f32.partialorder %v6580, 8.507059e+37
    %v6582 = vand.u32 %v6567, 2147483648
    %v6583 = vor.u32 1.1754944e-38, %v6582
    %v6584 = vsel %vm6581, %v6583, %v6579
    %v6585 = vmul.f32 1.0, %v6584
    %v6586 = vrcp.pop %v6568
    %v6587 = vmul.f32 %v6568, %v6586
    %v6588 = vsub.f32 1.0, %v6587
    %v6589 = vmul.f32 %v6586, %v6588
    %v6590 = vadd.f32 %v6586, %v6589
    %vm6591 = vweird.f32 %v6568
    %vm6592 = vweird.f32 %v6586
    %vm6593 = vmor %vm6591, %vm6592
    %v6594 = vsel %vm6593, %v6586, %v6590
    %v6595 = vand.u32 2147483647, %v6568
    %vm6596 = vcmp.eq.f32.partialorder %v6595, 8.507059e+37
    %v6597 = vand.u32 %v6568, 2147483648
    %v6598 = vor.u32 1.1754944e-38, %v6597
    %v6599 = vsel %vm6596, %v6598, %v6594
    %v6600 = vmul.f32 1.0, %v6599
    %v6601 = vrcp.pop %v6569
    %v6602 = vmul.f32 %v6569, %v6601
    %v6603 = vsub.f32 1.0, %v6602
    %v6604 = vmul.f32 %v6601, %v6603
    %v6605 = vadd.f32 %v6601, %v6604
    %vm6606 = vweird.f32 %v6569
    %vm6607 = vweird.f32 %v6601
    %vm6608 = vmor %vm6606, %vm6607
    %v6609 = vsel %vm6608, %v6601, %v6605
    %v6610 = vand.u32 2147483647, %v6569
    %vm6611 = vcmp.eq.f32.partialorder %v6610, 8.507059e+37
    %v6612 = vand.u32 %v6569, 2147483648
    %v6613 = vor.u32 1.1754944e-38, %v6612
    %v6614 = vsel %vm6611, %v6613, %v6609
    %v6615 = vmul.f32 1.0, %v6614
    %v6616 = vrcp.pop %v6570
    %v6617 = vmul.f32 %v6570, %v6616
    %v6618 = vsub.f32 1.0, %v6617
    %v6619 = vmul.f32 %v6616, %v6618
    %v6620 = vadd.f32 %v6616, %v6619
    %vm6621 = vweird.f32 %v6570
    %vm6622 = vweird.f32 %v6616
    %vm6623 = vmor %vm6621, %vm6622
    %v6624 = vsel %vm6623, %v6616, %v6620
    %v6625 = vand.u32 2147483647, %v6570
    %vm6626 = vcmp.eq.f32.partialorder %v6625, 8.507059e+37
    %v6627 = vand.u32 %v6570, 2147483648
    %v6628 = vor.u32 1.1754944e-38, %v6627
    %v6629 = vsel %vm6626, %v6628, %v6624
    %v6630 = vmul.f32 1.0, %v6629
    %v6631 = vmul.f32 %v6505, %v6145
    %v6632 = vmul.f32 %v6520, %v6146
    %v6633 = vmul.f32 %v6535, %v6147
    %v6634 = vmul.f32 %v6550, %v6148
    %v6635 = vmul.f32 %v6429, %v6551
    %v6636 = vmul.f32 %v6444, %v6552
    %v6637 = vmul.f32 %v6459, %v6553
    %v6638 = vmul.f32 %v6474, %v6554
    %v6639 = vadd.f32 %v6631, %v6635
    %v6640 = vadd.f32 %v6632, %v6636
    %v6641 = vadd.f32 %v6633, %v6637
    %v6642 = vadd.f32 %v6634, %v6638
    %v6643 = vtanh.pop %v6639
    %v6644 = vtanh.pop %v6640
    %v6645 = vtanh.pop %v6641
    %v6646 = vtanh.pop %v6642
    %v6647 = vmul.f32 %v6585, %v6643
    %v6648 = vmul.f32 %v6600, %v6644
    %v6649 = vmul.f32 %v6615, %v6645
    %v6650 = vmul.f32 %v6630, %v6646
    %v6651 = vpack.c.bf16 %v6649, %v6647
    %v6652 = vpack.c.bf16 %v6650, %v6648
    %6653 = vmatpush.bf16.msra.mxu0 %v3983
    %6654 = vmatpush.bf16.msra.mxu0 %v3975
    %6655 = vmatpush.bf16.msra.mxu0 %v3967
    %6656 = vmatpush.bf16.msra.mxu0 %v3959
    %6657 = vmatpush.bf16.msra.mxu0 %v3951
    %6658 = vmatpush.bf16.msra.mxu0 %v3943
    %6659 = vmatpush.bf16.msra.mxu0 %v3935
    %6660 = vmatpush.bf16.msra.mxu0 %v3927
    %6661 = vmatmul.bf16.gmra.mxu0 %v6651
    %v6662 = vpop.f32.mrf.mxu0
    %v6663 = vadd.f32 0.0, %v6662
    %v6664 = vpop.f32.mrf.mxu0
    %v6665 = vadd.f32 0.0, %v6664
    %6666 = vdwg.mxu0
    %6667 = vmatpush.bf16.msra.mxu0 %v4047
    %6668 = vmatpush.bf16.msra.mxu0 %v4039
    %6669 = vmatpush.bf16.msra.mxu0 %v4031
    %6670 = vmatpush.bf16.msra.mxu0 %v4023
    %6671 = vmatpush.bf16.msra.mxu0 %v4015
    %6672 = vmatpush.bf16.msra.mxu0 %v4007
    %6673 = vmatpush.bf16.msra.mxu0 %v3999
    %6674 = vmatpush.bf16.msra.mxu0 %v3991
    %6675 = vmatmul.bf16.gmra.mxu0 %v6652
    %v6676 = vpop.f32.mrf.mxu0
    %v6677 = vadd.f32 %v6663, %v6676
    %v6678 = vpop.f32.mrf.mxu0
    %v6679 = vadd.f32 %v6665, %v6678
    %6680 = vdwg.mxu0
    %6681 = vmatpush.bf16.msra.mxu0 %v3984
    %6682 = vmatpush.bf16.msra.mxu0 %v3976
    %6683 = vmatpush.bf16.msra.mxu0 %v3968
    %6684 = vmatpush.bf16.msra.mxu0 %v3960
    %6685 = vmatpush.bf16.msra.mxu0 %v3952
    %6686 = vmatpush.bf16.msra.mxu0 %v3944
    %6687 = vmatpush.bf16.msra.mxu0 %v3936
    %6688 = vmatpush.bf16.msra.mxu0 %v3928
    %6689 = vmatmul.bf16.gmra.mxu0 %v6651
    %v6690 = vpop.f32.mrf.mxu0
    %v6691 = vadd.f32 0.0, %v6690
    %v6692 = vpop.f32.mrf.mxu0
    %v6693 = vadd.f32 0.0, %v6692
    %6694 = vdwg.mxu0
    %6695 = vmatpush.bf16.msra.mxu0 %v4048
    %6696 = vmatpush.bf16.msra.mxu0 %v4040
    %6697 = vmatpush.bf16.msra.mxu0 %v4032
    %6698 = vmatpush.bf16.msra.mxu0 %v4024
    %6699 = vmatpush.bf16.msra.mxu0 %v4016
    %6700 = vmatpush.bf16.msra.mxu0 %v4008
    %6701 = vmatpush.bf16.msra.mxu0 %v4000
    %6702 = vmatpush.bf16.msra.mxu0 %v3992
    %6703 = vmatmul.bf16.gmra.mxu0 %v6652
    %v6704 = vpop.f32.mrf.mxu0
    %v6705 = vadd.f32 %v6691, %v6704
    %v6706 = vpop.f32.mrf.mxu0
    %v6707 = vadd.f32 %v6693, %v6706
    %6708 = vdwg.mxu0
    %6709 = vmatpush.bf16.msra.mxu0 %v3985
    %6710 = vmatpush.bf16.msra.mxu0 %v3977
    %6711 = vmatpush.bf16.msra.mxu0 %v3969
    %6712 = vmatpush.bf16.msra.mxu0 %v3961
    %6713 = vmatpush.bf16.msra.mxu0 %v3953
    %6714 = vmatpush.bf16.msra.mxu0 %v3945
    %6715 = vmatpush.bf16.msra.mxu0 %v3937
    %6716 = vmatpush.bf16.msra.mxu0 %v3929
    %6717 = vmatmul.bf16.gmra.mxu0 %v6651
    %v6718 = vpop.f32.mrf.mxu0
    %v6719 = vadd.f32 0.0, %v6718
    %v6720 = vpop.f32.mrf.mxu0
    %v6721 = vadd.f32 0.0, %v6720
    %6722 = vdwg.mxu0
    %6723 = vmatpush.bf16.msra.mxu0 %v4049
    %6724 = vmatpush.bf16.msra.mxu0 %v4041
    %6725 = vmatpush.bf16.msra.mxu0 %v4033
    %6726 = vmatpush.bf16.msra.mxu0 %v4025
    %6727 = vmatpush.bf16.msra.mxu0 %v4017
    %6728 = vmatpush.bf16.msra.mxu0 %v4009
    %6729 = vmatpush.bf16.msra.mxu0 %v4001
    %6730 = vmatpush.bf16.msra.mxu0 %v3993
    %6731 = vmatmul.bf16.gmra.mxu0 %v6652
    %v6732 = vpop.f32.mrf.mxu0
    %v6733 = vadd.f32 %v6719, %v6732
    %v6734 = vpop.f32.mrf.mxu0
    %v6735 = vadd.f32 %v6721, %v6734
    %6736 = vdwg.mxu0
    %6737 = vmatpush.bf16.msra.mxu0 %v3986
    %6738 = vmatpush.bf16.msra.mxu0 %v3978
    %6739 = vmatpush.bf16.msra.mxu0 %v3970
    %6740 = vmatpush.bf16.msra.mxu0 %v3962
    %6741 = vmatpush.bf16.msra.mxu0 %v3954
    %6742 = vmatpush.bf16.msra.mxu0 %v3946
    %6743 = vmatpush.bf16.msra.mxu0 %v3938
    %6744 = vmatpush.bf16.msra.mxu0 %v3930
    %6745 = vmatmul.bf16.gmra.mxu0 %v6651
    %v6746 = vpop.f32.mrf.mxu0
    %v6747 = vadd.f32 0.0, %v6746
    %v6748 = vpop.f32.mrf.mxu0
    %v6749 = vadd.f32 0.0, %v6748
    %6750 = vdwg.mxu0
    %6751 = vmatpush.bf16.msra.mxu0 %v4050
    %6752 = vmatpush.bf16.msra.mxu0 %v4042
    %6753 = vmatpush.bf16.msra.mxu0 %v4034
    %6754 = vmatpush.bf16.msra.mxu0 %v4026
    %6755 = vmatpush.bf16.msra.mxu0 %v4018
    %6756 = vmatpush.bf16.msra.mxu0 %v4010
    %6757 = vmatpush.bf16.msra.mxu0 %v4002
    %6758 = vmatpush.bf16.msra.mxu0 %v3994
    %6759 = vmatmul.bf16.gmra.mxu0 %v6652
    %v6760 = vpop.f32.mrf.mxu0
    %v6761 = vadd.f32 %v6747, %v6760
    %v6762 = vpop.f32.mrf.mxu0
    %v6763 = vadd.f32 %v6749, %v6762
    %6764 = vdwg.mxu0
    %6765 = vmatpush.bf16.msra.mxu0 %v3987
    %6766 = vmatpush.bf16.msra.mxu0 %v3979
    %6767 = vmatpush.bf16.msra.mxu0 %v3971
    %6768 = vmatpush.bf16.msra.mxu0 %v3963
    %6769 = vmatpush.bf16.msra.mxu0 %v3955
    %6770 = vmatpush.bf16.msra.mxu0 %v3947
    %6771 = vmatpush.bf16.msra.mxu0 %v3939
    %6772 = vmatpush.bf16.msra.mxu0 %v3931
    %6773 = vmatmul.bf16.gmra.mxu0 %v6651
    %v6774 = vpop.f32.mrf.mxu0
    %v6775 = vadd.f32 0.0, %v6774
    %v6776 = vpop.f32.mrf.mxu0
    %v6777 = vadd.f32 0.0, %v6776
    %6778 = vdwg.mxu0
    %6779 = vmatpush.bf16.msra.mxu0 %v4051
    %6780 = vmatpush.bf16.msra.mxu0 %v4043
    %6781 = vmatpush.bf16.msra.mxu0 %v4035
    %6782 = vmatpush.bf16.msra.mxu0 %v4027
    %6783 = vmatpush.bf16.msra.mxu0 %v4019
    %6784 = vmatpush.bf16.msra.mxu0 %v4011
    %6785 = vmatpush.bf16.msra.mxu0 %v4003
    %6786 = vmatpush.bf16.msra.mxu0 %v3995
    %6787 = vmatmul.bf16.gmra.mxu0 %v6652
    %v6788 = vpop.f32.mrf.mxu0
    %v6789 = vadd.f32 %v6775, %v6788
    %v6790 = vpop.f32.mrf.mxu0
    %v6791 = vadd.f32 %v6777, %v6790
    %6792 = vdwg.mxu0
    %6793 = vmatpush.bf16.msra.mxu0 %v3988
    %6794 = vmatpush.bf16.msra.mxu0 %v3980
    %6795 = vmatpush.bf16.msra.mxu0 %v3972
    %6796 = vmatpush.bf16.msra.mxu0 %v3964
    %6797 = vmatpush.bf16.msra.mxu0 %v3956
    %6798 = vmatpush.bf16.msra.mxu0 %v3948
    %6799 = vmatpush.bf16.msra.mxu0 %v3940
    %6800 = vmatpush.bf16.msra.mxu0 %v3932
    %6801 = vmatmul.bf16.gmra.mxu0 %v6651
    %v6802 = vpop.f32.mrf.mxu0
    %v6803 = vadd.f32 0.0, %v6802
    %v6804 = vpop.f32.mrf.mxu0
    %v6805 = vadd.f32 0.0, %v6804
    %6806 = vdwg.mxu0
    %6807 = vmatpush.bf16.msra.mxu0 %v4052
    %6808 = vmatpush.bf16.msra.mxu0 %v4044
    %6809 = vmatpush.bf16.msra.mxu0 %v4036
    %6810 = vmatpush.bf16.msra.mxu0 %v4028
    %6811 = vmatpush.bf16.msra.mxu0 %v4020
    %6812 = vmatpush.bf16.msra.mxu0 %v4012
    %6813 = vmatpush.bf16.msra.mxu0 %v4004
    %6814 = vmatpush.bf16.msra.mxu0 %v3996
    %6815 = vmatmul.bf16.gmra.mxu0 %v6652
    %v6816 = vpop.f32.mrf.mxu0
    %v6817 = vadd.f32 %v6803, %v6816
    %v6818 = vpop.f32.mrf.mxu0
    %v6819 = vadd.f32 %v6805, %v6818
    %6820 = vdwg.mxu0
    %6821 = vmatpush.bf16.msra.mxu0 %v3989
    %6822 = vmatpush.bf16.msra.mxu0 %v3981
    %6823 = vmatpush.bf16.msra.mxu0 %v3973
    %6824 = vmatpush.bf16.msra.mxu0 %v3965
    %6825 = vmatpush.bf16.msra.mxu0 %v3957
    %6826 = vmatpush.bf16.msra.mxu0 %v3949
    %6827 = vmatpush.bf16.msra.mxu0 %v3941
    %6828 = vmatpush.bf16.msra.mxu0 %v3933
    %6829 = vmatmul.bf16.gmra.mxu0 %v6651
    %v6830 = vpop.f32.mrf.mxu0
    %v6831 = vadd.f32 0.0, %v6830
    %v6832 = vpop.f32.mrf.mxu0
    %v6833 = vadd.f32 0.0, %v6832
    %6834 = vdwg.mxu0
    %6835 = vmatpush.bf16.msra.mxu0 %v4053
    %6836 = vmatpush.bf16.msra.mxu0 %v4045
    %6837 = vmatpush.bf16.msra.mxu0 %v4037
    %6838 = vmatpush.bf16.msra.mxu0 %v4029
    %6839 = vmatpush.bf16.msra.mxu0 %v4021
    %6840 = vmatpush.bf16.msra.mxu0 %v4013
    %6841 = vmatpush.bf16.msra.mxu0 %v4005
    %6842 = vmatpush.bf16.msra.mxu0 %v3997
    %6843 = vmatmul.bf16.gmra.mxu0 %v6652
    %v6844 = vpop.f32.mrf.mxu0
    %v6845 = vadd.f32 %v6831, %v6844
    %v6846 = vpop.f32.mrf.mxu0
    %v6847 = vadd.f32 %v6833, %v6846
    %6848 = vdwg.mxu0
    %6849 = vmatpush.bf16.msra.mxu0 %v3990
    %6850 = vmatpush.bf16.msra.mxu0 %v3982
    %6851 = vmatpush.bf16.msra.mxu0 %v3974
    %6852 = vmatpush.bf16.msra.mxu0 %v3966
    %6853 = vmatpush.bf16.msra.mxu0 %v3958
    %6854 = vmatpush.bf16.msra.mxu0 %v3950
    %6855 = vmatpush.bf16.msra.mxu0 %v3942
    %6856 = vmatpush.bf16.msra.mxu0 %v3934
    %6857 = vmatmul.bf16.gmra.mxu0 %v6651
    %v6858 = vpop.f32.mrf.mxu0
    %v6859 = vadd.f32 0.0, %v6858
    %v6860 = vpop.f32.mrf.mxu0
    %v6861 = vadd.f32 0.0, %v6860
    %6862 = vdwg.mxu0
    %6863 = vmatpush.bf16.msra.mxu0 %v4054
    %6864 = vmatpush.bf16.msra.mxu0 %v4046
    %6865 = vmatpush.bf16.msra.mxu0 %v4038
    %6866 = vmatpush.bf16.msra.mxu0 %v4030
    %6867 = vmatpush.bf16.msra.mxu0 %v4022
    %6868 = vmatpush.bf16.msra.mxu0 %v4014
    %6869 = vmatpush.bf16.msra.mxu0 %v4006
    %6870 = vmatpush.bf16.msra.mxu0 %v3998
    %6871 = vmatmul.bf16.gmra.mxu0 %v6652
    %v6872 = vpop.f32.mrf.mxu0
    %v6873 = vadd.f32 %v6859, %v6872
    %v6874 = vpop.f32.mrf.mxu0
    %v6875 = vadd.f32 %v6861, %v6874
    %6876 = vdwg.mxu0
    %v6877 = vadd.f32 %v2029, %v6677
    %v6878 = vadd.f32 %v2225, %v6705
    %v6879 = vadd.f32 %v2421, %v6733
    %v6880 = vadd.f32 %v2617, %v6761
    %v6881 = vadd.f32 %v2813, %v6789
    %v6882 = vadd.f32 %v3009, %v6817
    %v6883 = vadd.f32 %v3205, %v6845
    %v6884 = vadd.f32 %v3401, %v6873
    %v6885 = vadd.f32 %v2031, %v6679
    %v6886 = vadd.f32 %v2227, %v6707
    %v6887 = vadd.f32 %v2423, %v6735
    %v6888 = vadd.f32 %v2619, %v6763
    %v6889 = vadd.f32 %v2815, %v6791
    %v6890 = vadd.f32 %v3011, %v6819
    %v6891 = vadd.f32 %v3207, %v6847
    %v6892 = vadd.f32 %v3403, %v6875
    %v6893 = vxor.u32 %v6877, 2147483648
    %v6894 = vxor.u32 %v6878, 2147483648
    %v6895 = vxor.u32 %v6885, 2147483648
    %v6896 = vxor.u32 %v6886, 2147483648
    %v6897 = vmul.f32 %v6893, 1.442695
    %v6898 = vpow.pop %v6897
    %v6899 = vmul.f32 %v6894, 1.442695
    %v6900 = vpow.pop %v6899
    %v6901 = vmul.f32 %v6895, 1.442695
    %v6902 = vpow.pop %v6901
    %v6903 = vmul.f32 %v6896, 1.442695
    %v6904 = vpow.pop %v6903
    %v6905 = vadd.f32 %v6898, 1.0
    %v6906 = vadd.f32 %v6900, 1.0
    %v6907 = vadd.f32 %v6902, 1.0
    %v6908 = vadd.f32 %v6904, 1.0
    %v6909 = vrcp.pop %v6905
    %v6910 = vmul.f32 %v6905, %v6909
    %v6911 = vsub.f32 1.0, %v6910
    %v6912 = vmul.f32 %v6909, %v6911
    %v6913 = vadd.f32 %v6909, %v6912
    %vm6914 = vweird.f32 %v6905
    %vm6915 = vweird.f32 %v6909
    %vm6916 = vmor %vm6914, %vm6915
    %v6917 = vsel %vm6916, %v6909, %v6913
    %v6918 = vand.u32 2147483647, %v6905
    %vm6919 = vcmp.eq.f32.partialorder %v6918, 8.507059e+37
    %v6920 = vand.u32 %v6905, 2147483648
    %v6921 = vor.u32 1.1754944e-38, %v6920
    %v6922 = vsel %vm6919, %v6921, %v6917
    %v6923 = vmul.f32 1.0, %v6922
    %v6924 = vrcp.pop %v6906
    %v6925 = vmul.f32 %v6906, %v6924
    %v6926 = vsub.f32 1.0, %v6925
    %v6927 = vmul.f32 %v6924, %v6926
    %v6928 = vadd.f32 %v6924, %v6927
    %vm6929 = vweird.f32 %v6906
    %vm6930 = vweird.f32 %v6924
    %vm6931 = vmor %vm6929, %vm6930
    %v6932 = vsel %vm6931, %v6924, %v6928
    %v6933 = vand.u32 2147483647, %v6906
    %vm6934 = vcmp.eq.f32.partialorder %v6933, 8.507059e+37
    %v6935 = vand.u32 %v6906, 2147483648
    %v6936 = vor.u32 1.1754944e-38, %v6935
    %v6937 = vsel %vm6934, %v6936, %v6932
    %v6938 = vmul.f32 1.0, %v6937
    %v6939 = vrcp.pop %v6907
    %v6940 = vmul.f32 %v6907, %v6939
    %v6941 = vsub.f32 1.0, %v6940
    %v6942 = vmul.f32 %v6939, %v6941
    %v6943 = vadd.f32 %v6939, %v6942
    %vm6944 = vweird.f32 %v6907
    %vm6945 = vweird.f32 %v6939
    %vm6946 = vmor %vm6944, %vm6945
    %v6947 = vsel %vm6946, %v6939, %v6943
    %v6948 = vand.u32 2147483647, %v6907
    %vm6949 = vcmp.eq.f32.partialorder %v6948, 8.507059e+37
    %v6950 = vand.u32 %v6907, 2147483648
    %v6951 = vor.u32 1.1754944e-38, %v6950
    %v6952 = vsel %vm6949, %v6951, %v6947
    %v6953 = vmul.f32 1.0, %v6952
    %v6954 = vrcp.pop %v6908
    %v6955 = vmul.f32 %v6908, %v6954
    %v6956 = vsub.f32 1.0, %v6955
    %v6957 = vmul.f32 %v6954, %v6956
    %v6958 = vadd.f32 %v6954, %v6957
    %vm6959 = vweird.f32 %v6908
    %vm6960 = vweird.f32 %v6954
    %vm6961 = vmor %vm6959, %vm6960
    %v6962 = vsel %vm6961, %v6954, %v6958
    %v6963 = vand.u32 2147483647, %v6908
    %vm6964 = vcmp.eq.f32.partialorder %v6963, 8.507059e+37
    %v6965 = vand.u32 %v6908, 2147483648
    %v6966 = vor.u32 1.1754944e-38, %v6965
    %v6967 = vsel %vm6964, %v6966, %v6962
    %v6968 = vmul.f32 1.0, %v6967
    %v6969 = vxor.u32 %v6879, 2147483648
    %v6970 = vxor.u32 %v6880, 2147483648
    %v6971 = vxor.u32 %v6887, 2147483648
    %v6972 = vxor.u32 %v6888, 2147483648
    %v6973 = vmul.f32 %v6969, 1.442695
    %v6974 = vpow.pop %v6973
    %v6975 = vmul.f32 %v6970, 1.442695
    %v6976 = vpow.pop %v6975
    %v6977 = vmul.f32 %v6971, 1.442695
    %v6978 = vpow.pop %v6977
    %v6979 = vmul.f32 %v6972, 1.442695
    %v6980 = vpow.pop %v6979
    %v6981 = vadd.f32 %v6974, 1.0
    %v6982 = vadd.f32 %v6976, 1.0
    %v6983 = vadd.f32 %v6978, 1.0
    %v6984 = vadd.f32 %v6980, 1.0
    %v6985 = vrcp.pop %v6981
    %v6986 = vmul.f32 %v6981, %v6985
    %v6987 = vsub.f32 1.0, %v6986
    %v6988 = vmul.f32 %v6985, %v6987
    %v6989 = vadd.f32 %v6985, %v6988
    %vm6990 = vweird.f32 %v6981
    %vm6991 = vweird.f32 %v6985
    %vm6992 = vmor %vm6990, %vm6991
    %v6993 = vsel %vm6992, %v6985, %v6989
    %v6994 = vand.u32 2147483647, %v6981
    %vm6995 = vcmp.eq.f32.partialorder %v6994, 8.507059e+37
    %v6996 = vand.u32 %v6981, 2147483648
    %v6997 = vor.u32 1.1754944e-38, %v6996
    %v6998 = vsel %vm6995, %v6997, %v6993
    %v6999 = vmul.f32 1.0, %v6998
    %v7000 = vrcp.pop %v6982
    %v7001 = vmul.f32 %v6982, %v7000
    %v7002 = vsub.f32 1.0, %v7001
    %v7003 = vmul.f32 %v7000, %v7002
    %v7004 = vadd.f32 %v7000, %v7003
    %vm7005 = vweird.f32 %v6982
    %vm7006 = vweird.f32 %v7000
    %vm7007 = vmor %vm7005, %vm7006
    %v7008 = vsel %vm7007, %v7000, %v7004
    %v7009 = vand.u32 2147483647, %v6982
    %vm7010 = vcmp.eq.f32.partialorder %v7009, 8.507059e+37
    %v7011 = vand.u32 %v6982, 2147483648
    %v7012 = vor.u32 1.1754944e-38, %v7011
    %v7013 = vsel %vm7010, %v7012, %v7008
    %v7014 = vmul.f32 1.0, %v7013
    %v7015 = vrcp.pop %v6983
    %v7016 = vmul.f32 %v6983, %v7015
    %v7017 = vsub.f32 1.0, %v7016
    %v7018 = vmul.f32 %v7015, %v7017
    %v7019 = vadd.f32 %v7015, %v7018
    %vm7020 = vweird.f32 %v6983
    %vm7021 = vweird.f32 %v7015
    %vm7022 = vmor %vm7020, %vm7021
    %v7023 = vsel %vm7022, %v7015, %v7019
    %v7024 = vand.u32 2147483647, %v6983
    %vm7025 = vcmp.eq.f32.partialorder %v7024, 8.507059e+37
    %v7026 = vand.u32 %v6983, 2147483648
    %v7027 = vor.u32 1.1754944e-38, %v7026
    %v7028 = vsel %vm7025, %v7027, %v7023
    %v7029 = vmul.f32 1.0, %v7028
    %v7030 = vrcp.pop %v6984
    %v7031 = vmul.f32 %v6984, %v7030
    %v7032 = vsub.f32 1.0, %v7031
    %v7033 = vmul.f32 %v7030, %v7032
    %v7034 = vadd.f32 %v7030, %v7033
    %vm7035 = vweird.f32 %v6984
    %vm7036 = vweird.f32 %v7030
    %vm7037 = vmor %vm7035, %vm7036
    %v7038 = vsel %vm7037, %v7030, %v7034
    %v7039 = vand.u32 2147483647, %v6984
    %vm7040 = vcmp.eq.f32.partialorder %v7039, 8.507059e+37
    %v7041 = vand.u32 %v6984, 2147483648
    %v7042 = vor.u32 1.1754944e-38, %v7041
    %v7043 = vsel %vm7040, %v7042, %v7038
    %v7044 = vmul.f32 1.0, %v7043
    %v7045 = vtanh.pop %v6881
    %v7046 = vtanh.pop %v6882
    %v7047 = vtanh.pop %v6889
    %v7048 = vtanh.pop %v6890
    %v7049 = vxor.u32 %v6883, 2147483648
    %v7050 = vxor.u32 %v6884, 2147483648
    %v7051 = vxor.u32 %v6891, 2147483648
    %v7052 = vxor.u32 %v6892, 2147483648
    %v7053 = vmul.f32 %v7049, 1.442695
    %v7054 = vpow.pop %v7053
    %v7055 = vmul.f32 %v7050, 1.442695
    %v7056 = vpow.pop %v7055
    %v7057 = vmul.f32 %v7051, 1.442695
    %v7058 = vpow.pop %v7057
    %v7059 = vmul.f32 %v7052, 1.442695
    %v7060 = vpow.pop %v7059
    %v7061 = vadd.f32 %v7054, 1.0
    %v7062 = vadd.f32 %v7056, 1.0
    %v7063 = vadd.f32 %v7058, 1.0
    %v7064 = vadd.f32 %v7060, 1.0
    %v7065 = vrcp.pop %v7061
    %v7066 = vmul.f32 %v7061, %v7065
    %v7067 = vsub.f32 1.0, %v7066
    %v7068 = vmul.f32 %v7065, %v7067
    %v7069 = vadd.f32 %v7065, %v7068
    %vm7070 = vweird.f32 %v7061
    %vm7071 = vweird.f32 %v7065
    %vm7072 = vmor %vm7070, %vm7071
    %v7073 = vsel %vm7072, %v7065, %v7069
    %v7074 = vand.u32 2147483647, %v7061
    %vm7075 = vcmp.eq.f32.partialorder %v7074, 8.507059e+37
    %v7076 = vand.u32 %v7061, 2147483648
    %v7077 = vor.u32 1.1754944e-38, %v7076
    %v7078 = vsel %vm7075, %v7077, %v7073
    %v7079 = vmul.f32 1.0, %v7078
    %v7080 = vrcp.pop %v7062
    %v7081 = vmul.f32 %v7062, %v7080
    %v7082 = vsub.f32 1.0, %v7081
    %v7083 = vmul.f32 %v7080, %v7082
    %v7084 = vadd.f32 %v7080, %v7083
    %vm7085 = vweird.f32 %v7062
    %vm7086 = vweird.f32 %v7080
    %vm7087 = vmor %vm7085, %vm7086
    %v7088 = vsel %vm7087, %v7080, %v7084
    %v7089 = vand.u32 2147483647, %v7062
    %vm7090 = vcmp.eq.f32.partialorder %v7089, 8.507059e+37
    %v7091 = vand.u32 %v7062, 2147483648
    %v7092 = vor.u32 1.1754944e-38, %v7091
    %v7093 = vsel %vm7090, %v7092, %v7088
    %v7094 = vmul.f32 1.0, %v7093
    %v7095 = vrcp.pop %v7063
    %v7096 = vmul.f32 %v7063, %v7095
    %v7097 = vsub.f32 1.0, %v7096
    %v7098 = vmul.f32 %v7095, %v7097
    %v7099 = vadd.f32 %v7095, %v7098
    %vm7100 = vweird.f32 %v7063
    %vm7101 = vweird.f32 %v7095
    %vm7102 = vmor %vm7100, %vm7101
    %v7103 = vsel %vm7102, %v7095, %v7099
    %v7104 = vand.u32 2147483647, %v7063
    %vm7105 = vcmp.eq.f32.partialorder %v7104, 8.507059e+37
    %v7106 = vand.u32 %v7063, 2147483648
    %v7107 = vor.u32 1.1754944e-38, %v7106
    %v7108 = vsel %vm7105, %v7107, %v7103
    %v7109 = vmul.f32 1.0, %v7108
    %v7110 = vrcp.pop %v7064
    %v7111 = vmul.f32 %v7064, %v7110
    %v7112 = vsub.f32 1.0, %v7111
    %v7113 = vmul.f32 %v7110, %v7112
    %v7114 = vadd.f32 %v7110, %v7113
    %vm7115 = vweird.f32 %v7064
    %vm7116 = vweird.f32 %v7110
    %vm7117 = vmor %vm7115, %vm7116
    %v7118 = vsel %vm7117, %v7110, %v7114
    %v7119 = vand.u32 2147483647, %v7064
    %vm7120 = vcmp.eq.f32.partialorder %v7119, 8.507059e+37
    %v7121 = vand.u32 %v7064, 2147483648
    %v7122 = vor.u32 1.1754944e-38, %v7121
    %v7123 = vsel %vm7120, %v7122, %v7118
    %v7124 = vmul.f32 1.0, %v7123
    %v7125 = vmul.f32 %v6999, %v6639
    %v7126 = vmul.f32 %v7014, %v6640
    %v7127 = vmul.f32 %v7029, %v6641
    %v7128 = vmul.f32 %v7044, %v6642
    %v7129 = vmul.f32 %v6923, %v7045
    %v7130 = vmul.f32 %v6938, %v7046
    %v7131 = vmul.f32 %v6953, %v7047
    %v7132 = vmul.f32 %v6968, %v7048
    %v7133 = vadd.f32 %v7125, %v7129
    %v7134 = vadd.f32 %v7126, %v7130
    %v7135 = vadd.f32 %v7127, %v7131
    %v7136 = vadd.f32 %v7128, %v7132
    %v7137 = vtanh.pop %v7133
    %v7138 = vtanh.pop %v7134
    %v7139 = vtanh.pop %v7135
    %v7140 = vtanh.pop %v7136
    %v7141 = vmul.f32 %v7079, %v7137
    %v7142 = vmul.f32 %v7094, %v7138
    %v7143 = vmul.f32 %v7109, %v7139
    %v7144 = vmul.f32 %v7124, %v7140
    %v7145 = vpack.c.bf16 %v7143, %v7141
    %v7146 = vpack.c.bf16 %v7144, %v7142
    %7147 = vmatpush.bf16.msra.mxu0 %v3983
    %7148 = vmatpush.bf16.msra.mxu0 %v3975
    %7149 = vmatpush.bf16.msra.mxu0 %v3967
    %7150 = vmatpush.bf16.msra.mxu0 %v3959
    %7151 = vmatpush.bf16.msra.mxu0 %v3951
    %7152 = vmatpush.bf16.msra.mxu0 %v3943
    %7153 = vmatpush.bf16.msra.mxu0 %v3935
    %7154 = vmatpush.bf16.msra.mxu0 %v3927
    %7155 = vmatmul.bf16.gmra.mxu0 %v7145
    %v7156 = vpop.f32.mrf.mxu0
    %v7157 = vadd.f32 0.0, %v7156
    %v7158 = vpop.f32.mrf.mxu0
    %v7159 = vadd.f32 0.0, %v7158
    %7160 = vdwg.mxu0
    %7161 = vmatpush.bf16.msra.mxu0 %v4047
    %7162 = vmatpush.bf16.msra.mxu0 %v4039
    %7163 = vmatpush.bf16.msra.mxu0 %v4031
    %7164 = vmatpush.bf16.msra.mxu0 %v4023
    %7165 = vmatpush.bf16.msra.mxu0 %v4015
    %7166 = vmatpush.bf16.msra.mxu0 %v4007
    %7167 = vmatpush.bf16.msra.mxu0 %v3999
    %7168 = vmatpush.bf16.msra.mxu0 %v3991
    %7169 = vmatmul.bf16.gmra.mxu0 %v7146
    %v7170 = vpop.f32.mrf.mxu0
    %v7171 = vadd.f32 %v7157, %v7170
    %v7172 = vpop.f32.mrf.mxu0
    %v7173 = vadd.f32 %v7159, %v7172
    %7174 = vdwg.mxu0
    %7175 = vmatpush.bf16.msra.mxu0 %v3984
    %7176 = vmatpush.bf16.msra.mxu0 %v3976
    %7177 = vmatpush.bf16.msra.mxu0 %v3968
    %7178 = vmatpush.bf16.msra.mxu0 %v3960
    %7179 = vmatpush.bf16.msra.mxu0 %v3952
    %7180 = vmatpush.bf16.msra.mxu0 %v3944
    %7181 = vmatpush.bf16.msra.mxu0 %v3936
    %7182 = vmatpush.bf16.msra.mxu0 %v3928
    %7183 = vmatmul.bf16.gmra.mxu0 %v7145
    %v7184 = vpop.f32.mrf.mxu0
    %v7185 = vadd.f32 0.0, %v7184
    %v7186 = vpop.f32.mrf.mxu0
    %v7187 = vadd.f32 0.0, %v7186
    %7188 = vdwg.mxu0
    %7189 = vmatpush.bf16.msra.mxu0 %v4048
    %7190 = vmatpush.bf16.msra.mxu0 %v4040
    %7191 = vmatpush.bf16.msra.mxu0 %v4032
    %7192 = vmatpush.bf16.msra.mxu0 %v4024
    %7193 = vmatpush.bf16.msra.mxu0 %v4016
    %7194 = vmatpush.bf16.msra.mxu0 %v4008
    %7195 = vmatpush.bf16.msra.mxu0 %v4000
    %7196 = vmatpush.bf16.msra.mxu0 %v3992
    %7197 = vmatmul.bf16.gmra.mxu0 %v7146
    %v7198 = vpop.f32.mrf.mxu0
    %v7199 = vadd.f32 %v7185, %v7198
    %v7200 = vpop.f32.mrf.mxu0
    %v7201 = vadd.f32 %v7187, %v7200
    %7202 = vdwg.mxu0
    %7203 = vmatpush.bf16.msra.mxu0 %v3985
    %7204 = vmatpush.bf16.msra.mxu0 %v3977
    %7205 = vmatpush.bf16.msra.mxu0 %v3969
    %7206 = vmatpush.bf16.msra.mxu0 %v3961
    %7207 = vmatpush.bf16.msra.mxu0 %v3953
    %7208 = vmatpush.bf16.msra.mxu0 %v3945
    %7209 = vmatpush.bf16.msra.mxu0 %v3937
    %7210 = vmatpush.bf16.msra.mxu0 %v3929
    %7211 = vmatmul.bf16.gmra.mxu0 %v7145
    %v7212 = vpop.f32.mrf.mxu0
    %v7213 = vadd.f32 0.0, %v7212
    %v7214 = vpop.f32.mrf.mxu0
    %v7215 = vadd.f32 0.0, %v7214
    %7216 = vdwg.mxu0
    %7217 = vmatpush.bf16.msra.mxu0 %v4049
    %7218 = vmatpush.bf16.msra.mxu0 %v4041
    %7219 = vmatpush.bf16.msra.mxu0 %v4033
    %7220 = vmatpush.bf16.msra.mxu0 %v4025
    %7221 = vmatpush.bf16.msra.mxu0 %v4017
    %7222 = vmatpush.bf16.msra.mxu0 %v4009
    %7223 = vmatpush.bf16.msra.mxu0 %v4001
    %7224 = vmatpush.bf16.msra.mxu0 %v3993
    %7225 = vmatmul.bf16.gmra.mxu0 %v7146
    %v7226 = vpop.f32.mrf.mxu0
    %v7227 = vadd.f32 %v7213, %v7226
    %v7228 = vpop.f32.mrf.mxu0
    %v7229 = vadd.f32 %v7215, %v7228
    %7230 = vdwg.mxu0
    %7231 = vmatpush.bf16.msra.mxu0 %v3986
    %7232 = vmatpush.bf16.msra.mxu0 %v3978
    %7233 = vmatpush.bf16.msra.mxu0 %v3970
    %7234 = vmatpush.bf16.msra.mxu0 %v3962
    %7235 = vmatpush.bf16.msra.mxu0 %v3954
    %7236 = vmatpush.bf16.msra.mxu0 %v3946
    %7237 = vmatpush.bf16.msra.mxu0 %v3938
    %7238 = vmatpush.bf16.msra.mxu0 %v3930
    %7239 = vmatmul.bf16.gmra.mxu0 %v7145
    %v7240 = vpop.f32.mrf.mxu0
    %v7241 = vadd.f32 0.0, %v7240
    %v7242 = vpop.f32.mrf.mxu0
    %v7243 = vadd.f32 0.0, %v7242
    %7244 = vdwg.mxu0
    %7245 = vmatpush.bf16.msra.mxu0 %v4050
    %7246 = vmatpush.bf16.msra.mxu0 %v4042
    %7247 = vmatpush.bf16.msra.mxu0 %v4034
    %7248 = vmatpush.bf16.msra.mxu0 %v4026
    %7249 = vmatpush.bf16.msra.mxu0 %v4018
    %7250 = vmatpush.bf16.msra.mxu0 %v4010
    %7251 = vmatpush.bf16.msra.mxu0 %v4002
    %7252 = vmatpush.bf16.msra.mxu0 %v3994
    %7253 = vmatmul.bf16.gmra.mxu0 %v7146
    %v7254 = vpop.f32.mrf.mxu0
    %v7255 = vadd.f32 %v7241, %v7254
    %v7256 = vpop.f32.mrf.mxu0
    %v7257 = vadd.f32 %v7243, %v7256
    %7258 = vdwg.mxu0
    %7259 = vmatpush.bf16.msra.mxu0 %v3987
    %7260 = vmatpush.bf16.msra.mxu0 %v3979
    %7261 = vmatpush.bf16.msra.mxu0 %v3971
    %7262 = vmatpush.bf16.msra.mxu0 %v3963
    %7263 = vmatpush.bf16.msra.mxu0 %v3955
    %7264 = vmatpush.bf16.msra.mxu0 %v3947
    %7265 = vmatpush.bf16.msra.mxu0 %v3939
    %7266 = vmatpush.bf16.msra.mxu0 %v3931
    %7267 = vmatmul.bf16.gmra.mxu0 %v7145
    %v7268 = vpop.f32.mrf.mxu0
    %v7269 = vadd.f32 0.0, %v7268
    %v7270 = vpop.f32.mrf.mxu0
    %v7271 = vadd.f32 0.0, %v7270
    %7272 = vdwg.mxu0
    %7273 = vmatpush.bf16.msra.mxu0 %v4051
    %7274 = vmatpush.bf16.msra.mxu0 %v4043
    %7275 = vmatpush.bf16.msra.mxu0 %v4035
    %7276 = vmatpush.bf16.msra.mxu0 %v4027
    %7277 = vmatpush.bf16.msra.mxu0 %v4019
    %7278 = vmatpush.bf16.msra.mxu0 %v4011
    %7279 = vmatpush.bf16.msra.mxu0 %v4003
    %7280 = vmatpush.bf16.msra.mxu0 %v3995
    %7281 = vmatmul.bf16.gmra.mxu0 %v7146
    %v7282 = vpop.f32.mrf.mxu0
    %v7283 = vadd.f32 %v7269, %v7282
    %v7284 = vpop.f32.mrf.mxu0
    %v7285 = vadd.f32 %v7271, %v7284
    %7286 = vdwg.mxu0
    %7287 = vmatpush.bf16.msra.mxu0 %v3988
    %7288 = vmatpush.bf16.msra.mxu0 %v3980
    %7289 = vmatpush.bf16.msra.mxu0 %v3972
    %7290 = vmatpush.bf16.msra.mxu0 %v3964
    %7291 = vmatpush.bf16.msra.mxu0 %v3956
    %7292 = vmatpush.bf16.msra.mxu0 %v3948
    %7293 = vmatpush.bf16.msra.mxu0 %v3940
    %7294 = vmatpush.bf16.msra.mxu0 %v3932
    %7295 = vmatmul.bf16.gmra.mxu0 %v7145
    %v7296 = vpop.f32.mrf.mxu0
    %v7297 = vadd.f32 0.0, %v7296
    %v7298 = vpop.f32.mrf.mxu0
    %v7299 = vadd.f32 0.0, %v7298
    %7300 = vdwg.mxu0
    %7301 = vmatpush.bf16.msra.mxu0 %v4052
    %7302 = vmatpush.bf16.msra.mxu0 %v4044
    %7303 = vmatpush.bf16.msra.mxu0 %v4036
    %7304 = vmatpush.bf16.msra.mxu0 %v4028
    %7305 = vmatpush.bf16.msra.mxu0 %v4020
    %7306 = vmatpush.bf16.msra.mxu0 %v4012
    %7307 = vmatpush.bf16.msra.mxu0 %v4004
    %7308 = vmatpush.bf16.msra.mxu0 %v3996
    %7309 = vmatmul.bf16.gmra.mxu0 %v7146
    %v7310 = vpop.f32.mrf.mxu0
    %v7311 = vadd.f32 %v7297, %v7310
    %v7312 = vpop.f32.mrf.mxu0
    %v7313 = vadd.f32 %v7299, %v7312
    %7314 = vdwg.mxu0
    %7315 = vmatpush.bf16.msra.mxu0 %v3989
    %7316 = vmatpush.bf16.msra.mxu0 %v3981
    %7317 = vmatpush.bf16.msra.mxu0 %v3973
    %7318 = vmatpush.bf16.msra.mxu0 %v3965
    %7319 = vmatpush.bf16.msra.mxu0 %v3957
    %7320 = vmatpush.bf16.msra.mxu0 %v3949
    %7321 = vmatpush.bf16.msra.mxu0 %v3941
    %7322 = vmatpush.bf16.msra.mxu0 %v3933
    %7323 = vmatmul.bf16.gmra.mxu0 %v7145
    %v7324 = vpop.f32.mrf.mxu0
    %v7325 = vadd.f32 0.0, %v7324
    %v7326 = vpop.f32.mrf.mxu0
    %v7327 = vadd.f32 0.0, %v7326
    %7328 = vdwg.mxu0
    %7329 = vmatpush.bf16.msra.mxu0 %v4053
    %7330 = vmatpush.bf16.msra.mxu0 %v4045
    %7331 = vmatpush.bf16.msra.mxu0 %v4037
    %7332 = vmatpush.bf16.msra.mxu0 %v4029
    %7333 = vmatpush.bf16.msra.mxu0 %v4021
    %7334 = vmatpush.bf16.msra.mxu0 %v4013
    %7335 = vmatpush.bf16.msra.mxu0 %v4005
    %7336 = vmatpush.bf16.msra.mxu0 %v3997
    %7337 = vmatmul.bf16.gmra.mxu0 %v7146
    %v7338 = vpop.f32.mrf.mxu0
    %v7339 = vadd.f32 %v7325, %v7338
    %v7340 = vpop.f32.mrf.mxu0
    %v7341 = vadd.f32 %v7327, %v7340
    %7342 = vdwg.mxu0
    %7343 = vmatpush.bf16.msra.mxu0 %v3990
    %7344 = vmatpush.bf16.msra.mxu0 %v3982
    %7345 = vmatpush.bf16.msra.mxu0 %v3974
    %7346 = vmatpush.bf16.msra.mxu0 %v3966
    %7347 = vmatpush.bf16.msra.mxu0 %v3958
    %7348 = vmatpush.bf16.msra.mxu0 %v3950
    %7349 = vmatpush.bf16.msra.mxu0 %v3942
    %7350 = vmatpush.bf16.msra.mxu0 %v3934
    %7351 = vmatmul.bf16.gmra.mxu0 %v7145
    %v7352 = vpop.f32.mrf.mxu0
    %v7353 = vadd.f32 0.0, %v7352
    %v7354 = vpop.f32.mrf.mxu0
    %v7355 = vadd.f32 0.0, %v7354
    %7356 = vdwg.mxu0
    %7357 = vmatpush.bf16.msra.mxu0 %v4054
    %7358 = vmatpush.bf16.msra.mxu0 %v4046
    %7359 = vmatpush.bf16.msra.mxu0 %v4038
    %7360 = vmatpush.bf16.msra.mxu0 %v4030
    %7361 = vmatpush.bf16.msra.mxu0 %v4022
    %7362 = vmatpush.bf16.msra.mxu0 %v4014
    %7363 = vmatpush.bf16.msra.mxu0 %v4006
    %7364 = vmatpush.bf16.msra.mxu0 %v3998
    %7365 = vmatmul.bf16.gmra.mxu0 %v7146
    %v7366 = vpop.f32.mrf.mxu0
    %v7367 = vadd.f32 %v7353, %v7366
    %v7368 = vpop.f32.mrf.mxu0
    %v7369 = vadd.f32 %v7355, %v7368
    %7370 = vdwg.mxu0
    %v7371 = vadd.f32 %v2034, %v7171
    %v7372 = vadd.f32 %v2230, %v7199
    %v7373 = vadd.f32 %v2426, %v7227
    %v7374 = vadd.f32 %v2622, %v7255
    %v7375 = vadd.f32 %v2818, %v7283
    %v7376 = vadd.f32 %v3014, %v7311
    %v7377 = vadd.f32 %v3210, %v7339
    %v7378 = vadd.f32 %v3406, %v7367
    %v7379 = vadd.f32 %v2036, %v7173
    %v7380 = vadd.f32 %v2232, %v7201
    %v7381 = vadd.f32 %v2428, %v7229
    %v7382 = vadd.f32 %v2624, %v7257
    %v7383 = vadd.f32 %v2820, %v7285
    %v7384 = vadd.f32 %v3016, %v7313
    %v7385 = vadd.f32 %v3212, %v7341
    %v7386 = vadd.f32 %v3408, %v7369
    %v7387 = vxor.u32 %v7371, 2147483648
    %v7388 = vxor.u32 %v7372, 2147483648
    %v7389 = vxor.u32 %v7379, 2147483648
    %v7390 = vxor.u32 %v7380, 2147483648
    %v7391 = vmul.f32 %v7387, 1.442695
    %v7392 = vpow.pop %v7391
    %v7393 = vmul.f32 %v7388, 1.442695
    %v7394 = vpow.pop %v7393
    %v7395 = vmul.f32 %v7389, 1.442695
    %v7396 = vpow.pop %v7395
    %v7397 = vmul.f32 %v7390, 1.442695
    %v7398 = vpow.pop %v7397
    %v7399 = vadd.f32 %v7392, 1.0
    %v7400 = vadd.f32 %v7394, 1.0
    %v7401 = vadd.f32 %v7396, 1.0
    %v7402 = vadd.f32 %v7398, 1.0
    %v7403 = vrcp.pop %v7399
    %v7404 = vmul.f32 %v7399, %v7403
    %v7405 = vsub.f32 1.0, %v7404
    %v7406 = vmul.f32 %v7403, %v7405
    %v7407 = vadd.f32 %v7403, %v7406
    %vm7408 = vweird.f32 %v7399
    %vm7409 = vweird.f32 %v7403
    %vm7410 = vmor %vm7408, %vm7409
    %v7411 = vsel %vm7410, %v7403, %v7407
    %v7412 = vand.u32 2147483647, %v7399
    %vm7413 = vcmp.eq.f32.partialorder %v7412, 8.507059e+37
    %v7414 = vand.u32 %v7399, 2147483648
    %v7415 = vor.u32 1.1754944e-38, %v7414
    %v7416 = vsel %vm7413, %v7415, %v7411
    %v7417 = vmul.f32 1.0, %v7416
    %v7418 = vrcp.pop %v7400
    %v7419 = vmul.f32 %v7400, %v7418
    %v7420 = vsub.f32 1.0, %v7419
    %v7421 = vmul.f32 %v7418, %v7420
    %v7422 = vadd.f32 %v7418, %v7421
    %vm7423 = vweird.f32 %v7400
    %vm7424 = vweird.f32 %v7418
    %vm7425 = vmor %vm7423, %vm7424
    %v7426 = vsel %vm7425, %v7418, %v7422
    %v7427 = vand.u32 2147483647, %v7400
    %vm7428 = vcmp.eq.f32.partialorder %v7427, 8.507059e+37
    %v7429 = vand.u32 %v7400, 2147483648
    %v7430 = vor.u32 1.1754944e-38, %v7429
    %v7431 = vsel %vm7428, %v7430, %v7426
    %v7432 = vmul.f32 1.0, %v7431
    %v7433 = vrcp.pop %v7401
    %v7434 = vmul.f32 %v7401, %v7433
    %v7435 = vsub.f32 1.0, %v7434
    %v7436 = vmul.f32 %v7433, %v7435
    %v7437 = vadd.f32 %v7433, %v7436
    %vm7438 = vweird.f32 %v7401
    %vm7439 = vweird.f32 %v7433
    %vm7440 = vmor %vm7438, %vm7439
    %v7441 = vsel %vm7440, %v7433, %v7437
    %v7442 = vand.u32 2147483647, %v7401
    %vm7443 = vcmp.eq.f32.partialorder %v7442, 8.507059e+37
    %v7444 = vand.u32 %v7401, 2147483648
    %v7445 = vor.u32 1.1754944e-38, %v7444
    %v7446 = vsel %vm7443, %v7445, %v7441
    %v7447 = vmul.f32 1.0, %v7446
    %v7448 = vrcp.pop %v7402
    %v7449 = vmul.f32 %v7402, %v7448
    %v7450 = vsub.f32 1.0, %v7449
    %v7451 = vmul.f32 %v7448, %v7450
    %v7452 = vadd.f32 %v7448, %v7451
    %vm7453 = vweird.f32 %v7402
    %vm7454 = vweird.f32 %v7448
    %vm7455 = vmor %vm7453, %vm7454
    %v7456 = vsel %vm7455, %v7448, %v7452
    %v7457 = vand.u32 2147483647, %v7402
    %vm7458 = vcmp.eq.f32.partialorder %v7457, 8.507059e+37
    %v7459 = vand.u32 %v7402, 2147483648
    %v7460 = vor.u32 1.1754944e-38, %v7459
    %v7461 = vsel %vm7458, %v7460, %v7456
    %v7462 = vmul.f32 1.0, %v7461
    %v7463 = vxor.u32 %v7373, 2147483648
    %v7464 = vxor.u32 %v7374, 2147483648
    %v7465 = vxor.u32 %v7381, 2147483648
    %v7466 = vxor.u32 %v7382, 2147483648
    %v7467 = vmul.f32 %v7463, 1.442695
    %v7468 = vpow.pop %v7467
    %v7469 = vmul.f32 %v7464, 1.442695
    %v7470 = vpow.pop %v7469
    %v7471 = vmul.f32 %v7465, 1.442695
    %v7472 = vpow.pop %v7471
    %v7473 = vmul.f32 %v7466, 1.442695
    %v7474 = vpow.pop %v7473
    %v7475 = vadd.f32 %v7468, 1.0
    %v7476 = vadd.f32 %v7470, 1.0
    %v7477 = vadd.f32 %v7472, 1.0
    %v7478 = vadd.f32 %v7474, 1.0
    %v7479 = vrcp.pop %v7475
    %v7480 = vmul.f32 %v7475, %v7479
    %v7481 = vsub.f32 1.0, %v7480
    %v7482 = vmul.f32 %v7479, %v7481
    %v7483 = vadd.f32 %v7479, %v7482
    %vm7484 = vweird.f32 %v7475
    %vm7485 = vweird.f32 %v7479
    %vm7486 = vmor %vm7484, %vm7485
    %v7487 = vsel %vm7486, %v7479, %v7483
    %v7488 = vand.u32 2147483647, %v7475
    %vm7489 = vcmp.eq.f32.partialorder %v7488, 8.507059e+37
    %v7490 = vand.u32 %v7475, 2147483648
    %v7491 = vor.u32 1.1754944e-38, %v7490
    %v7492 = vsel %vm7489, %v7491, %v7487
    %v7493 = vmul.f32 1.0, %v7492
    %v7494 = vrcp.pop %v7476
    %v7495 = vmul.f32 %v7476, %v7494
    %v7496 = vsub.f32 1.0, %v7495
    %v7497 = vmul.f32 %v7494, %v7496
    %v7498 = vadd.f32 %v7494, %v7497
    %vm7499 = vweird.f32 %v7476
    %vm7500 = vweird.f32 %v7494
    %vm7501 = vmor %vm7499, %vm7500
    %v7502 = vsel %vm7501, %v7494, %v7498
    %v7503 = vand.u32 2147483647, %v7476
    %vm7504 = vcmp.eq.f32.partialorder %v7503, 8.507059e+37
    %v7505 = vand.u32 %v7476, 2147483648
    %v7506 = vor.u32 1.1754944e-38, %v7505
    %v7507 = vsel %vm7504, %v7506, %v7502
    %v7508 = vmul.f32 1.0, %v7507
    %v7509 = vrcp.pop %v7477
    %v7510 = vmul.f32 %v7477, %v7509
    %v7511 = vsub.f32 1.0, %v7510
    %v7512 = vmul.f32 %v7509, %v7511
    %v7513 = vadd.f32 %v7509, %v7512
    %vm7514 = vweird.f32 %v7477
    %vm7515 = vweird.f32 %v7509
    %vm7516 = vmor %vm7514, %vm7515
    %v7517 = vsel %vm7516, %v7509, %v7513
    %v7518 = vand.u32 2147483647, %v7477
    %vm7519 = vcmp.eq.f32.partialorder %v7518, 8.507059e+37
    %v7520 = vand.u32 %v7477, 2147483648
    %v7521 = vor.u32 1.1754944e-38, %v7520
    %v7522 = vsel %vm7519, %v7521, %v7517
    %v7523 = vmul.f32 1.0, %v7522
    %v7524 = vrcp.pop %v7478
    %v7525 = vmul.f32 %v7478, %v7524
    %v7526 = vsub.f32 1.0, %v7525
    %v7527 = vmul.f32 %v7524, %v7526
    %v7528 = vadd.f32 %v7524, %v7527
    %vm7529 = vweird.f32 %v7478
    %vm7530 = vweird.f32 %v7524
    %vm7531 = vmor %vm7529, %vm7530
    %v7532 = vsel %vm7531, %v7524, %v7528
    %v7533 = vand.u32 2147483647, %v7478
    %vm7534 = vcmp.eq.f32.partialorder %v7533, 8.507059e+37
    %v7535 = vand.u32 %v7478, 2147483648
    %v7536 = vor.u32 1.1754944e-38, %v7535
    %v7537 = vsel %vm7534, %v7536, %v7532
    %v7538 = vmul.f32 1.0, %v7537
    %v7539 = vtanh.pop %v7375
    %v7540 = vtanh.pop %v7376
    %v7541 = vtanh.pop %v7383
    %v7542 = vtanh.pop %v7384
    %v7543 = vxor.u32 %v7377, 2147483648
    %v7544 = vxor.u32 %v7378, 2147483648
    %v7545 = vxor.u32 %v7385, 2147483648
    %v7546 = vxor.u32 %v7386, 2147483648
    %v7547 = vmul.f32 %v7543, 1.442695
    %v7548 = vpow.pop %v7547
    %v7549 = vmul.f32 %v7544, 1.442695
    %v7550 = vpow.pop %v7549
    %v7551 = vmul.f32 %v7545, 1.442695
    %v7552 = vpow.pop %v7551
    %v7553 = vmul.f32 %v7546, 1.442695
    %v7554 = vpow.pop %v7553
    %v7555 = vadd.f32 %v7548, 1.0
    %v7556 = vadd.f32 %v7550, 1.0
    %v7557 = vadd.f32 %v7552, 1.0
    %v7558 = vadd.f32 %v7554, 1.0
    %v7559 = vrcp.pop %v7555
    %v7560 = vmul.f32 %v7555, %v7559
    %v7561 = vsub.f32 1.0, %v7560
    %v7562 = vmul.f32 %v7559, %v7561
    %v7563 = vadd.f32 %v7559, %v7562
    %vm7564 = vweird.f32 %v7555
    %vm7565 = vweird.f32 %v7559
    %vm7566 = vmor %vm7564, %vm7565
    %v7567 = vsel %vm7566, %v7559, %v7563
    %v7568 = vand.u32 2147483647, %v7555
    %vm7569 = vcmp.eq.f32.partialorder %v7568, 8.507059e+37
    %v7570 = vand.u32 %v7555, 2147483648
    %v7571 = vor.u32 1.1754944e-38, %v7570
    %v7572 = vsel %vm7569, %v7571, %v7567
    %v7573 = vmul.f32 1.0, %v7572
    %v7574 = vrcp.pop %v7556
    %v7575 = vmul.f32 %v7556, %v7574
    %v7576 = vsub.f32 1.0, %v7575
    %v7577 = vmul.f32 %v7574, %v7576
    %v7578 = vadd.f32 %v7574, %v7577
    %vm7579 = vweird.f32 %v7556
    %vm7580 = vweird.f32 %v7574
    %vm7581 = vmor %vm7579, %vm7580
    %v7582 = vsel %vm7581, %v7574, %v7578
    %v7583 = vand.u32 2147483647, %v7556
    %vm7584 = vcmp.eq.f32.partialorder %v7583, 8.507059e+37
    %v7585 = vand.u32 %v7556, 2147483648
    %v7586 = vor.u32 1.1754944e-38, %v7585
    %v7587 = vsel %vm7584, %v7586, %v7582
    %v7588 = vmul.f32 1.0, %v7587
    %v7589 = vrcp.pop %v7557
    %v7590 = vmul.f32 %v7557, %v7589
    %v7591 = vsub.f32 1.0, %v7590
    %v7592 = vmul.f32 %v7589, %v7591
    %v7593 = vadd.f32 %v7589, %v7592
    %vm7594 = vweird.f32 %v7557
    %vm7595 = vweird.f32 %v7589
    %vm7596 = vmor %vm7594, %vm7595
    %v7597 = vsel %vm7596, %v7589, %v7593
    %v7598 = vand.u32 2147483647, %v7557
    %vm7599 = vcmp.eq.f32.partialorder %v7598, 8.507059e+37
    %v7600 = vand.u32 %v7557, 2147483648
    %v7601 = vor.u32 1.1754944e-38, %v7600
    %v7602 = vsel %vm7599, %v7601, %v7597
    %v7603 = vmul.f32 1.0, %v7602
    %v7604 = vrcp.pop %v7558
    %v7605 = vmul.f32 %v7558, %v7604
    %v7606 = vsub.f32 1.0, %v7605
    %v7607 = vmul.f32 %v7604, %v7606
    %v7608 = vadd.f32 %v7604, %v7607
    %vm7609 = vweird.f32 %v7558
    %vm7610 = vweird.f32 %v7604
    %vm7611 = vmor %vm7609, %vm7610
    %v7612 = vsel %vm7611, %v7604, %v7608
    %v7613 = vand.u32 2147483647, %v7558
    %vm7614 = vcmp.eq.f32.partialorder %v7613, 8.507059e+37
    %v7615 = vand.u32 %v7558, 2147483648
    %v7616 = vor.u32 1.1754944e-38, %v7615
    %v7617 = vsel %vm7614, %v7616, %v7612
    %v7618 = vmul.f32 1.0, %v7617
    %v7619 = vmul.f32 %v7493, %v7133
    %v7620 = vmul.f32 %v7508, %v7134
    %v7621 = vmul.f32 %v7523, %v7135
    %v7622 = vmul.f32 %v7538, %v7136
    %v7623 = vmul.f32 %v7417, %v7539
    %v7624 = vmul.f32 %v7432, %v7540
    %v7625 = vmul.f32 %v7447, %v7541
    %v7626 = vmul.f32 %v7462, %v7542
    %v7627 = vadd.f32 %v7619, %v7623
    %v7628 = vadd.f32 %v7620, %v7624
    %v7629 = vadd.f32 %v7621, %v7625
    %v7630 = vadd.f32 %v7622, %v7626
    %v7631 = vtanh.pop %v7627
    %v7632 = vtanh.pop %v7628
    %v7633 = vtanh.pop %v7629
    %v7634 = vtanh.pop %v7630
    %v7635 = vmul.f32 %v7573, %v7631
    %v7636 = vmul.f32 %v7588, %v7632
    %v7637 = vmul.f32 %v7603, %v7633
    %v7638 = vmul.f32 %v7618, %v7634
    %v7639 = vpack.c.bf16 %v7637, %v7635
    %v7640 = vpack.c.bf16 %v7638, %v7636
    %7641 = vmatpush.bf16.msra.mxu0 %v3983
    %7642 = vmatpush.bf16.msra.mxu0 %v3975
    %7643 = vmatpush.bf16.msra.mxu0 %v3967
    %7644 = vmatpush.bf16.msra.mxu0 %v3959
    %7645 = vmatpush.bf16.msra.mxu0 %v3951
    %7646 = vmatpush.bf16.msra.mxu0 %v3943
    %7647 = vmatpush.bf16.msra.mxu0 %v3935
    %7648 = vmatpush.bf16.msra.mxu0 %v3927
    %7649 = vmatmul.bf16.gmra.mxu0 %v7639
    %v7650 = vpop.f32.mrf.mxu0
    %v7651 = vadd.f32 0.0, %v7650
    %v7652 = vpop.f32.mrf.mxu0
    %v7653 = vadd.f32 0.0, %v7652
    %7654 = vdwg.mxu0
    %7655 = vmatpush.bf16.msra.mxu0 %v4047
    %7656 = vmatpush.bf16.msra.mxu0 %v4039
    %7657 = vmatpush.bf16.msra.mxu0 %v4031
    %7658 = vmatpush.bf16.msra.mxu0 %v4023
    %7659 = vmatpush.bf16.msra.mxu0 %v4015
    %7660 = vmatpush.bf16.msra.mxu0 %v4007
    %7661 = vmatpush.bf16.msra.mxu0 %v3999
    %7662 = vmatpush.bf16.msra.mxu0 %v3991
    %7663 = vmatmul.bf16.gmra.mxu0 %v7640
    %v7664 = vpop.f32.mrf.mxu0
    %v7665 = vadd.f32 %v7651, %v7664
    %v7666 = vpop.f32.mrf.mxu0
    %v7667 = vadd.f32 %v7653, %v7666
    %7668 = vdwg.mxu0
    %7669 = vmatpush.bf16.msra.mxu0 %v3984
    %7670 = vmatpush.bf16.msra.mxu0 %v3976
    %7671 = vmatpush.bf16.msra.mxu0 %v3968
    %7672 = vmatpush.bf16.msra.mxu0 %v3960
    %7673 = vmatpush.bf16.msra.mxu0 %v3952
    %7674 = vmatpush.bf16.msra.mxu0 %v3944
    %7675 = vmatpush.bf16.msra.mxu0 %v3936
    %7676 = vmatpush.bf16.msra.mxu0 %v3928
    %7677 = vmatmul.bf16.gmra.mxu0 %v7639
    %v7678 = vpop.f32.mrf.mxu0
    %v7679 = vadd.f32 0.0, %v7678
    %v7680 = vpop.f32.mrf.mxu0
    %v7681 = vadd.f32 0.0, %v7680
    %7682 = vdwg.mxu0
    %7683 = vmatpush.bf16.msra.mxu0 %v4048
    %7684 = vmatpush.bf16.msra.mxu0 %v4040
    %7685 = vmatpush.bf16.msra.mxu0 %v4032
    %7686 = vmatpush.bf16.msra.mxu0 %v4024
    %7687 = vmatpush.bf16.msra.mxu0 %v4016
    %7688 = vmatpush.bf16.msra.mxu0 %v4008
    %7689 = vmatpush.bf16.msra.mxu0 %v4000
    %7690 = vmatpush.bf16.msra.mxu0 %v3992
    %7691 = vmatmul.bf16.gmra.mxu0 %v7640
    %v7692 = vpop.f32.mrf.mxu0
    %v7693 = vadd.f32 %v7679, %v7692
    %v7694 = vpop.f32.mrf.mxu0
    %v7695 = vadd.f32 %v7681, %v7694
    %7696 = vdwg.mxu0
    %7697 = vmatpush.bf16.msra.mxu0 %v3985
    %7698 = vmatpush.bf16.msra.mxu0 %v3977
    %7699 = vmatpush.bf16.msra.mxu0 %v3969
    %7700 = vmatpush.bf16.msra.mxu0 %v3961
    %7701 = vmatpush.bf16.msra.mxu0 %v3953
    %7702 = vmatpush.bf16.msra.mxu0 %v3945
    %7703 = vmatpush.bf16.msra.mxu0 %v3937
    %7704 = vmatpush.bf16.msra.mxu0 %v3929
    %7705 = vmatmul.bf16.gmra.mxu0 %v7639
    %v7706 = vpop.f32.mrf.mxu0
    %v7707 = vadd.f32 0.0, %v7706
    %v7708 = vpop.f32.mrf.mxu0
    %v7709 = vadd.f32 0.0, %v7708
    %7710 = vdwg.mxu0
    %7711 = vmatpush.bf16.msra.mxu0 %v4049
    %7712 = vmatpush.bf16.msra.mxu0 %v4041
    %7713 = vmatpush.bf16.msra.mxu0 %v4033
    %7714 = vmatpush.bf16.msra.mxu0 %v4025
    %7715 = vmatpush.bf16.msra.mxu0 %v4017
    %7716 = vmatpush.bf16.msra.mxu0 %v4009
    %7717 = vmatpush.bf16.msra.mxu0 %v4001
    %7718 = vmatpush.bf16.msra.mxu0 %v3993
    %7719 = vmatmul.bf16.gmra.mxu0 %v7640
    %v7720 = vpop.f32.mrf.mxu0
    %v7721 = vadd.f32 %v7707, %v7720
    %v7722 = vpop.f32.mrf.mxu0
    %v7723 = vadd.f32 %v7709, %v7722
    %7724 = vdwg.mxu0
    %7725 = vmatpush.bf16.msra.mxu0 %v3986
    %7726 = vmatpush.bf16.msra.mxu0 %v3978
    %7727 = vmatpush.bf16.msra.mxu0 %v3970
    %7728 = vmatpush.bf16.msra.mxu0 %v3962
    %7729 = vmatpush.bf16.msra.mxu0 %v3954
    %7730 = vmatpush.bf16.msra.mxu0 %v3946
    %7731 = vmatpush.bf16.msra.mxu0 %v3938
    %7732 = vmatpush.bf16.msra.mxu0 %v3930
    %7733 = vmatmul.bf16.gmra.mxu0 %v7639
    %v7734 = vpop.f32.mrf.mxu0
    %v7735 = vadd.f32 0.0, %v7734
    %v7736 = vpop.f32.mrf.mxu0
    %v7737 = vadd.f32 0.0, %v7736
    %7738 = vdwg.mxu0
    %7739 = vmatpush.bf16.msra.mxu0 %v4050
    %7740 = vmatpush.bf16.msra.mxu0 %v4042
    %7741 = vmatpush.bf16.msra.mxu0 %v4034
    %7742 = vmatpush.bf16.msra.mxu0 %v4026
    %7743 = vmatpush.bf16.msra.mxu0 %v4018
    %7744 = vmatpush.bf16.msra.mxu0 %v4010
    %7745 = vmatpush.bf16.msra.mxu0 %v4002
    %7746 = vmatpush.bf16.msra.mxu0 %v3994
    %7747 = vmatmul.bf16.gmra.mxu0 %v7640
    %v7748 = vpop.f32.mrf.mxu0
    %v7749 = vadd.f32 %v7735, %v7748
    %v7750 = vpop.f32.mrf.mxu0
    %v7751 = vadd.f32 %v7737, %v7750
    %7752 = vdwg.mxu0
    %7753 = vmatpush.bf16.msra.mxu0 %v3987
    %7754 = vmatpush.bf16.msra.mxu0 %v3979
    %7755 = vmatpush.bf16.msra.mxu0 %v3971
    %7756 = vmatpush.bf16.msra.mxu0 %v3963
    %7757 = vmatpush.bf16.msra.mxu0 %v3955
    %7758 = vmatpush.bf16.msra.mxu0 %v3947
    %7759 = vmatpush.bf16.msra.mxu0 %v3939
    %7760 = vmatpush.bf16.msra.mxu0 %v3931
    %7761 = vmatmul.bf16.gmra.mxu0 %v7639
    %v7762 = vpop.f32.mrf.mxu0
    %v7763 = vadd.f32 0.0, %v7762
    %v7764 = vpop.f32.mrf.mxu0
    %v7765 = vadd.f32 0.0, %v7764
    %7766 = vdwg.mxu0
    %7767 = vmatpush.bf16.msra.mxu0 %v4051
    %7768 = vmatpush.bf16.msra.mxu0 %v4043
    %7769 = vmatpush.bf16.msra.mxu0 %v4035
    %7770 = vmatpush.bf16.msra.mxu0 %v4027
    %7771 = vmatpush.bf16.msra.mxu0 %v4019
    %7772 = vmatpush.bf16.msra.mxu0 %v4011
    %7773 = vmatpush.bf16.msra.mxu0 %v4003
    %7774 = vmatpush.bf16.msra.mxu0 %v3995
    %7775 = vmatmul.bf16.gmra.mxu0 %v7640
    %v7776 = vpop.f32.mrf.mxu0
    %v7777 = vadd.f32 %v7763, %v7776
    %v7778 = vpop.f32.mrf.mxu0
    %v7779 = vadd.f32 %v7765, %v7778
    %7780 = vdwg.mxu0
    %7781 = vmatpush.bf16.msra.mxu0 %v3988
    %7782 = vmatpush.bf16.msra.mxu0 %v3980
    %7783 = vmatpush.bf16.msra.mxu0 %v3972
    %7784 = vmatpush.bf16.msra.mxu0 %v3964
    %7785 = vmatpush.bf16.msra.mxu0 %v3956
    %7786 = vmatpush.bf16.msra.mxu0 %v3948
    %7787 = vmatpush.bf16.msra.mxu0 %v3940
    %7788 = vmatpush.bf16.msra.mxu0 %v3932
    %7789 = vmatmul.bf16.gmra.mxu0 %v7639
    %v7790 = vpop.f32.mrf.mxu0
    %v7791 = vadd.f32 0.0, %v7790
    %v7792 = vpop.f32.mrf.mxu0
    %v7793 = vadd.f32 0.0, %v7792
    %7794 = vdwg.mxu0
    %7795 = vmatpush.bf16.msra.mxu0 %v4052
    %7796 = vmatpush.bf16.msra.mxu0 %v4044
    %7797 = vmatpush.bf16.msra.mxu0 %v4036
    %7798 = vmatpush.bf16.msra.mxu0 %v4028
    %7799 = vmatpush.bf16.msra.mxu0 %v4020
    %7800 = vmatpush.bf16.msra.mxu0 %v4012
    %7801 = vmatpush.bf16.msra.mxu0 %v4004
    %7802 = vmatpush.bf16.msra.mxu0 %v3996
    %7803 = vmatmul.bf16.gmra.mxu0 %v7640
    %v7804 = vpop.f32.mrf.mxu0
    %v7805 = vadd.f32 %v7791, %v7804
    %v7806 = vpop.f32.mrf.mxu0
    %v7807 = vadd.f32 %v7793, %v7806
    %7808 = vdwg.mxu0
    %7809 = vmatpush.bf16.msra.mxu0 %v3989
    %7810 = vmatpush.bf16.msra.mxu0 %v3981
    %7811 = vmatpush.bf16.msra.mxu0 %v3973
    %7812 = vmatpush.bf16.msra.mxu0 %v3965
    %7813 = vmatpush.bf16.msra.mxu0 %v3957
    %7814 = vmatpush.bf16.msra.mxu0 %v3949
    %7815 = vmatpush.bf16.msra.mxu0 %v3941
    %7816 = vmatpush.bf16.msra.mxu0 %v3933
    %7817 = vmatmul.bf16.gmra.mxu0 %v7639
    %v7818 = vpop.f32.mrf.mxu0
    %v7819 = vadd.f32 0.0, %v7818
    %v7820 = vpop.f32.mrf.mxu0
    %v7821 = vadd.f32 0.0, %v7820
    %7822 = vdwg.mxu0
    %7823 = vmatpush.bf16.msra.mxu0 %v4053
    %7824 = vmatpush.bf16.msra.mxu0 %v4045
    %7825 = vmatpush.bf16.msra.mxu0 %v4037
    %7826 = vmatpush.bf16.msra.mxu0 %v4029
    %7827 = vmatpush.bf16.msra.mxu0 %v4021
    %7828 = vmatpush.bf16.msra.mxu0 %v4013
    %7829 = vmatpush.bf16.msra.mxu0 %v4005
    %7830 = vmatpush.bf16.msra.mxu0 %v3997
    %7831 = vmatmul.bf16.gmra.mxu0 %v7640
    %v7832 = vpop.f32.mrf.mxu0
    %v7833 = vadd.f32 %v7819, %v7832
    %v7834 = vpop.f32.mrf.mxu0
    %v7835 = vadd.f32 %v7821, %v7834
    %7836 = vdwg.mxu0
    %7837 = vmatpush.bf16.msra.mxu0 %v3990
    %7838 = vmatpush.bf16.msra.mxu0 %v3982
    %7839 = vmatpush.bf16.msra.mxu0 %v3974
    %7840 = vmatpush.bf16.msra.mxu0 %v3966
    %7841 = vmatpush.bf16.msra.mxu0 %v3958
    %7842 = vmatpush.bf16.msra.mxu0 %v3950
    %7843 = vmatpush.bf16.msra.mxu0 %v3942
    %7844 = vmatpush.bf16.msra.mxu0 %v3934
    %7845 = vmatmul.bf16.gmra.mxu0 %v7639
    %v7846 = vpop.f32.mrf.mxu0
    %v7847 = vadd.f32 0.0, %v7846
    %v7848 = vpop.f32.mrf.mxu0
    %v7849 = vadd.f32 0.0, %v7848
    %7850 = vdwg.mxu0
    %7851 = vmatpush.bf16.msra.mxu0 %v4054
    %7852 = vmatpush.bf16.msra.mxu0 %v4046
    %7853 = vmatpush.bf16.msra.mxu0 %v4038
    %7854 = vmatpush.bf16.msra.mxu0 %v4030
    %7855 = vmatpush.bf16.msra.mxu0 %v4022
    %7856 = vmatpush.bf16.msra.mxu0 %v4014
    %7857 = vmatpush.bf16.msra.mxu0 %v4006
    %7858 = vmatpush.bf16.msra.mxu0 %v3998
    %7859 = vmatmul.bf16.gmra.mxu0 %v7640
    %v7860 = vpop.f32.mrf.mxu0
    %v7861 = vadd.f32 %v7847, %v7860
    %v7862 = vpop.f32.mrf.mxu0
    %v7863 = vadd.f32 %v7849, %v7862
    %7864 = vdwg.mxu0
    %v7865 = vadd.f32 %v2039, %v7665
    %v7866 = vadd.f32 %v2235, %v7693
    %v7867 = vadd.f32 %v2431, %v7721
    %v7868 = vadd.f32 %v2627, %v7749
    %v7869 = vadd.f32 %v2823, %v7777
    %v7870 = vadd.f32 %v3019, %v7805
    %v7871 = vadd.f32 %v3215, %v7833
    %v7872 = vadd.f32 %v3411, %v7861
    %v7873 = vadd.f32 %v2041, %v7667
    %v7874 = vadd.f32 %v2237, %v7695
    %v7875 = vadd.f32 %v2433, %v7723
    %v7876 = vadd.f32 %v2629, %v7751
    %v7877 = vadd.f32 %v2825, %v7779
    %v7878 = vadd.f32 %v3021, %v7807
    %v7879 = vadd.f32 %v3217, %v7835
    %v7880 = vadd.f32 %v3413, %v7863
    %v7881 = vxor.u32 %v7865, 2147483648
    %v7882 = vxor.u32 %v7866, 2147483648
    %v7883 = vxor.u32 %v7873, 2147483648
    %v7884 = vxor.u32 %v7874, 2147483648
    %v7885 = vmul.f32 %v7881, 1.442695
    %v7886 = vpow.pop %v7885
    %v7887 = vmul.f32 %v7882, 1.442695
    %v7888 = vpow.pop %v7887
    %v7889 = vmul.f32 %v7883, 1.442695
    %v7890 = vpow.pop %v7889
    %v7891 = vmul.f32 %v7884, 1.442695
    %v7892 = vpow.pop %v7891
    %v7893 = vadd.f32 %v7886, 1.0
    %v7894 = vadd.f32 %v7888, 1.0
    %v7895 = vadd.f32 %v7890, 1.0
    %v7896 = vadd.f32 %v7892, 1.0
    %v7897 = vrcp.pop %v7893
    %v7898 = vmul.f32 %v7893, %v7897
    %v7899 = vsub.f32 1.0, %v7898
    %v7900 = vmul.f32 %v7897, %v7899
    %v7901 = vadd.f32 %v7897, %v7900
    %vm7902 = vweird.f32 %v7893
    %vm7903 = vweird.f32 %v7897
    %vm7904 = vmor %vm7902, %vm7903
    %v7905 = vsel %vm7904, %v7897, %v7901
    %v7906 = vand.u32 2147483647, %v7893
    %vm7907 = vcmp.eq.f32.partialorder %v7906, 8.507059e+37
    %v7908 = vand.u32 %v7893, 2147483648
    %v7909 = vor.u32 1.1754944e-38, %v7908
    %v7910 = vsel %vm7907, %v7909, %v7905
    %v7911 = vmul.f32 1.0, %v7910
    %v7912 = vrcp.pop %v7894
    %v7913 = vmul.f32 %v7894, %v7912
    %v7914 = vsub.f32 1.0, %v7913
    %v7915 = vmul.f32 %v7912, %v7914
    %v7916 = vadd.f32 %v7912, %v7915
    %vm7917 = vweird.f32 %v7894
    %vm7918 = vweird.f32 %v7912
    %vm7919 = vmor %vm7917, %vm7918
    %v7920 = vsel %vm7919, %v7912, %v7916
    %v7921 = vand.u32 2147483647, %v7894
    %vm7922 = vcmp.eq.f32.partialorder %v7921, 8.507059e+37
    %v7923 = vand.u32 %v7894, 2147483648
    %v7924 = vor.u32 1.1754944e-38, %v7923
    %v7925 = vsel %vm7922, %v7924, %v7920
    %v7926 = vmul.f32 1.0, %v7925
    %v7927 = vrcp.pop %v7895
    %v7928 = vmul.f32 %v7895, %v7927
    %v7929 = vsub.f32 1.0, %v7928
    %v7930 = vmul.f32 %v7927, %v7929
    %v7931 = vadd.f32 %v7927, %v7930
    %vm7932 = vweird.f32 %v7895
    %vm7933 = vweird.f32 %v7927
    %vm7934 = vmor %vm7932, %vm7933
    %v7935 = vsel %vm7934, %v7927, %v7931
    %v7936 = vand.u32 2147483647, %v7895
    %vm7937 = vcmp.eq.f32.partialorder %v7936, 8.507059e+37
    %v7938 = vand.u32 %v7895, 2147483648
    %v7939 = vor.u32 1.1754944e-38, %v7938
    %v7940 = vsel %vm7937, %v7939, %v7935
    %v7941 = vmul.f32 1.0, %v7940
    %v7942 = vrcp.pop %v7896
    %v7943 = vmul.f32 %v7896, %v7942
    %v7944 = vsub.f32 1.0, %v7943
    %v7945 = vmul.f32 %v7942, %v7944
    %v7946 = vadd.f32 %v7942, %v7945
    %vm7947 = vweird.f32 %v7896
    %vm7948 = vweird.f32 %v7942
    %vm7949 = vmor %vm7947, %vm7948
    %v7950 = vsel %vm7949, %v7942, %v7946
    %v7951 = vand.u32 2147483647, %v7896
    %vm7952 = vcmp.eq.f32.partialorder %v7951, 8.507059e+37
    %v7953 = vand.u32 %v7896, 2147483648
    %v7954 = vor.u32 1.1754944e-38, %v7953
    %v7955 = vsel %vm7952, %v7954, %v7950
    %v7956 = vmul.f32 1.0, %v7955
    %v7957 = vxor.u32 %v7867, 2147483648
    %v7958 = vxor.u32 %v7868, 2147483648
    %v7959 = vxor.u32 %v7875, 2147483648
    %v7960 = vxor.u32 %v7876, 2147483648
    %v7961 = vmul.f32 %v7957, 1.442695
    %v7962 = vpow.pop %v7961
    %v7963 = vmul.f32 %v7958, 1.442695
    %v7964 = vpow.pop %v7963
    %v7965 = vmul.f32 %v7959, 1.442695
    %v7966 = vpow.pop %v7965
    %v7967 = vmul.f32 %v7960, 1.442695
    %v7968 = vpow.pop %v7967
    %v7969 = vadd.f32 %v7962, 1.0
    %v7970 = vadd.f32 %v7964, 1.0
    %v7971 = vadd.f32 %v7966, 1.0
    %v7972 = vadd.f32 %v7968, 1.0
    %v7973 = vrcp.pop %v7969
    %v7974 = vmul.f32 %v7969, %v7973
    %v7975 = vsub.f32 1.0, %v7974
    %v7976 = vmul.f32 %v7973, %v7975
    %v7977 = vadd.f32 %v7973, %v7976
    %vm7978 = vweird.f32 %v7969
    %vm7979 = vweird.f32 %v7973
    %vm7980 = vmor %vm7978, %vm7979
    %v7981 = vsel %vm7980, %v7973, %v7977
    %v7982 = vand.u32 2147483647, %v7969
    %vm7983 = vcmp.eq.f32.partialorder %v7982, 8.507059e+37
    %v7984 = vand.u32 %v7969, 2147483648
    %v7985 = vor.u32 1.1754944e-38, %v7984
    %v7986 = vsel %vm7983, %v7985, %v7981
    %v7987 = vmul.f32 1.0, %v7986
    %v7988 = vrcp.pop %v7970
    %v7989 = vmul.f32 %v7970, %v7988
    %v7990 = vsub.f32 1.0, %v7989
    %v7991 = vmul.f32 %v7988, %v7990
    %v7992 = vadd.f32 %v7988, %v7991
    %vm7993 = vweird.f32 %v7970
    %vm7994 = vweird.f32 %v7988
    %vm7995 = vmor %vm7993, %vm7994
    %v7996 = vsel %vm7995, %v7988, %v7992
    %v7997 = vand.u32 2147483647, %v7970
    %vm7998 = vcmp.eq.f32.partialorder %v7997, 8.507059e+37
    %v7999 = vand.u32 %v7970, 2147483648
    %v8000 = vor.u32 1.1754944e-38, %v7999
    %v8001 = vsel %vm7998, %v8000, %v7996
    %v8002 = vmul.f32 1.0, %v8001
    %v8003 = vrcp.pop %v7971
    %v8004 = vmul.f32 %v7971, %v8003
    %v8005 = vsub.f32 1.0, %v8004
    %v8006 = vmul.f32 %v8003, %v8005
    %v8007 = vadd.f32 %v8003, %v8006
    %vm8008 = vweird.f32 %v7971
    %vm8009 = vweird.f32 %v8003
    %vm8010 = vmor %vm8008, %vm8009
    %v8011 = vsel %vm8010, %v8003, %v8007
    %v8012 = vand.u32 2147483647, %v7971
    %vm8013 = vcmp.eq.f32.partialorder %v8012, 8.507059e+37
    %v8014 = vand.u32 %v7971, 2147483648
    %v8015 = vor.u32 1.1754944e-38, %v8014
    %v8016 = vsel %vm8013, %v8015, %v8011
    %v8017 = vmul.f32 1.0, %v8016
    %v8018 = vrcp.pop %v7972
    %v8019 = vmul.f32 %v7972, %v8018
    %v8020 = vsub.f32 1.0, %v8019
    %v8021 = vmul.f32 %v8018, %v8020
    %v8022 = vadd.f32 %v8018, %v8021
    %vm8023 = vweird.f32 %v7972
    %vm8024 = vweird.f32 %v8018
    %vm8025 = vmor %vm8023, %vm8024
    %v8026 = vsel %vm8025, %v8018, %v8022
    %v8027 = vand.u32 2147483647, %v7972
    %vm8028 = vcmp.eq.f32.partialorder %v8027, 8.507059e+37
    %v8029 = vand.u32 %v7972, 2147483648
    %v8030 = vor.u32 1.1754944e-38, %v8029
    %v8031 = vsel %vm8028, %v8030, %v8026
    %v8032 = vmul.f32 1.0, %v8031
    %v8033 = vtanh.pop %v7869
    %v8034 = vtanh.pop %v7870
    %v8035 = vtanh.pop %v7877
    %v8036 = vtanh.pop %v7878
    %v8037 = vxor.u32 %v7871, 2147483648
    %v8038 = vxor.u32 %v7872, 2147483648
    %v8039 = vxor.u32 %v7879, 2147483648
    %v8040 = vxor.u32 %v7880, 2147483648
    %v8041 = vmul.f32 %v8037, 1.442695
    %v8042 = vpow.pop %v8041
    %v8043 = vmul.f32 %v8038, 1.442695
    %v8044 = vpow.pop %v8043
    %v8045 = vmul.f32 %v8039, 1.442695
    %v8046 = vpow.pop %v8045
    %v8047 = vmul.f32 %v8040, 1.442695
    %v8048 = vpow.pop %v8047
    %v8049 = vadd.f32 %v8042, 1.0
    %v8050 = vadd.f32 %v8044, 1.0
    %v8051 = vadd.f32 %v8046, 1.0
    %v8052 = vadd.f32 %v8048, 1.0
    %v8053 = vrcp.pop %v8049
    %v8054 = vmul.f32 %v8049, %v8053
    %v8055 = vsub.f32 1.0, %v8054
    %v8056 = vmul.f32 %v8053, %v8055
    %v8057 = vadd.f32 %v8053, %v8056
    %vm8058 = vweird.f32 %v8049
    %vm8059 = vweird.f32 %v8053
    %vm8060 = vmor %vm8058, %vm8059
    %v8061 = vsel %vm8060, %v8053, %v8057
    %v8062 = vand.u32 2147483647, %v8049
    %vm8063 = vcmp.eq.f32.partialorder %v8062, 8.507059e+37
    %v8064 = vand.u32 %v8049, 2147483648
    %v8065 = vor.u32 1.1754944e-38, %v8064
    %v8066 = vsel %vm8063, %v8065, %v8061
    %v8067 = vmul.f32 1.0, %v8066
    %v8068 = vrcp.pop %v8050
    %v8069 = vmul.f32 %v8050, %v8068
    %v8070 = vsub.f32 1.0, %v8069
    %v8071 = vmul.f32 %v8068, %v8070
    %v8072 = vadd.f32 %v8068, %v8071
    %vm8073 = vweird.f32 %v8050
    %vm8074 = vweird.f32 %v8068
    %vm8075 = vmor %vm8073, %vm8074
    %v8076 = vsel %vm8075, %v8068, %v8072
    %v8077 = vand.u32 2147483647, %v8050
    %vm8078 = vcmp.eq.f32.partialorder %v8077, 8.507059e+37
    %v8079 = vand.u32 %v8050, 2147483648
    %v8080 = vor.u32 1.1754944e-38, %v8079
    %v8081 = vsel %vm8078, %v8080, %v8076
    %v8082 = vmul.f32 1.0, %v8081
    %v8083 = vrcp.pop %v8051
    %v8084 = vmul.f32 %v8051, %v8083
    %v8085 = vsub.f32 1.0, %v8084
    %v8086 = vmul.f32 %v8083, %v8085
    %v8087 = vadd.f32 %v8083, %v8086
    %vm8088 = vweird.f32 %v8051
    %vm8089 = vweird.f32 %v8083
    %vm8090 = vmor %vm8088, %vm8089
    %v8091 = vsel %vm8090, %v8083, %v8087
    %v8092 = vand.u32 2147483647, %v8051
    %vm8093 = vcmp.eq.f32.partialorder %v8092, 8.507059e+37
    %v8094 = vand.u32 %v8051, 2147483648
    %v8095 = vor.u32 1.1754944e-38, %v8094
    %v8096 = vsel %vm8093, %v8095, %v8091
    %v8097 = vmul.f32 1.0, %v8096
    %v8098 = vrcp.pop %v8052
    %v8099 = vmul.f32 %v8052, %v8098
    %v8100 = vsub.f32 1.0, %v8099
    %v8101 = vmul.f32 %v8098, %v8100
    %v8102 = vadd.f32 %v8098, %v8101
    %vm8103 = vweird.f32 %v8052
    %vm8104 = vweird.f32 %v8098
    %vm8105 = vmor %vm8103, %vm8104
    %v8106 = vsel %vm8105, %v8098, %v8102
    %v8107 = vand.u32 2147483647, %v8052
    %vm8108 = vcmp.eq.f32.partialorder %v8107, 8.507059e+37
    %v8109 = vand.u32 %v8052, 2147483648
    %v8110 = vor.u32 1.1754944e-38, %v8109
    %v8111 = vsel %vm8108, %v8110, %v8106
    %v8112 = vmul.f32 1.0, %v8111
    %v8113 = vmul.f32 %v7987, %v7627
    %v8114 = vmul.f32 %v8002, %v7628
    %v8115 = vmul.f32 %v8017, %v7629
    %v8116 = vmul.f32 %v8032, %v7630
    %v8117 = vmul.f32 %v7911, %v8033
    %v8118 = vmul.f32 %v7926, %v8034
    %v8119 = vmul.f32 %v7941, %v8035
    %v8120 = vmul.f32 %v7956, %v8036
    %v8121 = vadd.f32 %v8113, %v8117
    %v8122 = vadd.f32 %v8114, %v8118
    %v8123 = vadd.f32 %v8115, %v8119
    %v8124 = vadd.f32 %v8116, %v8120
    %v8125 = vtanh.pop %v8121
    %v8126 = vtanh.pop %v8122
    %v8127 = vtanh.pop %v8123
    %v8128 = vtanh.pop %v8124
    %v8129 = vmul.f32 %v8067, %v8125
    %v8130 = vmul.f32 %v8082, %v8126
    %v8131 = vmul.f32 %v8097, %v8127
    %v8132 = vmul.f32 %v8112, %v8128
    %v8133 = vpack.c.bf16 %v8131, %v8129
    %v8134 = vpack.c.bf16 %v8132, %v8130
    %v8135 = vld [vmem:[#allocation10] sm:$0xf]
    %v8136 = vld [vmem:[#allocation10 + $0x4] sm:$0xf]
    %v8137 = vld [vmem:[#allocation10 + $0x8] sm:$0xf]
    %v8138 = vld [vmem:[#allocation10 + $0xc] sm:$0xf]
    %v8139 = vld [vmem:[#allocation10 + $0x10] sm:$0xf]
    %v8140 = vld [vmem:[#allocation10 + $0x14] sm:$0xf]
    %v8141 = vld [vmem:[#allocation10 + $0x18] sm:$0xf]
    %v8142 = vld [vmem:[#allocation10 + $0x1c] sm:$0xf]
    %v8143 = vld [vmem:[#allocation10 + $0x20] sm:$0xf]
    %v8144 = vld [vmem:[#allocation10 + $0x24] sm:$0xf]
    %v8145 = vld [vmem:[#allocation10 + $0x28] sm:$0xf]
    %v8146 = vld [vmem:[#allocation10 + $0x2c] sm:$0xf]
    %v8147 = vld [vmem:[#allocation10 + $0x30] sm:$0xf]
    %v8148 = vld [vmem:[#allocation10 + $0x34] sm:$0xf]
    %v8149 = vld [vmem:[#allocation10 + $0x38] sm:$0xf]
    %v8150 = vld [vmem:[#allocation10 + $0x3c] sm:$0xf]
    %v8151 = vld [vmem:[#allocation10 + $0x40] sm:$0xf]
    %v8152 = vld [vmem:[#allocation10 + $0x44] sm:$0xf]
    %v8153 = vld [vmem:[#allocation10 + $0x48] sm:$0xf]
    %v8154 = vld [vmem:[#allocation10 + $0x4c] sm:$0xf]
    %v8155 = vld [vmem:[#allocation10 + $0x50] sm:$0xf]
    %v8156 = vld [vmem:[#allocation10 + $0x54] sm:$0xf]
    %v8157 = vld [vmem:[#allocation10 + $0x58] sm:$0xf]
    %v8158 = vld [vmem:[#allocation10 + $0x5c] sm:$0xf]
    %v8159 = vld [vmem:[#allocation10 + $0x60] sm:$0xf]
    %v8160 = vld [vmem:[#allocation10 + $0x64] sm:$0xf]
    %v8161 = vld [vmem:[#allocation10 + $0x68] sm:$0xf]
    %v8162 = vld [vmem:[#allocation10 + $0x6c] sm:$0xf]
    %v8163 = vld [vmem:[#allocation10 + $0x70] sm:$0xf]
    %v8164 = vld [vmem:[#allocation10 + $0x74] sm:$0xf]
    %v8165 = vld [vmem:[#allocation10 + $0x78] sm:$0xf]
    %v8166 = vld [vmem:[#allocation10 + $0x7c] sm:$0xf]
    %v8167 = vld [vmem:[%s5] sm:$0x1]
    %v8169 = vperm.slane %v8167, 0
    %v8203 = vunpack.c.l.b16 %v8135
    %v8204 = vunpack.c.l.b16 %v8136
    %v8205 = vunpack.c.l.b16 %v8137
    %v8206 = vunpack.c.l.b16 %v8138
    %v8207 = vunpack.c.l.b16 %v8139
    %v8208 = vunpack.c.l.b16 %v8140
    %v8209 = vunpack.c.l.b16 %v8141
    %v8210 = vunpack.c.l.b16 %v8142
    %v8211 = vunpack.c.l.b16 %v8143
    %v8212 = vunpack.c.l.b16 %v8144
    %v8213 = vunpack.c.l.b16 %v8145
    %v8214 = vunpack.c.l.b16 %v8146
    %v8215 = vunpack.c.l.b16 %v8147
    %v8216 = vunpack.c.l.b16 %v8148
    %v8217 = vunpack.c.l.b16 %v8149
    %v8218 = vunpack.c.l.b16 %v8150
    %v8219 = vunpack.c.l.b16 %v8151
    %v8220 = vunpack.c.l.b16 %v8152
    %v8221 = vunpack.c.l.b16 %v8153
    %v8222 = vunpack.c.l.b16 %v8154
    %v8223 = vunpack.c.l.b16 %v8155
    %v8224 = vunpack.c.l.b16 %v8156
    %v8225 = vunpack.c.l.b16 %v8157
    %v8226 = vunpack.c.l.b16 %v8158
    %v8227 = vunpack.c.l.b16 %v8159
    %v8228 = vunpack.c.l.b16 %v8160
    %v8229 = vunpack.c.l.b16 %v8161
    %v8230 = vunpack.c.l.b16 %v8162
    %v8231 = vunpack.c.l.b16 %v8163
    %v8232 = vunpack.c.l.b16 %v8164
    %v8233 = vunpack.c.l.b16 %v8165
    %v8234 = vunpack.c.l.b16 %v8166
    %v8235 = vpack.c.b16 %v8204, %v8203
    %v8236 = vpack.c.b16 %v8206, %v8205
    %v8237 = vpack.c.b16 %v8208, %v8207
    %v8238 = vpack.c.b16 %v8210, %v8209
    %v8239 = vpack.c.b16 %v8212, %v8211
    %v8240 = vpack.c.b16 %v8214, %v8213
    %v8241 = vpack.c.b16 %v8216, %v8215
    %v8242 = vpack.c.b16 %v8218, %v8217
    %v8243 = vpack.c.b16 %v8220, %v8219
    %v8244 = vpack.c.b16 %v8222, %v8221
    %v8245 = vpack.c.b16 %v8224, %v8223
    %v8246 = vpack.c.b16 %v8226, %v8225
    %v8247 = vpack.c.b16 %v8228, %v8227
    %v8248 = vpack.c.b16 %v8230, %v8229
    %v8249 = vpack.c.b16 %v8232, %v8231
    %v8250 = vpack.c.b16 %v8234, %v8233
    %8267 = vmatpush.bf16.msra.mxu0 %v8242
    %8268 = vmatpush.bf16.msra.mxu0 %v8241
    %8269 = vmatpush.bf16.msra.mxu0 %v8240
    %8270 = vmatpush.bf16.msra.mxu0 %v8239
    %8271 = vmatpush.bf16.msra.mxu0 %v8238
    %8272 = vmatpush.bf16.msra.mxu0 %v8237
    %8273 = vmatpush.bf16.msra.mxu0 %v8236
    %8274 = vmatpush.bf16.msra.mxu0 %v8235
    %8275 = vmatmul.bf16.gmra.mxu0 %v8133
    %v8276 = vpop.f32.mrf.mxu0
    %v8277 = vadd.f32 %v8169, %v8276
    %v8278 = vpop.f32.mrf.mxu0
    %v8279 = vadd.f32 %v8169, %v8278
    %8280 = vdwg.mxu0
    %8281 = vmatpush.bf16.msra.mxu0 %v8250
    %8282 = vmatpush.bf16.msra.mxu0 %v8249
    %8283 = vmatpush.bf16.msra.mxu0 %v8248
    %8284 = vmatpush.bf16.msra.mxu0 %v8247
    %8285 = vmatpush.bf16.msra.mxu0 %v8246
    %8286 = vmatpush.bf16.msra.mxu0 %v8245
    %8287 = vmatpush.bf16.msra.mxu0 %v8244
    %8288 = vmatpush.bf16.msra.mxu0 %v8243
    %8289 = vmatmul.bf16.gmra.mxu0 %v8134
    %v8290 = vpop.f32.mrf.mxu0
    %v8291 = vadd.f32 %v8277, %v8290
    %v8292 = vpop.f32.mrf.mxu0
    %v8293 = vadd.f32 %v8279, %v8292
    %8294 = vdwg.mxu0
    %8295 = vst [vmem:[#allocation11] sm:$0xff] %v8291
    %8296 = vst [vmem:[#allocation11 + $0x8] sm:$0xff] %v8293
    // Predicated region
    $region46: #{tpu_custom_call.1} parent=1 // pred_check
      _
    $region47: #{tpu_custom_call.1} parent=1 // pred_check_branch
      %8298 = sbr.rel (0) target = $region49
    $region48: #{tpu_custom_call.1} parent=1 // pred_region
      %8300 = vsyncadd [#allocation4], 0
      %s8301 = sshll.u32 [#allocation11], 4
      %s8302 = int_to_ptr.vmem [resolvable:$true] %s8301
      %s8303 = sshll.u32 %s6, 4
      %s8304 = int_to_ptr.hbm [resolvable:$true] %s8303
      %8309 = dma.vmem_to_hbm [thread:$0]  %s8302, 256, %s8304, [#allocation4], 128, 128, 8
    $region49: #{tpu_custom_call.1} parent=1 // pred_fallthru
      _
    // Predicated region
    $region50: #{tpu_custom_call.1} parent=1 // pred_check
      _
    $region51: #{tpu_custom_call.1} parent=1 // pred_check_branch
      %8311 = sbr.rel (0) target = $region53
    $region52: #{tpu_custom_call.1} parent=1 // pred_region
      %8313 = dma.done [#allocation4], 256
    $region53: #{tpu_custom_call.1} parent=1 // pred_fallthru
      _
    %8314 = vsyncpa [#allocation3], 1
    %8315 = vsyncpa [#allocation6], 1
    %8316 = vsyncpa [#allocation9], 1
    %8317 = vsyncpa [#allocation4], 1

</llo_original>
